<compile_context>
chip_gen: v6e
topology: v6e:2x2x1
jax: 0.10.0
libtpu: 0.0.40
codegen_flags: <defaults>
</compile_context>

<pallas_src>
import jax
import jax.numpy as jnp
from jax.experimental import pallas as pl
from jax.experimental.pallas import tpu as pltpu

EPS = 1e-5


def _sum2d(v):
    # (h, w) -> (1, 1): lane reduction then sublane reduction (single-axis reduces only).
    return jnp.sum(jnp.sum(v, axis=1, keepdims=True), axis=0, keepdims=True)


def _make_fused_kernel(n, cin, cout, h, w, d):
    hp, wp = h + 2 * d, w + 2 * d

    def kernel(w_ref, b_ref, g_ref, bt_ref, x_ref, o_ref, xpad_ref, y_ref):
        # w_ref   : (cout*cin*9,) f32 SMEM   flattened OIHW conv weights
        # b_ref   : (cout,)       f32 SMEM   conv bias
        # g_ref   : (cout,)       f32 SMEM   BN gamma
        # bt_ref  : (cout,)       f32 SMEM   BN beta
        # x_ref   : (n, cin, h, w)    f32 VMEM  unpadded input (full block)
        # o_ref   : (n, cout, h, w)       VMEM  final output (full block)
        # xpad_ref: (n, cin, hp, wp)  f32 VMEM  scratch: zero-padded input
        # y_ref   : (n, cout, h, w)   f32 VMEM  scratch: resident bias-free conv output

        # ---- Stage 0: build zero-padded input in VMEM (no HBM pad copy) ----
        xpad_ref[...] = jnp.zeros((n, cin, hp, wp), jnp.float32)
        for ni in range(n):
            for ci in range(cin):
                xpad_ref[ni, ci, d:d + h, d:d + w] = x_ref[ni, ci]

        # Hoist all conv-weight scalar reads (shared across the batch loop).
        wv = [[[[w_ref[((co * cin + ci) * 3 + kh) * 3 + kw]
                 for kw in range(3)] for kh in range(3)]
               for ci in range(cin)] for co in range(cout)]

        # ---- Stage 1: 3x3 dilated conv (bias-free) + per-channel sums ----
        s1 = [jnp.zeros((1, 1), jnp.float32) for _ in range(cout)]
        for ni in range(n):
            accs = [jnp.zeros((h, w), jnp.float32) for _ in range(cout)]
            for ci in range(cin):
                for kw in range(3):
                    # One lane-shifted slab per (ci, kw), reused across kh and co.
                    slab = xpad_ref[ni, ci, :, kw * d:kw * d + w]        # (hp, w)
                    for kh in range(3):
                        patch = slab[kh * d:kh * d + h, :]               # (h, w)
                        for co in range(cout):
                            accs[co] = accs[co] + patch * wv[co][ci][kh][kw]
            for co in range(cout):
                y_ref[ni, co] = accs[co]
                s1[co] = s1[co] + _sum2d(accs[co])

        inv_m = 1.0 / float(n * h * w)
        means = [s1[co] * inv_m for co in range(cout)]                   # (1, 1) each

        # ---- Stage 2: centered variance (second pass over VMEM-resident y) ----
        s2 = [jnp.zeros((1, 1), jnp.float32) for _ in range(cout)]
        for ni in range(n):
            for co in range(cout):
                c = y_ref[ni, co] - means[co]
                s2[co] = s2[co] + _sum2d(c * c)

        # ---- Stage 3: fused BN + residual + bias + ReLU, applied from VMEM y ----
        # y_full = acc + bias;  out = relu(y_full + BN(y_full))
        #        = relu(acc * (1 + g*inv_std) + (bias + beta - mean*g*inv_std))
        for co in range(cout):
            var = s2[co] * inv_m
            inv_std = jax.lax.rsqrt(var + EPS)                           # (1, 1)
            g = g_ref[co]
            scale = 1.0 + g * inv_std
            shift = (b_ref[co] + bt_ref[co]) - means[co] * (g * inv_std)
            for ni in range(n):
                v = y_ref[ni, co] * scale + shift
                o_ref[ni, co] = jnp.maximum(v, 0.0).astype(o_ref.dtype)

    return kernel


def conv_block_forward(x, weight, bias, gamma, beta, dilation):
    """x: (N, Cin, H, W); weight: (Cout, Cin, 3, 3); bias/gamma/beta: (Cout,)."""
    n, cin, h, w = x.shape
    cout = weight.shape[0]
    d = int(dilation)
    hp, wp = h + 2 * d, w + 2 * d

    xf = x.astype(jnp.float32)
    w_flat = weight.astype(jnp.float32).reshape(-1)
    b_vec = bias.astype(jnp.float32)
    g_vec = gamma.astype(jnp.float32)
    bt_vec = beta.astype(jnp.float32)

    cost = pl.CostEstimate(
        flops=2 * n * cout * cin * 9 * h * w + 8 * n * cout * h * w,
        transcendentals=cout,
        bytes_accessed=4 * (n * cin * h * w + n * cout * h * w
                            + cout * (cin * 9 + 3)),
    )

    # Explicit VMEM limit: blocks here are tiny (<1 MiB); 32 MiB is valid on
    # v5e/v6e/v7x. Re-derive when enlarging blocks (v7x physical VMEM = 64 MiB).
    vmem_limit = 32 * 1024 * 1024

    out = pl.pallas_call(
        _make_fused_kernel(n, cin, cout, h, w, d),
        out_shape=jax.ShapeDtypeStruct((n, cout, h, w), x.dtype),
        in_specs=[
            pl.BlockSpec(memory_space=pltpu.MemorySpace.SMEM),   # conv weights
            pl.BlockSpec(memory_space=pltpu.MemorySpace.SMEM),   # conv bias
            pl.BlockSpec(memory_space=pltpu.MemorySpace.SMEM),   # BN gamma
            pl.BlockSpec(memory_space=pltpu.MemorySpace.SMEM),   # BN beta
            pl.BlockSpec(memory_space=pltpu.MemorySpace.VMEM),   # x (full block)
        ],
        out_specs=pl.BlockSpec(memory_space=pltpu.MemorySpace.VMEM),
        scratch_shapes=[
            pltpu.VMEM((n, cin, hp, wp), jnp.float32),           # padded input
            pltpu.VMEM((n, cout, h, w), jnp.float32),            # resident conv output
        ],
        compiler_params=pltpu.CompilerParams(vmem_limit_bytes=vmem_limit),
        cost_estimate=cost,
    )(w_flat, b_vec, g_vec, bt_vec, xf)

    return out


def _reference(x, weight, bias, gamma, beta, d):
    # Pure-JAX reference for correctness check.
    y = jax.lax.conv_general_dilated(
        x.astype(jnp.float32), weight.astype(jnp.float32),
        window_strides=(1, 1), padding=((d, d), (d, d)),
        rhs_dilation=(d, d),
        dimension_numbers=("NCHW", "OIHW", "NCHW"))
    y = y + bias.reshape(1, -1, 1, 1)
    mean = jnp.mean(y, axis=(0, 2, 3), keepdims=True)
    var = jnp.mean((y - mean) ** 2, axis=(0, 2, 3), keepdims=True)
    bn = ((y - mean) * jax.lax.rsqrt(var + EPS)
          * gamma.reshape(1, -1, 1, 1) + beta.reshape(1, -1, 1, 1))
    return jnp.maximum(y + bn, 0.0).astype(x.dtype)


if __name__ == "__main__":
    key = jax.random.PRNGKey(0)
    N, Cin, Cout, H, W = 2, 4, 4, 16, 16
    DIL = 2  # dialation_rate

    k1, k2, k3 = jax.random.split(key, 3)
    x = jax.random.normal(k1, (N, Cin, H, W), dtype=jnp.float32)
    weight = 0.1 * jax.random.normal(k2, (Cout, Cin, 3, 3), dtype=jnp.float32)
    bias = 0.1 * jax.random.normal(k3, (Cout,), dtype=jnp.float32)
    # PyTorch BatchNorm2d default affine init: weight (gamma)=1, bias (beta)=0.
    gamma = jnp.ones((Cout,), jnp.float32)
    beta = jnp.zeros((Cout,), jnp.float32)

    out = conv_block_forward(x, weight, bias, gamma, beta, DIL)
    out = jax.block_until_ready(out)

    ref = _reference(x, weight, bias, gamma, beta, DIL)
    assert out.shape == (N, Cout, H, W)
    assert jnp.allclose(out, ref, atol=1e-4, rtol=1e-4), \
        float(jnp.max(jnp.abs(out - ref)))

    print("KERNEL_OK")
</pallas_src>

<mosaic_0001>
module attributes {stable_mosaic.version = 11 : i64} {
  func.func @kernel(%arg0: memref<144xf32, #tpu.memory_space<smem>>, %arg1: memref<4xf32, #tpu.memory_space<smem>>, %arg2: memref<4xf32, #tpu.memory_space<smem>>, %arg3: memref<4xf32, #tpu.memory_space<smem>>, %arg4: memref<2x4x16x16xf32, #tpu.memory_space<vmem>>, %arg5: memref<2x4x16x16xf32, #tpu.memory_space<vmem>>, %arg6: memref<2x4x20x20xf32, #tpu.memory_space<vmem>>, %arg7: memref<2x4x16x16xf32, #tpu.memory_space<vmem>>) attributes {dimension_semantics = [], scalar_prefetch = 0 : i64, scratch_operands = 2 : i64, tpu.core_type = #tpu.core_type<tc>} {
    %cst = arith.constant 0.000000e+00 : f32
    %0 = vector.broadcast %cst : f32 to vector<2x4x20x20xf32>
    %c0 = arith.constant 0 : index
    %c0_0 = arith.constant 0 : index
    %c0_1 = arith.constant 0 : index
    %c0_2 = arith.constant 0 : index
    %1 = vector.load %arg6[%c0, %c0_0, %c0_1, %c0_2] : memref<2x4x20x20xf32, #tpu.memory_space<vmem>>, vector<2x4x20x20xf32>
    tpu.vector_store %arg6[%c0, %c0_0, %c0_1, %c0_2], %0 {strides = array<i32>} : memref<2x4x20x20xf32, #tpu.memory_space<vmem>>, vector<2x4x20x20xf32>,
    %c0_3 = arith.constant 0 : index
    %c0_4 = arith.constant 0 : index
    %c0_5 = arith.constant 0 : index
    %c0_6 = arith.constant 0 : index
    %2 = vector.load %arg4[%c0_3, %c0_4, %c0_5, %c0_6] : memref<2x4x16x16xf32, #tpu.memory_space<vmem>>, vector<1x1x16x16xf32>
    %3 = vector.shape_cast %2 : vector<1x1x16x16xf32> to vector<16x16xf32>
    %c0_7 = arith.constant 0 : index
    %c0_8 = arith.constant 0 : index
    %c2 = arith.constant 2 : index
    %c2_9 = arith.constant 2 : index
    %4 = vector.load %arg6[%c0_7, %c0_8, %c2, %c2_9] : memref<2x4x20x20xf32, #tpu.memory_space<vmem>>, vector<1x1x16x16xf32>
    %5 = vector.shape_cast %4 : vector<1x1x16x16xf32> to vector<16x16xf32>
    %6 = vector.shape_cast %3 : vector<16x16xf32> to vector<1x1x16x16xf32>
    tpu.vector_store %arg6[%c0_7, %c0_8, %c2, %c2_9], %6 {strides = array<i32>} : memref<2x4x20x20xf32, #tpu.memory_space<vmem>>, vector<1x1x16x16xf32>,
    %c0_10 = arith.constant 0 : index
    %c1 = arith.constant 1 : index
    %c0_11 = arith.constant 0 : index
    %c0_12 = arith.constant 0 : index
    %7 = vector.load %arg4[%c0_10, %c1, %c0_11, %c0_12] : memref<2x4x16x16xf32, #tpu.memory_space<vmem>>, vector<1x1x16x16xf32>
    %8 = vector.shape_cast %7 : vector<1x1x16x16xf32> to vector<16x16xf32>
    %c0_13 = arith.constant 0 : index
    %c1_14 = arith.constant 1 : index
    %c2_15 = arith.constant 2 : index
    %c2_16 = arith.constant 2 : index
    %9 = vector.load %arg6[%c0_13, %c1_14, %c2_15, %c2_16] : memref<2x4x20x20xf32, #tpu.memory_space<vmem>>, vector<1x1x16x16xf32>
    %10 = vector.shape_cast %9 : vector<1x1x16x16xf32> to vector<16x16xf32>
    %11 = vector.shape_cast %8 : vector<16x16xf32> to vector<1x1x16x16xf32>
    tpu.vector_store %arg6[%c0_13, %c1_14, %c2_15, %c2_16], %11 {strides = array<i32>} : memref<2x4x20x20xf32, #tpu.memory_space<vmem>>, vector<1x1x16x16xf32>,
    %c0_17 = arith.constant 0 : index
    %c2_18 = arith.constant 2 : index
    %c0_19 = arith.constant 0 : index
    %c0_20 = arith.constant 0 : index
    %12 = vector.load %arg4[%c0_17, %c2_18, %c0_19, %c0_20] : memref<2x4x16x16xf32, #tpu.memory_space<vmem>>, vector<1x1x16x16xf32>
    %13 = vector.shape_cast %12 : vector<1x1x16x16xf32> to vector<16x16xf32>
    %c0_21 = arith.constant 0 : index
    %c2_22 = arith.constant 2 : index
    %c2_23 = arith.constant 2 : index
    %c2_24 = arith.constant 2 : index
    %14 = vector.load %arg6[%c0_21, %c2_22, %c2_23, %c2_24] : memref<2x4x20x20xf32, #tpu.memory_space<vmem>>, vector<1x1x16x16xf32>
    %15 = vector.shape_cast %14 : vector<1x1x16x16xf32> to vector<16x16xf32>
    %16 = vector.shape_cast %13 : vector<16x16xf32> to vector<1x1x16x16xf32>
    tpu.vector_store %arg6[%c0_21, %c2_22, %c2_23, %c2_24], %16 {strides = array<i32>} : memref<2x4x20x20xf32, #tpu.memory_space<vmem>>, vector<1x1x16x16xf32>,
    %c0_25 = arith.constant 0 : index
    %c3 = arith.constant 3 : index
    %c0_26 = arith.constant 0 : index
    %c0_27 = arith.constant 0 : index
    %17 = vector.load %arg4[%c0_25, %c3, %c0_26, %c0_27] : memref<2x4x16x16xf32, #tpu.memory_space<vmem>>, vector<1x1x16x16xf32>
    %18 = vector.shape_cast %17 : vector<1x1x16x16xf32> to vector<16x16xf32>
    %c0_28 = arith.constant 0 : index
    %c3_29 = arith.constant 3 : index
    %c2_30 = arith.constant 2 : index
    %c2_31 = arith.constant 2 : index
    %19 = vector.load %arg6[%c0_28, %c3_29, %c2_30, %c2_31] : memref<2x4x20x20xf32, #tpu.memory_space<vmem>>, vector<1x1x16x16xf32>
    %20 = vector.shape_cast %19 : vector<1x1x16x16xf32> to vector<16x16xf32>
    %21 = vector.shape_cast %18 : vector<16x16xf32> to vector<1x1x16x16xf32>
    tpu.vector_store %arg6[%c0_28, %c3_29, %c2_30, %c2_31], %21 {strides = array<i32>} : memref<2x4x20x20xf32, #tpu.memory_space<vmem>>, vector<1x1x16x16xf32>,
    %c1_32 = arith.constant 1 : index
    %c0_33 = arith.constant 0 : index
    %c0_34 = arith.constant 0 : index
    %c0_35 = arith.constant 0 : index
    %22 = vector.load %arg4[%c1_32, %c0_33, %c0_34, %c0_35] : memref<2x4x16x16xf32, #tpu.memory_space<vmem>>, vector<1x1x16x16xf32>
    %23 = vector.shape_cast %22 : vector<1x1x16x16xf32> to vector<16x16xf32>
    %c1_36 = arith.constant 1 : index
    %c0_37 = arith.constant 0 : index
    %c2_38 = arith.constant 2 : index
    %c2_39 = arith.constant 2 : index
    %24 = vector.load %arg6[%c1_36, %c0_37, %c2_38, %c2_39] : memref<2x4x20x20xf32, #tpu.memory_space<vmem>>, vector<1x1x16x16xf32>
    %25 = vector.shape_cast %24 : vector<1x1x16x16xf32> to vector<16x16xf32>
    %26 = vector.shape_cast %23 : vector<16x16xf32> to vector<1x1x16x16xf32>
    tpu.vector_store %arg6[%c1_36, %c0_37, %c2_38, %c2_39], %26 {strides = array<i32>} : memref<2x4x20x20xf32, #tpu.memory_space<vmem>>, vector<1x1x16x16xf32>,
    %c1_40 = arith.constant 1 : index
    %c1_41 = arith.constant 1 : index
    %c0_42 = arith.constant 0 : index
    %c0_43 = arith.constant 0 : index
    %27 = vector.load %arg4[%c1_40, %c1_41, %c0_42, %c0_43] : memref<2x4x16x16xf32, #tpu.memory_space<vmem>>, vector<1x1x16x16xf32>
    %28 = vector.shape_cast %27 : vector<1x1x16x16xf32> to vector<16x16xf32>
    %c1_44 = arith.constant 1 : index
    %c1_45 = arith.constant 1 : index
    %c2_46 = arith.constant 2 : index
    %c2_47 = arith.constant 2 : index
    %29 = vector.load %arg6[%c1_44, %c1_45, %c2_46, %c2_47] : memref<2x4x20x20xf32, #tpu.memory_space<vmem>>, vector<1x1x16x16xf32>
    %30 = vector.shape_cast %29 : vector<1x1x16x16xf32> to vector<16x16xf32>
    %31 = vector.shape_cast %28 : vector<16x16xf32> to vector<1x1x16x16xf32>
    tpu.vector_store %arg6[%c1_44, %c1_45, %c2_46, %c2_47], %31 {strides = array<i32>} : memref<2x4x20x20xf32, #tpu.memory_space<vmem>>, vector<1x1x16x16xf32>,
    %c1_48 = arith.constant 1 : index
    %c2_49 = arith.constant 2 : index
    %c0_50 = arith.constant 0 : index
    %c0_51 = arith.constant 0 : index
    %32 = vector.load %arg4[%c1_48, %c2_49, %c0_50, %c0_51] : memref<2x4x16x16xf32, #tpu.memory_space<vmem>>, vector<1x1x16x16xf32>
    %33 = vector.shape_cast %32 : vector<1x1x16x16xf32> to vector<16x16xf32>
    %c1_52 = arith.constant 1 : index
    %c2_53 = arith.constant 2 : index
    %c2_54 = arith.constant 2 : index
    %c2_55 = arith.constant 2 : index
    %34 = vector.load %arg6[%c1_52, %c2_53, %c2_54, %c2_55] : memref<2x4x20x20xf32, #tpu.memory_space<vmem>>, vector<1x1x16x16xf32>
    %35 = vector.shape_cast %34 : vector<1x1x16x16xf32> to vector<16x16xf32>
    %36 = vector.shape_cast %33 : vector<16x16xf32> to vector<1x1x16x16xf32>
    tpu.vector_store %arg6[%c1_52, %c2_53, %c2_54, %c2_55], %36 {strides = array<i32>} : memref<2x4x20x20xf32, #tpu.memory_space<vmem>>, vector<1x1x16x16xf32>,
    %c1_56 = arith.constant 1 : index
    %c3_57 = arith.constant 3 : index
    %c0_58 = arith.constant 0 : index
    %c0_59 = arith.constant 0 : index
    %37 = vector.load %arg4[%c1_56, %c3_57, %c0_58, %c0_59] : memref<2x4x16x16xf32, #tpu.memory_space<vmem>>, vector<1x1x16x16xf32>
    %38 = vector.shape_cast %37 : vector<1x1x16x16xf32> to vector<16x16xf32>
    %c1_60 = arith.constant 1 : index
    %c3_61 = arith.constant 3 : index
    %c2_62 = arith.constant 2 : index
    %c2_63 = arith.constant 2 : index
    %39 = vector.load %arg6[%c1_60, %c3_61, %c2_62, %c2_63] : memref<2x4x20x20xf32, #tpu.memory_space<vmem>>, vector<1x1x16x16xf32>
    %40 = vector.shape_cast %39 : vector<1x1x16x16xf32> to vector<16x16xf32>
    %41 = vector.shape_cast %38 : vector<16x16xf32> to vector<1x1x16x16xf32>
    tpu.vector_store %arg6[%c1_60, %c3_61, %c2_62, %c2_63], %41 {strides = array<i32>} : memref<2x4x20x20xf32, #tpu.memory_space<vmem>>, vector<1x1x16x16xf32>,
    %c0_64 = arith.constant 0 : index
    %42 = memref.load %arg0[%c0_64] : memref<144xf32, #tpu.memory_space<smem>>
    %c1_65 = arith.constant 1 : index
    %43 = memref.load %arg0[%c1_65] : memref<144xf32, #tpu.memory_space<smem>>
    %c2_66 = arith.constant 2 : index
    %44 = memref.load %arg0[%c2_66] : memref<144xf32, #tpu.memory_space<smem>>
    %c3_67 = arith.constant 3 : index
    %45 = memref.load %arg0[%c3_67] : memref<144xf32, #tpu.memory_space<smem>>
    %c4 = arith.constant 4 : index
    %46 = memref.load %arg0[%c4] : memref<144xf32, #tpu.memory_space<smem>>
    %c5 = arith.constant 5 : index
    %47 = memref.load %arg0[%c5] : memref<144xf32, #tpu.memory_space<smem>>
    %c6 = arith.constant 6 : index
    %48 = memref.load %arg0[%c6] : memref<144xf32, #tpu.memory_space<smem>>
    %c7 = arith.constant 7 : index
    %49 = memref.load %arg0[%c7] : memref<144xf32, #tpu.memory_space<smem>>
    %c8 = arith.constant 8 : index
    %50 = memref.load %arg0[%c8] : memref<144xf32, #tpu.memory_space<smem>>
    %c9 = arith.constant 9 : index
    %51 = memref.load %arg0[%c9] : memref<144xf32, #tpu.memory_space<smem>>
    %c10 = arith.constant 10 : index
    %52 = memref.load %arg0[%c10] : memref<144xf32, #tpu.memory_space<smem>>
    %c11 = arith.constant 11 : index
    %53 = memref.load %arg0[%c11] : memref<144xf32, #tpu.memory_space<smem>>
    %c12 = arith.constant 12 : index
    %54 = memref.load %arg0[%c12] : memref<144xf32, #tpu.memory_space<smem>>
    %c13 = arith.constant 13 : index
    %55 = memref.load %arg0[%c13] : memref<144xf32, #tpu.memory_space<smem>>
    %c14 = arith.constant 14 : index
    %56 = memref.load %arg0[%c14] : memref<144xf32, #tpu.memory_space<smem>>
    %c15 = arith.constant 15 : index
    %57 = memref.load %arg0[%c15] : memref<144xf32, #tpu.memory_space<smem>>
    %c16 = arith.constant 16 : index
    %58 = memref.load %arg0[%c16] : memref<144xf32, #tpu.memory_space<smem>>
    %c17 = arith.constant 17 : index
    %59 = memref.load %arg0[%c17] : memref<144xf32, #tpu.memory_space<smem>>
    %c18 = arith.constant 18 : index
    %60 = memref.load %arg0[%c18] : memref<144xf32, #tpu.memory_space<smem>>
    %c19 = arith.constant 19 : index
    %61 = memref.load %arg0[%c19] : memref<144xf32, #tpu.memory_space<smem>>
    %c20 = arith.constant 20 : index
    %62 = memref.load %arg0[%c20] : memref<144xf32, #tpu.memory_space<smem>>
    %c21 = arith.constant 21 : index
    %63 = memref.load %arg0[%c21] : memref<144xf32, #tpu.memory_space<smem>>
    %c22 = arith.constant 22 : index
    %64 = memref.load %arg0[%c22] : memref<144xf32, #tpu.memory_space<smem>>
    %c23 = arith.constant 23 : index
    %65 = memref.load %arg0[%c23] : memref<144xf32, #tpu.memory_space<smem>>
    %c24 = arith.constant 24 : index
    %66 = memref.load %arg0[%c24] : memref<144xf32, #tpu.memory_space<smem>>
    %c25 = arith.constant 25 : index
    %67 = memref.load %arg0[%c25] : memref<144xf32, #tpu.memory_space<smem>>
    %c26 = arith.constant 26 : index
    %68 = memref.load %arg0[%c26] : memref<144xf32, #tpu.memory_space<smem>>
    %c27 = arith.constant 27 : index
    %69 = memref.load %arg0[%c27] : memref<144xf32, #tpu.memory_space<smem>>
    %c28 = arith.constant 28 : index
    %70 = memref.load %arg0[%c28] : memref<144xf32, #tpu.memory_space<smem>>
    %c29 = arith.constant 29 : index
    %71 = memref.load %arg0[%c29] : memref<144xf32, #tpu.memory_space<smem>>
    %c30 = arith.constant 30 : index
    %72 = memref.load %arg0[%c30] : memref<144xf32, #tpu.memory_space<smem>>
    %c31 = arith.constant 31 : index
    %73 = memref.load %arg0[%c31] : memref<144xf32, #tpu.memory_space<smem>>
    %c32 = arith.constant 32 : index
    %74 = memref.load %arg0[%c32] : memref<144xf32, #tpu.memory_space<smem>>
    %c33 = arith.constant 33 : index
    %75 = memref.load %arg0[%c33] : memref<144xf32, #tpu.memory_space<smem>>
    %c34 = arith.constant 34 : index
    %76 = memref.load %arg0[%c34] : memref<144xf32, #tpu.memory_space<smem>>
    %c35 = arith.constant 35 : index
    %77 = memref.load %arg0[%c35] : memref<144xf32, #tpu.memory_space<smem>>
    %c36 = arith.constant 36 : index
    %78 = memref.load %arg0[%c36] : memref<144xf32, #tpu.memory_space<smem>>
    %c37 = arith.constant 37 : index
    %79 = memref.load %arg0[%c37] : memref<144xf32, #tpu.memory_space<smem>>
    %c38 = arith.constant 38 : index
    %80 = memref.load %arg0[%c38] : memref<144xf32, #tpu.memory_space<smem>>
    %c39 = arith.constant 39 : index
    %81 = memref.load %arg0[%c39] : memref<144xf32, #tpu.memory_space<smem>>
    %c40 = arith.constant 40 : index
    %82 = memref.load %arg0[%c40] : memref<144xf32, #tpu.memory_space<smem>>
    %c41 = arith.constant 41 : index
    %83 = memref.load %arg0[%c41] : memref<144xf32, #tpu.memory_space<smem>>
    %c42 = arith.constant 42 : index
    %84 = memref.load %arg0[%c42] : memref<144xf32, #tpu.memory_space<smem>>
    %c43 = arith.constant 43 : index
    %85 = memref.load %arg0[%c43] : memref<144xf32, #tpu.memory_space<smem>>
    %c44 = arith.constant 44 : index
    %86 = memref.load %arg0[%c44] : memref<144xf32, #tpu.memory_space<smem>>
    %c45 = arith.constant 45 : index
    %87 = memref.load %arg0[%c45] : memref<144xf32, #tpu.memory_space<smem>>
    %c46 = arith.constant 46 : index
    %88 = memref.load %arg0[%c46] : memref<144xf32, #tpu.memory_space<smem>>
    %c47 = arith.constant 47 : index
    %89 = memref.load %arg0[%c47] : memref<144xf32, #tpu.memory_space<smem>>
    %c48 = arith.constant 48 : index
    %90 = memref.load %arg0[%c48] : memref<144xf32, #tpu.memory_space<smem>>
    %c49 = arith.constant 49 : index
    %91 = memref.load %arg0[%c49] : memref<144xf32, #tpu.memory_space<smem>>
    %c50 = arith.constant 50 : index
    %92 = memref.load %arg0[%c50] : memref<144xf32, #tpu.memory_space<smem>>
    %c51 = arith.constant 51 : index
    %93 = memref.load %arg0[%c51] : memref<144xf32, #tpu.memory_space<smem>>
    %c52 = arith.constant 52 : index
    %94 = memref.load %arg0[%c52] : memref<144xf32, #tpu.memory_space<smem>>
    %c53 = arith.constant 53 : index
    %95 = memref.load %arg0[%c53] : memref<144xf32, #tpu.memory_space<smem>>
    %c54 = arith.constant 54 : index
    %96 = memref.load %arg0[%c54] : memref<144xf32, #tpu.memory_space<smem>>
    %c55 = arith.constant 55 : index
    %97 = memref.load %arg0[%c55] : memref<144xf32, #tpu.memory_space<smem>>
    %c56 = arith.constant 56 : index
    %98 = memref.load %arg0[%c56] : memref<144xf32, #tpu.memory_space<smem>>
    %c57 = arith.constant 57 : index
    %99 = memref.load %arg0[%c57] : memref<144xf32, #tpu.memory_space<smem>>
    %c58 = arith.constant 58 : index
    %100 = memref.load %arg0[%c58] : memref<144xf32, #tpu.memory_space<smem>>
    %c59 = arith.constant 59 : index
    %101 = memref.load %arg0[%c59] : memref<144xf32, #tpu.memory_space<smem>>
    %c60 = arith.constant 60 : index
    %102 = memref.load %arg0[%c60] : memref<144xf32, #tpu.memory_space<smem>>
    %c61 = arith.constant 61 : index
    %103 = memref.load %arg0[%c61] : memref<144xf32, #tpu.memory_space<smem>>
    %c62 = arith.constant 62 : index
    %104 = memref.load %arg0[%c62] : memref<144xf32, #tpu.memory_space<smem>>
    %c63 = arith.constant 63 : index
    %105 = memref.load %arg0[%c63] : memref<144xf32, #tpu.memory_space<smem>>
    %c64 = arith.constant 64 : index
    %106 = memref.load %arg0[%c64] : memref<144xf32, #tpu.memory_space<smem>>
    %c65 = arith.constant 65 : index
    %107 = memref.load %arg0[%c65] : memref<144xf32, #tpu.memory_space<smem>>
    %c66 = arith.constant 66 : index
    %108 = memref.load %arg0[%c66] : memref<144xf32, #tpu.memory_space<smem>>
    %c67 = arith.constant 67 : index
    %109 = memref.load %arg0[%c67] : memref<144xf32, #tpu.memory_space<smem>>
    %c68 = arith.constant 68 : index
    %110 = memref.load %arg0[%c68] : memref<144xf32, #tpu.memory_space<smem>>
    %c69 = arith.constant 69 : index
    %111 = memref.load %arg0[%c69] : memref<144xf32, #tpu.memory_space<smem>>
    %c70 = arith.constant 70 : index
    %112 = memref.load %arg0[%c70] : memref<144xf32, #tpu.memory_space<smem>>
    %c71 = arith.constant 71 : index
    %113 = memref.load %arg0[%c71] : memref<144xf32, #tpu.memory_space<smem>>
    %c72 = arith.constant 72 : index
    %114 = memref.load %arg0[%c72] : memref<144xf32, #tpu.memory_space<smem>>
    %c73 = arith.constant 73 : index
    %115 = memref.load %arg0[%c73] : memref<144xf32, #tpu.memory_space<smem>>
    %c74 = arith.constant 74 : index
    %116 = memref.load %arg0[%c74] : memref<144xf32, #tpu.memory_space<smem>>
    %c75 = arith.constant 75 : index
    %117 = memref.load %arg0[%c75] : memref<144xf32, #tpu.memory_space<smem>>
    %c76 = arith.constant 76 : index
    %118 = memref.load %arg0[%c76] : memref<144xf32, #tpu.memory_space<smem>>
    %c77 = arith.constant 77 : index
    %119 = memref.load %arg0[%c77] : memref<144xf32, #tpu.memory_space<smem>>
    %c78 = arith.constant 78 : index
    %120 = memref.load %arg0[%c78] : memref<144xf32, #tpu.memory_space<smem>>
    %c79 = arith.constant 79 : index
    %121 = memref.load %arg0[%c79] : memref<144xf32, #tpu.memory_space<smem>>
    %c80 = arith.constant 80 : index
    %122 = memref.load %arg0[%c80] : memref<144xf32, #tpu.memory_space<smem>>
    %c81 = arith.constant 81 : index
    %123 = memref.load %arg0[%c81] : memref<144xf32, #tpu.memory_space<smem>>
    %c82 = arith.constant 82 : index
    %124 = memref.load %arg0[%c82] : memref<144xf32, #tpu.memory_space<smem>>
    %c83 = arith.constant 83 : index
    %125 = memref.load %arg0[%c83] : memref<144xf32, #tpu.memory_space<smem>>
    %c84 = arith.constant 84 : index
    %126 = memref.load %arg0[%c84] : memref<144xf32, #tpu.memory_space<smem>>
    %c85 = arith.constant 85 : index
    %127 = memref.load %arg0[%c85] : memref<144xf32, #tpu.memory_space<smem>>
    %c86 = arith.constant 86 : index
    %128 = memref.load %arg0[%c86] : memref<144xf32, #tpu.memory_space<smem>>
    %c87 = arith.constant 87 : index
    %129 = memref.load %arg0[%c87] : memref<144xf32, #tpu.memory_space<smem>>
    %c88 = arith.constant 88 : index
    %130 = memref.load %arg0[%c88] : memref<144xf32, #tpu.memory_space<smem>>
    %c89 = arith.constant 89 : index
    %131 = memref.load %arg0[%c89] : memref<144xf32, #tpu.memory_space<smem>>
    %c90 = arith.constant 90 : index
    %132 = memref.load %arg0[%c90] : memref<144xf32, #tpu.memory_space<smem>>
    %c91 = arith.constant 91 : index
    %133 = memref.load %arg0[%c91] : memref<144xf32, #tpu.memory_space<smem>>
    %c92 = arith.constant 92 : index
    %134 = memref.load %arg0[%c92] : memref<144xf32, #tpu.memory_space<smem>>
    %c93 = arith.constant 93 : index
    %135 = memref.load %arg0[%c93] : memref<144xf32, #tpu.memory_space<smem>>
    %c94 = arith.constant 94 : index
    %136 = memref.load %arg0[%c94] : memref<144xf32, #tpu.memory_space<smem>>
    %c95 = arith.constant 95 : index
    %137 = memref.load %arg0[%c95] : memref<144xf32, #tpu.memory_space<smem>>
    %c96 = arith.constant 96 : index
    %138 = memref.load %arg0[%c96] : memref<144xf32, #tpu.memory_space<smem>>
    %c97 = arith.constant 97 : index
    %139 = memref.load %arg0[%c97] : memref<144xf32, #tpu.memory_space<smem>>
    %c98 = arith.constant 98 : index
    %140 = memref.load %arg0[%c98] : memref<144xf32, #tpu.memory_space<smem>>
    %c99 = arith.constant 99 : index
    %141 = memref.load %arg0[%c99] : memref<144xf32, #tpu.memory_space<smem>>
    %c100 = arith.constant 100 : index
    %142 = memref.load %arg0[%c100] : memref<144xf32, #tpu.memory_space<smem>>
    %c101 = arith.constant 101 : index
    %143 = memref.load %arg0[%c101] : memref<144xf32, #tpu.memory_space<smem>>
    %c102 = arith.constant 102 : index
    %144 = memref.load %arg0[%c102] : memref<144xf32, #tpu.memory_space<smem>>
    %c103 = arith.constant 103 : index
    %145 = memref.load %arg0[%c103] : memref<144xf32, #tpu.memory_space<smem>>
    %c104 = arith.constant 104 : index
    %146 = memref.load %arg0[%c104] : memref<144xf32, #tpu.memory_space<smem>>
    %c105 = arith.constant 105 : index
    %147 = memref.load %arg0[%c105] : memref<144xf32, #tpu.memory_space<smem>>
    %c106 = arith.constant 106 : index
    %148 = memref.load %arg0[%c106] : memref<144xf32, #tpu.memory_space<smem>>
    %c107 = arith.constant 107 : index
    %149 = memref.load %arg0[%c107] : memref<144xf32, #tpu.memory_space<smem>>
    %c108 = arith.constant 108 : index
    %150 = memref.load %arg0[%c108] : memref<144xf32, #tpu.memory_space<smem>>
    %c109 = arith.constant 109 : index
    %151 = memref.load %arg0[%c109] : memref<144xf32, #tpu.memory_space<smem>>
    %c110 = arith.constant 110 : index
    %152 = memref.load %arg0[%c110] : memref<144xf32, #tpu.memory_space<smem>>
    %c111 = arith.constant 111 : index
    %153 = memref.load %arg0[%c111] : memref<144xf32, #tpu.memory_space<smem>>
    %c112 = arith.constant 112 : index
    %154 = memref.load %arg0[%c112] : memref<144xf32, #tpu.memory_space<smem>>
    %c113 = arith.constant 113 : index
    %155 = memref.load %arg0[%c113] : memref<144xf32, #tpu.memory_space<smem>>
    %c114 = arith.constant 114 : index
    %156 = memref.load %arg0[%c114] : memref<144xf32, #tpu.memory_space<smem>>
    %c115 = arith.constant 115 : index
    %157 = memref.load %arg0[%c115] : memref<144xf32, #tpu.memory_space<smem>>
    %c116 = arith.constant 116 : index
    %158 = memref.load %arg0[%c116] : memref<144xf32, #tpu.memory_space<smem>>
    %c117 = arith.constant 117 : index
    %159 = memref.load %arg0[%c117] : memref<144xf32, #tpu.memory_space<smem>>
    %c118 = arith.constant 118 : index
    %160 = memref.load %arg0[%c118] : memref<144xf32, #tpu.memory_space<smem>>
    %c119 = arith.constant 119 : index
    %161 = memref.load %arg0[%c119] : memref<144xf32, #tpu.memory_space<smem>>
    %c120 = arith.constant 120 : index
    %162 = memref.load %arg0[%c120] : memref<144xf32, #tpu.memory_space<smem>>
    %c121 = arith.constant 121 : index
    %163 = memref.load %arg0[%c121] : memref<144xf32, #tpu.memory_space<smem>>
    %c122 = arith.constant 122 : index
    %164 = memref.load %arg0[%c122] : memref<144xf32, #tpu.memory_space<smem>>
    %c123 = arith.constant 123 : index
    %165 = memref.load %arg0[%c123] : memref<144xf32, #tpu.memory_space<smem>>
    %c124 = arith.constant 124 : index
    %166 = memref.load %arg0[%c124] : memref<144xf32, #tpu.memory_space<smem>>
    %c125 = arith.constant 125 : index
    %167 = memref.load %arg0[%c125] : memref<144xf32, #tpu.memory_space<smem>>
    %c126 = arith.constant 126 : index
    %168 = memref.load %arg0[%c126] : memref<144xf32, #tpu.memory_space<smem>>
    %c127 = arith.constant 127 : index
    %169 = memref.load %arg0[%c127] : memref<144xf32, #tpu.memory_space<smem>>
    %c128 = arith.constant 128 : index
    %170 = memref.load %arg0[%c128] : memref<144xf32, #tpu.memory_space<smem>>
    %c129 = arith.constant 129 : index
    %171 = memref.load %arg0[%c129] : memref<144xf32, #tpu.memory_space<smem>>
    %c130 = arith.constant 130 : index
    %172 = memref.load %arg0[%c130] : memref<144xf32, #tpu.memory_space<smem>>
    %c131 = arith.constant 131 : index
    %173 = memref.load %arg0[%c131] : memref<144xf32, #tpu.memory_space<smem>>
    %c132 = arith.constant 132 : index
    %174 = memref.load %arg0[%c132] : memref<144xf32, #tpu.memory_space<smem>>
    %c133 = arith.constant 133 : index
    %175 = memref.load %arg0[%c133] : memref<144xf32, #tpu.memory_space<smem>>
    %c134 = arith.constant 134 : index
    %176 = memref.load %arg0[%c134] : memref<144xf32, #tpu.memory_space<smem>>
    %c135 = arith.constant 135 : index
    %177 = memref.load %arg0[%c135] : memref<144xf32, #tpu.memory_space<smem>>
    %c136 = arith.constant 136 : index
    %178 = memref.load %arg0[%c136] : memref<144xf32, #tpu.memory_space<smem>>
    %c137 = arith.constant 137 : index
    %179 = memref.load %arg0[%c137] : memref<144xf32, #tpu.memory_space<smem>>
    %c138 = arith.constant 138 : index
    %180 = memref.load %arg0[%c138] : memref<144xf32, #tpu.memory_space<smem>>
    %c139 = arith.constant 139 : index
    %181 = memref.load %arg0[%c139] : memref<144xf32, #tpu.memory_space<smem>>
    %c140 = arith.constant 140 : index
    %182 = memref.load %arg0[%c140] : memref<144xf32, #tpu.memory_space<smem>>
    %c141 = arith.constant 141 : index
    %183 = memref.load %arg0[%c141] : memref<144xf32, #tpu.memory_space<smem>>
    %c142 = arith.constant 142 : index
    %184 = memref.load %arg0[%c142] : memref<144xf32, #tpu.memory_space<smem>>
    %c143 = arith.constant 143 : index
    %185 = memref.load %arg0[%c143] : memref<144xf32, #tpu.memory_space<smem>>
    %cst_68 = arith.constant 0.000000e+00 : f32
    %186 = vector.broadcast %cst_68 : f32 to vector<1x1xf32>
    %cst_69 = arith.constant 0.000000e+00 : f32
    %187 = vector.broadcast %cst_69 : f32 to vector<1x1xf32>
    %cst_70 = arith.constant 0.000000e+00 : f32
    %188 = vector.broadcast %cst_70 : f32 to vector<1x1xf32>
    %cst_71 = arith.constant 0.000000e+00 : f32
    %189 = vector.broadcast %cst_71 : f32 to vector<1x1xf32>
    %cst_72 = arith.constant 0.000000e+00 : f32
    %190 = vector.broadcast %cst_72 : f32 to vector<16x16xf32>
    %cst_73 = arith.constant 0.000000e+00 : f32
    %191 = vector.broadcast %cst_73 : f32 to vector<16x16xf32>
    %cst_74 = arith.constant 0.000000e+00 : f32
    %192 = vector.broadcast %cst_74 : f32 to vector<16x16xf32>
    %cst_75 = arith.constant 0.000000e+00 : f32
    %193 = vector.broadcast %cst_75 : f32 to vector<16x16xf32>
    %c0_76 = arith.constant 0 : index
    %c0_77 = arith.constant 0 : index
    %c0_78 = arith.constant 0 : index
    %c0_79 = arith.constant 0 : index
    %194 = vector.load %arg6[%c0_76, %c0_77, %c0_78, %c0_79] : memref<2x4x20x20xf32, #tpu.memory_space<vmem>>, vector<1x1x20x16xf32>
    %195 = vector.shape_cast %194 : vector<1x1x20x16xf32> to vector<20x16xf32>
    %196 = vector.extract_strided_slice %195 {offsets = [0, 0], sizes = [16, 16], strides = [1, 1]} : vector<20x16xf32> to vector<16x16xf32>
    %197 = vector.broadcast %42 : f32 to vector<16x16xf32>
    %198 = arith.mulf %196, %197 : vector<16x16xf32>
    %199 = arith.addf %190, %198 : vector<16x16xf32>
    %200 = vector.broadcast %78 : f32 to vector<16x16xf32>
    %201 = arith.mulf %196, %200 : vector<16x16xf32>
    %202 = arith.addf %191, %201 : vector<16x16xf32>
    %203 = vector.broadcast %114 : f32 to vector<16x16xf32>
    %204 = arith.mulf %196, %203 : vector<16x16xf32>
    %205 = arith.addf %192, %204 : vector<16x16xf32>
    %206 = vector.broadcast %150 : f32 to vector<16x16xf32>
    %207 = arith.mulf %196, %206 : vector<16x16xf32>
    %208 = arith.addf %193, %207 : vector<16x16xf32>
    %209 = vector.extract_strided_slice %195 {offsets = [2, 0], sizes = [16, 16], strides = [1, 1]} : vector<20x16xf32> to vector<16x16xf32>
    %210 = vector.broadcast %45 : f32 to vector<16x16xf32>
    %211 = arith.mulf %209, %210 : vector<16x16xf32>
    %212 = arith.addf %199, %211 : vector<16x16xf32>
    %213 = vector.broadcast %81 : f32 to vector<16x16xf32>
    %214 = arith.mulf %209, %213 : vector<16x16xf32>
    %215 = arith.addf %202, %214 : vector<16x16xf32>
    %216 = vector.broadcast %117 : f32 to vector<16x16xf32>
    %217 = arith.mulf %209, %216 : vector<16x16xf32>
    %218 = arith.addf %205, %217 : vector<16x16xf32>
    %219 = vector.broadcast %153 : f32 to vector<16x16xf32>
    %220 = arith.mulf %209, %219 : vector<16x16xf32>
    %221 = arith.addf %208, %220 : vector<16x16xf32>
    %222 = vector.extract_strided_slice %195 {offsets = [4, 0], sizes = [16, 16], strides = [1, 1]} : vector<20x16xf32> to vector<16x16xf32>
    %223 = vector.broadcast %48 : f32 to vector<16x16xf32>
    %224 = arith.mulf %222, %223 : vector<16x16xf32>
    %225 = arith.addf %212, %224 : vector<16x16xf32>
    %226 = vector.broadcast %84 : f32 to vector<16x16xf32>
    %227 = arith.mulf %222, %226 : vector<16x16xf32>
    %228 = arith.addf %215, %227 : vector<16x16xf32>
    %229 = vector.broadcast %120 : f32 to vector<16x16xf32>
    %230 = arith.mulf %222, %229 : vector<16x16xf32>
    %231 = arith.addf %218, %230 : vector<16x16xf32>
    %232 = vector.broadcast %156 : f32 to vector<16x16xf32>
    %233 = arith.mulf %222, %232 : vector<16x16xf32>
    %234 = arith.addf %221, %233 : vector<16x16xf32>
    %c0_80 = arith.constant 0 : index
    %c0_81 = arith.constant 0 : index
    %c0_82 = arith.constant 0 : index
    %c2_83 = arith.constant 2 : index
    %235 = vector.load %arg6[%c0_80, %c0_81, %c0_82, %c2_83] : memref<2x4x20x20xf32, #tpu.memory_space<vmem>>, vector<1x1x20x16xf32>
    %236 = vector.shape_cast %235 : vector<1x1x20x16xf32> to vector<20x16xf32>
    %237 = vector.extract_strided_slice %236 {offsets = [0, 0], sizes = [16, 16], strides = [1, 1]} : vector<20x16xf32> to vector<16x16xf32>
    %238 = vector.broadcast %43 : f32 to vector<16x16xf32>
    %239 = arith.mulf %237, %238 : vector<16x16xf32>
    %240 = arith.addf %225, %239 : vector<16x16xf32>
    %241 = vector.broadcast %79 : f32 to vector<16x16xf32>
    %242 = arith.mulf %237, %241 : vector<16x16xf32>
    %243 = arith.addf %228, %242 : vector<16x16xf32>
    %244 = vector.broadcast %115 : f32 to vector<16x16xf32>
    %245 = arith.mulf %237, %244 : vector<16x16xf32>
    %246 = arith.addf %231, %245 : vector<16x16xf32>
    %247 = vector.broadcast %151 : f32 to vector<16x16xf32>
    %248 = arith.mulf %237, %247 : vector<16x16xf32>
    %249 = arith.addf %234, %248 : vector<16x16xf32>
    %250 = vector.extract_strided_slice %236 {offsets = [2, 0], sizes = [16, 16], strides = [1, 1]} : vector<20x16xf32> to vector<16x16xf32>
    %251 = vector.broadcast %46 : f32 to vector<16x16xf32>
    %252 = arith.mulf %250, %251 : vector<16x16xf32>
    %253 = arith.addf %240, %252 : vector<16x16xf32>
    %254 = vector.broadcast %82 : f32 to vector<16x16xf32>
    %255 = arith.mulf %250, %254 : vector<16x16xf32>
    %256 = arith.addf %243, %255 : vector<16x16xf32>
    %257 = vector.broadcast %118 : f32 to vector<16x16xf32>
    %258 = arith.mulf %250, %257 : vector<16x16xf32>
    %259 = arith.addf %246, %258 : vector<16x16xf32>
    %260 = vector.broadcast %154 : f32 to vector<16x16xf32>
    %261 = arith.mulf %250, %260 : vector<16x16xf32>
    %262 = arith.addf %249, %261 : vector<16x16xf32>
    %263 = vector.extract_strided_slice %236 {offsets = [4, 0], sizes = [16, 16], strides = [1, 1]} : vector<20x16xf32> to vector<16x16xf32>
    %264 = vector.broadcast %49 : f32 to vector<16x16xf32>
    %265 = arith.mulf %263, %264 : vector<16x16xf32>
    %266 = arith.addf %253, %265 : vector<16x16xf32>
    %267 = vector.broadcast %85 : f32 to vector<16x16xf32>
    %268 = arith.mulf %263, %267 : vector<16x16xf32>
    %269 = arith.addf %256, %268 : vector<16x16xf32>
    %270 = vector.broadcast %121 : f32 to vector<16x16xf32>
    %271 = arith.mulf %263, %270 : vector<16x16xf32>
    %272 = arith.addf %259, %271 : vector<16x16xf32>
    %273 = vector.broadcast %157 : f32 to vector<16x16xf32>
    %274 = arith.mulf %263, %273 : vector<16x16xf32>
    %275 = arith.addf %262, %274 : vector<16x16xf32>
    %c0_84 = arith.constant 0 : index
    %c0_85 = arith.constant 0 : index
    %c0_86 = arith.constant 0 : index
    %c4_87 = arith.constant 4 : index
    %276 = vector.load %arg6[%c0_84, %c0_85, %c0_86, %c4_87] : memref<2x4x20x20xf32, #tpu.memory_space<vmem>>, vector<1x1x20x16xf32>
    %277 = vector.shape_cast %276 : vector<1x1x20x16xf32> to vector<20x16xf32>
    %278 = vector.extract_strided_slice %277 {offsets = [0, 0], sizes = [16, 16], strides = [1, 1]} : vector<20x16xf32> to vector<16x16xf32>
    %279 = vector.broadcast %44 : f32 to vector<16x16xf32>
    %280 = arith.mulf %278, %279 : vector<16x16xf32>
    %281 = arith.addf %266, %280 : vector<16x16xf32>
    %282 = vector.broadcast %80 : f32 to vector<16x16xf32>
    %283 = arith.mulf %278, %282 : vector<16x16xf32>
    %284 = arith.addf %269, %283 : vector<16x16xf32>
    %285 = vector.broadcast %116 : f32 to vector<16x16xf32>
    %286 = arith.mulf %278, %285 : vector<16x16xf32>
    %287 = arith.addf %272, %286 : vector<16x16xf32>
    %288 = vector.broadcast %152 : f32 to vector<16x16xf32>
    %289 = arith.mulf %278, %288 : vector<16x16xf32>
    %290 = arith.addf %275, %289 : vector<16x16xf32>
    %291 = vector.extract_strided_slice %277 {offsets = [2, 0], sizes = [16, 16], strides = [1, 1]} : vector<20x16xf32> to vector<16x16xf32>
    %292 = vector.broadcast %47 : f32 to vector<16x16xf32>
    %293 = arith.mulf %291, %292 : vector<16x16xf32>
    %294 = arith.addf %281, %293 : vector<16x16xf32>
    %295 = vector.broadcast %83 : f32 to vector<16x16xf32>
    %296 = arith.mulf %291, %295 : vector<16x16xf32>
    %297 = arith.addf %284, %296 : vector<16x16xf32>
    %298 = vector.broadcast %119 : f32 to vector<16x16xf32>
    %299 = arith.mulf %291, %298 : vector<16x16xf32>
    %300 = arith.addf %287, %299 : vector<16x16xf32>
    %301 = vector.broadcast %155 : f32 to vector<16x16xf32>
    %302 = arith.mulf %291, %301 : vector<16x16xf32>
    %303 = arith.addf %290, %302 : vector<16x16xf32>
    %304 = vector.extract_strided_slice %277 {offsets = [4, 0], sizes = [16, 16], strides = [1, 1]} : vector<20x16xf32> to vector<16x16xf32>
    %305 = vector.broadcast %50 : f32 to vector<16x16xf32>
    %306 = arith.mulf %304, %305 : vector<16x16xf32>
    %307 = arith.addf %294, %306 : vector<16x16xf32>
    %308 = vector.broadcast %86 : f32 to vector<16x16xf32>
    %309 = arith.mulf %304, %308 : vector<16x16xf32>
    %310 = arith.addf %297, %309 : vector<16x16xf32>
    %311 = vector.broadcast %122 : f32 to vector<16x16xf32>
    %312 = arith.mulf %304, %311 : vector<16x16xf32>
    %313 = arith.addf %300, %312 : vector<16x16xf32>
    %314 = vector.broadcast %158 : f32 to vector<16x16xf32>
    %315 = arith.mulf %304, %314 : vector<16x16xf32>
    %316 = arith.addf %303, %315 : vector<16x16xf32>
    %c0_88 = arith.constant 0 : index
    %c1_89 = arith.constant 1 : index
    %c0_90 = arith.constant 0 : index
    %c0_91 = arith.constant 0 : index
    %317 = vector.load %arg6[%c0_88, %c1_89, %c0_90, %c0_91] : memref<2x4x20x20xf32, #tpu.memory_space<vmem>>, vector<1x1x20x16xf32>
    %318 = vector.shape_cast %317 : vector<1x1x20x16xf32> to vector<20x16xf32>
    %319 = vector.extract_strided_slice %318 {offsets = [0, 0], sizes = [16, 16], strides = [1, 1]} : vector<20x16xf32> to vector<16x16xf32>
    %320 = vector.broadcast %51 : f32 to vector<16x16xf32>
    %321 = arith.mulf %319, %320 : vector<16x16xf32>
    %322 = arith.addf %307, %321 : vector<16x16xf32>
    %323 = vector.broadcast %87 : f32 to vector<16x16xf32>
    %324 = arith.mulf %319, %323 : vector<16x16xf32>
    %325 = arith.addf %310, %324 : vector<16x16xf32>
    %326 = vector.broadcast %123 : f32 to vector<16x16xf32>
    %327 = arith.mulf %319, %326 : vector<16x16xf32>
    %328 = arith.addf %313, %327 : vector<16x16xf32>
    %329 = vector.broadcast %159 : f32 to vector<16x16xf32>
    %330 = arith.mulf %319, %329 : vector<16x16xf32>
    %331 = arith.addf %316, %330 : vector<16x16xf32>
    %332 = vector.extract_strided_slice %318 {offsets = [2, 0], sizes = [16, 16], strides = [1, 1]} : vector<20x16xf32> to vector<16x16xf32>
    %333 = vector.broadcast %54 : f32 to vector<16x16xf32>
    %334 = arith.mulf %332, %333 : vector<16x16xf32>
    %335 = arith.addf %322, %334 : vector<16x16xf32>
    %336 = vector.broadcast %90 : f32 to vector<16x16xf32>
    %337 = arith.mulf %332, %336 : vector<16x16xf32>
    %338 = arith.addf %325, %337 : vector<16x16xf32>
    %339 = vector.broadcast %126 : f32 to vector<16x16xf32>
    %340 = arith.mulf %332, %339 : vector<16x16xf32>
    %341 = arith.addf %328, %340 : vector<16x16xf32>
    %342 = vector.broadcast %162 : f32 to vector<16x16xf32>
    %343 = arith.mulf %332, %342 : vector<16x16xf32>
    %344 = arith.addf %331, %343 : vector<16x16xf32>
    %345 = vector.extract_strided_slice %318 {offsets = [4, 0], sizes = [16, 16], strides = [1, 1]} : vector<20x16xf32> to vector<16x16xf32>
    %346 = vector.broadcast %57 : f32 to vector<16x16xf32>
    %347 = arith.mulf %345, %346 : vector<16x16xf32>
    %348 = arith.addf %335, %347 : vector<16x16xf32>
    %349 = vector.broadcast %93 : f32 to vector<16x16xf32>
    %350 = arith.mulf %345, %349 : vector<16x16xf32>
    %351 = arith.addf %338, %350 : vector<16x16xf32>
    %352 = vector.broadcast %129 : f32 to vector<16x16xf32>
    %353 = arith.mulf %345, %352 : vector<16x16xf32>
    %354 = arith.addf %341, %353 : vector<16x16xf32>
    %355 = vector.broadcast %165 : f32 to vector<16x16xf32>
    %356 = arith.mulf %345, %355 : vector<16x16xf32>
    %357 = arith.addf %344, %356 : vector<16x16xf32>
    %c0_92 = arith.constant 0 : index
    %c1_93 = arith.constant 1 : index
    %c0_94 = arith.constant 0 : index
    %c2_95 = arith.constant 2 : index
    %358 = vector.load %arg6[%c0_92, %c1_93, %c0_94, %c2_95] : memref<2x4x20x20xf32, #tpu.memory_space<vmem>>, vector<1x1x20x16xf32>
    %359 = vector.shape_cast %358 : vector<1x1x20x16xf32> to vector<20x16xf32>
    %360 = vector.extract_strided_slice %359 {offsets = [0, 0], sizes = [16, 16], strides = [1, 1]} : vector<20x16xf32> to vector<16x16xf32>
    %361 = vector.broadcast %52 : f32 to vector<16x16xf32>
    %362 = arith.mulf %360, %361 : vector<16x16xf32>
    %363 = arith.addf %348, %362 : vector<16x16xf32>
    %364 = vector.broadcast %88 : f32 to vector<16x16xf32>
    %365 = arith.mulf %360, %364 : vector<16x16xf32>
    %366 = arith.addf %351, %365 : vector<16x16xf32>
    %367 = vector.broadcast %124 : f32 to vector<16x16xf32>
    %368 = arith.mulf %360, %367 : vector<16x16xf32>
    %369 = arith.addf %354, %368 : vector<16x16xf32>
    %370 = vector.broadcast %160 : f32 to vector<16x16xf32>
    %371 = arith.mulf %360, %370 : vector<16x16xf32>
    %372 = arith.addf %357, %371 : vector<16x16xf32>
    %373 = vector.extract_strided_slice %359 {offsets = [2, 0], sizes = [16, 16], strides = [1, 1]} : vector<20x16xf32> to vector<16x16xf32>
    %374 = vector.broadcast %55 : f32 to vector<16x16xf32>
    %375 = arith.mulf %373, %374 : vector<16x16xf32>
    %376 = arith.addf %363, %375 : vector<16x16xf32>
    %377 = vector.broadcast %91 : f32 to vector<16x16xf32>
    %378 = arith.mulf %373, %377 : vector<16x16xf32>
    %379 = arith.addf %366, %378 : vector<16x16xf32>
    %380 = vector.broadcast %127 : f32 to vector<16x16xf32>
    %381 = arith.mulf %373, %380 : vector<16x16xf32>
    %382 = arith.addf %369, %381 : vector<16x16xf32>
    %383 = vector.broadcast %163 : f32 to vector<16x16xf32>
    %384 = arith.mulf %373, %383 : vector<16x16xf32>
    %385 = arith.addf %372, %384 : vector<16x16xf32>
    %386 = vector.extract_strided_slice %359 {offsets = [4, 0], sizes = [16, 16], strides = [1, 1]} : vector<20x16xf32> to vector<16x16xf32>
    %387 = vector.broadcast %58 : f32 to vector<16x16xf32>
    %388 = arith.mulf %386, %387 : vector<16x16xf32>
    %389 = arith.addf %376, %388 : vector<16x16xf32>
    %390 = vector.broadcast %94 : f32 to vector<16x16xf32>
    %391 = arith.mulf %386, %390 : vector<16x16xf32>
    %392 = arith.addf %379, %391 : vector<16x16xf32>
    %393 = vector.broadcast %130 : f32 to vector<16x16xf32>
    %394 = arith.mulf %386, %393 : vector<16x16xf32>
    %395 = arith.addf %382, %394 : vector<16x16xf32>
    %396 = vector.broadcast %166 : f32 to vector<16x16xf32>
    %397 = arith.mulf %386, %396 : vector<16x16xf32>
    %398 = arith.addf %385, %397 : vector<16x16xf32>
    %c0_96 = arith.constant 0 : index
    %c1_97 = arith.constant 1 : index
    %c0_98 = arith.constant 0 : index
    %c4_99 = arith.constant 4 : index
    %399 = vector.load %arg6[%c0_96, %c1_97, %c0_98, %c4_99] : memref<2x4x20x20xf32, #tpu.memory_space<vmem>>, vector<1x1x20x16xf32>
    %400 = vector.shape_cast %399 : vector<1x1x20x16xf32> to vector<20x16xf32>
    %401 = vector.extract_strided_slice %400 {offsets = [0, 0], sizes = [16, 16], strides = [1, 1]} : vector<20x16xf32> to vector<16x16xf32>
    %402 = vector.broadcast %53 : f32 to vector<16x16xf32>
    %403 = arith.mulf %401, %402 : vector<16x16xf32>
    %404 = arith.addf %389, %403 : vector<16x16xf32>
    %405 = vector.broadcast %89 : f32 to vector<16x16xf32>
    %406 = arith.mulf %401, %405 : vector<16x16xf32>
    %407 = arith.addf %392, %406 : vector<16x16xf32>
    %408 = vector.broadcast %125 : f32 to vector<16x16xf32>
    %409 = arith.mulf %401, %408 : vector<16x16xf32>
    %410 = arith.addf %395, %409 : vector<16x16xf32>
    %411 = vector.broadcast %161 : f32 to vector<16x16xf32>
    %412 = arith.mulf %401, %411 : vector<16x16xf32>
    %413 = arith.addf %398, %412 : vector<16x16xf32>
    %414 = vector.extract_strided_slice %400 {offsets = [2, 0], sizes = [16, 16], strides = [1, 1]} : vector<20x16xf32> to vector<16x16xf32>
    %415 = vector.broadcast %56 : f32 to vector<16x16xf32>
    %416 = arith.mulf %414, %415 : vector<16x16xf32>
    %417 = arith.addf %404, %416 : vector<16x16xf32>
    %418 = vector.broadcast %92 : f32 to vector<16x16xf32>
    %419 = arith.mulf %414, %418 : vector<16x16xf32>
    %420 = arith.addf %407, %419 : vector<16x16xf32>
    %421 = vector.broadcast %128 : f32 to vector<16x16xf32>
    %422 = arith.mulf %414, %421 : vector<16x16xf32>
    %423 = arith.addf %410, %422 : vector<16x16xf32>
    %424 = vector.broadcast %164 : f32 to vector<16x16xf32>
    %425 = arith.mulf %414, %424 : vector<16x16xf32>
    %426 = arith.addf %413, %425 : vector<16x16xf32>
    %427 = vector.extract_strided_slice %400 {offsets = [4, 0], sizes = [16, 16], strides = [1, 1]} : vector<20x16xf32> to vector<16x16xf32>
    %428 = vector.broadcast %59 : f32 to vector<16x16xf32>
    %429 = arith.mulf %427, %428 : vector<16x16xf32>
    %430 = arith.addf %417, %429 : vector<16x16xf32>
    %431 = vector.broadcast %95 : f32 to vector<16x16xf32>
    %432 = arith.mulf %427, %431 : vector<16x16xf32>
    %433 = arith.addf %420, %432 : vector<16x16xf32>
    %434 = vector.broadcast %131 : f32 to vector<16x16xf32>
    %435 = arith.mulf %427, %434 : vector<16x16xf32>
    %436 = arith.addf %423, %435 : vector<16x16xf32>
    %437 = vector.broadcast %167 : f32 to vector<16x16xf32>
    %438 = arith.mulf %427, %437 : vector<16x16xf32>
    %439 = arith.addf %426, %438 : vector<16x16xf32>
    %c0_100 = arith.constant 0 : index
    %c2_101 = arith.constant 2 : index
    %c0_102 = arith.constant 0 : index
    %c0_103 = arith.constant 0 : index
    %440 = vector.load %arg6[%c0_100, %c2_101, %c0_102, %c0_103] : memref<2x4x20x20xf32, #tpu.memory_space<vmem>>, vector<1x1x20x16xf32>
    %441 = vector.shape_cast %440 : vector<1x1x20x16xf32> to vector<20x16xf32>
    %442 = vector.extract_strided_slice %441 {offsets = [0, 0], sizes = [16, 16], strides = [1, 1]} : vector<20x16xf32> to vector<16x16xf32>
    %443 = vector.broadcast %60 : f32 to vector<16x16xf32>
    %444 = arith.mulf %442, %443 : vector<16x16xf32>
    %445 = arith.addf %430, %444 : vector<16x16xf32>
    %446 = vector.broadcast %96 : f32 to vector<16x16xf32>
    %447 = arith.mulf %442, %446 : vector<16x16xf32>
    %448 = arith.addf %433, %447 : vector<16x16xf32>
    %449 = vector.broadcast %132 : f32 to vector<16x16xf32>
    %450 = arith.mulf %442, %449 : vector<16x16xf32>
    %451 = arith.addf %436, %450 : vector<16x16xf32>
    %452 = vector.broadcast %168 : f32 to vector<16x16xf32>
    %453 = arith.mulf %442, %452 : vector<16x16xf32>
    %454 = arith.addf %439, %453 : vector<16x16xf32>
    %455 = vector.extract_strided_slice %441 {offsets = [2, 0], sizes = [16, 16], strides = [1, 1]} : vector<20x16xf32> to vector<16x16xf32>
    %456 = vector.broadcast %63 : f32 to vector<16x16xf32>
    %457 = arith.mulf %455, %456 : vector<16x16xf32>
    %458 = arith.addf %445, %457 : vector<16x16xf32>
    %459 = vector.broadcast %99 : f32 to vector<16x16xf32>
    %460 = arith.mulf %455, %459 : vector<16x16xf32>
    %461 = arith.addf %448, %460 : vector<16x16xf32>
    %462 = vector.broadcast %135 : f32 to vector<16x16xf32>
    %463 = arith.mulf %455, %462 : vector<16x16xf32>
    %464 = arith.addf %451, %463 : vector<16x16xf32>
    %465 = vector.broadcast %171 : f32 to vector<16x16xf32>
    %466 = arith.mulf %455, %465 : vector<16x16xf32>
    %467 = arith.addf %454, %466 : vector<16x16xf32>
    %468 = vector.extract_strided_slice %441 {offsets = [4, 0], sizes = [16, 16], strides = [1, 1]} : vector<20x16xf32> to vector<16x16xf32>
    %469 = vector.broadcast %66 : f32 to vector<16x16xf32>
    %470 = arith.mulf %468, %469 : vector<16x16xf32>
    %471 = arith.addf %458, %470 : vector<16x16xf32>
    %472 = vector.broadcast %102 : f32 to vector<16x16xf32>
    %473 = arith.mulf %468, %472 : vector<16x16xf32>
    %474 = arith.addf %461, %473 : vector<16x16xf32>
    %475 = vector.broadcast %138 : f32 to vector<16x16xf32>
    %476 = arith.mulf %468, %475 : vector<16x16xf32>
    %477 = arith.addf %464, %476 : vector<16x16xf32>
    %478 = vector.broadcast %174 : f32 to vector<16x16xf32>
    %479 = arith.mulf %468, %478 : vector<16x16xf32>
    %480 = arith.addf %467, %479 : vector<16x16xf32>
    %c0_104 = arith.constant 0 : index
    %c2_105 = arith.constant 2 : index
    %c0_106 = arith.constant 0 : index
    %c2_107 = arith.constant 2 : index
    %481 = vector.load %arg6[%c0_104, %c2_105, %c0_106, %c2_107] : memref<2x4x20x20xf32, #tpu.memory_space<vmem>>, vector<1x1x20x16xf32>
    %482 = vector.shape_cast %481 : vector<1x1x20x16xf32> to vector<20x16xf32>
    %483 = vector.extract_strided_slice %482 {offsets = [0, 0], sizes = [16, 16], strides = [1, 1]} : vector<20x16xf32> to vector<16x16xf32>
    %484 = vector.broadcast %61 : f32 to vector<16x16xf32>
    %485 = arith.mulf %483, %484 : vector<16x16xf32>
    %486 = arith.addf %471, %485 : vector<16x16xf32>
    %487 = vector.broadcast %97 : f32 to vector<16x16xf32>
    %488 = arith.mulf %483, %487 : vector<16x16xf32>
    %489 = arith.addf %474, %488 : vector<16x16xf32>
    %490 = vector.broadcast %133 : f32 to vector<16x16xf32>
    %491 = arith.mulf %483, %490 : vector<16x16xf32>
    %492 = arith.addf %477, %491 : vector<16x16xf32>
    %493 = vector.broadcast %169 : f32 to vector<16x16xf32>
    %494 = arith.mulf %483, %493 : vector<16x16xf32>
    %495 = arith.addf %480, %494 : vector<16x16xf32>
    %496 = vector.extract_strided_slice %482 {offsets = [2, 0], sizes = [16, 16], strides = [1, 1]} : vector<20x16xf32> to vector<16x16xf32>
    %497 = vector.broadcast %64 : f32 to vector<16x16xf32>
    %498 = arith.mulf %496, %497 : vector<16x16xf32>
    %499 = arith.addf %486, %498 : vector<16x16xf32>
    %500 = vector.broadcast %100 : f32 to vector<16x16xf32>
    %501 = arith.mulf %496, %500 : vector<16x16xf32>
    %502 = arith.addf %489, %501 : vector<16x16xf32>
    %503 = vector.broadcast %136 : f32 to vector<16x16xf32>
    %504 = arith.mulf %496, %503 : vector<16x16xf32>
    %505 = arith.addf %492, %504 : vector<16x16xf32>
    %506 = vector.broadcast %172 : f32 to vector<16x16xf32>
    %507 = arith.mulf %496, %506 : vector<16x16xf32>
    %508 = arith.addf %495, %507 : vector<16x16xf32>
    %509 = vector.extract_strided_slice %482 {offsets = [4, 0], sizes = [16, 16], strides = [1, 1]} : vector<20x16xf32> to vector<16x16xf32>
    %510 = vector.broadcast %67 : f32 to vector<16x16xf32>
    %511 = arith.mulf %509, %510 : vector<16x16xf32>
    %512 = arith.addf %499, %511 : vector<16x16xf32>
    %513 = vector.broadcast %103 : f32 to vector<16x16xf32>
    %514 = arith.mulf %509, %513 : vector<16x16xf32>
    %515 = arith.addf %502, %514 : vector<16x16xf32>
    %516 = vector.broadcast %139 : f32 to vector<16x16xf32>
    %517 = arith.mulf %509, %516 : vector<16x16xf32>
    %518 = arith.addf %505, %517 : vector<16x16xf32>
    %519 = vector.broadcast %175 : f32 to vector<16x16xf32>
    %520 = arith.mulf %509, %519 : vector<16x16xf32>
    %521 = arith.addf %508, %520 : vector<16x16xf32>
    %c0_108 = arith.constant 0 : index
    %c2_109 = arith.constant 2 : index
    %c0_110 = arith.constant 0 : index
    %c4_111 = arith.constant 4 : index
    %522 = vector.load %arg6[%c0_108, %c2_109, %c0_110, %c4_111] : memref<2x4x20x20xf32, #tpu.memory_space<vmem>>, vector<1x1x20x16xf32>
    %523 = vector.shape_cast %522 : vector<1x1x20x16xf32> to vector<20x16xf32>
    %524 = vector.extract_strided_slice %523 {offsets = [0, 0], sizes = [16, 16], strides = [1, 1]} : vector<20x16xf32> to vector<16x16xf32>
    %525 = vector.broadcast %62 : f32 to vector<16x16xf32>
    %526 = arith.mulf %524, %525 : vector<16x16xf32>
    %527 = arith.addf %512, %526 : vector<16x16xf32>
    %528 = vector.broadcast %98 : f32 to vector<16x16xf32>
    %529 = arith.mulf %524, %528 : vector<16x16xf32>
    %530 = arith.addf %515, %529 : vector<16x16xf32>
    %531 = vector.broadcast %134 : f32 to vector<16x16xf32>
    %532 = arith.mulf %524, %531 : vector<16x16xf32>
    %533 = arith.addf %518, %532 : vector<16x16xf32>
    %534 = vector.broadcast %170 : f32 to vector<16x16xf32>
    %535 = arith.mulf %524, %534 : vector<16x16xf32>
    %536 = arith.addf %521, %535 : vector<16x16xf32>
    %537 = vector.extract_strided_slice %523 {offsets = [2, 0], sizes = [16, 16], strides = [1, 1]} : vector<20x16xf32> to vector<16x16xf32>
    %538 = vector.broadcast %65 : f32 to vector<16x16xf32>
    %539 = arith.mulf %537, %538 : vector<16x16xf32>
    %540 = arith.addf %527, %539 : vector<16x16xf32>
    %541 = vector.broadcast %101 : f32 to vector<16x16xf32>
    %542 = arith.mulf %537, %541 : vector<16x16xf32>
    %543 = arith.addf %530, %542 : vector<16x16xf32>
    %544 = vector.broadcast %137 : f32 to vector<16x16xf32>
    %545 = arith.mulf %537, %544 : vector<16x16xf32>
    %546 = arith.addf %533, %545 : vector<16x16xf32>
    %547 = vector.broadcast %173 : f32 to vector<16x16xf32>
    %548 = arith.mulf %537, %547 : vector<16x16xf32>
    %549 = arith.addf %536, %548 : vector<16x16xf32>
    %550 = vector.extract_strided_slice %523 {offsets = [4, 0], sizes = [16, 16], strides = [1, 1]} : vector<20x16xf32> to vector<16x16xf32>
    %551 = vector.broadcast %68 : f32 to vector<16x16xf32>
    %552 = arith.mulf %550, %551 : vector<16x16xf32>
    %553 = arith.addf %540, %552 : vector<16x16xf32>
    %554 = vector.broadcast %104 : f32 to vector<16x16xf32>
    %555 = arith.mulf %550, %554 : vector<16x16xf32>
    %556 = arith.addf %543, %555 : vector<16x16xf32>
    %557 = vector.broadcast %140 : f32 to vector<16x16xf32>
    %558 = arith.mulf %550, %557 : vector<16x16xf32>
    %559 = arith.addf %546, %558 : vector<16x16xf32>
    %560 = vector.broadcast %176 : f32 to vector<16x16xf32>
    %561 = arith.mulf %550, %560 : vector<16x16xf32>
    %562 = arith.addf %549, %561 : vector<16x16xf32>
    %c0_112 = arith.constant 0 : index
    %c3_113 = arith.constant 3 : index
    %c0_114 = arith.constant 0 : index
    %c0_115 = arith.constant 0 : index
    %563 = vector.load %arg6[%c0_112, %c3_113, %c0_114, %c0_115] : memref<2x4x20x20xf32, #tpu.memory_space<vmem>>, vector<1x1x20x16xf32>
    %564 = vector.shape_cast %563 : vector<1x1x20x16xf32> to vector<20x16xf32>
    %565 = vector.extract_strided_slice %564 {offsets = [0, 0], sizes = [16, 16], strides = [1, 1]} : vector<20x16xf32> to vector<16x16xf32>
    %566 = vector.broadcast %69 : f32 to vector<16x16xf32>
    %567 = arith.mulf %565, %566 : vector<16x16xf32>
    %568 = arith.addf %553, %567 : vector<16x16xf32>
    %569 = vector.broadcast %105 : f32 to vector<16x16xf32>
    %570 = arith.mulf %565, %569 : vector<16x16xf32>
    %571 = arith.addf %556, %570 : vector<16x16xf32>
    %572 = vector.broadcast %141 : f32 to vector<16x16xf32>
    %573 = arith.mulf %565, %572 : vector<16x16xf32>
    %574 = arith.addf %559, %573 : vector<16x16xf32>
    %575 = vector.broadcast %177 : f32 to vector<16x16xf32>
    %576 = arith.mulf %565, %575 : vector<16x16xf32>
    %577 = arith.addf %562, %576 : vector<16x16xf32>
    %578 = vector.extract_strided_slice %564 {offsets = [2, 0], sizes = [16, 16], strides = [1, 1]} : vector<20x16xf32> to vector<16x16xf32>
    %579 = vector.broadcast %72 : f32 to vector<16x16xf32>
    %580 = arith.mulf %578, %579 : vector<16x16xf32>
    %581 = arith.addf %568, %580 : vector<16x16xf32>
    %582 = vector.broadcast %108 : f32 to vector<16x16xf32>
    %583 = arith.mulf %578, %582 : vector<16x16xf32>
    %584 = arith.addf %571, %583 : vector<16x16xf32>
    %585 = vector.broadcast %144 : f32 to vector<16x16xf32>
    %586 = arith.mulf %578, %585 : vector<16x16xf32>
    %587 = arith.addf %574, %586 : vector<16x16xf32>
    %588 = vector.broadcast %180 : f32 to vector<16x16xf32>
    %589 = arith.mulf %578, %588 : vector<16x16xf32>
    %590 = arith.addf %577, %589 : vector<16x16xf32>
    %591 = vector.extract_strided_slice %564 {offsets = [4, 0], sizes = [16, 16], strides = [1, 1]} : vector<20x16xf32> to vector<16x16xf32>
    %592 = vector.broadcast %75 : f32 to vector<16x16xf32>
    %593 = arith.mulf %591, %592 : vector<16x16xf32>
    %594 = arith.addf %581, %593 : vector<16x16xf32>
    %595 = vector.broadcast %111 : f32 to vector<16x16xf32>
    %596 = arith.mulf %591, %595 : vector<16x16xf32>
    %597 = arith.addf %584, %596 : vector<16x16xf32>
    %598 = vector.broadcast %147 : f32 to vector<16x16xf32>
    %599 = arith.mulf %591, %598 : vector<16x16xf32>
    %600 = arith.addf %587, %599 : vector<16x16xf32>
    %601 = vector.broadcast %183 : f32 to vector<16x16xf32>
    %602 = arith.mulf %591, %601 : vector<16x16xf32>
    %603 = arith.addf %590, %602 : vector<16x16xf32>
    %c0_116 = arith.constant 0 : index
    %c3_117 = arith.constant 3 : index
    %c0_118 = arith.constant 0 : index
    %c2_119 = arith.constant 2 : index
    %604 = vector.load %arg6[%c0_116, %c3_117, %c0_118, %c2_119] : memref<2x4x20x20xf32, #tpu.memory_space<vmem>>, vector<1x1x20x16xf32>
    %605 = vector.shape_cast %604 : vector<1x1x20x16xf32> to vector<20x16xf32>
    %606 = vector.extract_strided_slice %605 {offsets = [0, 0], sizes = [16, 16], strides = [1, 1]} : vector<20x16xf32> to vector<16x16xf32>
    %607 = vector.broadcast %70 : f32 to vector<16x16xf32>
    %608 = arith.mulf %606, %607 : vector<16x16xf32>
    %609 = arith.addf %594, %608 : vector<16x16xf32>
    %610 = vector.broadcast %106 : f32 to vector<16x16xf32>
    %611 = arith.mulf %606, %610 : vector<16x16xf32>
    %612 = arith.addf %597, %611 : vector<16x16xf32>
    %613 = vector.broadcast %142 : f32 to vector<16x16xf32>
    %614 = arith.mulf %606, %613 : vector<16x16xf32>
    %615 = arith.addf %600, %614 : vector<16x16xf32>
    %616 = vector.broadcast %178 : f32 to vector<16x16xf32>
    %617 = arith.mulf %606, %616 : vector<16x16xf32>
    %618 = arith.addf %603, %617 : vector<16x16xf32>
    %619 = vector.extract_strided_slice %605 {offsets = [2, 0], sizes = [16, 16], strides = [1, 1]} : vector<20x16xf32> to vector<16x16xf32>
    %620 = vector.broadcast %73 : f32 to vector<16x16xf32>
    %621 = arith.mulf %619, %620 : vector<16x16xf32>
    %622 = arith.addf %609, %621 : vector<16x16xf32>
    %623 = vector.broadcast %109 : f32 to vector<16x16xf32>
    %624 = arith.mulf %619, %623 : vector<16x16xf32>
    %625 = arith.addf %612, %624 : vector<16x16xf32>
    %626 = vector.broadcast %145 : f32 to vector<16x16xf32>
    %627 = arith.mulf %619, %626 : vector<16x16xf32>
    %628 = arith.addf %615, %627 : vector<16x16xf32>
    %629 = vector.broadcast %181 : f32 to vector<16x16xf32>
    %630 = arith.mulf %619, %629 : vector<16x16xf32>
    %631 = arith.addf %618, %630 : vector<16x16xf32>
    %632 = vector.extract_strided_slice %605 {offsets = [4, 0], sizes = [16, 16], strides = [1, 1]} : vector<20x16xf32> to vector<16x16xf32>
    %633 = vector.broadcast %76 : f32 to vector<16x16xf32>
    %634 = arith.mulf %632, %633 : vector<16x16xf32>
    %635 = arith.addf %622, %634 : vector<16x16xf32>
    %636 = vector.broadcast %112 : f32 to vector<16x16xf32>
    %637 = arith.mulf %632, %636 : vector<16x16xf32>
    %638 = arith.addf %625, %637 : vector<16x16xf32>
    %639 = vector.broadcast %148 : f32 to vector<16x16xf32>
    %640 = arith.mulf %632, %639 : vector<16x16xf32>
    %641 = arith.addf %628, %640 : vector<16x16xf32>
    %642 = vector.broadcast %184 : f32 to vector<16x16xf32>
    %643 = arith.mulf %632, %642 : vector<16x16xf32>
    %644 = arith.addf %631, %643 : vector<16x16xf32>
    %c0_120 = arith.constant 0 : index
    %c3_121 = arith.constant 3 : index
    %c0_122 = arith.constant 0 : index
    %c4_123 = arith.constant 4 : index
    %645 = vector.load %arg6[%c0_120, %c3_121, %c0_122, %c4_123] : memref<2x4x20x20xf32, #tpu.memory_space<vmem>>, vector<1x1x20x16xf32>
    %646 = vector.shape_cast %645 : vector<1x1x20x16xf32> to vector<20x16xf32>
    %647 = vector.extract_strided_slice %646 {offsets = [0, 0], sizes = [16, 16], strides = [1, 1]} : vector<20x16xf32> to vector<16x16xf32>
    %648 = vector.broadcast %71 : f32 to vector<16x16xf32>
    %649 = arith.mulf %647, %648 : vector<16x16xf32>
    %650 = arith.addf %635, %649 : vector<16x16xf32>
    %651 = vector.broadcast %107 : f32 to vector<16x16xf32>
    %652 = arith.mulf %647, %651 : vector<16x16xf32>
    %653 = arith.addf %638, %652 : vector<16x16xf32>
    %654 = vector.broadcast %143 : f32 to vector<16x16xf32>
    %655 = arith.mulf %647, %654 : vector<16x16xf32>
    %656 = arith.addf %641, %655 : vector<16x16xf32>
    %657 = vector.broadcast %179 : f32 to vector<16x16xf32>
    %658 = arith.mulf %647, %657 : vector<16x16xf32>
    %659 = arith.addf %644, %658 : vector<16x16xf32>
    %660 = vector.extract_strided_slice %646 {offsets = [2, 0], sizes = [16, 16], strides = [1, 1]} : vector<20x16xf32> to vector<16x16xf32>
    %661 = vector.broadcast %74 : f32 to vector<16x16xf32>
    %662 = arith.mulf %660, %661 : vector<16x16xf32>
    %663 = arith.addf %650, %662 : vector<16x16xf32>
    %664 = vector.broadcast %110 : f32 to vector<16x16xf32>
    %665 = arith.mulf %660, %664 : vector<16x16xf32>
    %666 = arith.addf %653, %665 : vector<16x16xf32>
    %667 = vector.broadcast %146 : f32 to vector<16x16xf32>
    %668 = arith.mulf %660, %667 : vector<16x16xf32>
    %669 = arith.addf %656, %668 : vector<16x16xf32>
    %670 = vector.broadcast %182 : f32 to vector<16x16xf32>
    %671 = arith.mulf %660, %670 : vector<16x16xf32>
    %672 = arith.addf %659, %671 : vector<16x16xf32>
    %673 = vector.extract_strided_slice %646 {offsets = [4, 0], sizes = [16, 16], strides = [1, 1]} : vector<20x16xf32> to vector<16x16xf32>
    %674 = vector.broadcast %77 : f32 to vector<16x16xf32>
    %675 = arith.mulf %673, %674 : vector<16x16xf32>
    %676 = arith.addf %663, %675 : vector<16x16xf32>
    %677 = vector.broadcast %113 : f32 to vector<16x16xf32>
    %678 = arith.mulf %673, %677 : vector<16x16xf32>
    %679 = arith.addf %666, %678 : vector<16x16xf32>
    %680 = vector.broadcast %149 : f32 to vector<16x16xf32>
    %681 = arith.mulf %673, %680 : vector<16x16xf32>
    %682 = arith.addf %669, %681 : vector<16x16xf32>
    %683 = vector.broadcast %185 : f32 to vector<16x16xf32>
    %684 = arith.mulf %673, %683 : vector<16x16xf32>
    %685 = arith.addf %672, %684 : vector<16x16xf32>
    %c0_124 = arith.constant 0 : index
    %c0_125 = arith.constant 0 : index
    %c0_126 = arith.constant 0 : index
    %c0_127 = arith.constant 0 : index
    %686 = vector.load %arg7[%c0_124, %c0_125, %c0_126, %c0_127] : memref<2x4x16x16xf32, #tpu.memory_space<vmem>>, vector<1x1x16x16xf32>
    %687 = vector.shape_cast %686 : vector<1x1x16x16xf32> to vector<16x16xf32>
    %688 = vector.shape_cast %676 : vector<16x16xf32> to vector<1x1x16x16xf32>
    tpu.vector_store %arg7[%c0_124, %c0_125, %c0_126, %c0_127], %688 {strides = array<i32>} : memref<2x4x16x16xf32, #tpu.memory_space<vmem>>, vector<1x1x16x16xf32>,
    %cst_128 = arith.constant dense<0.000000e+00> : vector<16xf32>
    %689 = vector.multi_reduction <add>, %676, %cst_128 [1] : vector<16x16xf32> to vector<16xf32>
    %690 = vector.shape_cast %689 : vector<16xf32> to vector<16x1xf32>
    %cst_129 = arith.constant dense<0.000000e+00> : vector<1xf32>
    %691 = vector.multi_reduction <add>, %690, %cst_129 [0] : vector<16x1xf32> to vector<1xf32>
    %692 = vector.shape_cast %691 : vector<1xf32> to vector<1x1xf32>
    %693 = arith.addf %186, %692 : vector<1x1xf32>
    %c0_130 = arith.constant 0 : index
    %c1_131 = arith.constant 1 : index
    %c0_132 = arith.constant 0 : index
    %c0_133 = arith.constant 0 : index
    %694 = vector.load %arg7[%c0_130, %c1_131, %c0_132, %c0_133] : memref<2x4x16x16xf32, #tpu.memory_space<vmem>>, vector<1x1x16x16xf32>
    %695 = vector.shape_cast %694 : vector<1x1x16x16xf32> to vector<16x16xf32>
    %696 = vector.shape_cast %679 : vector<16x16xf32> to vector<1x1x16x16xf32>
    tpu.vector_store %arg7[%c0_130, %c1_131, %c0_132, %c0_133], %696 {strides = array<i32>} : memref<2x4x16x16xf32, #tpu.memory_space<vmem>>, vector<1x1x16x16xf32>,
    %cst_134 = arith.constant dense<0.000000e+00> : vector<16xf32>
    %697 = vector.multi_reduction <add>, %679, %cst_134 [1] : vector<16x16xf32> to vector<16xf32>
    %698 = vector.shape_cast %697 : vector<16xf32> to vector<16x1xf32>
    %cst_135 = arith.constant dense<0.000000e+00> : vector<1xf32>
    %699 = vector.multi_reduction <add>, %698, %cst_135 [0] : vector<16x1xf32> to vector<1xf32>
    %700 = vector.shape_cast %699 : vector<1xf32> to vector<1x1xf32>
    %701 = arith.addf %187, %700 : vector<1x1xf32>
    %c0_136 = arith.constant 0 : index
    %c2_137 = arith.constant 2 : index
    %c0_138 = arith.constant 0 : index
    %c0_139 = arith.constant 0 : index
    %702 = vector.load %arg7[%c0_136, %c2_137, %c0_138, %c0_139] : memref<2x4x16x16xf32, #tpu.memory_space<vmem>>, vector<1x1x16x16xf32>
    %703 = vector.shape_cast %702 : vector<1x1x16x16xf32> to vector<16x16xf32>
    %704 = vector.shape_cast %682 : vector<16x16xf32> to vector<1x1x16x16xf32>
    tpu.vector_store %arg7[%c0_136, %c2_137, %c0_138, %c0_139], %704 {strides = array<i32>} : memref<2x4x16x16xf32, #tpu.memory_space<vmem>>, vector<1x1x16x16xf32>,
    %cst_140 = arith.constant dense<0.000000e+00> : vector<16xf32>
    %705 = vector.multi_reduction <add>, %682, %cst_140 [1] : vector<16x16xf32> to vector<16xf32>
    %706 = vector.shape_cast %705 : vector<16xf32> to vector<16x1xf32>
    %cst_141 = arith.constant dense<0.000000e+00> : vector<1xf32>
    %707 = vector.multi_reduction <add>, %706, %cst_141 [0] : vector<16x1xf32> to vector<1xf32>
    %708 = vector.shape_cast %707 : vector<1xf32> to vector<1x1xf32>
    %709 = arith.addf %188, %708 : vector<1x1xf32>
    %c0_142 = arith.constant 0 : index
    %c3_143 = arith.constant 3 : index
    %c0_144 = arith.constant 0 : index
    %c0_145 = arith.constant 0 : index
    %710 = vector.load %arg7[%c0_142, %c3_143, %c0_144, %c0_145] : memref<2x4x16x16xf32, #tpu.memory_space<vmem>>, vector<1x1x16x16xf32>
    %711 = vector.shape_cast %710 : vector<1x1x16x16xf32> to vector<16x16xf32>
    %712 = vector.shape_cast %685 : vector<16x16xf32> to vector<1x1x16x16xf32>
    tpu.vector_store %arg7[%c0_142, %c3_143, %c0_144, %c0_145], %712 {strides = array<i32>} : memref<2x4x16x16xf32, #tpu.memory_space<vmem>>, vector<1x1x16x16xf32>,
    %cst_146 = arith.constant dense<0.000000e+00> : vector<16xf32>
    %713 = vector.multi_reduction <add>, %685, %cst_146 [1] : vector<16x16xf32> to vector<16xf32>
    %714 = vector.shape_cast %713 : vector<16xf32> to vector<16x1xf32>
    %cst_147 = arith.constant dense<0.000000e+00> : vector<1xf32>
    %715 = vector.multi_reduction <add>, %714, %cst_147 [0] : vector<16x1xf32> to vector<1xf32>
    %716 = vector.shape_cast %715 : vector<1xf32> to vector<1x1xf32>
    %717 = arith.addf %189, %716 : vector<1x1xf32>
    %cst_148 = arith.constant 0.000000e+00 : f32
    %718 = vector.broadcast %cst_148 : f32 to vector<16x16xf32>
    %cst_149 = arith.constant 0.000000e+00 : f32
    %719 = vector.broadcast %cst_149 : f32 to vector<16x16xf32>
    %cst_150 = arith.constant 0.000000e+00 : f32
    %720 = vector.broadcast %cst_150 : f32 to vector<16x16xf32>
    %cst_151 = arith.constant 0.000000e+00 : f32
    %721 = vector.broadcast %cst_151 : f32 to vector<16x16xf32>
    %c1_152 = arith.constant 1 : index
    %c0_153 = arith.constant 0 : index
    %c0_154 = arith.constant 0 : index
    %c0_155 = arith.constant 0 : index
    %722 = vector.load %arg6[%c1_152, %c0_153, %c0_154, %c0_155] : memref<2x4x20x20xf32, #tpu.memory_space<vmem>>, vector<1x1x20x16xf32>
    %723 = vector.shape_cast %722 : vector<1x1x20x16xf32> to vector<20x16xf32>
    %724 = vector.extract_strided_slice %723 {offsets = [0, 0], sizes = [16, 16], strides = [1, 1]} : vector<20x16xf32> to vector<16x16xf32>
    %725 = vector.broadcast %42 : f32 to vector<16x16xf32>
    %726 = arith.mulf %724, %725 : vector<16x16xf32>
    %727 = arith.addf %718, %726 : vector<16x16xf32>
    %728 = vector.broadcast %78 : f32 to vector<16x16xf32>
    %729 = arith.mulf %724, %728 : vector<16x16xf32>
    %730 = arith.addf %719, %729 : vector<16x16xf32>
    %731 = vector.broadcast %114 : f32 to vector<16x16xf32>
    %732 = arith.mulf %724, %731 : vector<16x16xf32>
    %733 = arith.addf %720, %732 : vector<16x16xf32>
    %734 = vector.broadcast %150 : f32 to vector<16x16xf32>
    %735 = arith.mulf %724, %734 : vector<16x16xf32>
    %736 = arith.addf %721, %735 : vector<16x16xf32>
    %737 = vector.extract_strided_slice %723 {offsets = [2, 0], sizes = [16, 16], strides = [1, 1]} : vector<20x16xf32> to vector<16x16xf32>
    %738 = vector.broadcast %45 : f32 to vector<16x16xf32>
    %739 = arith.mulf %737, %738 : vector<16x16xf32>
    %740 = arith.addf %727, %739 : vector<16x16xf32>
    %741 = vector.broadcast %81 : f32 to vector<16x16xf32>
    %742 = arith.mulf %737, %741 : vector<16x16xf32>
    %743 = arith.addf %730, %742 : vector<16x16xf32>
    %744 = vector.broadcast %117 : f32 to vector<16x16xf32>
    %745 = arith.mulf %737, %744 : vector<16x16xf32>
    %746 = arith.addf %733, %745 : vector<16x16xf32>
    %747 = vector.broadcast %153 : f32 to vector<16x16xf32>
    %748 = arith.mulf %737, %747 : vector<16x16xf32>
    %749 = arith.addf %736, %748 : vector<16x16xf32>
    %750 = vector.extract_strided_slice %723 {offsets = [4, 0], sizes = [16, 16], strides = [1, 1]} : vector<20x16xf32> to vector<16x16xf32>
    %751 = vector.broadcast %48 : f32 to vector<16x16xf32>
    %752 = arith.mulf %750, %751 : vector<16x16xf32>
    %753 = arith.addf %740, %752 : vector<16x16xf32>
    %754 = vector.broadcast %84 : f32 to vector<16x16xf32>
    %755 = arith.mulf %750, %754 : vector<16x16xf32>
    %756 = arith.addf %743, %755 : vector<16x16xf32>
    %757 = vector.broadcast %120 : f32 to vector<16x16xf32>
    %758 = arith.mulf %750, %757 : vector<16x16xf32>
    %759 = arith.addf %746, %758 : vector<16x16xf32>
    %760 = vector.broadcast %156 : f32 to vector<16x16xf32>
    %761 = arith.mulf %750, %760 : vector<16x16xf32>
    %762 = arith.addf %749, %761 : vector<16x16xf32>
    %c1_156 = arith.constant 1 : index
    %c0_157 = arith.constant 0 : index
    %c0_158 = arith.constant 0 : index
    %c2_159 = arith.constant 2 : index
    %763 = vector.load %arg6[%c1_156, %c0_157, %c0_158, %c2_159] : memref<2x4x20x20xf32, #tpu.memory_space<vmem>>, vector<1x1x20x16xf32>
    %764 = vector.shape_cast %763 : vector<1x1x20x16xf32> to vector<20x16xf32>
    %765 = vector.extract_strided_slice %764 {offsets = [0, 0], sizes = [16, 16], strides = [1, 1]} : vector<20x16xf32> to vector<16x16xf32>
    %766 = vector.broadcast %43 : f32 to vector<16x16xf32>
    %767 = arith.mulf %765, %766 : vector<16x16xf32>
    %768 = arith.addf %753, %767 : vector<16x16xf32>
    %769 = vector.broadcast %79 : f32 to vector<16x16xf32>
    %770 = arith.mulf %765, %769 : vector<16x16xf32>
    %771 = arith.addf %756, %770 : vector<16x16xf32>
    %772 = vector.broadcast %115 : f32 to vector<16x16xf32>
    %773 = arith.mulf %765, %772 : vector<16x16xf32>
    %774 = arith.addf %759, %773 : vector<16x16xf32>
    %775 = vector.broadcast %151 : f32 to vector<16x16xf32>
    %776 = arith.mulf %765, %775 : vector<16x16xf32>
    %777 = arith.addf %762, %776 : vector<16x16xf32>
    %778 = vector.extract_strided_slice %764 {offsets = [2, 0], sizes = [16, 16], strides = [1, 1]} : vector<20x16xf32> to vector<16x16xf32>
    %779 = vector.broadcast %46 : f32 to vector<16x16xf32>
    %780 = arith.mulf %778, %779 : vector<16x16xf32>
    %781 = arith.addf %768, %780 : vector<16x16xf32>
    %782 = vector.broadcast %82 : f32 to vector<16x16xf32>
    %783 = arith.mulf %778, %782 : vector<16x16xf32>
    %784 = arith.addf %771, %783 : vector<16x16xf32>
    %785 = vector.broadcast %118 : f32 to vector<16x16xf32>
    %786 = arith.mulf %778, %785 : vector<16x16xf32>
    %787 = arith.addf %774, %786 : vector<16x16xf32>
    %788 = vector.broadcast %154 : f32 to vector<16x16xf32>
    %789 = arith.mulf %778, %788 : vector<16x16xf32>
    %790 = arith.addf %777, %789 : vector<16x16xf32>
    %791 = vector.extract_strided_slice %764 {offsets = [4, 0], sizes = [16, 16], strides = [1, 1]} : vector<20x16xf32> to vector<16x16xf32>
    %792 = vector.broadcast %49 : f32 to vector<16x16xf32>
    %793 = arith.mulf %791, %792 : vector<16x16xf32>
    %794 = arith.addf %781, %793 : vector<16x16xf32>
    %795 = vector.broadcast %85 : f32 to vector<16x16xf32>
    %796 = arith.mulf %791, %795 : vector<16x16xf32>
    %797 = arith.addf %784, %796 : vector<16x16xf32>
    %798 = vector.broadcast %121 : f32 to vector<16x16xf32>
    %799 = arith.mulf %791, %798 : vector<16x16xf32>
    %800 = arith.addf %787, %799 : vector<16x16xf32>
    %801 = vector.broadcast %157 : f32 to vector<16x16xf32>
    %802 = arith.mulf %791, %801 : vector<16x16xf32>
    %803 = arith.addf %790, %802 : vector<16x16xf32>
    %c1_160 = arith.constant 1 : index
    %c0_161 = arith.constant 0 : index
    %c0_162 = arith.constant 0 : index
    %c4_163 = arith.constant 4 : index
    %804 = vector.load %arg6[%c1_160, %c0_161, %c0_162, %c4_163] : memref<2x4x20x20xf32, #tpu.memory_space<vmem>>, vector<1x1x20x16xf32>
    %805 = vector.shape_cast %804 : vector<1x1x20x16xf32> to vector<20x16xf32>
    %806 = vector.extract_strided_slice %805 {offsets = [0, 0], sizes = [16, 16], strides = [1, 1]} : vector<20x16xf32> to vector<16x16xf32>
    %807 = vector.broadcast %44 : f32 to vector<16x16xf32>
    %808 = arith.mulf %806, %807 : vector<16x16xf32>
    %809 = arith.addf %794, %808 : vector<16x16xf32>
    %810 = vector.broadcast %80 : f32 to vector<16x16xf32>
    %811 = arith.mulf %806, %810 : vector<16x16xf32>
    %812 = arith.addf %797, %811 : vector<16x16xf32>
    %813 = vector.broadcast %116 : f32 to vector<16x16xf32>
    %814 = arith.mulf %806, %813 : vector<16x16xf32>
    %815 = arith.addf %800, %814 : vector<16x16xf32>
    %816 = vector.broadcast %152 : f32 to vector<16x16xf32>
    %817 = arith.mulf %806, %816 : vector<16x16xf32>
    %818 = arith.addf %803, %817 : vector<16x16xf32>
    %819 = vector.extract_strided_slice %805 {offsets = [2, 0], sizes = [16, 16], strides = [1, 1]} : vector<20x16xf32> to vector<16x16xf32>
    %820 = vector.broadcast %47 : f32 to vector<16x16xf32>
    %821 = arith.mulf %819, %820 : vector<16x16xf32>
    %822 = arith.addf %809, %821 : vector<16x16xf32>
    %823 = vector.broadcast %83 : f32 to vector<16x16xf32>
    %824 = arith.mulf %819, %823 : vector<16x16xf32>
    %825 = arith.addf %812, %824 : vector<16x16xf32>
    %826 = vector.broadcast %119 : f32 to vector<16x16xf32>
    %827 = arith.mulf %819, %826 : vector<16x16xf32>
    %828 = arith.addf %815, %827 : vector<16x16xf32>
    %829 = vector.broadcast %155 : f32 to vector<16x16xf32>
    %830 = arith.mulf %819, %829 : vector<16x16xf32>
    %831 = arith.addf %818, %830 : vector<16x16xf32>
    %832 = vector.extract_strided_slice %805 {offsets = [4, 0], sizes = [16, 16], strides = [1, 1]} : vector<20x16xf32> to vector<16x16xf32>
    %833 = vector.broadcast %50 : f32 to vector<16x16xf32>
    %834 = arith.mulf %832, %833 : vector<16x16xf32>
    %835 = arith.addf %822, %834 : vector<16x16xf32>
    %836 = vector.broadcast %86 : f32 to vector<16x16xf32>
    %837 = arith.mulf %832, %836 : vector<16x16xf32>
    %838 = arith.addf %825, %837 : vector<16x16xf32>
    %839 = vector.broadcast %122 : f32 to vector<16x16xf32>
    %840 = arith.mulf %832, %839 : vector<16x16xf32>
    %841 = arith.addf %828, %840 : vector<16x16xf32>
    %842 = vector.broadcast %158 : f32 to vector<16x16xf32>
    %843 = arith.mulf %832, %842 : vector<16x16xf32>
    %844 = arith.addf %831, %843 : vector<16x16xf32>
    %c1_164 = arith.constant 1 : index
    %c1_165 = arith.constant 1 : index
    %c0_166 = arith.constant 0 : index
    %c0_167 = arith.constant 0 : index
    %845 = vector.load %arg6[%c1_164, %c1_165, %c0_166, %c0_167] : memref<2x4x20x20xf32, #tpu.memory_space<vmem>>, vector<1x1x20x16xf32>
    %846 = vector.shape_cast %845 : vector<1x1x20x16xf32> to vector<20x16xf32>
    %847 = vector.extract_strided_slice %846 {offsets = [0, 0], sizes = [16, 16], strides = [1, 1]} : vector<20x16xf32> to vector<16x16xf32>
    %848 = vector.broadcast %51 : f32 to vector<16x16xf32>
    %849 = arith.mulf %847, %848 : vector<16x16xf32>
    %850 = arith.addf %835, %849 : vector<16x16xf32>
    %851 = vector.broadcast %87 : f32 to vector<16x16xf32>
    %852 = arith.mulf %847, %851 : vector<16x16xf32>
    %853 = arith.addf %838, %852 : vector<16x16xf32>
    %854 = vector.broadcast %123 : f32 to vector<16x16xf32>
    %855 = arith.mulf %847, %854 : vector<16x16xf32>
    %856 = arith.addf %841, %855 : vector<16x16xf32>
    %857 = vector.broadcast %159 : f32 to vector<16x16xf32>
    %858 = arith.mulf %847, %857 : vector<16x16xf32>
    %859 = arith.addf %844, %858 : vector<16x16xf32>
    %860 = vector.extract_strided_slice %846 {offsets = [2, 0], sizes = [16, 16], strides = [1, 1]} : vector<20x16xf32> to vector<16x16xf32>
    %861 = vector.broadcast %54 : f32 to vector<16x16xf32>
    %862 = arith.mulf %860, %861 : vector<16x16xf32>
    %863 = arith.addf %850, %862 : vector<16x16xf32>
    %864 = vector.broadcast %90 : f32 to vector<16x16xf32>
    %865 = arith.mulf %860, %864 : vector<16x16xf32>
    %866 = arith.addf %853, %865 : vector<16x16xf32>
    %867 = vector.broadcast %126 : f32 to vector<16x16xf32>
    %868 = arith.mulf %860, %867 : vector<16x16xf32>
    %869 = arith.addf %856, %868 : vector<16x16xf32>
    %870 = vector.broadcast %162 : f32 to vector<16x16xf32>
    %871 = arith.mulf %860, %870 : vector<16x16xf32>
    %872 = arith.addf %859, %871 : vector<16x16xf32>
    %873 = vector.extract_strided_slice %846 {offsets = [4, 0], sizes = [16, 16], strides = [1, 1]} : vector<20x16xf32> to vector<16x16xf32>
    %874 = vector.broadcast %57 : f32 to vector<16x16xf32>
    %875 = arith.mulf %873, %874 : vector<16x16xf32>
    %876 = arith.addf %863, %875 : vector<16x16xf32>
    %877 = vector.broadcast %93 : f32 to vector<16x16xf32>
    %878 = arith.mulf %873, %877 : vector<16x16xf32>
    %879 = arith.addf %866, %878 : vector<16x16xf32>
    %880 = vector.broadcast %129 : f32 to vector<16x16xf32>
    %881 = arith.mulf %873, %880 : vector<16x16xf32>
    %882 = arith.addf %869, %881 : vector<16x16xf32>
    %883 = vector.broadcast %165 : f32 to vector<16x16xf32>
    %884 = arith.mulf %873, %883 : vector<16x16xf32>
    %885 = arith.addf %872, %884 : vector<16x16xf32>
    %c1_168 = arith.constant 1 : index
    %c1_169 = arith.constant 1 : index
    %c0_170 = arith.constant 0 : index
    %c2_171 = arith.constant 2 : index
    %886 = vector.load %arg6[%c1_168, %c1_169, %c0_170, %c2_171] : memref<2x4x20x20xf32, #tpu.memory_space<vmem>>, vector<1x1x20x16xf32>
    %887 = vector.shape_cast %886 : vector<1x1x20x16xf32> to vector<20x16xf32>
    %888 = vector.extract_strided_slice %887 {offsets = [0, 0], sizes = [16, 16], strides = [1, 1]} : vector<20x16xf32> to vector<16x16xf32>
    %889 = vector.broadcast %52 : f32 to vector<16x16xf32>
    %890 = arith.mulf %888, %889 : vector<16x16xf32>
    %891 = arith.addf %876, %890 : vector<16x16xf32>
    %892 = vector.broadcast %88 : f32 to vector<16x16xf32>
    %893 = arith.mulf %888, %892 : vector<16x16xf32>
    %894 = arith.addf %879, %893 : vector<16x16xf32>
    %895 = vector.broadcast %124 : f32 to vector<16x16xf32>
    %896 = arith.mulf %888, %895 : vector<16x16xf32>
    %897 = arith.addf %882, %896 : vector<16x16xf32>
    %898 = vector.broadcast %160 : f32 to vector<16x16xf32>
    %899 = arith.mulf %888, %898 : vector<16x16xf32>
    %900 = arith.addf %885, %899 : vector<16x16xf32>
    %901 = vector.extract_strided_slice %887 {offsets = [2, 0], sizes = [16, 16], strides = [1, 1]} : vector<20x16xf32> to vector<16x16xf32>
    %902 = vector.broadcast %55 : f32 to vector<16x16xf32>
    %903 = arith.mulf %901, %902 : vector<16x16xf32>
    %904 = arith.addf %891, %903 : vector<16x16xf32>
    %905 = vector.broadcast %91 : f32 to vector<16x16xf32>
    %906 = arith.mulf %901, %905 : vector<16x16xf32>
    %907 = arith.addf %894, %906 : vector<16x16xf32>
    %908 = vector.broadcast %127 : f32 to vector<16x16xf32>
    %909 = arith.mulf %901, %908 : vector<16x16xf32>
    %910 = arith.addf %897, %909 : vector<16x16xf32>
    %911 = vector.broadcast %163 : f32 to vector<16x16xf32>
    %912 = arith.mulf %901, %911 : vector<16x16xf32>
    %913 = arith.addf %900, %912 : vector<16x16xf32>
    %914 = vector.extract_strided_slice %887 {offsets = [4, 0], sizes = [16, 16], strides = [1, 1]} : vector<20x16xf32> to vector<16x16xf32>
    %915 = vector.broadcast %58 : f32 to vector<16x16xf32>
    %916 = arith.mulf %914, %915 : vector<16x16xf32>
    %917 = arith.addf %904, %916 : vector<16x16xf32>
    %918 = vector.broadcast %94 : f32 to vector<16x16xf32>
    %919 = arith.mulf %914, %918 : vector<16x16xf32>
    %920 = arith.addf %907, %919 : vector<16x16xf32>
    %921 = vector.broadcast %130 : f32 to vector<16x16xf32>
    %922 = arith.mulf %914, %921 : vector<16x16xf32>
    %923 = arith.addf %910, %922 : vector<16x16xf32>
    %924 = vector.broadcast %166 : f32 to vector<16x16xf32>
    %925 = arith.mulf %914, %924 : vector<16x16xf32>
    %926 = arith.addf %913, %925 : vector<16x16xf32>
    %c1_172 = arith.constant 1 : index
    %c1_173 = arith.constant 1 : index
    %c0_174 = arith.constant 0 : index
    %c4_175 = arith.constant 4 : index
    %927 = vector.load %arg6[%c1_172, %c1_173, %c0_174, %c4_175] : memref<2x4x20x20xf32, #tpu.memory_space<vmem>>, vector<1x1x20x16xf32>
    %928 = vector.shape_cast %927 : vector<1x1x20x16xf32> to vector<20x16xf32>
    %929 = vector.extract_strided_slice %928 {offsets = [0, 0], sizes = [16, 16], strides = [1, 1]} : vector<20x16xf32> to vector<16x16xf32>
    %930 = vector.broadcast %53 : f32 to vector<16x16xf32>
    %931 = arith.mulf %929, %930 : vector<16x16xf32>
    %932 = arith.addf %917, %931 : vector<16x16xf32>
    %933 = vector.broadcast %89 : f32 to vector<16x16xf32>
    %934 = arith.mulf %929, %933 : vector<16x16xf32>
    %935 = arith.addf %920, %934 : vector<16x16xf32>
    %936 = vector.broadcast %125 : f32 to vector<16x16xf32>
    %937 = arith.mulf %929, %936 : vector<16x16xf32>
    %938 = arith.addf %923, %937 : vector<16x16xf32>
    %939 = vector.broadcast %161 : f32 to vector<16x16xf32>
    %940 = arith.mulf %929, %939 : vector<16x16xf32>
    %941 = arith.addf %926, %940 : vector<16x16xf32>
    %942 = vector.extract_strided_slice %928 {offsets = [2, 0], sizes = [16, 16], strides = [1, 1]} : vector<20x16xf32> to vector<16x16xf32>
    %943 = vector.broadcast %56 : f32 to vector<16x16xf32>
    %944 = arith.mulf %942, %943 : vector<16x16xf32>
    %945 = arith.addf %932, %944 : vector<16x16xf32>
    %946 = vector.broadcast %92 : f32 to vector<16x16xf32>
    %947 = arith.mulf %942, %946 : vector<16x16xf32>
    %948 = arith.addf %935, %947 : vector<16x16xf32>
    %949 = vector.broadcast %128 : f32 to vector<16x16xf32>
    %950 = arith.mulf %942, %949 : vector<16x16xf32>
    %951 = arith.addf %938, %950 : vector<16x16xf32>
    %952 = vector.broadcast %164 : f32 to vector<16x16xf32>
    %953 = arith.mulf %942, %952 : vector<16x16xf32>
    %954 = arith.addf %941, %953 : vector<16x16xf32>
    %955 = vector.extract_strided_slice %928 {offsets = [4, 0], sizes = [16, 16], strides = [1, 1]} : vector<20x16xf32> to vector<16x16xf32>
    %956 = vector.broadcast %59 : f32 to vector<16x16xf32>
    %957 = arith.mulf %955, %956 : vector<16x16xf32>
    %958 = arith.addf %945, %957 : vector<16x16xf32>
    %959 = vector.broadcast %95 : f32 to vector<16x16xf32>
    %960 = arith.mulf %955, %959 : vector<16x16xf32>
    %961 = arith.addf %948, %960 : vector<16x16xf32>
    %962 = vector.broadcast %131 : f32 to vector<16x16xf32>
    %963 = arith.mulf %955, %962 : vector<16x16xf32>
    %964 = arith.addf %951, %963 : vector<16x16xf32>
    %965 = vector.broadcast %167 : f32 to vector<16x16xf32>
    %966 = arith.mulf %955, %965 : vector<16x16xf32>
    %967 = arith.addf %954, %966 : vector<16x16xf32>
    %c1_176 = arith.constant 1 : index
    %c2_177 = arith.constant 2 : index
    %c0_178 = arith.constant 0 : index
    %c0_179 = arith.constant 0 : index
    %968 = vector.load %arg6[%c1_176, %c2_177, %c0_178, %c0_179] : memref<2x4x20x20xf32, #tpu.memory_space<vmem>>, vector<1x1x20x16xf32>
    %969 = vector.shape_cast %968 : vector<1x1x20x16xf32> to vector<20x16xf32>
    %970 = vector.extract_strided_slice %969 {offsets = [0, 0], sizes = [16, 16], strides = [1, 1]} : vector<20x16xf32> to vector<16x16xf32>
    %971 = vector.broadcast %60 : f32 to vector<16x16xf32>
    %972 = arith.mulf %970, %971 : vector<16x16xf32>
    %973 = arith.addf %958, %972 : vector<16x16xf32>
    %974 = vector.broadcast %96 : f32 to vector<16x16xf32>
    %975 = arith.mulf %970, %974 : vector<16x16xf32>
    %976 = arith.addf %961, %975 : vector<16x16xf32>
    %977 = vector.broadcast %132 : f32 to vector<16x16xf32>
    %978 = arith.mulf %970, %977 : vector<16x16xf32>
    %979 = arith.addf %964, %978 : vector<16x16xf32>
    %980 = vector.broadcast %168 : f32 to vector<16x16xf32>
    %981 = arith.mulf %970, %980 : vector<16x16xf32>
    %982 = arith.addf %967, %981 : vector<16x16xf32>
    %983 = vector.extract_strided_slice %969 {offsets = [2, 0], sizes = [16, 16], strides = [1, 1]} : vector<20x16xf32> to vector<16x16xf32>
    %984 = vector.broadcast %63 : f32 to vector<16x16xf32>
    %985 = arith.mulf %983, %984 : vector<16x16xf32>
    %986 = arith.addf %973, %985 : vector<16x16xf32>
    %987 = vector.broadcast %99 : f32 to vector<16x16xf32>
    %988 = arith.mulf %983, %987 : vector<16x16xf32>
    %989 = arith.addf %976, %988 : vector<16x16xf32>
    %990 = vector.broadcast %135 : f32 to vector<16x16xf32>
    %991 = arith.mulf %983, %990 : vector<16x16xf32>
    %992 = arith.addf %979, %991 : vector<16x16xf32>
    %993 = vector.broadcast %171 : f32 to vector<16x16xf32>
    %994 = arith.mulf %983, %993 : vector<16x16xf32>
    %995 = arith.addf %982, %994 : vector<16x16xf32>
    %996 = vector.extract_strided_slice %969 {offsets = [4, 0], sizes = [16, 16], strides = [1, 1]} : vector<20x16xf32> to vector<16x16xf32>
    %997 = vector.broadcast %66 : f32 to vector<16x16xf32>
    %998 = arith.mulf %996, %997 : vector<16x16xf32>
    %999 = arith.addf %986, %998 : vector<16x16xf32>
    %1000 = vector.broadcast %102 : f32 to vector<16x16xf32>
    %1001 = arith.mulf %996, %1000 : vector<16x16xf32>
    %1002 = arith.addf %989, %1001 : vector<16x16xf32>
    %1003 = vector.broadcast %138 : f32 to vector<16x16xf32>
    %1004 = arith.mulf %996, %1003 : vector<16x16xf32>
    %1005 = arith.addf %992, %1004 : vector<16x16xf32>
    %1006 = vector.broadcast %174 : f32 to vector<16x16xf32>
    %1007 = arith.mulf %996, %1006 : vector<16x16xf32>
    %1008 = arith.addf %995, %1007 : vector<16x16xf32>
    %c1_180 = arith.constant 1 : index
    %c2_181 = arith.constant 2 : index
    %c0_182 = arith.constant 0 : index
    %c2_183 = arith.constant 2 : index
    %1009 = vector.load %arg6[%c1_180, %c2_181, %c0_182, %c2_183] : memref<2x4x20x20xf32, #tpu.memory_space<vmem>>, vector<1x1x20x16xf32>
    %1010 = vector.shape_cast %1009 : vector<1x1x20x16xf32> to vector<20x16xf32>
    %1011 = vector.extract_strided_slice %1010 {offsets = [0, 0], sizes = [16, 16], strides = [1, 1]} : vector<20x16xf32> to vector<16x16xf32>
    %1012 = vector.broadcast %61 : f32 to vector<16x16xf32>
    %1013 = arith.mulf %1011, %1012 : vector<16x16xf32>
    %1014 = arith.addf %999, %1013 : vector<16x16xf32>
    %1015 = vector.broadcast %97 : f32 to vector<16x16xf32>
    %1016 = arith.mulf %1011, %1015 : vector<16x16xf32>
    %1017 = arith.addf %1002, %1016 : vector<16x16xf32>
    %1018 = vector.broadcast %133 : f32 to vector<16x16xf32>
    %1019 = arith.mulf %1011, %1018 : vector<16x16xf32>
    %1020 = arith.addf %1005, %1019 : vector<16x16xf32>
    %1021 = vector.broadcast %169 : f32 to vector<16x16xf32>
    %1022 = arith.mulf %1011, %1021 : vector<16x16xf32>
    %1023 = arith.addf %1008, %1022 : vector<16x16xf32>
    %1024 = vector.extract_strided_slice %1010 {offsets = [2, 0], sizes = [16, 16], strides = [1, 1]} : vector<20x16xf32> to vector<16x16xf32>
    %1025 = vector.broadcast %64 : f32 to vector<16x16xf32>
    %1026 = arith.mulf %1024, %1025 : vector<16x16xf32>
    %1027 = arith.addf %1014, %1026 : vector<16x16xf32>
    %1028 = vector.broadcast %100 : f32 to vector<16x16xf32>
    %1029 = arith.mulf %1024, %1028 : vector<16x16xf32>
    %1030 = arith.addf %1017, %1029 : vector<16x16xf32>
    %1031 = vector.broadcast %136 : f32 to vector<16x16xf32>
    %1032 = arith.mulf %1024, %1031 : vector<16x16xf32>
    %1033 = arith.addf %1020, %1032 : vector<16x16xf32>
    %1034 = vector.broadcast %172 : f32 to vector<16x16xf32>
    %1035 = arith.mulf %1024, %1034 : vector<16x16xf32>
    %1036 = arith.addf %1023, %1035 : vector<16x16xf32>
    %1037 = vector.extract_strided_slice %1010 {offsets = [4, 0], sizes = [16, 16], strides = [1, 1]} : vector<20x16xf32> to vector<16x16xf32>
    %1038 = vector.broadcast %67 : f32 to vector<16x16xf32>
    %1039 = arith.mulf %1037, %1038 : vector<16x16xf32>
    %1040 = arith.addf %1027, %1039 : vector<16x16xf32>
    %1041 = vector.broadcast %103 : f32 to vector<16x16xf32>
    %1042 = arith.mulf %1037, %1041 : vector<16x16xf32>
    %1043 = arith.addf %1030, %1042 : vector<16x16xf32>
    %1044 = vector.broadcast %139 : f32 to vector<16x16xf32>
    %1045 = arith.mulf %1037, %1044 : vector<16x16xf32>
    %1046 = arith.addf %1033, %1045 : vector<16x16xf32>
    %1047 = vector.broadcast %175 : f32 to vector<16x16xf32>
    %1048 = arith.mulf %1037, %1047 : vector<16x16xf32>
    %1049 = arith.addf %1036, %1048 : vector<16x16xf32>
    %c1_184 = arith.constant 1 : index
    %c2_185 = arith.constant 2 : index
    %c0_186 = arith.constant 0 : index
    %c4_187 = arith.constant 4 : index
    %1050 = vector.load %arg6[%c1_184, %c2_185, %c0_186, %c4_187] : memref<2x4x20x20xf32, #tpu.memory_space<vmem>>, vector<1x1x20x16xf32>
    %1051 = vector.shape_cast %1050 : vector<1x1x20x16xf32> to vector<20x16xf32>
    %1052 = vector.extract_strided_slice %1051 {offsets = [0, 0], sizes = [16, 16], strides = [1, 1]} : vector<20x16xf32> to vector<16x16xf32>
    %1053 = vector.broadcast %62 : f32 to vector<16x16xf32>
    %1054 = arith.mulf %1052, %1053 : vector<16x16xf32>
    %1055 = arith.addf %1040, %1054 : vector<16x16xf32>
    %1056 = vector.broadcast %98 : f32 to vector<16x16xf32>
    %1057 = arith.mulf %1052, %1056 : vector<16x16xf32>
    %1058 = arith.addf %1043, %1057 : vector<16x16xf32>
    %1059 = vector.broadcast %134 : f32 to vector<16x16xf32>
    %1060 = arith.mulf %1052, %1059 : vector<16x16xf32>
    %1061 = arith.addf %1046, %1060 : vector<16x16xf32>
    %1062 = vector.broadcast %170 : f32 to vector<16x16xf32>
    %1063 = arith.mulf %1052, %1062 : vector<16x16xf32>
    %1064 = arith.addf %1049, %1063 : vector<16x16xf32>
    %1065 = vector.extract_strided_slice %1051 {offsets = [2, 0], sizes = [16, 16], strides = [1, 1]} : vector<20x16xf32> to vector<16x16xf32>
    %1066 = vector.broadcast %65 : f32 to vector<16x16xf32>
    %1067 = arith.mulf %1065, %1066 : vector<16x16xf32>
    %1068 = arith.addf %1055, %1067 : vector<16x16xf32>
    %1069 = vector.broadcast %101 : f32 to vector<16x16xf32>
    %1070 = arith.mulf %1065, %1069 : vector<16x16xf32>
    %1071 = arith.addf %1058, %1070 : vector<16x16xf32>
    %1072 = vector.broadcast %137 : f32 to vector<16x16xf32>
    %1073 = arith.mulf %1065, %1072 : vector<16x16xf32>
    %1074 = arith.addf %1061, %1073 : vector<16x16xf32>
    %1075 = vector.broadcast %173 : f32 to vector<16x16xf32>
    %1076 = arith.mulf %1065, %1075 : vector<16x16xf32>
    %1077 = arith.addf %1064, %1076 : vector<16x16xf32>
    %1078 = vector.extract_strided_slice %1051 {offsets = [4, 0], sizes = [16, 16], strides = [1, 1]} : vector<20x16xf32> to vector<16x16xf32>
    %1079 = vector.broadcast %68 : f32 to vector<16x16xf32>
    %1080 = arith.mulf %1078, %1079 : vector<16x16xf32>
    %1081 = arith.addf %1068, %1080 : vector<16x16xf32>
    %1082 = vector.broadcast %104 : f32 to vector<16x16xf32>
    %1083 = arith.mulf %1078, %1082 : vector<16x16xf32>
    %1084 = arith.addf %1071, %1083 : vector<16x16xf32>
    %1085 = vector.broadcast %140 : f32 to vector<16x16xf32>
    %1086 = arith.mulf %1078, %1085 : vector<16x16xf32>
    %1087 = arith.addf %1074, %1086 : vector<16x16xf32>
    %1088 = vector.broadcast %176 : f32 to vector<16x16xf32>
    %1089 = arith.mulf %1078, %1088 : vector<16x16xf32>
    %1090 = arith.addf %1077, %1089 : vector<16x16xf32>
    %c1_188 = arith.constant 1 : index
    %c3_189 = arith.constant 3 : index
    %c0_190 = arith.constant 0 : index
    %c0_191 = arith.constant 0 : index
    %1091 = vector.load %arg6[%c1_188, %c3_189, %c0_190, %c0_191] : memref<2x4x20x20xf32, #tpu.memory_space<vmem>>, vector<1x1x20x16xf32>
    %1092 = vector.shape_cast %1091 : vector<1x1x20x16xf32> to vector<20x16xf32>
    %1093 = vector.extract_strided_slice %1092 {offsets = [0, 0], sizes = [16, 16], strides = [1, 1]} : vector<20x16xf32> to vector<16x16xf32>
    %1094 = vector.broadcast %69 : f32 to vector<16x16xf32>
    %1095 = arith.mulf %1093, %1094 : vector<16x16xf32>
    %1096 = arith.addf %1081, %1095 : vector<16x16xf32>
    %1097 = vector.broadcast %105 : f32 to vector<16x16xf32>
    %1098 = arith.mulf %1093, %1097 : vector<16x16xf32>
    %1099 = arith.addf %1084, %1098 : vector<16x16xf32>
    %1100 = vector.broadcast %141 : f32 to vector<16x16xf32>
    %1101 = arith.mulf %1093, %1100 : vector<16x16xf32>
    %1102 = arith.addf %1087, %1101 : vector<16x16xf32>
    %1103 = vector.broadcast %177 : f32 to vector<16x16xf32>
    %1104 = arith.mulf %1093, %1103 : vector<16x16xf32>
    %1105 = arith.addf %1090, %1104 : vector<16x16xf32>
    %1106 = vector.extract_strided_slice %1092 {offsets = [2, 0], sizes = [16, 16], strides = [1, 1]} : vector<20x16xf32> to vector<16x16xf32>
    %1107 = vector.broadcast %72 : f32 to vector<16x16xf32>
    %1108 = arith.mulf %1106, %1107 : vector<16x16xf32>
    %1109 = arith.addf %1096, %1108 : vector<16x16xf32>
    %1110 = vector.broadcast %108 : f32 to vector<16x16xf32>
    %1111 = arith.mulf %1106, %1110 : vector<16x16xf32>
    %1112 = arith.addf %1099, %1111 : vector<16x16xf32>
    %1113 = vector.broadcast %144 : f32 to vector<16x16xf32>
    %1114 = arith.mulf %1106, %1113 : vector<16x16xf32>
    %1115 = arith.addf %1102, %1114 : vector<16x16xf32>
    %1116 = vector.broadcast %180 : f32 to vector<16x16xf32>
    %1117 = arith.mulf %1106, %1116 : vector<16x16xf32>
    %1118 = arith.addf %1105, %1117 : vector<16x16xf32>
    %1119 = vector.extract_strided_slice %1092 {offsets = [4, 0], sizes = [16, 16], strides = [1, 1]} : vector<20x16xf32> to vector<16x16xf32>
    %1120 = vector.broadcast %75 : f32 to vector<16x16xf32>
    %1121 = arith.mulf %1119, %1120 : vector<16x16xf32>
    %1122 = arith.addf %1109, %1121 : vector<16x16xf32>
    %1123 = vector.broadcast %111 : f32 to vector<16x16xf32>
    %1124 = arith.mulf %1119, %1123 : vector<16x16xf32>
    %1125 = arith.addf %1112, %1124 : vector<16x16xf32>
    %1126 = vector.broadcast %147 : f32 to vector<16x16xf32>
    %1127 = arith.mulf %1119, %1126 : vector<16x16xf32>
    %1128 = arith.addf %1115, %1127 : vector<16x16xf32>
    %1129 = vector.broadcast %183 : f32 to vector<16x16xf32>
    %1130 = arith.mulf %1119, %1129 : vector<16x16xf32>
    %1131 = arith.addf %1118, %1130 : vector<16x16xf32>
    %c1_192 = arith.constant 1 : index
    %c3_193 = arith.constant 3 : index
    %c0_194 = arith.constant 0 : index
    %c2_195 = arith.constant 2 : index
    %1132 = vector.load %arg6[%c1_192, %c3_193, %c0_194, %c2_195] : memref<2x4x20x20xf32, #tpu.memory_space<vmem>>, vector<1x1x20x16xf32>
    %1133 = vector.shape_cast %1132 : vector<1x1x20x16xf32> to vector<20x16xf32>
    %1134 = vector.extract_strided_slice %1133 {offsets = [0, 0], sizes = [16, 16], strides = [1, 1]} : vector<20x16xf32> to vector<16x16xf32>
    %1135 = vector.broadcast %70 : f32 to vector<16x16xf32>
    %1136 = arith.mulf %1134, %1135 : vector<16x16xf32>
    %1137 = arith.addf %1122, %1136 : vector<16x16xf32>
    %1138 = vector.broadcast %106 : f32 to vector<16x16xf32>
    %1139 = arith.mulf %1134, %1138 : vector<16x16xf32>
    %1140 = arith.addf %1125, %1139 : vector<16x16xf32>
    %1141 = vector.broadcast %142 : f32 to vector<16x16xf32>
    %1142 = arith.mulf %1134, %1141 : vector<16x16xf32>
    %1143 = arith.addf %1128, %1142 : vector<16x16xf32>
    %1144 = vector.broadcast %178 : f32 to vector<16x16xf32>
    %1145 = arith.mulf %1134, %1144 : vector<16x16xf32>
    %1146 = arith.addf %1131, %1145 : vector<16x16xf32>
    %1147 = vector.extract_strided_slice %1133 {offsets = [2, 0], sizes = [16, 16], strides = [1, 1]} : vector<20x16xf32> to vector<16x16xf32>
    %1148 = vector.broadcast %73 : f32 to vector<16x16xf32>
    %1149 = arith.mulf %1147, %1148 : vector<16x16xf32>
    %1150 = arith.addf %1137, %1149 : vector<16x16xf32>
    %1151 = vector.broadcast %109 : f32 to vector<16x16xf32>
    %1152 = arith.mulf %1147, %1151 : vector<16x16xf32>
    %1153 = arith.addf %1140, %1152 : vector<16x16xf32>
    %1154 = vector.broadcast %145 : f32 to vector<16x16xf32>
    %1155 = arith.mulf %1147, %1154 : vector<16x16xf32>
    %1156 = arith.addf %1143, %1155 : vector<16x16xf32>
    %1157 = vector.broadcast %181 : f32 to vector<16x16xf32>
    %1158 = arith.mulf %1147, %1157 : vector<16x16xf32>
    %1159 = arith.addf %1146, %1158 : vector<16x16xf32>
    %1160 = vector.extract_strided_slice %1133 {offsets = [4, 0], sizes = [16, 16], strides = [1, 1]} : vector<20x16xf32> to vector<16x16xf32>
    %1161 = vector.broadcast %76 : f32 to vector<16x16xf32>
    %1162 = arith.mulf %1160, %1161 : vector<16x16xf32>
    %1163 = arith.addf %1150, %1162 : vector<16x16xf32>
    %1164 = vector.broadcast %112 : f32 to vector<16x16xf32>
    %1165 = arith.mulf %1160, %1164 : vector<16x16xf32>
    %1166 = arith.addf %1153, %1165 : vector<16x16xf32>
    %1167 = vector.broadcast %148 : f32 to vector<16x16xf32>
    %1168 = arith.mulf %1160, %1167 : vector<16x16xf32>
    %1169 = arith.addf %1156, %1168 : vector<16x16xf32>
    %1170 = vector.broadcast %184 : f32 to vector<16x16xf32>
    %1171 = arith.mulf %1160, %1170 : vector<16x16xf32>
    %1172 = arith.addf %1159, %1171 : vector<16x16xf32>
    %c1_196 = arith.constant 1 : index
    %c3_197 = arith.constant 3 : index
    %c0_198 = arith.constant 0 : index
    %c4_199 = arith.constant 4 : index
    %1173 = vector.load %arg6[%c1_196, %c3_197, %c0_198, %c4_199] : memref<2x4x20x20xf32, #tpu.memory_space<vmem>>, vector<1x1x20x16xf32>
    %1174 = vector.shape_cast %1173 : vector<1x1x20x16xf32> to vector<20x16xf32>
    %1175 = vector.extract_strided_slice %1174 {offsets = [0, 0], sizes = [16, 16], strides = [1, 1]} : vector<20x16xf32> to vector<16x16xf32>
    %1176 = vector.broadcast %71 : f32 to vector<16x16xf32>
    %1177 = arith.mulf %1175, %1176 : vector<16x16xf32>
    %1178 = arith.addf %1163, %1177 : vector<16x16xf32>
    %1179 = vector.broadcast %107 : f32 to vector<16x16xf32>
    %1180 = arith.mulf %1175, %1179 : vector<16x16xf32>
    %1181 = arith.addf %1166, %1180 : vector<16x16xf32>
    %1182 = vector.broadcast %143 : f32 to vector<16x16xf32>
    %1183 = arith.mulf %1175, %1182 : vector<16x16xf32>
    %1184 = arith.addf %1169, %1183 : vector<16x16xf32>
    %1185 = vector.broadcast %179 : f32 to vector<16x16xf32>
    %1186 = arith.mulf %1175, %1185 : vector<16x16xf32>
    %1187 = arith.addf %1172, %1186 : vector<16x16xf32>
    %1188 = vector.extract_strided_slice %1174 {offsets = [2, 0], sizes = [16, 16], strides = [1, 1]} : vector<20x16xf32> to vector<16x16xf32>
    %1189 = vector.broadcast %74 : f32 to vector<16x16xf32>
    %1190 = arith.mulf %1188, %1189 : vector<16x16xf32>
    %1191 = arith.addf %1178, %1190 : vector<16x16xf32>
    %1192 = vector.broadcast %110 : f32 to vector<16x16xf32>
    %1193 = arith.mulf %1188, %1192 : vector<16x16xf32>
    %1194 = arith.addf %1181, %1193 : vector<16x16xf32>
    %1195 = vector.broadcast %146 : f32 to vector<16x16xf32>
    %1196 = arith.mulf %1188, %1195 : vector<16x16xf32>
    %1197 = arith.addf %1184, %1196 : vector<16x16xf32>
    %1198 = vector.broadcast %182 : f32 to vector<16x16xf32>
    %1199 = arith.mulf %1188, %1198 : vector<16x16xf32>
    %1200 = arith.addf %1187, %1199 : vector<16x16xf32>
    %1201 = vector.extract_strided_slice %1174 {offsets = [4, 0], sizes = [16, 16], strides = [1, 1]} : vector<20x16xf32> to vector<16x16xf32>
    %1202 = vector.broadcast %77 : f32 to vector<16x16xf32>
    %1203 = arith.mulf %1201, %1202 : vector<16x16xf32>
    %1204 = arith.addf %1191, %1203 : vector<16x16xf32>
    %1205 = vector.broadcast %113 : f32 to vector<16x16xf32>
    %1206 = arith.mulf %1201, %1205 : vector<16x16xf32>
    %1207 = arith.addf %1194, %1206 : vector<16x16xf32>
    %1208 = vector.broadcast %149 : f32 to vector<16x16xf32>
    %1209 = arith.mulf %1201, %1208 : vector<16x16xf32>
    %1210 = arith.addf %1197, %1209 : vector<16x16xf32>
    %1211 = vector.broadcast %185 : f32 to vector<16x16xf32>
    %1212 = arith.mulf %1201, %1211 : vector<16x16xf32>
    %1213 = arith.addf %1200, %1212 : vector<16x16xf32>
    %c1_200 = arith.constant 1 : index
    %c0_201 = arith.constant 0 : index
    %c0_202 = arith.constant 0 : index
    %c0_203 = arith.constant 0 : index
    %1214 = vector.load %arg7[%c1_200, %c0_201, %c0_202, %c0_203] : memref<2x4x16x16xf32, #tpu.memory_space<vmem>>, vector<1x1x16x16xf32>
    %1215 = vector.shape_cast %1214 : vector<1x1x16x16xf32> to vector<16x16xf32>
    %1216 = vector.shape_cast %1204 : vector<16x16xf32> to vector<1x1x16x16xf32>
    tpu.vector_store %arg7[%c1_200, %c0_201, %c0_202, %c0_203], %1216 {strides = array<i32>} : memref<2x4x16x16xf32, #tpu.memory_space<vmem>>, vector<1x1x16x16xf32>,
    %cst_204 = arith.constant dense<0.000000e+00> : vector<16xf32>
    %1217 = vector.multi_reduction <add>, %1204, %cst_204 [1] : vector<16x16xf32> to vector<16xf32>
    %1218 = vector.shape_cast %1217 : vector<16xf32> to vector<16x1xf32>
    %cst_205 = arith.constant dense<0.000000e+00> : vector<1xf32>
    %1219 = vector.multi_reduction <add>, %1218, %cst_205 [0] : vector<16x1xf32> to vector<1xf32>
    %1220 = vector.shape_cast %1219 : vector<1xf32> to vector<1x1xf32>
    %1221 = arith.addf %693, %1220 : vector<1x1xf32>
    %c1_206 = arith.constant 1 : index
    %c1_207 = arith.constant 1 : index
    %c0_208 = arith.constant 0 : index
    %c0_209 = arith.constant 0 : index
    %1222 = vector.load %arg7[%c1_206, %c1_207, %c0_208, %c0_209] : memref<2x4x16x16xf32, #tpu.memory_space<vmem>>, vector<1x1x16x16xf32>
    %1223 = vector.shape_cast %1222 : vector<1x1x16x16xf32> to vector<16x16xf32>
    %1224 = vector.shape_cast %1207 : vector<16x16xf32> to vector<1x1x16x16xf32>
    tpu.vector_store %arg7[%c1_206, %c1_207, %c0_208, %c0_209], %1224 {strides = array<i32>} : memref<2x4x16x16xf32, #tpu.memory_space<vmem>>, vector<1x1x16x16xf32>,
    %cst_210 = arith.constant dense<0.000000e+00> : vector<16xf32>
    %1225 = vector.multi_reduction <add>, %1207, %cst_210 [1] : vector<16x16xf32> to vector<16xf32>
    %1226 = vector.shape_cast %1225 : vector<16xf32> to vector<16x1xf32>
    %cst_211 = arith.constant dense<0.000000e+00> : vector<1xf32>
    %1227 = vector.multi_reduction <add>, %1226, %cst_211 [0] : vector<16x1xf32> to vector<1xf32>
    %1228 = vector.shape_cast %1227 : vector<1xf32> to vector<1x1xf32>
    %1229 = arith.addf %701, %1228 : vector<1x1xf32>
    %c1_212 = arith.constant 1 : index
    %c2_213 = arith.constant 2 : index
    %c0_214 = arith.constant 0 : index
    %c0_215 = arith.constant 0 : index
    %1230 = vector.load %arg7[%c1_212, %c2_213, %c0_214, %c0_215] : memref<2x4x16x16xf32, #tpu.memory_space<vmem>>, vector<1x1x16x16xf32>
    %1231 = vector.shape_cast %1230 : vector<1x1x16x16xf32> to vector<16x16xf32>
    %1232 = vector.shape_cast %1210 : vector<16x16xf32> to vector<1x1x16x16xf32>
    tpu.vector_store %arg7[%c1_212, %c2_213, %c0_214, %c0_215], %1232 {strides = array<i32>} : memref<2x4x16x16xf32, #tpu.memory_space<vmem>>, vector<1x1x16x16xf32>,
    %cst_216 = arith.constant dense<0.000000e+00> : vector<16xf32>
    %1233 = vector.multi_reduction <add>, %1210, %cst_216 [1] : vector<16x16xf32> to vector<16xf32>
    %1234 = vector.shape_cast %1233 : vector<16xf32> to vector<16x1xf32>
    %cst_217 = arith.constant dense<0.000000e+00> : vector<1xf32>
    %1235 = vector.multi_reduction <add>, %1234, %cst_217 [0] : vector<16x1xf32> to vector<1xf32>
    %1236 = vector.shape_cast %1235 : vector<1xf32> to vector<1x1xf32>
    %1237 = arith.addf %709, %1236 : vector<1x1xf32>
    %c1_218 = arith.constant 1 : index
    %c3_219 = arith.constant 3 : index
    %c0_220 = arith.constant 0 : index
    %c0_221 = arith.constant 0 : index
    %1238 = vector.load %arg7[%c1_218, %c3_219, %c0_220, %c0_221] : memref<2x4x16x16xf32, #tpu.memory_space<vmem>>, vector<1x1x16x16xf32>
    %1239 = vector.shape_cast %1238 : vector<1x1x16x16xf32> to vector<16x16xf32>
    %1240 = vector.shape_cast %1213 : vector<16x16xf32> to vector<1x1x16x16xf32>
    tpu.vector_store %arg7[%c1_218, %c3_219, %c0_220, %c0_221], %1240 {strides = array<i32>} : memref<2x4x16x16xf32, #tpu.memory_space<vmem>>, vector<1x1x16x16xf32>,
    %cst_222 = arith.constant dense<0.000000e+00> : vector<16xf32>
    %1241 = vector.multi_reduction <add>, %1213, %cst_222 [1] : vector<16x16xf32> to vector<16xf32>
    %1242 = vector.shape_cast %1241 : vector<16xf32> to vector<16x1xf32>
    %cst_223 = arith.constant dense<0.000000e+00> : vector<1xf32>
    %1243 = vector.multi_reduction <add>, %1242, %cst_223 [0] : vector<16x1xf32> to vector<1xf32>
    %1244 = vector.shape_cast %1243 : vector<1xf32> to vector<1x1xf32>
    %1245 = arith.addf %717, %1244 : vector<1x1xf32>
    %cst_224 = arith.constant 0.001953125 : f32
    %1246 = vector.broadcast %cst_224 : f32 to vector<1x1xf32>
    %1247 = arith.mulf %1221, %1246 : vector<1x1xf32>
    %cst_225 = arith.constant 0.001953125 : f32
    %1248 = vector.broadcast %cst_225 : f32 to vector<1x1xf32>
    %1249 = arith.mulf %1229, %1248 : vector<1x1xf32>
    %cst_226 = arith.constant 0.001953125 : f32
    %1250 = vector.broadcast %cst_226 : f32 to vector<1x1xf32>
    %1251 = arith.mulf %1237, %1250 : vector<1x1xf32>
    %cst_227 = arith.constant 0.001953125 : f32
    %1252 = vector.broadcast %cst_227 : f32 to vector<1x1xf32>
    %1253 = arith.mulf %1245, %1252 : vector<1x1xf32>
    %cst_228 = arith.constant 0.000000e+00 : f32
    %1254 = vector.broadcast %cst_228 : f32 to vector<1x1xf32>
    %cst_229 = arith.constant 0.000000e+00 : f32
    %1255 = vector.broadcast %cst_229 : f32 to vector<1x1xf32>
    %cst_230 = arith.constant 0.000000e+00 : f32
    %1256 = vector.broadcast %cst_230 : f32 to vector<1x1xf32>
    %cst_231 = arith.constant 0.000000e+00 : f32
    %1257 = vector.broadcast %cst_231 : f32 to vector<1x1xf32>
    %c0_232 = arith.constant 0 : index
    %c0_233 = arith.constant 0 : index
    %c0_234 = arith.constant 0 : index
    %c0_235 = arith.constant 0 : index
    %1258 = vector.load %arg7[%c0_232, %c0_233, %c0_234, %c0_235] : memref<2x4x16x16xf32, #tpu.memory_space<vmem>>, vector<1x1x16x16xf32>
    %1259 = vector.shape_cast %1258 : vector<1x1x16x16xf32> to vector<16x16xf32>
    %1260 = vector.broadcast %1247 : vector<1x1xf32> to vector<16x16xf32>
    %1261 = arith.subf %1259, %1260 : vector<16x16xf32>
    %1262 = arith.mulf %1261, %1261 : vector<16x16xf32>
    %cst_236 = arith.constant dense<0.000000e+00> : vector<16xf32>
    %1263 = vector.multi_reduction <add>, %1262, %cst_236 [1] : vector<16x16xf32> to vector<16xf32>
    %1264 = vector.shape_cast %1263 : vector<16xf32> to vector<16x1xf32>
    %cst_237 = arith.constant dense<0.000000e+00> : vector<1xf32>
    %1265 = vector.multi_reduction <add>, %1264, %cst_237 [0] : vector<16x1xf32> to vector<1xf32>
    %1266 = vector.shape_cast %1265 : vector<1xf32> to vector<1x1xf32>
    %1267 = arith.addf %1254, %1266 : vector<1x1xf32>
    %c0_238 = arith.constant 0 : index
    %c1_239 = arith.constant 1 : index
    %c0_240 = arith.constant 0 : index
    %c0_241 = arith.constant 0 : index
    %1268 = vector.load %arg7[%c0_238, %c1_239, %c0_240, %c0_241] : memref<2x4x16x16xf32, #tpu.memory_space<vmem>>, vector<1x1x16x16xf32>
    %1269 = vector.shape_cast %1268 : vector<1x1x16x16xf32> to vector<16x16xf32>
    %1270 = vector.broadcast %1249 : vector<1x1xf32> to vector<16x16xf32>
    %1271 = arith.subf %1269, %1270 : vector<16x16xf32>
    %1272 = arith.mulf %1271, %1271 : vector<16x16xf32>
    %cst_242 = arith.constant dense<0.000000e+00> : vector<16xf32>
    %1273 = vector.multi_reduction <add>, %1272, %cst_242 [1] : vector<16x16xf32> to vector<16xf32>
    %1274 = vector.shape_cast %1273 : vector<16xf32> to vector<16x1xf32>
    %cst_243 = arith.constant dense<0.000000e+00> : vector<1xf32>
    %1275 = vector.multi_reduction <add>, %1274, %cst_243 [0] : vector<16x1xf32> to vector<1xf32>
    %1276 = vector.shape_cast %1275 : vector<1xf32> to vector<1x1xf32>
    %1277 = arith.addf %1255, %1276 : vector<1x1xf32>
    %c0_244 = arith.constant 0 : index
    %c2_245 = arith.constant 2 : index
    %c0_246 = arith.constant 0 : index
    %c0_247 = arith.constant 0 : index
    %1278 = vector.load %arg7[%c0_244, %c2_245, %c0_246, %c0_247] : memref<2x4x16x16xf32, #tpu.memory_space<vmem>>, vector<1x1x16x16xf32>
    %1279 = vector.shape_cast %1278 : vector<1x1x16x16xf32> to vector<16x16xf32>
    %1280 = vector.broadcast %1251 : vector<1x1xf32> to vector<16x16xf32>
    %1281 = arith.subf %1279, %1280 : vector<16x16xf32>
    %1282 = arith.mulf %1281, %1281 : vector<16x16xf32>
    %cst_248 = arith.constant dense<0.000000e+00> : vector<16xf32>
    %1283 = vector.multi_reduction <add>, %1282, %cst_248 [1] : vector<16x16xf32> to vector<16xf32>
    %1284 = vector.shape_cast %1283 : vector<16xf32> to vector<16x1xf32>
    %cst_249 = arith.constant dense<0.000000e+00> : vector<1xf32>
    %1285 = vector.multi_reduction <add>, %1284, %cst_249 [0] : vector<16x1xf32> to vector<1xf32>
    %1286 = vector.shape_cast %1285 : vector<1xf32> to vector<1x1xf32>
    %1287 = arith.addf %1256, %1286 : vector<1x1xf32>
    %c0_250 = arith.constant 0 : index
    %c3_251 = arith.constant 3 : index
    %c0_252 = arith.constant 0 : index
    %c0_253 = arith.constant 0 : index
    %1288 = vector.load %arg7[%c0_250, %c3_251, %c0_252, %c0_253] : memref<2x4x16x16xf32, #tpu.memory_space<vmem>>, vector<1x1x16x16xf32>
    %1289 = vector.shape_cast %1288 : vector<1x1x16x16xf32> to vector<16x16xf32>
    %1290 = vector.broadcast %1253 : vector<1x1xf32> to vector<16x16xf32>
    %1291 = arith.subf %1289, %1290 : vector<16x16xf32>
    %1292 = arith.mulf %1291, %1291 : vector<16x16xf32>
    %cst_254 = arith.constant dense<0.000000e+00> : vector<16xf32>
    %1293 = vector.multi_reduction <add>, %1292, %cst_254 [1] : vector<16x16xf32> to vector<16xf32>
    %1294 = vector.shape_cast %1293 : vector<16xf32> to vector<16x1xf32>
    %cst_255 = arith.constant dense<0.000000e+00> : vector<1xf32>
    %1295 = vector.multi_reduction <add>, %1294, %cst_255 [0] : vector<16x1xf32> to vector<1xf32>
    %1296 = vector.shape_cast %1295 : vector<1xf32> to vector<1x1xf32>
    %1297 = arith.addf %1257, %1296 : vector<1x1xf32>
    %c1_256 = arith.constant 1 : index
    %c0_257 = arith.constant 0 : index
    %c0_258 = arith.constant 0 : index
    %c0_259 = arith.constant 0 : index
    %1298 = vector.load %arg7[%c1_256, %c0_257, %c0_258, %c0_259] : memref<2x4x16x16xf32, #tpu.memory_space<vmem>>, vector<1x1x16x16xf32>
    %1299 = vector.shape_cast %1298 : vector<1x1x16x16xf32> to vector<16x16xf32>
    %1300 = vector.broadcast %1247 : vector<1x1xf32> to vector<16x16xf32>
    %1301 = arith.subf %1299, %1300 : vector<16x16xf32>
    %1302 = arith.mulf %1301, %1301 : vector<16x16xf32>
    %cst_260 = arith.constant dense<0.000000e+00> : vector<16xf32>
    %1303 = vector.multi_reduction <add>, %1302, %cst_260 [1] : vector<16x16xf32> to vector<16xf32>
    %1304 = vector.shape_cast %1303 : vector<16xf32> to vector<16x1xf32>
    %cst_261 = arith.constant dense<0.000000e+00> : vector<1xf32>
    %1305 = vector.multi_reduction <add>, %1304, %cst_261 [0] : vector<16x1xf32> to vector<1xf32>
    %1306 = vector.shape_cast %1305 : vector<1xf32> to vector<1x1xf32>
    %1307 = arith.addf %1267, %1306 : vector<1x1xf32>
    %c1_262 = arith.constant 1 : index
    %c1_263 = arith.constant 1 : index
    %c0_264 = arith.constant 0 : index
    %c0_265 = arith.constant 0 : index
    %1308 = vector.load %arg7[%c1_262, %c1_263, %c0_264, %c0_265] : memref<2x4x16x16xf32, #tpu.memory_space<vmem>>, vector<1x1x16x16xf32>
    %1309 = vector.shape_cast %1308 : vector<1x1x16x16xf32> to vector<16x16xf32>
    %1310 = vector.broadcast %1249 : vector<1x1xf32> to vector<16x16xf32>
    %1311 = arith.subf %1309, %1310 : vector<16x16xf32>
    %1312 = arith.mulf %1311, %1311 : vector<16x16xf32>
    %cst_266 = arith.constant dense<0.000000e+00> : vector<16xf32>
    %1313 = vector.multi_reduction <add>, %1312, %cst_266 [1] : vector<16x16xf32> to vector<16xf32>
    %1314 = vector.shape_cast %1313 : vector<16xf32> to vector<16x1xf32>
    %cst_267 = arith.constant dense<0.000000e+00> : vector<1xf32>
    %1315 = vector.multi_reduction <add>, %1314, %cst_267 [0] : vector<16x1xf32> to vector<1xf32>
    %1316 = vector.shape_cast %1315 : vector<1xf32> to vector<1x1xf32>
    %1317 = arith.addf %1277, %1316 : vector<1x1xf32>
    %c1_268 = arith.constant 1 : index
    %c2_269 = arith.constant 2 : index
    %c0_270 = arith.constant 0 : index
    %c0_271 = arith.constant 0 : index
    %1318 = vector.load %arg7[%c1_268, %c2_269, %c0_270, %c0_271] : memref<2x4x16x16xf32, #tpu.memory_space<vmem>>, vector<1x1x16x16xf32>
    %1319 = vector.shape_cast %1318 : vector<1x1x16x16xf32> to vector<16x16xf32>
    %1320 = vector.broadcast %1251 : vector<1x1xf32> to vector<16x16xf32>
    %1321 = arith.subf %1319, %1320 : vector<16x16xf32>
    %1322 = arith.mulf %1321, %1321 : vector<16x16xf32>
    %cst_272 = arith.constant dense<0.000000e+00> : vector<16xf32>
    %1323 = vector.multi_reduction <add>, %1322, %cst_272 [1] : vector<16x16xf32> to vector<16xf32>
    %1324 = vector.shape_cast %1323 : vector<16xf32> to vector<16x1xf32>
    %cst_273 = arith.constant dense<0.000000e+00> : vector<1xf32>
    %1325 = vector.multi_reduction <add>, %1324, %cst_273 [0] : vector<16x1xf32> to vector<1xf32>
    %1326 = vector.shape_cast %1325 : vector<1xf32> to vector<1x1xf32>
    %1327 = arith.addf %1287, %1326 : vector<1x1xf32>
    %c1_274 = arith.constant 1 : index
    %c3_275 = arith.constant 3 : index
    %c0_276 = arith.constant 0 : index
    %c0_277 = arith.constant 0 : index
    %1328 = vector.load %arg7[%c1_274, %c3_275, %c0_276, %c0_277] : memref<2x4x16x16xf32, #tpu.memory_space<vmem>>, vector<1x1x16x16xf32>
    %1329 = vector.shape_cast %1328 : vector<1x1x16x16xf32> to vector<16x16xf32>
    %1330 = vector.broadcast %1253 : vector<1x1xf32> to vector<16x16xf32>
    %1331 = arith.subf %1329, %1330 : vector<16x16xf32>
    %1332 = arith.mulf %1331, %1331 : vector<16x16xf32>
    %cst_278 = arith.constant dense<0.000000e+00> : vector<16xf32>
    %1333 = vector.multi_reduction <add>, %1332, %cst_278 [1] : vector<16x16xf32> to vector<16xf32>
    %1334 = vector.shape_cast %1333 : vector<16xf32> to vector<16x1xf32>
    %cst_279 = arith.constant dense<0.000000e+00> : vector<1xf32>
    %1335 = vector.multi_reduction <add>, %1334, %cst_279 [0] : vector<16x1xf32> to vector<1xf32>
    %1336 = vector.shape_cast %1335 : vector<1xf32> to vector<1x1xf32>
    %1337 = arith.addf %1297, %1336 : vector<1x1xf32>
    %cst_280 = arith.constant 0.001953125 : f32
    %1338 = vector.broadcast %cst_280 : f32 to vector<1x1xf32>
    %1339 = arith.mulf %1307, %1338 : vector<1x1xf32>
    %cst_281 = arith.constant 9.99999974E-6 : f32
    %1340 = vector.broadcast %cst_281 : f32 to vector<1x1xf32>
    %1341 = arith.addf %1339, %1340 : vector<1x1xf32>
    %1342 = math.rsqrt %1341 : vector<1x1xf32>
    %c0_282 = arith.constant 0 : index
    %1343 = memref.load %arg2[%c0_282] : memref<4xf32, #tpu.memory_space<smem>>
    %1344 = vector.broadcast %1343 : f32 to vector<1x1xf32>
    %1345 = arith.mulf %1344, %1342 : vector<1x1xf32>
    %cst_283 = arith.constant 1.000000e+00 : f32
    %1346 = vector.broadcast %cst_283 : f32 to vector<1x1xf32>
    %1347 = arith.addf %1346, %1345 : vector<1x1xf32>
    %c0_284 = arith.constant 0 : index
    %1348 = memref.load %arg1[%c0_284] : memref<4xf32, #tpu.memory_space<smem>>
    %c0_285 = arith.constant 0 : index
    %1349 = memref.load %arg3[%c0_285] : memref<4xf32, #tpu.memory_space<smem>>
    %1350 = arith.addf %1348, %1349 : f32
    %1351 = vector.broadcast %1343 : f32 to vector<1x1xf32>
    %1352 = arith.mulf %1351, %1342 : vector<1x1xf32>
    %1353 = arith.mulf %1247, %1352 : vector<1x1xf32>
    %1354 = vector.broadcast %1350 : f32 to vector<1x1xf32>
    %1355 = arith.subf %1354, %1353 : vector<1x1xf32>
    %c0_286 = arith.constant 0 : index
    %c0_287 = arith.constant 0 : index
    %c0_288 = arith.constant 0 : index
    %c0_289 = arith.constant 0 : index
    %1356 = vector.load %arg7[%c0_286, %c0_287, %c0_288, %c0_289] : memref<2x4x16x16xf32, #tpu.memory_space<vmem>>, vector<1x1x16x16xf32>
    %1357 = vector.shape_cast %1356 : vector<1x1x16x16xf32> to vector<16x16xf32>
    %1358 = vector.broadcast %1347 : vector<1x1xf32> to vector<16x16xf32>
    %1359 = arith.mulf %1357, %1358 : vector<16x16xf32>
    %1360 = vector.broadcast %1355 : vector<1x1xf32> to vector<16x16xf32>
    %1361 = arith.addf %1359, %1360 : vector<16x16xf32>
    %cst_290 = arith.constant 0.000000e+00 : f32
    %1362 = vector.broadcast %cst_290 : f32 to vector<16x16xf32>
    %1363 = arith.maximumf %1361, %1362 : vector<16x16xf32>
    %c0_291 = arith.constant 0 : index
    %c0_292 = arith.constant 0 : index
    %c0_293 = arith.constant 0 : index
    %c0_294 = arith.constant 0 : index
    %1364 = vector.load %arg5[%c0_291, %c0_292, %c0_293, %c0_294] : memref<2x4x16x16xf32, #tpu.memory_space<vmem>>, vector<1x1x16x16xf32>
    %1365 = vector.shape_cast %1364 : vector<1x1x16x16xf32> to vector<16x16xf32>
    %1366 = vector.shape_cast %1363 : vector<16x16xf32> to vector<1x1x16x16xf32>
    tpu.vector_store %arg5[%c0_291, %c0_292, %c0_293, %c0_294], %1366 {strides = array<i32>} : memref<2x4x16x16xf32, #tpu.memory_space<vmem>>, vector<1x1x16x16xf32>,
    %c1_295 = arith.constant 1 : index
    %c0_296 = arith.constant 0 : index
    %c0_297 = arith.constant 0 : index
    %c0_298 = arith.constant 0 : index
    %1367 = vector.load %arg7[%c1_295, %c0_296, %c0_297, %c0_298] : memref<2x4x16x16xf32, #tpu.memory_space<vmem>>, vector<1x1x16x16xf32>
    %1368 = vector.shape_cast %1367 : vector<1x1x16x16xf32> to vector<16x16xf32>
    %1369 = vector.broadcast %1347 : vector<1x1xf32> to vector<16x16xf32>
    %1370 = arith.mulf %1368, %1369 : vector<16x16xf32>
    %1371 = vector.broadcast %1355 : vector<1x1xf32> to vector<16x16xf32>
    %1372 = arith.addf %1370, %1371 : vector<16x16xf32>
    %cst_299 = arith.constant 0.000000e+00 : f32
    %1373 = vector.broadcast %cst_299 : f32 to vector<16x16xf32>
    %1374 = arith.maximumf %1372, %1373 : vector<16x16xf32>
    %c1_300 = arith.constant 1 : index
    %c0_301 = arith.constant 0 : index
    %c0_302 = arith.constant 0 : index
    %c0_303 = arith.constant 0 : index
    %1375 = vector.load %arg5[%c1_300, %c0_301, %c0_302, %c0_303] : memref<2x4x16x16xf32, #tpu.memory_space<vmem>>, vector<1x1x16x16xf32>
    %1376 = vector.shape_cast %1375 : vector<1x1x16x16xf32> to vector<16x16xf32>
    %1377 = vector.shape_cast %1374 : vector<16x16xf32> to vector<1x1x16x16xf32>
    tpu.vector_store %arg5[%c1_300, %c0_301, %c0_302, %c0_303], %1377 {strides = array<i32>} : memref<2x4x16x16xf32, #tpu.memory_space<vmem>>, vector<1x1x16x16xf32>,
    %cst_304 = arith.constant 0.001953125 : f32
    %1378 = vector.broadcast %cst_304 : f32 to vector<1x1xf32>
    %1379 = arith.mulf %1317, %1378 : vector<1x1xf32>
    %cst_305 = arith.constant 9.99999974E-6 : f32
    %1380 = vector.broadcast %cst_305 : f32 to vector<1x1xf32>
    %1381 = arith.addf %1379, %1380 : vector<1x1xf32>
    %1382 = math.rsqrt %1381 : vector<1x1xf32>
    %c1_306 = arith.constant 1 : index
    %1383 = memref.load %arg2[%c1_306] : memref<4xf32, #tpu.memory_space<smem>>
    %1384 = vector.broadcast %1383 : f32 to vector<1x1xf32>
    %1385 = arith.mulf %1384, %1382 : vector<1x1xf32>
    %cst_307 = arith.constant 1.000000e+00 : f32
    %1386 = vector.broadcast %cst_307 : f32 to vector<1x1xf32>
    %1387 = arith.addf %1386, %1385 : vector<1x1xf32>
    %c1_308 = arith.constant 1 : index
    %1388 = memref.load %arg1[%c1_308] : memref<4xf32, #tpu.memory_space<smem>>
    %c1_309 = arith.constant 1 : index
    %1389 = memref.load %arg3[%c1_309] : memref<4xf32, #tpu.memory_space<smem>>
    %1390 = arith.addf %1388, %1389 : f32
    %1391 = vector.broadcast %1383 : f32 to vector<1x1xf32>
    %1392 = arith.mulf %1391, %1382 : vector<1x1xf32>
    %1393 = arith.mulf %1249, %1392 : vector<1x1xf32>
    %1394 = vector.broadcast %1390 : f32 to vector<1x1xf32>
    %1395 = arith.subf %1394, %1393 : vector<1x1xf32>
    %c0_310 = arith.constant 0 : index
    %c1_311 = arith.constant 1 : index
    %c0_312 = arith.constant 0 : index
    %c0_313 = arith.constant 0 : index
    %1396 = vector.load %arg7[%c0_310, %c1_311, %c0_312, %c0_313] : memref<2x4x16x16xf32, #tpu.memory_space<vmem>>, vector<1x1x16x16xf32>
    %1397 = vector.shape_cast %1396 : vector<1x1x16x16xf32> to vector<16x16xf32>
    %1398 = vector.broadcast %1387 : vector<1x1xf32> to vector<16x16xf32>
    %1399 = arith.mulf %1397, %1398 : vector<16x16xf32>
    %1400 = vector.broadcast %1395 : vector<1x1xf32> to vector<16x16xf32>
    %1401 = arith.addf %1399, %1400 : vector<16x16xf32>
    %cst_314 = arith.constant 0.000000e+00 : f32
    %1402 = vector.broadcast %cst_314 : f32 to vector<16x16xf32>
    %1403 = arith.maximumf %1401, %1402 : vector<16x16xf32>
    %c0_315 = arith.constant 0 : index
    %c1_316 = arith.constant 1 : index
    %c0_317 = arith.constant 0 : index
    %c0_318 = arith.constant 0 : index
    %1404 = vector.load %arg5[%c0_315, %c1_316, %c0_317, %c0_318] : memref<2x4x16x16xf32, #tpu.memory_space<vmem>>, vector<1x1x16x16xf32>
    %1405 = vector.shape_cast %1404 : vector<1x1x16x16xf32> to vector<16x16xf32>
    %1406 = vector.shape_cast %1403 : vector<16x16xf32> to vector<1x1x16x16xf32>
    tpu.vector_store %arg5[%c0_315, %c1_316, %c0_317, %c0_318], %1406 {strides = array<i32>} : memref<2x4x16x16xf32, #tpu.memory_space<vmem>>, vector<1x1x16x16xf32>,
    %c1_319 = arith.constant 1 : index
    %c1_320 = arith.constant 1 : index
    %c0_321 = arith.constant 0 : index
    %c0_322 = arith.constant 0 : index
    %1407 = vector.load %arg7[%c1_319, %c1_320, %c0_321, %c0_322] : memref<2x4x16x16xf32, #tpu.memory_space<vmem>>, vector<1x1x16x16xf32>
    %1408 = vector.shape_cast %1407 : vector<1x1x16x16xf32> to vector<16x16xf32>
    %1409 = vector.broadcast %1387 : vector<1x1xf32> to vector<16x16xf32>
    %1410 = arith.mulf %1408, %1409 : vector<16x16xf32>
    %1411 = vector.broadcast %1395 : vector<1x1xf32> to vector<16x16xf32>
    %1412 = arith.addf %1410, %1411 : vector<16x16xf32>
    %cst_323 = arith.constant 0.000000e+00 : f32
    %1413 = vector.broadcast %cst_323 : f32 to vector<16x16xf32>
    %1414 = arith.maximumf %1412, %1413 : vector<16x16xf32>
    %c1_324 = arith.constant 1 : index
    %c1_325 = arith.constant 1 : index
    %c0_326 = arith.constant 0 : index
    %c0_327 = arith.constant 0 : index
    %1415 = vector.load %arg5[%c1_324, %c1_325, %c0_326, %c0_327] : memref<2x4x16x16xf32, #tpu.memory_space<vmem>>, vector<1x1x16x16xf32>
    %1416 = vector.shape_cast %1415 : vector<1x1x16x16xf32> to vector<16x16xf32>
    %1417 = vector.shape_cast %1414 : vector<16x16xf32> to vector<1x1x16x16xf32>
    tpu.vector_store %arg5[%c1_324, %c1_325, %c0_326, %c0_327], %1417 {strides = array<i32>} : memref<2x4x16x16xf32, #tpu.memory_space<vmem>>, vector<1x1x16x16xf32>,
    %cst_328 = arith.constant 0.001953125 : f32
    %1418 = vector.broadcast %cst_328 : f32 to vector<1x1xf32>
    %1419 = arith.mulf %1327, %1418 : vector<1x1xf32>
    %cst_329 = arith.constant 9.99999974E-6 : f32
    %1420 = vector.broadcast %cst_329 : f32 to vector<1x1xf32>
    %1421 = arith.addf %1419, %1420 : vector<1x1xf32>
    %1422 = math.rsqrt %1421 : vector<1x1xf32>
    %c2_330 = arith.constant 2 : index
    %1423 = memref.load %arg2[%c2_330] : memref<4xf32, #tpu.memory_space<smem>>
    %1424 = vector.broadcast %1423 : f32 to vector<1x1xf32>
    %1425 = arith.mulf %1424, %1422 : vector<1x1xf32>
    %cst_331 = arith.constant 1.000000e+00 : f32
    %1426 = vector.broadcast %cst_331 : f32 to vector<1x1xf32>
    %1427 = arith.addf %1426, %1425 : vector<1x1xf32>
    %c2_332 = arith.constant 2 : index
    %1428 = memref.load %arg1[%c2_332] : memref<4xf32, #tpu.memory_space<smem>>
    %c2_333 = arith.constant 2 : index
    %1429 = memref.load %arg3[%c2_333] : memref<4xf32, #tpu.memory_space<smem>>
    %1430 = arith.addf %1428, %1429 : f32
    %1431 = vector.broadcast %1423 : f32 to vector<1x1xf32>
    %1432 = arith.mulf %1431, %1422 : vector<1x1xf32>
    %1433 = arith.mulf %1251, %1432 : vector<1x1xf32>
    %1434 = vector.broadcast %1430 : f32 to vector<1x1xf32>
    %1435 = arith.subf %1434, %1433 : vector<1x1xf32>
    %c0_334 = arith.constant 0 : index
    %c2_335 = arith.constant 2 : index
    %c0_336 = arith.constant 0 : index
    %c0_337 = arith.constant 0 : index
    %1436 = vector.load %arg7[%c0_334, %c2_335, %c0_336, %c0_337] : memref<2x4x16x16xf32, #tpu.memory_space<vmem>>, vector<1x1x16x16xf32>
    %1437 = vector.shape_cast %1436 : vector<1x1x16x16xf32> to vector<16x16xf32>
    %1438 = vector.broadcast %1427 : vector<1x1xf32> to vector<16x16xf32>
    %1439 = arith.mulf %1437, %1438 : vector<16x16xf32>
    %1440 = vector.broadcast %1435 : vector<1x1xf32> to vector<16x16xf32>
    %1441 = arith.addf %1439, %1440 : vector<16x16xf32>
    %cst_338 = arith.constant 0.000000e+00 : f32
    %1442 = vector.broadcast %cst_338 : f32 to vector<16x16xf32>
    %1443 = arith.maximumf %1441, %1442 : vector<16x16xf32>
    %c0_339 = arith.constant 0 : index
    %c2_340 = arith.constant 2 : index
    %c0_341 = arith.constant 0 : index
    %c0_342 = arith.constant 0 : index
    %1444 = vector.load %arg5[%c0_339, %c2_340, %c0_341, %c0_342] : memref<2x4x16x16xf32, #tpu.memory_space<vmem>>, vector<1x1x16x16xf32>
    %1445 = vector.shape_cast %1444 : vector<1x1x16x16xf32> to vector<16x16xf32>
    %1446 = vector.shape_cast %1443 : vector<16x16xf32> to vector<1x1x16x16xf32>
    tpu.vector_store %arg5[%c0_339, %c2_340, %c0_341, %c0_342], %1446 {strides = array<i32>} : memref<2x4x16x16xf32, #tpu.memory_space<vmem>>, vector<1x1x16x16xf32>,
    %c1_343 = arith.constant 1 : index
    %c2_344 = arith.constant 2 : index
    %c0_345 = arith.constant 0 : index
    %c0_346 = arith.constant 0 : index
    %1447 = vector.load %arg7[%c1_343, %c2_344, %c0_345, %c0_346] : memref<2x4x16x16xf32, #tpu.memory_space<vmem>>, vector<1x1x16x16xf32>
    %1448 = vector.shape_cast %1447 : vector<1x1x16x16xf32> to vector<16x16xf32>
    %1449 = vector.broadcast %1427 : vector<1x1xf32> to vector<16x16xf32>
    %1450 = arith.mulf %1448, %1449 : vector<16x16xf32>
    %1451 = vector.broadcast %1435 : vector<1x1xf32> to vector<16x16xf32>
    %1452 = arith.addf %1450, %1451 : vector<16x16xf32>
    %cst_347 = arith.constant 0.000000e+00 : f32
    %1453 = vector.broadcast %cst_347 : f32 to vector<16x16xf32>
    %1454 = arith.maximumf %1452, %1453 : vector<16x16xf32>
    %c1_348 = arith.constant 1 : index
    %c2_349 = arith.constant 2 : index
    %c0_350 = arith.constant 0 : index
    %c0_351 = arith.constant 0 : index
    %1455 = vector.load %arg5[%c1_348, %c2_349, %c0_350, %c0_351] : memref<2x4x16x16xf32, #tpu.memory_space<vmem>>, vector<1x1x16x16xf32>
    %1456 = vector.shape_cast %1455 : vector<1x1x16x16xf32> to vector<16x16xf32>
    %1457 = vector.shape_cast %1454 : vector<16x16xf32> to vector<1x1x16x16xf32>
    tpu.vector_store %arg5[%c1_348, %c2_349, %c0_350, %c0_351], %1457 {strides = array<i32>} : memref<2x4x16x16xf32, #tpu.memory_space<vmem>>, vector<1x1x16x16xf32>,
    %cst_352 = arith.constant 0.001953125 : f32
    %1458 = vector.broadcast %cst_352 : f32 to vector<1x1xf32>
    %1459 = arith.mulf %1337, %1458 : vector<1x1xf32>
    %cst_353 = arith.constant 9.99999974E-6 : f32
    %1460 = vector.broadcast %cst_353 : f32 to vector<1x1xf32>
    %1461 = arith.addf %1459, %1460 : vector<1x1xf32>
    %1462 = math.rsqrt %1461 : vector<1x1xf32>
    %c3_354 = arith.constant 3 : index
    %1463 = memref.load %arg2[%c3_354] : memref<4xf32, #tpu.memory_space<smem>>
    %1464 = vector.broadcast %1463 : f32 to vector<1x1xf32>
    %1465 = arith.mulf %1464, %1462 : vector<1x1xf32>
    %cst_355 = arith.constant 1.000000e+00 : f32
    %1466 = vector.broadcast %cst_355 : f32 to vector<1x1xf32>
    %1467 = arith.addf %1466, %1465 : vector<1x1xf32>
    %c3_356 = arith.constant 3 : index
    %1468 = memref.load %arg1[%c3_356] : memref<4xf32, #tpu.memory_space<smem>>
    %c3_357 = arith.constant 3 : index
    %1469 = memref.load %arg3[%c3_357] : memref<4xf32, #tpu.memory_space<smem>>
    %1470 = arith.addf %1468, %1469 : f32
    %1471 = vector.broadcast %1463 : f32 to vector<1x1xf32>
    %1472 = arith.mulf %1471, %1462 : vector<1x1xf32>
    %1473 = arith.mulf %1253, %1472 : vector<1x1xf32>
    %1474 = vector.broadcast %1470 : f32 to vector<1x1xf32>
    %1475 = arith.subf %1474, %1473 : vector<1x1xf32>
    %c0_358 = arith.constant 0 : index
    %c3_359 = arith.constant 3 : index
    %c0_360 = arith.constant 0 : index
    %c0_361 = arith.constant 0 : index
    %1476 = vector.load %arg7[%c0_358, %c3_359, %c0_360, %c0_361] : memref<2x4x16x16xf32, #tpu.memory_space<vmem>>, vector<1x1x16x16xf32>
    %1477 = vector.shape_cast %1476 : vector<1x1x16x16xf32> to vector<16x16xf32>
    %1478 = vector.broadcast %1467 : vector<1x1xf32> to vector<16x16xf32>
    %1479 = arith.mulf %1477, %1478 : vector<16x16xf32>
    %1480 = vector.broadcast %1475 : vector<1x1xf32> to vector<16x16xf32>
    %1481 = arith.addf %1479, %1480 : vector<16x16xf32>
    %cst_362 = arith.constant 0.000000e+00 : f32
    %1482 = vector.broadcast %cst_362 : f32 to vector<16x16xf32>
    %1483 = arith.maximumf %1481, %1482 : vector<16x16xf32>
    %c0_363 = arith.constant 0 : index
    %c3_364 = arith.constant 3 : index
    %c0_365 = arith.constant 0 : index
    %c0_366 = arith.constant 0 : index
    %1484 = vector.load %arg5[%c0_363, %c3_364, %c0_365, %c0_366] : memref<2x4x16x16xf32, #tpu.memory_space<vmem>>, vector<1x1x16x16xf32>
    %1485 = vector.shape_cast %1484 : vector<1x1x16x16xf32> to vector<16x16xf32>
    %1486 = vector.shape_cast %1483 : vector<16x16xf32> to vector<1x1x16x16xf32>
    tpu.vector_store %arg5[%c0_363, %c3_364, %c0_365, %c0_366], %1486 {strides = array<i32>} : memref<2x4x16x16xf32, #tpu.memory_space<vmem>>, vector<1x1x16x16xf32>,
    %c1_367 = arith.constant 1 : index
    %c3_368 = arith.constant 3 : index
    %c0_369 = arith.constant 0 : index
    %c0_370 = arith.constant 0 : index
    %1487 = vector.load %arg7[%c1_367, %c3_368, %c0_369, %c0_370] : memref<2x4x16x16xf32, #tpu.memory_space<vmem>>, vector<1x1x16x16xf32>
    %1488 = vector.shape_cast %1487 : vector<1x1x16x16xf32> to vector<16x16xf32>
    %1489 = vector.broadcast %1467 : vector<1x1xf32> to vector<16x16xf32>
    %1490 = arith.mulf %1488, %1489 : vector<16x16xf32>
    %1491 = vector.broadcast %1475 : vector<1x1xf32> to vector<16x16xf32>
    %1492 = arith.addf %1490, %1491 : vector<16x16xf32>
    %cst_371 = arith.constant 0.000000e+00 : f32
    %1493 = vector.broadcast %cst_371 : f32 to vector<16x16xf32>
    %1494 = arith.maximumf %1492, %1493 : vector<16x16xf32>
    %c1_372 = arith.constant 1 : index
    %c3_373 = arith.constant 3 : index
    %c0_374 = arith.constant 0 : index
    %c0_375 = arith.constant 0 : index
    %1495 = vector.load %arg5[%c1_372, %c3_373, %c0_374, %c0_375] : memref<2x4x16x16xf32, #tpu.memory_space<vmem>>, vector<1x1x16x16xf32>
    %1496 = vector.shape_cast %1495 : vector<1x1x16x16xf32> to vector<16x16xf32>
    %1497 = vector.shape_cast %1494 : vector<16x16xf32> to vector<1x1x16x16xf32>
    tpu.vector_store %arg5[%c1_372, %c3_373, %c0_374, %c0_375], %1497 {strides = array<i32>} : memref<2x4x16x16xf32, #tpu.memory_space<vmem>>, vector<1x1x16x16xf32>,
    return
  }
}

</mosaic_0001>

<llo_original>
// kernel: tpu_custom_call.1
$region0: #{tpu_custom_call.1}
  #allocation0 [shape = 'u32[]', space=smem, size = 0x4, offset = 0x4, fixed_abs, tag = 'smem constant byte address 0x4 - core index']
  #allocation1 [shape = 'u32[144,128]{1,0:T(1,128)}', space=vmem, size = 0x12000, scoped, tag = 'internal scratch']
  #allocation2 [shape = 'f32[2,4,20,20]{3,2,1,0:T(8,128)}', space=vmem, size = 0x18000, scoped, tag = 'scratch operand']
  #allocation3 [shape = 'f32[2,4,16,16]{3,2,1,0:T(8,128)}', space=vmem, size = 0x10000, scoped, tag = 'scratch operand']
  %s0 = inlined_call_operand.hbm [shape: f32[144], index: 0, kind: input, shape index: {}]
  %s1 = inlined_call_operand.vmem [shape: f32[4], index: 1, kind: input, shape index: {}]
  %s2 = inlined_call_operand.vmem [shape: f32[4], index: 2, kind: input, shape index: {}]
  %s3 = inlined_call_operand.vmem [shape: f32[4], index: 3, kind: input, shape index: {}]
  %s4 = inlined_call_operand.hbm [shape: f32[2,4,16,16], index: 4, kind: input, shape index: {}]
  %s5 = inlined_call_operand.hbm [shape: f32[2,4,16,16], index: 5, kind: output, shape index: {}]
  %s6 = sld [smem:[#allocation0]]
  $region50: #{tpu_custom_call.1} parent=0
    _
  %s8 = ssub.s32 1, %s6
  %s9 = scalar_select 0, %s8, %s6
  $region1: #{tpu_custom_call.1} parent=0
    #allocation4 [shape = 'u8[1024]{0}', space=smem, size = 0x400, scoped, tag = 'input window, operand 0, single buffered']
    #allocation5 [shape = 's32[1]{0}', space=sflag, size = 0x4, scoped, tag = 'scoped memory for tpu_custom_call.1']
    #allocation6 [shape = 's32[1]{0}', space=sflag, size = 0x4, scoped, tag = 'scoped memory for tpu_custom_call.1']
    #allocation7 [shape = 's32[1]{0}', space=sflag, size = 0x4, scoped, tag = 'scoped memory for tpu_custom_call.1']
    #allocation8 [shape = 's32[1]{0}', space=sflag, size = 0x4, scoped, tag = 'scoped memory for tpu_custom_call.1']
    #allocation9 [shape = 'u8[512]{0}', space=smem, size = 0x200, scoped, tag = 'input window, operand 1, single buffered']
    #allocation10 [shape = 'u8[512]{0}', space=smem, size = 0x200, scoped, tag = 'input window, operand 2, single buffered']
    #allocation11 [shape = 's32[1]{0}', space=sflag, size = 0x4, scoped, tag = 'scoped memory for tpu_custom_call.1']
    #allocation12 [shape = 'u8[512]{0}', space=smem, size = 0x200, scoped, tag = 'input window, operand 3, single buffered']
    #allocation13 [shape = 'u8[65536]{0}', space=vmem, size = 0x10000, scoped, tag = 'input window, operand 4, single buffered']
    #allocation14 [shape = 'u8[65536]{0}', space=vmem, size = 0x10000, scoped, tag = 'output window, operand 0, single buffered']
    %10 = vsyncpa [#allocation7], 0
    %11 = vsyncpa [#allocation8], 0
    %12 = vsyncpa [#allocation11], 0
    %13 = vsyncpa [#allocation5], 0
    %14 = vsyncpa [#allocation6], 0
    // Predicated region
    $region2: #{tpu_custom_call.1} parent=1 // pred_check
      _
    $region3: #{tpu_custom_call.1} parent=1 // pred_check_branch
      %16 = sbr.rel (0) target = $region5
    $region4: #{tpu_custom_call.1} parent=1 // pred_region
      %s18 = ssub.s32 32, 32
      %19 = vsyncadd [#allocation7], %s18
      %22 = dma.hbm_to_smem %s0, 32, [#allocation4], [#allocation7]
    $region5: #{tpu_custom_call.1} parent=1 // pred_fallthru
      _
    // Predicated region
    $region6: #{tpu_custom_call.1} parent=1 // pred_check
      _
    $region7: #{tpu_custom_call.1} parent=1 // pred_check_branch
      %24 = sbr.rel (0) target = $region9
    $region8: #{tpu_custom_call.1} parent=1 // pred_region
      %s26 = ssub.s32 16, 16
      %27 = vsyncadd [#allocation8], %s26
      %s29 = sshll.u32 %s1, 4
      %s30 = int_to_ptr.vmem [resolvable:$true] %s29
      %32 = dma.vmem_to_smem %s30, 16, [#allocation9], [#allocation8]
    $region9: #{tpu_custom_call.1} parent=1 // pred_fallthru
      _
    // Predicated region
    $region10: #{tpu_custom_call.1} parent=1 // pred_check
      _
    $region11: #{tpu_custom_call.1} parent=1 // pred_check_branch
      %34 = sbr.rel (0) target = $region13
    $region12: #{tpu_custom_call.1} parent=1 // pred_region
      %s36 = ssub.s32 16, 16
      %37 = vsyncadd [#allocation11], %s36
      %s39 = sshll.u32 %s2, 4
      %s40 = int_to_ptr.vmem [resolvable:$true] %s39
      %42 = dma.vmem_to_smem %s40, 16, [#allocation10], [#allocation11]
    $region13: #{tpu_custom_call.1} parent=1 // pred_fallthru
      _
    // Predicated region
    $region14: #{tpu_custom_call.1} parent=1 // pred_check
      _
    $region15: #{tpu_custom_call.1} parent=1 // pred_check_branch
      %44 = sbr.rel (0) target = $region17
    $region16: #{tpu_custom_call.1} parent=1 // pred_region
      %s46 = ssub.s32 16, 16
      %47 = vsyncadd [#allocation11], %s46
      %s49 = sshll.u32 %s3, 4
      %s50 = int_to_ptr.vmem [resolvable:$true] %s49
      %52 = dma.vmem_to_smem %s50, 16, [#allocation12], [#allocation11]
    $region17: #{tpu_custom_call.1} parent=1 // pred_fallthru
      _
    // Predicated region
    $region18: #{tpu_custom_call.1} parent=1 // pred_check
      _
    $region19: #{tpu_custom_call.1} parent=1 // pred_check_branch
      %54 = sbr.rel (0) target = $region21
    $region20: #{tpu_custom_call.1} parent=1 // pred_region
      %s56 = ssub.s32 2048, 2048
      %57 = vsyncadd [#allocation5], %s56
      %s58 = sshll.u32 [#allocation13], 4
      %s59 = int_to_ptr.vmem [resolvable:$true] %s58
      %64 = dma.hbm_to_vmem [thread:$0]  %s4, 2048, %s59, [#allocation5], 128, 128, 8
    $region21: #{tpu_custom_call.1} parent=1 // pred_fallthru
      _
    // Predicated region
    $region22: #{tpu_custom_call.1} parent=1 // pred_check
      _
    $region23: #{tpu_custom_call.1} parent=1 // pred_check_branch
      %66 = sbr.rel (0) target = $region25
    $region24: #{tpu_custom_call.1} parent=1 // pred_region
      %67 = dma.done [#allocation7], 32
    $region25: #{tpu_custom_call.1} parent=1 // pred_fallthru
      _
    // Predicated region
    $region26: #{tpu_custom_call.1} parent=1 // pred_check
      _
    $region27: #{tpu_custom_call.1} parent=1 // pred_check_branch
      %69 = sbr.rel (0) target = $region29
    $region28: #{tpu_custom_call.1} parent=1 // pred_region
      %70 = dma.done [#allocation8], 16
    $region29: #{tpu_custom_call.1} parent=1 // pred_fallthru
      _
    // Predicated region
    $region30: #{tpu_custom_call.1} parent=1 // pred_check
      _
    $region31: #{tpu_custom_call.1} parent=1 // pred_check_branch
      %72 = sbr.rel (0) target = $region33
    $region32: #{tpu_custom_call.1} parent=1 // pred_region
      %73 = dma.done [#allocation11], 16
    $region33: #{tpu_custom_call.1} parent=1 // pred_fallthru
      _
    // Predicated region
    $region34: #{tpu_custom_call.1} parent=1 // pred_check
      _
    $region35: #{tpu_custom_call.1} parent=1 // pred_check_branch
      %75 = sbr.rel (0) target = $region37
    $region36: #{tpu_custom_call.1} parent=1 // pred_region
      %76 = dma.done [#allocation11], 16
    $region37: #{tpu_custom_call.1} parent=1 // pred_fallthru
      _
    // Predicated region
    $region38: #{tpu_custom_call.1} parent=1 // pred_check
      _
    $region39: #{tpu_custom_call.1} parent=1 // pred_check_branch
      %78 = sbr.rel (0) target = $region41
    $region40: #{tpu_custom_call.1} parent=1 // pred_region
      %79 = dma.done [#allocation5], 2048
    $region41: #{tpu_custom_call.1} parent=1 // pred_fallthru
      _
    %80 = sfence
    %vm81 = vcmask 162816
    %82 = vst.msk [vmem:[#allocation2] sm:$0xff] %vm81, 0.0
    %83 = vst.msk [vmem:[#allocation2 + $0x8] sm:$0xff] %vm81, 0.0
    %vm84 = vcmask 158720
    %85 = vst.msk [vmem:[#allocation2 + $0x10] sm:$0xf] %vm84, 0.0
    %86 = vst.msk [vmem:[#allocation2 + $0x18] sm:$0xff] %vm81, 0.0
    %87 = vst.msk [vmem:[#allocation2 + $0x20] sm:$0xff] %vm81, 0.0
    %88 = vst.msk [vmem:[#allocation2 + $0x28] sm:$0xf] %vm84, 0.0
    %89 = vst.msk [vmem:[#allocation2 + $0x30] sm:$0xff] %vm81, 0.0
    %90 = vst.msk [vmem:[#allocation2 + $0x38] sm:$0xff] %vm81, 0.0
    %91 = vst.msk [vmem:[#allocation2 + $0x40] sm:$0xf] %vm84, 0.0
    %92 = vst.msk [vmem:[#allocation2 + $0x48] sm:$0xff] %vm81, 0.0
    %93 = vst.msk [vmem:[#allocation2 + $0x50] sm:$0xff] %vm81, 0.0
    %94 = vst.msk [vmem:[#allocation2 + $0x58] sm:$0xf] %vm84, 0.0
    %95 = vst.msk [vmem:[#allocation2 + $0x60] sm:$0xff] %vm81, 0.0
    %96 = vst.msk [vmem:[#allocation2 + $0x68] sm:$0xff] %vm81, 0.0
    %97 = vst.msk [vmem:[#allocation2 + $0x70] sm:$0xf] %vm84, 0.0
    %98 = vst.msk [vmem:[#allocation2 + $0x78] sm:$0xff] %vm81, 0.0
    %99 = vst.msk [vmem:[#allocation2 + $0x80] sm:$0xff] %vm81, 0.0
    %100 = vst.msk [vmem:[#allocation2 + $0x88] sm:$0xf] %vm84, 0.0
    %101 = vst.msk [vmem:[#allocation2 + $0x90] sm:$0xff] %vm81, 0.0
    %102 = vst.msk [vmem:[#allocation2 + $0x98] sm:$0xff] %vm81, 0.0
    %103 = vst.msk [vmem:[#allocation2 + $0xa0] sm:$0xf] %vm84, 0.0
    %104 = vst.msk [vmem:[#allocation2 + $0xa8] sm:$0xff] %vm81, 0.0
    %105 = vst.msk [vmem:[#allocation2 + $0xb0] sm:$0xff] %vm81, 0.0
    %106 = vst.msk [vmem:[#allocation2 + $0xb8] sm:$0xf] %vm84, 0.0
    %v107 = vld [vmem:[#allocation13] sm:$0xff]
    %v108 = vld [vmem:[#allocation13 + $0x8] sm:$0xff]
    %111 = vrot.lane.b32.xlu0 %v107, 2
    %v112 = vpop.permute.xlu0 %111
    %113 = vrot.lane.b32.xlu0 %v108, 2
    %v114 = vpop.permute.xlu0 %113
    %vm117 = vcmask 146448
    %118 = vst.msk [vmem:[#allocation2 + $0x2] sm:$0xff] %vm117, %v112
    %119 = vst.msk [vmem:[#allocation2 + $0xa] sm:$0xff] %vm117, %v114
    %s120 = scalar_lea.vmem [#allocation13], 16
    %v121 = vld [vmem:[%s120] sm:$0xff]
    %v122 = vld [vmem:[%s120 + $0x8] sm:$0xff]
    %125 = vrot.lane.b32.xlu0 %v121, 2
    %v126 = vpop.permute.xlu0 %125
    %127 = vrot.lane.b32.xlu0 %v122, 2
    %v128 = vpop.permute.xlu0 %127
    %s131 = scalar_lea.vmem [#allocation2], 24
    %132 = vst.msk [vmem:[%s131 + $0x2] sm:$0xff] %vm117, %v126
    %133 = vst.msk [vmem:[%s131 + $0xa] sm:$0xff] %vm117, %v128
    %s134 = scalar_lea.vmem [#allocation13], 32
    %v135 = vld [vmem:[%s134] sm:$0xff]
    %v136 = vld [vmem:[%s134 + $0x8] sm:$0xff]
    %139 = vrot.lane.b32.xlu0 %v135, 2
    %v140 = vpop.permute.xlu0 %139
    %141 = vrot.lane.b32.xlu0 %v136, 2
    %v142 = vpop.permute.xlu0 %141
    %s145 = scalar_lea.vmem [#allocation2], 48
    %146 = vst.msk [vmem:[%s145 + $0x2] sm:$0xff] %vm117, %v140
    %147 = vst.msk [vmem:[%s145 + $0xa] sm:$0xff] %vm117, %v142
    %s148 = scalar_lea.vmem [#allocation13], 48
    %v149 = vld [vmem:[%s148] sm:$0xff]
    %v150 = vld [vmem:[%s148 + $0x8] sm:$0xff]
    %153 = vrot.lane.b32.xlu0 %v149, 2
    %v154 = vpop.permute.xlu0 %153
    %155 = vrot.lane.b32.xlu0 %v150, 2
    %v156 = vpop.permute.xlu0 %155
    %s159 = scalar_lea.vmem [#allocation2], 72
    %160 = vst.msk [vmem:[%s159 + $0x2] sm:$0xff] %vm117, %v154
    %161 = vst.msk [vmem:[%s159 + $0xa] sm:$0xff] %vm117, %v156
    %s162 = scalar_lea.vmem [#allocation13], 64
    %v163 = vld [vmem:[%s162] sm:$0xff]
    %v164 = vld [vmem:[%s162 + $0x8] sm:$0xff]
    %167 = vrot.lane.b32.xlu0 %v163, 2
    %v168 = vpop.permute.xlu0 %167
    %169 = vrot.lane.b32.xlu0 %v164, 2
    %v170 = vpop.permute.xlu0 %169
    %s173 = scalar_lea.vmem [#allocation2], 96
    %174 = vst.msk [vmem:[%s173 + $0x2] sm:$0xff] %vm117, %v168
    %175 = vst.msk [vmem:[%s173 + $0xa] sm:$0xff] %vm117, %v170
    %s176 = scalar_lea.vmem [#allocation13], 80
    %v177 = vld [vmem:[%s176] sm:$0xff]
    %v178 = vld [vmem:[%s176 + $0x8] sm:$0xff]
    %181 = vrot.lane.b32.xlu0 %v177, 2
    %v182 = vpop.permute.xlu0 %181
    %183 = vrot.lane.b32.xlu0 %v178, 2
    %v184 = vpop.permute.xlu0 %183
    %s187 = scalar_lea.vmem [#allocation2], 120
    %188 = vst.msk [vmem:[%s187 + $0x2] sm:$0xff] %vm117, %v182
    %189 = vst.msk [vmem:[%s187 + $0xa] sm:$0xff] %vm117, %v184
    %s190 = scalar_lea.vmem [#allocation13], 96
    %v191 = vld [vmem:[%s190] sm:$0xff]
    %v192 = vld [vmem:[%s190 + $0x8] sm:$0xff]
    %195 = vrot.lane.b32.xlu0 %v191, 2
    %v196 = vpop.permute.xlu0 %195
    %197 = vrot.lane.b32.xlu0 %v192, 2
    %v198 = vpop.permute.xlu0 %197
    %s201 = scalar_lea.vmem [#allocation2], 144
    %202 = vst.msk [vmem:[%s201 + $0x2] sm:$0xff] %vm117, %v196
    %203 = vst.msk [vmem:[%s201 + $0xa] sm:$0xff] %vm117, %v198
    %s204 = scalar_lea.vmem [#allocation13], 112
    %v205 = vld [vmem:[%s204] sm:$0xff]
    %v206 = vld [vmem:[%s204 + $0x8] sm:$0xff]
    %209 = vrot.lane.b32.xlu0 %v205, 2
    %v210 = vpop.permute.xlu0 %209
    %211 = vrot.lane.b32.xlu0 %v206, 2
    %v212 = vpop.permute.xlu0 %211
    %s215 = scalar_lea.vmem [#allocation2], 168
    %216 = vst.msk [vmem:[%s215 + $0x2] sm:$0xff] %vm117, %v210
    %217 = vst.msk [vmem:[%s215 + $0xa] sm:$0xff] %vm117, %v212
    %s218 = sld [smem:[#allocation4]]
    %s219 = sld [smem:[#allocation4 + $0x1]]
    %s220 = sld [smem:[#allocation4 + $0x2]]
    %s221 = sld [smem:[#allocation4 + $0x3]]
    %s222 = sld [smem:[#allocation4 + $0x4]]
    %s223 = sld [smem:[#allocation4 + $0x5]]
    %s224 = sld [smem:[#allocation4 + $0x6]]
    %s225 = sld [smem:[#allocation4 + $0x7]]
    %s226 = sld [smem:[#allocation4 + $0x8]]
    %s227 = sld [smem:[#allocation4 + $0x9]]
    %s228 = sld [smem:[#allocation4 + $0xa]]
    %s229 = sld [smem:[#allocation4 + $0xb]]
    %s230 = sld [smem:[#allocation4 + $0xc]]
    %s231 = sld [smem:[#allocation4 + $0xd]]
    %s232 = sld [smem:[#allocation4 + $0xe]]
    %s233 = sld [smem:[#allocation4 + $0xf]]
    %s234 = sld [smem:[#allocation4 + $0x10]]
    %s235 = sld [smem:[#allocation4 + $0x11]]
    %s236 = sld [smem:[#allocation4 + $0x12]]
    %s237 = sld [smem:[#allocation4 + $0x13]]
    %s238 = sld [smem:[#allocation4 + $0x14]]
    %s239 = sld [smem:[#allocation4 + $0x15]]
    %s240 = sld [smem:[#allocation4 + $0x16]]
    %s241 = sld [smem:[#allocation4 + $0x17]]
    %s242 = sld [smem:[#allocation4 + $0x18]]
    %s243 = sld [smem:[#allocation4 + $0x19]]
    %s244 = sld [smem:[#allocation4 + $0x1a]]
    %s245 = sld [smem:[#allocation4 + $0x1b]]
    %s246 = sld [smem:[#allocation4 + $0x1c]]
    %s247 = sld [smem:[#allocation4 + $0x1d]]
    %s248 = sld [smem:[#allocation4 + $0x1e]]
    %s249 = sld [smem:[#allocation4 + $0x1f]]
    %s250 = sld [smem:[#allocation4 + $0x20]]
    %s251 = sld [smem:[#allocation4 + $0x21]]
    %s252 = sld [smem:[#allocation4 + $0x22]]
    %s253 = sld [smem:[#allocation4 + $0x23]]
    %s254 = sld [smem:[#allocation4 + $0x24]]
    %s255 = sld [smem:[#allocation4 + $0x25]]
    %s256 = sld [smem:[#allocation4 + $0x26]]
    %s257 = sld [smem:[#allocation4 + $0x27]]
    %s258 = sld [smem:[#allocation4 + $0x28]]
    %s259 = sld [smem:[#allocation4 + $0x29]]
    %s260 = sld [smem:[#allocation4 + $0x2a]]
    %s261 = sld [smem:[#allocation4 + $0x2b]]
    %s262 = sld [smem:[#allocation4 + $0x2c]]
    %s263 = sld [smem:[#allocation4 + $0x2d]]
    %s264 = sld [smem:[#allocation4 + $0x2e]]
    %s265 = sld [smem:[#allocation4 + $0x2f]]
    %s266 = sld [smem:[#allocation4 + $0x30]]
    %s267 = sld [smem:[#allocation4 + $0x31]]
    %s268 = sld [smem:[#allocation4 + $0x32]]
    %s269 = sld [smem:[#allocation4 + $0x33]]
    %s270 = sld [smem:[#allocation4 + $0x34]]
    %s271 = sld [smem:[#allocation4 + $0x35]]
    %s272 = sld [smem:[#allocation4 + $0x36]]
    %s273 = sld [smem:[#allocation4 + $0x37]]
    %s274 = sld [smem:[#allocation4 + $0x38]]
    %s275 = sld [smem:[#allocation4 + $0x39]]
    %s276 = sld [smem:[#allocation4 + $0x3a]]
    %s277 = sld [smem:[#allocation4 + $0x3b]]
    %s278 = sld [smem:[#allocation4 + $0x3c]]
    %s279 = sld [smem:[#allocation4 + $0x3d]]
    %s280 = sld [smem:[#allocation4 + $0x3e]]
    %s281 = sld [smem:[#allocation4 + $0x3f]]
    %s282 = sld [smem:[#allocation4 + $0x40]]
    %s283 = sld [smem:[#allocation4 + $0x41]]
    %s284 = sld [smem:[#allocation4 + $0x42]]
    %s285 = sld [smem:[#allocation4 + $0x43]]
    %s286 = sld [smem:[#allocation4 + $0x44]]
    %s287 = sld [smem:[#allocation4 + $0x45]]
    %s288 = sld [smem:[#allocation4 + $0x46]]
    %s289 = sld [smem:[#allocation4 + $0x47]]
    %s290 = sld [smem:[#allocation4 + $0x48]]
    %s291 = sld [smem:[#allocation4 + $0x49]]
    %s292 = sld [smem:[#allocation4 + $0x4a]]
    %s293 = sld [smem:[#allocation4 + $0x4b]]
    %s294 = sld [smem:[#allocation4 + $0x4c]]
    %s295 = sld [smem:[#allocation4 + $0x4d]]
    %s296 = sld [smem:[#allocation4 + $0x4e]]
    %s297 = sld [smem:[#allocation4 + $0x4f]]
    %s298 = sld [smem:[#allocation4 + $0x50]]
    %s299 = sld [smem:[#allocation4 + $0x51]]
    %s300 = sld [smem:[#allocation4 + $0x52]]
    %s301 = sld [smem:[#allocation4 + $0x53]]
    %s302 = sld [smem:[#allocation4 + $0x54]]
    %s303 = sld [smem:[#allocation4 + $0x55]]
    %s304 = sld [smem:[#allocation4 + $0x56]]
    %s305 = sld [smem:[#allocation4 + $0x57]]
    %s306 = sld [smem:[#allocation4 + $0x58]]
    %s307 = sld [smem:[#allocation4 + $0x59]]
    %s308 = sld [smem:[#allocation4 + $0x5a]]
    %s309 = sld [smem:[#allocation4 + $0x5b]]
    %s310 = sld [smem:[#allocation4 + $0x5c]]
    %s311 = sld [smem:[#allocation4 + $0x5d]]
    %s312 = sld [smem:[#allocation4 + $0x5e]]
    %s313 = sld [smem:[#allocation4 + $0x5f]]
    %s314 = sld [smem:[#allocation4 + $0x60]]
    %s315 = sld [smem:[#allocation4 + $0x61]]
    %s316 = sld [smem:[#allocation4 + $0x62]]
    %s317 = sld [smem:[#allocation4 + $0x63]]
    %s318 = sld [smem:[#allocation4 + $0x64]]
    %s319 = sld [smem:[#allocation4 + $0x65]]
    %s320 = sld [smem:[#allocation4 + $0x66]]
    %s321 = sld [smem:[#allocation4 + $0x67]]
    %s322 = sld [smem:[#allocation4 + $0x68]]
    %s323 = sld [smem:[#allocation4 + $0x69]]
    %s324 = sld [smem:[#allocation4 + $0x6a]]
    %s325 = sld [smem:[#allocation4 + $0x6b]]
    %s326 = sld [smem:[#allocation4 + $0x6c]]
    %s327 = sld [smem:[#allocation4 + $0x6d]]
    %s328 = sld [smem:[#allocation4 + $0x6e]]
    %s329 = sld [smem:[#allocation4 + $0x6f]]
    %s330 = sld [smem:[#allocation4 + $0x70]]
    %s331 = sld [smem:[#allocation4 + $0x71]]
    %s332 = sld [smem:[#allocation4 + $0x72]]
    %s333 = sld [smem:[#allocation4 + $0x73]]
    %s334 = sld [smem:[#allocation4 + $0x74]]
    %s335 = sld [smem:[#allocation4 + $0x75]]
    %s336 = sld [smem:[#allocation4 + $0x76]]
    %s337 = sld [smem:[#allocation4 + $0x77]]
    %s338 = sld [smem:[#allocation4 + $0x78]]
    %s339 = sld [smem:[#allocation4 + $0x79]]
    %s340 = sld [smem:[#allocation4 + $0x7a]]
    %s341 = sld [smem:[#allocation4 + $0x7b]]
    %s342 = sld [smem:[#allocation4 + $0x7c]]
    %s343 = sld [smem:[#allocation4 + $0x7d]]
    %s344 = sld [smem:[#allocation4 + $0x7e]]
    %s345 = sld [smem:[#allocation4 + $0x7f]]
    %s346 = sld [smem:[#allocation4 + $0x80]]
    %s347 = sld [smem:[#allocation4 + $0x81]]
    %s348 = sld [smem:[#allocation4 + $0x82]]
    %s349 = sld [smem:[#allocation4 + $0x83]]
    %s350 = sld [smem:[#allocation4 + $0x84]]
    %s351 = sld [smem:[#allocation4 + $0x85]]
    %s352 = sld [smem:[#allocation4 + $0x86]]
    %s353 = sld [smem:[#allocation4 + $0x87]]
    %s354 = sld [smem:[#allocation4 + $0x88]]
    %s355 = sld [smem:[#allocation4 + $0x89]]
    %s356 = sld [smem:[#allocation4 + $0x8a]]
    %s357 = sld [smem:[#allocation4 + $0x8b]]
    %s358 = sld [smem:[#allocation4 + $0x8c]]
    %s359 = sld [smem:[#allocation4 + $0x8d]]
    %s360 = sld [smem:[#allocation4 + $0x8e]]
    %s361 = sld [smem:[#allocation4 + $0x8f]]
    %v362 = vld [vmem:[#allocation2] sm:$0xff]
    %v363 = vld [vmem:[#allocation2 + $0x8] sm:$0xff]
    %v364 = vld [vmem:[#allocation2 + $0x10] sm:$0xf]
    %v365 = vstv %s218
    %v366 = vmul.f32 %v362, %v365
    %v367 = vmul.f32 %v363, %v365
    %v368 = vadd.f32 %v366, 0.0
    %v369 = vadd.f32 %v367, 0.0
    %v370 = vstv %s254
    %v371 = vmul.f32 %v362, %v370
    %v372 = vmul.f32 %v363, %v370
    %v373 = vadd.f32 %v371, 0.0
    %v374 = vadd.f32 %v372, 0.0
    %v375 = vstv %s290
    %v376 = vmul.f32 %v362, %v375
    %v377 = vmul.f32 %v363, %v375
    %v378 = vadd.f32 %v376, 0.0
    %v379 = vadd.f32 %v377, 0.0
    %v380 = vstv %s326
    %v381 = vmul.f32 %v362, %v380
    %v382 = vmul.f32 %v363, %v380
    %v383 = vadd.f32 %v381, 0.0
    %v384 = vadd.f32 %v382, 0.0
    %v385 = vstv %s221
    %v386 = vmul.f32 %v362, %v385
    %v387 = vmul.f32 %v363, %v385
    %v388 = vmul.f32 %v364, %v385
    %vm392 = vcmask 1045504
    %v393 = vrot.slane %v386, 2
    %v394 = vrot.slane %v387, 2
    %v395 = vsel %vm392, %v393, %v394
    %v396 = vrot.slane %v388, 2
    %v397 = vsel %vm392, %v394, %v396
    %v400 = vadd.f32 %v368, %v395
    %v401 = vadd.f32 %v369, %v397
    %v402 = vstv %s257
    %v403 = vmul.f32 %v362, %v402
    %v404 = vmul.f32 %v363, %v402
    %v405 = vmul.f32 %v364, %v402
    %v409 = vrot.slane %v403, 2
    %v410 = vrot.slane %v404, 2
    %v411 = vsel %vm392, %v409, %v410
    %v412 = vrot.slane %v405, 2
    %v413 = vsel %vm392, %v410, %v412
    %v416 = vadd.f32 %v373, %v411
    %v417 = vadd.f32 %v374, %v413
    %v418 = vstv %s293
    %v419 = vmul.f32 %v362, %v418
    %v420 = vmul.f32 %v363, %v418
    %v421 = vmul.f32 %v364, %v418
    %v425 = vrot.slane %v419, 2
    %v426 = vrot.slane %v420, 2
    %v427 = vsel %vm392, %v425, %v426
    %v428 = vrot.slane %v421, 2
    %v429 = vsel %vm392, %v426, %v428
    %v432 = vadd.f32 %v378, %v427
    %v433 = vadd.f32 %v379, %v429
    %v434 = vstv %s329
    %v435 = vmul.f32 %v362, %v434
    %v436 = vmul.f32 %v363, %v434
    %v437 = vmul.f32 %v364, %v434
    %v441 = vrot.slane %v435, 2
    %v442 = vrot.slane %v436, 2
    %v443 = vsel %vm392, %v441, %v442
    %v444 = vrot.slane %v437, 2
    %v445 = vsel %vm392, %v442, %v444
    %v448 = vadd.f32 %v383, %v443
    %v449 = vadd.f32 %v384, %v445
    %v450 = vstv %s224
    %v451 = vmul.f32 %v362, %v450
    %v452 = vmul.f32 %v363, %v450
    %v453 = vmul.f32 %v364, %v450
    %vm457 = vcmask 1043456
    %v458 = vrot.slane %v451, 4
    %v459 = vrot.slane %v452, 4
    %v460 = vsel %vm457, %v458, %v459
    %v461 = vrot.slane %v453, 4
    %v462 = vsel %vm457, %v459, %v461
    %v465 = vadd.f32 %v400, %v460
    %v466 = vadd.f32 %v401, %v462
    %v467 = vstv %s260
    %v468 = vmul.f32 %v362, %v467
    %v469 = vmul.f32 %v363, %v467
    %v470 = vmul.f32 %v364, %v467
    %v474 = vrot.slane %v468, 4
    %v475 = vrot.slane %v469, 4
    %v476 = vsel %vm457, %v474, %v475
    %v477 = vrot.slane %v470, 4
    %v478 = vsel %vm457, %v475, %v477
    %v481 = vadd.f32 %v416, %v476
    %v482 = vadd.f32 %v417, %v478
    %v483 = vstv %s296
    %v484 = vmul.f32 %v362, %v483
    %v485 = vmul.f32 %v363, %v483
    %v486 = vmul.f32 %v364, %v483
    %v490 = vrot.slane %v484, 4
    %v491 = vrot.slane %v485, 4
    %v492 = vsel %vm457, %v490, %v491
    %v493 = vrot.slane %v486, 4
    %v494 = vsel %vm457, %v491, %v493
    %v497 = vadd.f32 %v432, %v492
    %v498 = vadd.f32 %v433, %v494
    %v499 = vstv %s332
    %v500 = vmul.f32 %v362, %v499
    %v501 = vmul.f32 %v363, %v499
    %v502 = vmul.f32 %v364, %v499
    %v506 = vrot.slane %v500, 4
    %v507 = vrot.slane %v501, 4
    %v508 = vsel %vm457, %v506, %v507
    %v509 = vrot.slane %v502, 4
    %v510 = vsel %vm457, %v507, %v509
    %v513 = vadd.f32 %v448, %v508
    %v514 = vadd.f32 %v449, %v510
    %v515 = vstv %s219
    %v516 = vmul.f32 %v362, %v515
    %v517 = vmul.f32 %v363, %v515
    %520 = vrot.lane.b32.xlu0 %v516, 126
    %v521 = vpop.permute.xlu0 %520
    %522 = vrot.lane.b32.xlu0 %v517, 126
    %v523 = vpop.permute.xlu0 %522
    %v526 = vadd.f32 %v465, %v521
    %v527 = vadd.f32 %v466, %v523
    %v528 = vstv %s255
    %v529 = vmul.f32 %v362, %v528
    %v530 = vmul.f32 %v363, %v528
    %533 = vrot.lane.b32.xlu0 %v529, 126
    %v534 = vpop.permute.xlu0 %533
    %535 = vrot.lane.b32.xlu0 %v530, 126
    %v536 = vpop.permute.xlu0 %535
    %v539 = vadd.f32 %v481, %v534
    %v540 = vadd.f32 %v482, %v536
    %v541 = vstv %s291
    %v542 = vmul.f32 %v362, %v541
    %v543 = vmul.f32 %v363, %v541
    %546 = vrot.lane.b32.xlu0 %v542, 126
    %v547 = vpop.permute.xlu0 %546
    %548 = vrot.lane.b32.xlu0 %v543, 126
    %v549 = vpop.permute.xlu0 %548
    %v552 = vadd.f32 %v497, %v547
    %v553 = vadd.f32 %v498, %v549
    %v554 = vstv %s327
    %v555 = vmul.f32 %v362, %v554
    %v556 = vmul.f32 %v363, %v554
    %559 = vrot.lane.b32.xlu0 %v555, 126
    %v560 = vpop.permute.xlu0 %559
    %561 = vrot.lane.b32.xlu0 %v556, 126
    %v562 = vpop.permute.xlu0 %561
    %v565 = vadd.f32 %v513, %v560
    %v566 = vadd.f32 %v514, %v562
    %v567 = vstv %s222
    %v568 = vmul.f32 %v362, %v567
    %v569 = vmul.f32 %v363, %v567
    %v570 = vmul.f32 %v364, %v567
    %v574 = vrot.slane %v568, 2
    %v575 = vrot.slane %v569, 2
    %v576 = vsel %vm392, %v574, %v575
    %v577 = vrot.slane %v570, 2
    %v578 = vsel %vm392, %v575, %v577
    %579 = vrot.lane.b32.xlu0 %v576, 126
    %v580 = vpop.permute.xlu0 %579
    %581 = vrot.lane.b32.xlu0 %v578, 126
    %v582 = vpop.permute.xlu0 %581
    %v585 = vadd.f32 %v526, %v580
    %v586 = vadd.f32 %v527, %v582
    %v587 = vstv %s258
    %v588 = vmul.f32 %v362, %v587
    %v589 = vmul.f32 %v363, %v587
    %v590 = vmul.f32 %v364, %v587
    %v594 = vrot.slane %v588, 2
    %v595 = vrot.slane %v589, 2
    %v596 = vsel %vm392, %v594, %v595
    %v597 = vrot.slane %v590, 2
    %v598 = vsel %vm392, %v595, %v597
    %599 = vrot.lane.b32.xlu0 %v596, 126
    %v600 = vpop.permute.xlu0 %599
    %601 = vrot.lane.b32.xlu0 %v598, 126
    %v602 = vpop.permute.xlu0 %601
    %v605 = vadd.f32 %v539, %v600
    %v606 = vadd.f32 %v540, %v602
    %v607 = vstv %s294
    %v608 = vmul.f32 %v362, %v607
    %v609 = vmul.f32 %v363, %v607
    %v610 = vmul.f32 %v364, %v607
    %v614 = vrot.slane %v608, 2
    %v615 = vrot.slane %v609, 2
    %v616 = vsel %vm392, %v614, %v615
    %v617 = vrot.slane %v610, 2
    %v618 = vsel %vm392, %v615, %v617
    %619 = vrot.lane.b32.xlu0 %v616, 126
    %v620 = vpop.permute.xlu0 %619
    %621 = vrot.lane.b32.xlu0 %v618, 126
    %v622 = vpop.permute.xlu0 %621
    %v625 = vadd.f32 %v552, %v620
    %v626 = vadd.f32 %v553, %v622
    %v627 = vstv %s330
    %v628 = vmul.f32 %v362, %v627
    %v629 = vmul.f32 %v363, %v627
    %v630 = vmul.f32 %v364, %v627
    %v634 = vrot.slane %v628, 2
    %v635 = vrot.slane %v629, 2
    %v636 = vsel %vm392, %v634, %v635
    %v637 = vrot.slane %v630, 2
    %v638 = vsel %vm392, %v635, %v637
    %639 = vrot.lane.b32.xlu0 %v636, 126
    %v640 = vpop.permute.xlu0 %639
    %641 = vrot.lane.b32.xlu0 %v638, 126
    %v642 = vpop.permute.xlu0 %641
    %v645 = vadd.f32 %v565, %v640
    %v646 = vadd.f32 %v566, %v642
    %v647 = vstv %s225
    %v648 = vmul.f32 %v362, %v647
    %v649 = vmul.f32 %v363, %v647
    %v650 = vmul.f32 %v364, %v647
    %v654 = vrot.slane %v648, 4
    %v655 = vrot.slane %v649, 4
    %v656 = vsel %vm457, %v654, %v655
    %v657 = vrot.slane %v650, 4
    %v658 = vsel %vm457, %v655, %v657
    %659 = vrot.lane.b32.xlu0 %v656, 126
    %v660 = vpop.permute.xlu0 %659
    %661 = vrot.lane.b32.xlu0 %v658, 126
    %v662 = vpop.permute.xlu0 %661
    %v665 = vadd.f32 %v585, %v660
    %v666 = vadd.f32 %v586, %v662
    %v667 = vstv %s261
    %v668 = vmul.f32 %v362, %v667
    %v669 = vmul.f32 %v363, %v667
    %v670 = vmul.f32 %v364, %v667
    %v674 = vrot.slane %v668, 4
    %v675 = vrot.slane %v669, 4
    %v676 = vsel %vm457, %v674, %v675
    %v677 = vrot.slane %v670, 4
    %v678 = vsel %vm457, %v675, %v677
    %679 = vrot.lane.b32.xlu0 %v676, 126
    %v680 = vpop.permute.xlu0 %679
    %681 = vrot.lane.b32.xlu0 %v678, 126
    %v682 = vpop.permute.xlu0 %681
    %v685 = vadd.f32 %v605, %v680
    %v686 = vadd.f32 %v606, %v682
    %v687 = vstv %s297
    %v688 = vmul.f32 %v362, %v687
    %v689 = vmul.f32 %v363, %v687
    %v690 = vmul.f32 %v364, %v687
    %v694 = vrot.slane %v688, 4
    %v695 = vrot.slane %v689, 4
    %v696 = vsel %vm457, %v694, %v695
    %v697 = vrot.slane %v690, 4
    %v698 = vsel %vm457, %v695, %v697
    %699 = vrot.lane.b32.xlu0 %v696, 126
    %v700 = vpop.permute.xlu0 %699
    %701 = vrot.lane.b32.xlu0 %v698, 126
    %v702 = vpop.permute.xlu0 %701
    %v705 = vadd.f32 %v625, %v700
    %v706 = vadd.f32 %v626, %v702
    %v707 = vstv %s333
    %v708 = vmul.f32 %v362, %v707
    %v709 = vmul.f32 %v363, %v707
    %v710 = vmul.f32 %v364, %v707
    %v714 = vrot.slane %v708, 4
    %v715 = vrot.slane %v709, 4
    %v716 = vsel %vm457, %v714, %v715
    %v717 = vrot.slane %v710, 4
    %v718 = vsel %vm457, %v715, %v717
    %719 = vrot.lane.b32.xlu0 %v716, 126
    %v720 = vpop.permute.xlu0 %719
    %721 = vrot.lane.b32.xlu0 %v718, 126
    %v722 = vpop.permute.xlu0 %721
    %v725 = vadd.f32 %v645, %v720
    %v726 = vadd.f32 %v646, %v722
    %v727 = vstv %s220
    %v728 = vmul.f32 %v362, %v727
    %v729 = vmul.f32 %v363, %v727
    %732 = vrot.lane.b32.xlu0 %v728, 124
    %v733 = vpop.permute.xlu0 %732
    %734 = vrot.lane.b32.xlu0 %v729, 124
    %v735 = vpop.permute.xlu0 %734
    %v738 = vadd.f32 %v665, %v733
    %v739 = vadd.f32 %v666, %v735
    %v740 = vstv %s256
    %v741 = vmul.f32 %v362, %v740
    %v742 = vmul.f32 %v363, %v740
    %745 = vrot.lane.b32.xlu0 %v741, 124
    %v746 = vpop.permute.xlu0 %745
    %747 = vrot.lane.b32.xlu0 %v742, 124
    %v748 = vpop.permute.xlu0 %747
    %v751 = vadd.f32 %v685, %v746
    %v752 = vadd.f32 %v686, %v748
    %v753 = vstv %s292
    %v754 = vmul.f32 %v362, %v753
    %v755 = vmul.f32 %v363, %v753
    %758 = vrot.lane.b32.xlu0 %v754, 124
    %v759 = vpop.permute.xlu0 %758
    %760 = vrot.lane.b32.xlu0 %v755, 124
    %v761 = vpop.permute.xlu0 %760
    %v764 = vadd.f32 %v705, %v759
    %v765 = vadd.f32 %v706, %v761
    %v766 = vstv %s328
    %v767 = vmul.f32 %v362, %v766
    %v768 = vmul.f32 %v363, %v766
    %771 = vrot.lane.b32.xlu0 %v767, 124
    %v772 = vpop.permute.xlu0 %771
    %773 = vrot.lane.b32.xlu0 %v768, 124
    %v774 = vpop.permute.xlu0 %773
    %v777 = vadd.f32 %v725, %v772
    %v778 = vadd.f32 %v726, %v774
    %v779 = vstv %s223
    %v780 = vmul.f32 %v362, %v779
    %v781 = vmul.f32 %v363, %v779
    %v782 = vmul.f32 %v364, %v779
    %v786 = vrot.slane %v780, 2
    %v787 = vrot.slane %v781, 2
    %v788 = vsel %vm392, %v786, %v787
    %v789 = vrot.slane %v782, 2
    %v790 = vsel %vm392, %v787, %v789
    %791 = vrot.lane.b32.xlu0 %v788, 124
    %v792 = vpop.permute.xlu0 %791
    %793 = vrot.lane.b32.xlu0 %v790, 124
    %v794 = vpop.permute.xlu0 %793
    %v797 = vadd.f32 %v738, %v792
    %v798 = vadd.f32 %v739, %v794
    %v799 = vstv %s259
    %v800 = vmul.f32 %v362, %v799
    %v801 = vmul.f32 %v363, %v799
    %v802 = vmul.f32 %v364, %v799
    %v806 = vrot.slane %v800, 2
    %v807 = vrot.slane %v801, 2
    %v808 = vsel %vm392, %v806, %v807
    %v809 = vrot.slane %v802, 2
    %v810 = vsel %vm392, %v807, %v809
    %811 = vrot.lane.b32.xlu0 %v808, 124
    %v812 = vpop.permute.xlu0 %811
    %813 = vrot.lane.b32.xlu0 %v810, 124
    %v814 = vpop.permute.xlu0 %813
    %v817 = vadd.f32 %v751, %v812
    %v818 = vadd.f32 %v752, %v814
    %v819 = vstv %s295
    %v820 = vmul.f32 %v362, %v819
    %v821 = vmul.f32 %v363, %v819
    %v822 = vmul.f32 %v364, %v819
    %v826 = vrot.slane %v820, 2
    %v827 = vrot.slane %v821, 2
    %v828 = vsel %vm392, %v826, %v827
    %v829 = vrot.slane %v822, 2
    %v830 = vsel %vm392, %v827, %v829
    %831 = vrot.lane.b32.xlu0 %v828, 124
    %v832 = vpop.permute.xlu0 %831
    %833 = vrot.lane.b32.xlu0 %v830, 124
    %v834 = vpop.permute.xlu0 %833
    %v837 = vadd.f32 %v764, %v832
    %v838 = vadd.f32 %v765, %v834
    %v839 = vstv %s331
    %v840 = vmul.f32 %v362, %v839
    %v841 = vmul.f32 %v363, %v839
    %v842 = vmul.f32 %v364, %v839
    %v846 = vrot.slane %v840, 2
    %v847 = vrot.slane %v841, 2
    %v848 = vsel %vm392, %v846, %v847
    %v849 = vrot.slane %v842, 2
    %v850 = vsel %vm392, %v847, %v849
    %851 = vrot.lane.b32.xlu0 %v848, 124
    %v852 = vpop.permute.xlu0 %851
    %853 = vrot.lane.b32.xlu0 %v850, 124
    %v854 = vpop.permute.xlu0 %853
    %v857 = vadd.f32 %v777, %v852
    %v858 = vadd.f32 %v778, %v854
    %v859 = vstv %s226
    %v860 = vmul.f32 %v362, %v859
    %v861 = vmul.f32 %v363, %v859
    %v862 = vmul.f32 %v364, %v859
    %v866 = vrot.slane %v860, 4
    %v867 = vrot.slane %v861, 4
    %v868 = vsel %vm457, %v866, %v867
    %v869 = vrot.slane %v862, 4
    %v870 = vsel %vm457, %v867, %v869
    %871 = vrot.lane.b32.xlu0 %v868, 124
    %v872 = vpop.permute.xlu0 %871
    %873 = vrot.lane.b32.xlu0 %v870, 124
    %v874 = vpop.permute.xlu0 %873
    %v877 = vadd.f32 %v797, %v872
    %v878 = vadd.f32 %v798, %v874
    %v879 = vstv %s262
    %v880 = vmul.f32 %v362, %v879
    %v881 = vmul.f32 %v363, %v879
    %v882 = vmul.f32 %v364, %v879
    %v886 = vrot.slane %v880, 4
    %v887 = vrot.slane %v881, 4
    %v888 = vsel %vm457, %v886, %v887
    %v889 = vrot.slane %v882, 4
    %v890 = vsel %vm457, %v887, %v889
    %891 = vrot.lane.b32.xlu0 %v888, 124
    %v892 = vpop.permute.xlu0 %891
    %893 = vrot.lane.b32.xlu0 %v890, 124
    %v894 = vpop.permute.xlu0 %893
    %v897 = vadd.f32 %v817, %v892
    %v898 = vadd.f32 %v818, %v894
    %v899 = vstv %s298
    %v900 = vmul.f32 %v362, %v899
    %v901 = vmul.f32 %v363, %v899
    %v902 = vmul.f32 %v364, %v899
    %v906 = vrot.slane %v900, 4
    %v907 = vrot.slane %v901, 4
    %v908 = vsel %vm457, %v906, %v907
    %v909 = vrot.slane %v902, 4
    %v910 = vsel %vm457, %v907, %v909
    %911 = vrot.lane.b32.xlu0 %v908, 124
    %v912 = vpop.permute.xlu0 %911
    %913 = vrot.lane.b32.xlu0 %v910, 124
    %v914 = vpop.permute.xlu0 %913
    %v917 = vadd.f32 %v837, %v912
    %v918 = vadd.f32 %v838, %v914
    %v919 = vstv %s334
    %v920 = vmul.f32 %v362, %v919
    %v921 = vmul.f32 %v363, %v919
    %v922 = vmul.f32 %v364, %v919
    %v926 = vrot.slane %v920, 4
    %v927 = vrot.slane %v921, 4
    %v928 = vsel %vm457, %v926, %v927
    %v929 = vrot.slane %v922, 4
    %v930 = vsel %vm457, %v927, %v929
    %931 = vrot.lane.b32.xlu0 %v928, 124
    %v932 = vpop.permute.xlu0 %931
    %933 = vrot.lane.b32.xlu0 %v930, 124
    %v934 = vpop.permute.xlu0 %933
    %v937 = vadd.f32 %v857, %v932
    %v938 = vadd.f32 %v858, %v934
    %v939 = vld [vmem:[%s131] sm:$0xff]
    %v940 = vld [vmem:[%s131 + $0x8] sm:$0xff]
    %v941 = vld [vmem:[%s131 + $0x10] sm:$0xf]
    %v942 = vstv %s227
    %v943 = vmul.f32 %v939, %v942
    %v944 = vmul.f32 %v940, %v942
    %v945 = vadd.f32 %v877, %v943
    %v946 = vadd.f32 %v878, %v944
    %v947 = vstv %s263
    %v948 = vmul.f32 %v939, %v947
    %v949 = vmul.f32 %v940, %v947
    %v950 = vadd.f32 %v897, %v948
    %v951 = vadd.f32 %v898, %v949
    %v952 = vstv %s299
    %v953 = vmul.f32 %v939, %v952
    %v954 = vmul.f32 %v940, %v952
    %v955 = vadd.f32 %v917, %v953
    %v956 = vadd.f32 %v918, %v954
    %v957 = vstv %s335
    %v958 = vmul.f32 %v939, %v957
    %v959 = vmul.f32 %v940, %v957
    %v960 = vadd.f32 %v937, %v958
    %v961 = vadd.f32 %v938, %v959
    %v962 = vstv %s230
    %v963 = vmul.f32 %v939, %v962
    %v964 = vmul.f32 %v940, %v962
    %v965 = vmul.f32 %v941, %v962
    %v969 = vrot.slane %v963, 2
    %v970 = vrot.slane %v964, 2
    %v971 = vsel %vm392, %v969, %v970
    %v972 = vrot.slane %v965, 2
    %v973 = vsel %vm392, %v970, %v972
    %v976 = vadd.f32 %v945, %v971
    %v977 = vadd.f32 %v946, %v973
    %v978 = vstv %s266
    %v979 = vmul.f32 %v939, %v978
    %v980 = vmul.f32 %v940, %v978
    %v981 = vmul.f32 %v941, %v978
    %v985 = vrot.slane %v979, 2
    %v986 = vrot.slane %v980, 2
    %v987 = vsel %vm392, %v985, %v986
    %v988 = vrot.slane %v981, 2
    %v989 = vsel %vm392, %v986, %v988
    %v992 = vadd.f32 %v950, %v987
    %v993 = vadd.f32 %v951, %v989
    %v994 = vstv %s302
    %v995 = vmul.f32 %v939, %v994
    %v996 = vmul.f32 %v940, %v994
    %v997 = vmul.f32 %v941, %v994
    %v1001 = vrot.slane %v995, 2
    %v1002 = vrot.slane %v996, 2
    %v1003 = vsel %vm392, %v1001, %v1002
    %v1004 = vrot.slane %v997, 2
    %v1005 = vsel %vm392, %v1002, %v1004
    %v1008 = vadd.f32 %v955, %v1003
    %v1009 = vadd.f32 %v956, %v1005
    %v1010 = vstv %s338
    %v1011 = vmul.f32 %v939, %v1010
    %v1012 = vmul.f32 %v940, %v1010
    %v1013 = vmul.f32 %v941, %v1010
    %v1017 = vrot.slane %v1011, 2
    %v1018 = vrot.slane %v1012, 2
    %v1019 = vsel %vm392, %v1017, %v1018
    %v1020 = vrot.slane %v1013, 2
    %v1021 = vsel %vm392, %v1018, %v1020
    %v1024 = vadd.f32 %v960, %v1019
    %v1025 = vadd.f32 %v961, %v1021
    %v1026 = vstv %s233
    %v1027 = vmul.f32 %v939, %v1026
    %v1028 = vmul.f32 %v940, %v1026
    %v1029 = vmul.f32 %v941, %v1026
    %v1033 = vrot.slane %v1027, 4
    %v1034 = vrot.slane %v1028, 4
    %v1035 = vsel %vm457, %v1033, %v1034
    %v1036 = vrot.slane %v1029, 4
    %v1037 = vsel %vm457, %v1034, %v1036
    %v1040 = vadd.f32 %v976, %v1035
    %v1041 = vadd.f32 %v977, %v1037
    %v1042 = vstv %s269
    %v1043 = vmul.f32 %v939, %v1042
    %v1044 = vmul.f32 %v940, %v1042
    %v1045 = vmul.f32 %v941, %v1042
    %v1049 = vrot.slane %v1043, 4
    %v1050 = vrot.slane %v1044, 4
    %v1051 = vsel %vm457, %v1049, %v1050
    %v1052 = vrot.slane %v1045, 4
    %v1053 = vsel %vm457, %v1050, %v1052
    %v1056 = vadd.f32 %v992, %v1051
    %v1057 = vadd.f32 %v993, %v1053
    %v1058 = vstv %s305
    %v1059 = vmul.f32 %v939, %v1058
    %v1060 = vmul.f32 %v940, %v1058
    %v1061 = vmul.f32 %v941, %v1058
    %v1065 = vrot.slane %v1059, 4
    %v1066 = vrot.slane %v1060, 4
    %v1067 = vsel %vm457, %v1065, %v1066
    %v1068 = vrot.slane %v1061, 4
    %v1069 = vsel %vm457, %v1066, %v1068
    %v1072 = vadd.f32 %v1008, %v1067
    %v1073 = vadd.f32 %v1009, %v1069
    %v1074 = vstv %s341
    %v1075 = vmul.f32 %v939, %v1074
    %v1076 = vmul.f32 %v940, %v1074
    %v1077 = vmul.f32 %v941, %v1074
    %v1081 = vrot.slane %v1075, 4
    %v1082 = vrot.slane %v1076, 4
    %v1083 = vsel %vm457, %v1081, %v1082
    %v1084 = vrot.slane %v1077, 4
    %v1085 = vsel %vm457, %v1082, %v1084
    %v1088 = vadd.f32 %v1024, %v1083
    %v1089 = vadd.f32 %v1025, %v1085
    %v1090 = vstv %s228
    %v1091 = vmul.f32 %v939, %v1090
    %v1092 = vmul.f32 %v940, %v1090
    %1095 = vrot.lane.b32.xlu0 %v1091, 126
    %v1096 = vpop.permute.xlu0 %1095
    %1097 = vrot.lane.b32.xlu0 %v1092, 126
    %v1098 = vpop.permute.xlu0 %1097
    %v1101 = vadd.f32 %v1040, %v1096
    %v1102 = vadd.f32 %v1041, %v1098
    %v1103 = vstv %s264
    %v1104 = vmul.f32 %v939, %v1103
    %v1105 = vmul.f32 %v940, %v1103
    %1108 = vrot.lane.b32.xlu0 %v1104, 126
    %v1109 = vpop.permute.xlu0 %1108
    %1110 = vrot.lane.b32.xlu0 %v1105, 126
    %v1111 = vpop.permute.xlu0 %1110
    %v1114 = vadd.f32 %v1056, %v1109
    %v1115 = vadd.f32 %v1057, %v1111
    %v1116 = vstv %s300
    %v1117 = vmul.f32 %v939, %v1116
    %v1118 = vmul.f32 %v940, %v1116
    %1121 = vrot.lane.b32.xlu0 %v1117, 126
    %v1122 = vpop.permute.xlu0 %1121
    %1123 = vrot.lane.b32.xlu0 %v1118, 126
    %v1124 = vpop.permute.xlu0 %1123
    %v1127 = vadd.f32 %v1072, %v1122
    %v1128 = vadd.f32 %v1073, %v1124
    %v1129 = vstv %s336
    %v1130 = vmul.f32 %v939, %v1129
    %v1131 = vmul.f32 %v940, %v1129
    %1134 = vrot.lane.b32.xlu0 %v1130, 126
    %v1135 = vpop.permute.xlu0 %1134
    %1136 = vrot.lane.b32.xlu0 %v1131, 126
    %v1137 = vpop.permute.xlu0 %1136
    %v1140 = vadd.f32 %v1088, %v1135
    %v1141 = vadd.f32 %v1089, %v1137
    %v1142 = vstv %s231
    %v1143 = vmul.f32 %v939, %v1142
    %v1144 = vmul.f32 %v940, %v1142
    %v1145 = vmul.f32 %v941, %v1142
    %v1149 = vrot.slane %v1143, 2
    %v1150 = vrot.slane %v1144, 2
    %v1151 = vsel %vm392, %v1149, %v1150
    %v1152 = vrot.slane %v1145, 2
    %v1153 = vsel %vm392, %v1150, %v1152
    %1154 = vrot.lane.b32.xlu0 %v1151, 126
    %v1155 = vpop.permute.xlu0 %1154
    %1156 = vrot.lane.b32.xlu0 %v1153, 126
    %v1157 = vpop.permute.xlu0 %1156
    %v1160 = vadd.f32 %v1101, %v1155
    %v1161 = vadd.f32 %v1102, %v1157
    %v1162 = vstv %s267
    %v1163 = vmul.f32 %v939, %v1162
    %v1164 = vmul.f32 %v940, %v1162
    %v1165 = vmul.f32 %v941, %v1162
    %v1169 = vrot.slane %v1163, 2
    %v1170 = vrot.slane %v1164, 2
    %v1171 = vsel %vm392, %v1169, %v1170
    %v1172 = vrot.slane %v1165, 2
    %v1173 = vsel %vm392, %v1170, %v1172
    %1174 = vrot.lane.b32.xlu0 %v1171, 126
    %v1175 = vpop.permute.xlu0 %1174
    %1176 = vrot.lane.b32.xlu0 %v1173, 126
    %v1177 = vpop.permute.xlu0 %1176
    %v1180 = vadd.f32 %v1114, %v1175
    %v1181 = vadd.f32 %v1115, %v1177
    %v1182 = vstv %s303
    %v1183 = vmul.f32 %v939, %v1182
    %v1184 = vmul.f32 %v940, %v1182
    %v1185 = vmul.f32 %v941, %v1182
    %v1189 = vrot.slane %v1183, 2
    %v1190 = vrot.slane %v1184, 2
    %v1191 = vsel %vm392, %v1189, %v1190
    %v1192 = vrot.slane %v1185, 2
    %v1193 = vsel %vm392, %v1190, %v1192
    %1194 = vrot.lane.b32.xlu0 %v1191, 126
    %v1195 = vpop.permute.xlu0 %1194
    %1196 = vrot.lane.b32.xlu0 %v1193, 126
    %v1197 = vpop.permute.xlu0 %1196
    %v1200 = vadd.f32 %v1127, %v1195
    %v1201 = vadd.f32 %v1128, %v1197
    %v1202 = vstv %s339
    %v1203 = vmul.f32 %v939, %v1202
    %v1204 = vmul.f32 %v940, %v1202
    %v1205 = vmul.f32 %v941, %v1202
    %v1209 = vrot.slane %v1203, 2
    %v1210 = vrot.slane %v1204, 2
    %v1211 = vsel %vm392, %v1209, %v1210
    %v1212 = vrot.slane %v1205, 2
    %v1213 = vsel %vm392, %v1210, %v1212
    %1214 = vrot.lane.b32.xlu0 %v1211, 126
    %v1215 = vpop.permute.xlu0 %1214
    %1216 = vrot.lane.b32.xlu0 %v1213, 126
    %v1217 = vpop.permute.xlu0 %1216
    %v1220 = vadd.f32 %v1140, %v1215
    %v1221 = vadd.f32 %v1141, %v1217
    %v1222 = vstv %s234
    %v1223 = vmul.f32 %v939, %v1222
    %v1224 = vmul.f32 %v940, %v1222
    %v1225 = vmul.f32 %v941, %v1222
    %v1229 = vrot.slane %v1223, 4
    %v1230 = vrot.slane %v1224, 4
    %v1231 = vsel %vm457, %v1229, %v1230
    %v1232 = vrot.slane %v1225, 4
    %v1233 = vsel %vm457, %v1230, %v1232
    %1234 = vrot.lane.b32.xlu0 %v1231, 126
    %v1235 = vpop.permute.xlu0 %1234
    %1236 = vrot.lane.b32.xlu0 %v1233, 126
    %v1237 = vpop.permute.xlu0 %1236
    %v1240 = vadd.f32 %v1160, %v1235
    %v1241 = vadd.f32 %v1161, %v1237
    %v1242 = vstv %s270
    %v1243 = vmul.f32 %v939, %v1242
    %v1244 = vmul.f32 %v940, %v1242
    %v1245 = vmul.f32 %v941, %v1242
    %v1249 = vrot.slane %v1243, 4
    %v1250 = vrot.slane %v1244, 4
    %v1251 = vsel %vm457, %v1249, %v1250
    %v1252 = vrot.slane %v1245, 4
    %v1253 = vsel %vm457, %v1250, %v1252
    %1254 = vrot.lane.b32.xlu0 %v1251, 126
    %v1255 = vpop.permute.xlu0 %1254
    %1256 = vrot.lane.b32.xlu0 %v1253, 126
    %v1257 = vpop.permute.xlu0 %1256
    %v1260 = vadd.f32 %v1180, %v1255
    %v1261 = vadd.f32 %v1181, %v1257
    %v1262 = vstv %s306
    %v1263 = vmul.f32 %v939, %v1262
    %v1264 = vmul.f32 %v940, %v1262
    %v1265 = vmul.f32 %v941, %v1262
    %v1269 = vrot.slane %v1263, 4
    %v1270 = vrot.slane %v1264, 4
    %v1271 = vsel %vm457, %v1269, %v1270
    %v1272 = vrot.slane %v1265, 4
    %v1273 = vsel %vm457, %v1270, %v1272
    %1274 = vrot.lane.b32.xlu0 %v1271, 126
    %v1275 = vpop.permute.xlu0 %1274
    %1276 = vrot.lane.b32.xlu0 %v1273, 126
    %v1277 = vpop.permute.xlu0 %1276
    %v1280 = vadd.f32 %v1200, %v1275
    %v1281 = vadd.f32 %v1201, %v1277
    %v1282 = vstv %s342
    %v1283 = vmul.f32 %v939, %v1282
    %v1284 = vmul.f32 %v940, %v1282
    %v1285 = vmul.f32 %v941, %v1282
    %v1289 = vrot.slane %v1283, 4
    %v1290 = vrot.slane %v1284, 4
    %v1291 = vsel %vm457, %v1289, %v1290
    %v1292 = vrot.slane %v1285, 4
    %v1293 = vsel %vm457, %v1290, %v1292
    %1294 = vrot.lane.b32.xlu0 %v1291, 126
    %v1295 = vpop.permute.xlu0 %1294
    %1296 = vrot.lane.b32.xlu0 %v1293, 126
    %v1297 = vpop.permute.xlu0 %1296
    %v1300 = vadd.f32 %v1220, %v1295
    %v1301 = vadd.f32 %v1221, %v1297
    %v1302 = vstv %s229
    %v1303 = vmul.f32 %v939, %v1302
    %v1304 = vmul.f32 %v940, %v1302
    %1307 = vrot.lane.b32.xlu0 %v1303, 124
    %v1308 = vpop.permute.xlu0 %1307
    %1309 = vrot.lane.b32.xlu0 %v1304, 124
    %v1310 = vpop.permute.xlu0 %1309
    %v1313 = vadd.f32 %v1240, %v1308
    %v1314 = vadd.f32 %v1241, %v1310
    %v1315 = vstv %s265
    %v1316 = vmul.f32 %v939, %v1315
    %v1317 = vmul.f32 %v940, %v1315
    %1320 = vrot.lane.b32.xlu0 %v1316, 124
    %v1321 = vpop.permute.xlu0 %1320
    %1322 = vrot.lane.b32.xlu0 %v1317, 124
    %v1323 = vpop.permute.xlu0 %1322
    %v1326 = vadd.f32 %v1260, %v1321
    %v1327 = vadd.f32 %v1261, %v1323
    %v1328 = vstv %s301
    %v1329 = vmul.f32 %v939, %v1328
    %v1330 = vmul.f32 %v940, %v1328
    %1333 = vrot.lane.b32.xlu0 %v1329, 124
    %v1334 = vpop.permute.xlu0 %1333
    %1335 = vrot.lane.b32.xlu0 %v1330, 124
    %v1336 = vpop.permute.xlu0 %1335
    %v1339 = vadd.f32 %v1280, %v1334
    %v1340 = vadd.f32 %v1281, %v1336
    %v1341 = vstv %s337
    %v1342 = vmul.f32 %v939, %v1341
    %v1343 = vmul.f32 %v940, %v1341
    %1346 = vrot.lane.b32.xlu0 %v1342, 124
    %v1347 = vpop.permute.xlu0 %1346
    %1348 = vrot.lane.b32.xlu0 %v1343, 124
    %v1349 = vpop.permute.xlu0 %1348
    %v1352 = vadd.f32 %v1300, %v1347
    %v1353 = vadd.f32 %v1301, %v1349
    %v1354 = vstv %s232
    %v1355 = vmul.f32 %v939, %v1354
    %v1356 = vmul.f32 %v940, %v1354
    %v1357 = vmul.f32 %v941, %v1354
    %v1361 = vrot.slane %v1355, 2
    %v1362 = vrot.slane %v1356, 2
    %v1363 = vsel %vm392, %v1361, %v1362
    %v1364 = vrot.slane %v1357, 2
    %v1365 = vsel %vm392, %v1362, %v1364
    %1366 = vrot.lane.b32.xlu0 %v1363, 124
    %v1367 = vpop.permute.xlu0 %1366
    %1368 = vrot.lane.b32.xlu0 %v1365, 124
    %v1369 = vpop.permute.xlu0 %1368
    %v1372 = vadd.f32 %v1313, %v1367
    %v1373 = vadd.f32 %v1314, %v1369
    %v1374 = vstv %s268
    %v1375 = vmul.f32 %v939, %v1374
    %v1376 = vmul.f32 %v940, %v1374
    %v1377 = vmul.f32 %v941, %v1374
    %v1381 = vrot.slane %v1375, 2
    %v1382 = vrot.slane %v1376, 2
    %v1383 = vsel %vm392, %v1381, %v1382
    %v1384 = vrot.slane %v1377, 2
    %v1385 = vsel %vm392, %v1382, %v1384
    %1386 = vrot.lane.b32.xlu0 %v1383, 124
    %v1387 = vpop.permute.xlu0 %1386
    %1388 = vrot.lane.b32.xlu0 %v1385, 124
    %v1389 = vpop.permute.xlu0 %1388
    %v1392 = vadd.f32 %v1326, %v1387
    %v1393 = vadd.f32 %v1327, %v1389
    %v1394 = vstv %s304
    %v1395 = vmul.f32 %v939, %v1394
    %v1396 = vmul.f32 %v940, %v1394
    %v1397 = vmul.f32 %v941, %v1394
    %v1401 = vrot.slane %v1395, 2
    %v1402 = vrot.slane %v1396, 2
    %v1403 = vsel %vm392, %v1401, %v1402
    %v1404 = vrot.slane %v1397, 2
    %v1405 = vsel %vm392, %v1402, %v1404
    %1406 = vrot.lane.b32.xlu0 %v1403, 124
    %v1407 = vpop.permute.xlu0 %1406
    %1408 = vrot.lane.b32.xlu0 %v1405, 124
    %v1409 = vpop.permute.xlu0 %1408
    %v1412 = vadd.f32 %v1339, %v1407
    %v1413 = vadd.f32 %v1340, %v1409
    %v1414 = vstv %s340
    %v1415 = vmul.f32 %v939, %v1414
    %v1416 = vmul.f32 %v940, %v1414
    %v1417 = vmul.f32 %v941, %v1414
    %v1421 = vrot.slane %v1415, 2
    %v1422 = vrot.slane %v1416, 2
    %v1423 = vsel %vm392, %v1421, %v1422
    %v1424 = vrot.slane %v1417, 2
    %v1425 = vsel %vm392, %v1422, %v1424
    %1426 = vrot.lane.b32.xlu0 %v1423, 124
    %v1427 = vpop.permute.xlu0 %1426
    %1428 = vrot.lane.b32.xlu0 %v1425, 124
    %v1429 = vpop.permute.xlu0 %1428
    %v1432 = vadd.f32 %v1352, %v1427
    %v1433 = vadd.f32 %v1353, %v1429
    %v1434 = vstv %s235
    %v1435 = vmul.f32 %v939, %v1434
    %v1436 = vmul.f32 %v940, %v1434
    %v1437 = vmul.f32 %v941, %v1434
    %v1441 = vrot.slane %v1435, 4
    %v1442 = vrot.slane %v1436, 4
    %v1443 = vsel %vm457, %v1441, %v1442
    %v1444 = vrot.slane %v1437, 4
    %v1445 = vsel %vm457, %v1442, %v1444
    %1446 = vrot.lane.b32.xlu0 %v1443, 124
    %v1447 = vpop.permute.xlu0 %1446
    %1448 = vrot.lane.b32.xlu0 %v1445, 124
    %v1449 = vpop.permute.xlu0 %1448
    %v1452 = vadd.f32 %v1372, %v1447
    %v1453 = vadd.f32 %v1373, %v1449
    %v1454 = vstv %s271
    %v1455 = vmul.f32 %v939, %v1454
    %v1456 = vmul.f32 %v940, %v1454
    %v1457 = vmul.f32 %v941, %v1454
    %v1461 = vrot.slane %v1455, 4
    %v1462 = vrot.slane %v1456, 4
    %v1463 = vsel %vm457, %v1461, %v1462
    %v1464 = vrot.slane %v1457, 4
    %v1465 = vsel %vm457, %v1462, %v1464
    %1466 = vrot.lane.b32.xlu0 %v1463, 124
    %v1467 = vpop.permute.xlu0 %1466
    %1468 = vrot.lane.b32.xlu0 %v1465, 124
    %v1469 = vpop.permute.xlu0 %1468
    %v1472 = vadd.f32 %v1392, %v1467
    %v1473 = vadd.f32 %v1393, %v1469
    %v1474 = vstv %s307
    %v1475 = vmul.f32 %v939, %v1474
    %v1476 = vmul.f32 %v940, %v1474
    %v1477 = vmul.f32 %v941, %v1474
    %v1481 = vrot.slane %v1475, 4
    %v1482 = vrot.slane %v1476, 4
    %v1483 = vsel %vm457, %v1481, %v1482
    %v1484 = vrot.slane %v1477, 4
    %v1485 = vsel %vm457, %v1482, %v1484
    %1486 = vrot.lane.b32.xlu0 %v1483, 124
    %v1487 = vpop.permute.xlu0 %1486
    %1488 = vrot.lane.b32.xlu0 %v1485, 124
    %v1489 = vpop.permute.xlu0 %1488
    %v1492 = vadd.f32 %v1412, %v1487
    %v1493 = vadd.f32 %v1413, %v1489
    %v1494 = vstv %s343
    %v1495 = vmul.f32 %v939, %v1494
    %v1496 = vmul.f32 %v940, %v1494
    %v1497 = vmul.f32 %v941, %v1494
    %v1501 = vrot.slane %v1495, 4
    %v1502 = vrot.slane %v1496, 4
    %v1503 = vsel %vm457, %v1501, %v1502
    %v1504 = vrot.slane %v1497, 4
    %v1505 = vsel %vm457, %v1502, %v1504
    %1506 = vrot.lane.b32.xlu0 %v1503, 124
    %v1507 = vpop.permute.xlu0 %1506
    %1508 = vrot.lane.b32.xlu0 %v1505, 124
    %v1509 = vpop.permute.xlu0 %1508
    %v1512 = vadd.f32 %v1432, %v1507
    %v1513 = vadd.f32 %v1433, %v1509
    %v1514 = vld [vmem:[%s145] sm:$0xff]
    %v1515 = vld [vmem:[%s145 + $0x8] sm:$0xff]
    %v1516 = vld [vmem:[%s145 + $0x10] sm:$0xf]
    %v1517 = vstv %s236
    %v1518 = vmul.f32 %v1514, %v1517
    %v1519 = vmul.f32 %v1515, %v1517
    %v1520 = vadd.f32 %v1452, %v1518
    %v1521 = vadd.f32 %v1453, %v1519
    %v1522 = vstv %s272
    %v1523 = vmul.f32 %v1514, %v1522
    %v1524 = vmul.f32 %v1515, %v1522
    %v1525 = vadd.f32 %v1472, %v1523
    %v1526 = vadd.f32 %v1473, %v1524
    %v1527 = vstv %s308
    %v1528 = vmul.f32 %v1514, %v1527
    %v1529 = vmul.f32 %v1515, %v1527
    %v1530 = vadd.f32 %v1492, %v1528
    %v1531 = vadd.f32 %v1493, %v1529
    %v1532 = vstv %s344
    %v1533 = vmul.f32 %v1514, %v1532
    %v1534 = vmul.f32 %v1515, %v1532
    %v1535 = vadd.f32 %v1512, %v1533
    %v1536 = vadd.f32 %v1513, %v1534
    %v1537 = vstv %s239
    %v1538 = vmul.f32 %v1514, %v1537
    %v1539 = vmul.f32 %v1515, %v1537
    %v1540 = vmul.f32 %v1516, %v1537
    %v1544 = vrot.slane %v1538, 2
    %v1545 = vrot.slane %v1539, 2
    %v1546 = vsel %vm392, %v1544, %v1545
    %v1547 = vrot.slane %v1540, 2
    %v1548 = vsel %vm392, %v1545, %v1547
    %v1551 = vadd.f32 %v1520, %v1546
    %v1552 = vadd.f32 %v1521, %v1548
    %v1553 = vstv %s275
    %v1554 = vmul.f32 %v1514, %v1553
    %v1555 = vmul.f32 %v1515, %v1553
    %v1556 = vmul.f32 %v1516, %v1553
    %v1560 = vrot.slane %v1554, 2
    %v1561 = vrot.slane %v1555, 2
    %v1562 = vsel %vm392, %v1560, %v1561
    %v1563 = vrot.slane %v1556, 2
    %v1564 = vsel %vm392, %v1561, %v1563
    %v1567 = vadd.f32 %v1525, %v1562
    %v1568 = vadd.f32 %v1526, %v1564
    %v1569 = vstv %s311
    %v1570 = vmul.f32 %v1514, %v1569
    %v1571 = vmul.f32 %v1515, %v1569
    %v1572 = vmul.f32 %v1516, %v1569
    %v1576 = vrot.slane %v1570, 2
    %v1577 = vrot.slane %v1571, 2
    %v1578 = vsel %vm392, %v1576, %v1577
    %v1579 = vrot.slane %v1572, 2
    %v1580 = vsel %vm392, %v1577, %v1579
    %v1583 = vadd.f32 %v1530, %v1578
    %v1584 = vadd.f32 %v1531, %v1580
    %v1585 = vstv %s347
    %v1586 = vmul.f32 %v1514, %v1585
    %v1587 = vmul.f32 %v1515, %v1585
    %v1588 = vmul.f32 %v1516, %v1585
    %v1592 = vrot.slane %v1586, 2
    %v1593 = vrot.slane %v1587, 2
    %v1594 = vsel %vm392, %v1592, %v1593
    %v1595 = vrot.slane %v1588, 2
    %v1596 = vsel %vm392, %v1593, %v1595
    %v1599 = vadd.f32 %v1535, %v1594
    %v1600 = vadd.f32 %v1536, %v1596
    %v1601 = vstv %s242
    %v1602 = vmul.f32 %v1514, %v1601
    %v1603 = vmul.f32 %v1515, %v1601
    %v1604 = vmul.f32 %v1516, %v1601
    %v1608 = vrot.slane %v1602, 4
    %v1609 = vrot.slane %v1603, 4
    %v1610 = vsel %vm457, %v1608, %v1609
    %v1611 = vrot.slane %v1604, 4
    %v1612 = vsel %vm457, %v1609, %v1611
    %v1615 = vadd.f32 %v1551, %v1610
    %v1616 = vadd.f32 %v1552, %v1612
    %v1617 = vstv %s278
    %v1618 = vmul.f32 %v1514, %v1617
    %v1619 = vmul.f32 %v1515, %v1617
    %v1620 = vmul.f32 %v1516, %v1617
    %v1624 = vrot.slane %v1618, 4
    %v1625 = vrot.slane %v1619, 4
    %v1626 = vsel %vm457, %v1624, %v1625
    %v1627 = vrot.slane %v1620, 4
    %v1628 = vsel %vm457, %v1625, %v1627
    %v1631 = vadd.f32 %v1567, %v1626
    %v1632 = vadd.f32 %v1568, %v1628
    %v1633 = vstv %s314
    %v1634 = vmul.f32 %v1514, %v1633
    %v1635 = vmul.f32 %v1515, %v1633
    %v1636 = vmul.f32 %v1516, %v1633
    %v1640 = vrot.slane %v1634, 4
    %v1641 = vrot.slane %v1635, 4
    %v1642 = vsel %vm457, %v1640, %v1641
    %v1643 = vrot.slane %v1636, 4
    %v1644 = vsel %vm457, %v1641, %v1643
    %v1647 = vadd.f32 %v1583, %v1642
    %v1648 = vadd.f32 %v1584, %v1644
    %v1649 = vstv %s350
    %v1650 = vmul.f32 %v1514, %v1649
    %v1651 = vmul.f32 %v1515, %v1649
    %v1652 = vmul.f32 %v1516, %v1649
    %v1656 = vrot.slane %v1650, 4
    %v1657 = vrot.slane %v1651, 4
    %v1658 = vsel %vm457, %v1656, %v1657
    %v1659 = vrot.slane %v1652, 4
    %v1660 = vsel %vm457, %v1657, %v1659
    %v1663 = vadd.f32 %v1599, %v1658
    %v1664 = vadd.f32 %v1600, %v1660
    %v1665 = vstv %s237
    %v1666 = vmul.f32 %v1514, %v1665
    %v1667 = vmul.f32 %v1515, %v1665
    %1670 = vrot.lane.b32.xlu0 %v1666, 126
    %v1671 = vpop.permute.xlu0 %1670
    %1672 = vrot.lane.b32.xlu0 %v1667, 126
    %v1673 = vpop.permute.xlu0 %1672
    %v1676 = vadd.f32 %v1615, %v1671
    %v1677 = vadd.f32 %v1616, %v1673
    %v1678 = vstv %s273
    %v1679 = vmul.f32 %v1514, %v1678
    %v1680 = vmul.f32 %v1515, %v1678
    %1683 = vrot.lane.b32.xlu0 %v1679, 126
    %v1684 = vpop.permute.xlu0 %1683
    %1685 = vrot.lane.b32.xlu0 %v1680, 126
    %v1686 = vpop.permute.xlu0 %1685
    %v1689 = vadd.f32 %v1631, %v1684
    %v1690 = vadd.f32 %v1632, %v1686
    %v1691 = vstv %s309
    %v1692 = vmul.f32 %v1514, %v1691
    %v1693 = vmul.f32 %v1515, %v1691
    %1696 = vrot.lane.b32.xlu0 %v1692, 126
    %v1697 = vpop.permute.xlu0 %1696
    %1698 = vrot.lane.b32.xlu0 %v1693, 126
    %v1699 = vpop.permute.xlu0 %1698
    %v1702 = vadd.f32 %v1647, %v1697
    %v1703 = vadd.f32 %v1648, %v1699
    %v1704 = vstv %s345
    %v1705 = vmul.f32 %v1514, %v1704
    %v1706 = vmul.f32 %v1515, %v1704
    %1709 = vrot.lane.b32.xlu0 %v1705, 126
    %v1710 = vpop.permute.xlu0 %1709
    %1711 = vrot.lane.b32.xlu0 %v1706, 126
    %v1712 = vpop.permute.xlu0 %1711
    %v1715 = vadd.f32 %v1663, %v1710
    %v1716 = vadd.f32 %v1664, %v1712
    %v1717 = vstv %s240
    %v1718 = vmul.f32 %v1514, %v1717
    %v1719 = vmul.f32 %v1515, %v1717
    %v1720 = vmul.f32 %v1516, %v1717
    %v1724 = vrot.slane %v1718, 2
    %v1725 = vrot.slane %v1719, 2
    %v1726 = vsel %vm392, %v1724, %v1725
    %v1727 = vrot.slane %v1720, 2
    %v1728 = vsel %vm392, %v1725, %v1727
    %1729 = vrot.lane.b32.xlu0 %v1726, 126
    %v1730 = vpop.permute.xlu0 %1729
    %1731 = vrot.lane.b32.xlu0 %v1728, 126
    %v1732 = vpop.permute.xlu0 %1731
    %v1735 = vadd.f32 %v1676, %v1730
    %v1736 = vadd.f32 %v1677, %v1732
    %v1737 = vstv %s276
    %v1738 = vmul.f32 %v1514, %v1737
    %v1739 = vmul.f32 %v1515, %v1737
    %v1740 = vmul.f32 %v1516, %v1737
    %v1744 = vrot.slane %v1738, 2
    %v1745 = vrot.slane %v1739, 2
    %v1746 = vsel %vm392, %v1744, %v1745
    %v1747 = vrot.slane %v1740, 2
    %v1748 = vsel %vm392, %v1745, %v1747
    %1749 = vrot.lane.b32.xlu0 %v1746, 126
    %v1750 = vpop.permute.xlu0 %1749
    %1751 = vrot.lane.b32.xlu0 %v1748, 126
    %v1752 = vpop.permute.xlu0 %1751
    %v1755 = vadd.f32 %v1689, %v1750
    %v1756 = vadd.f32 %v1690, %v1752
    %v1757 = vstv %s312
    %v1758 = vmul.f32 %v1514, %v1757
    %v1759 = vmul.f32 %v1515, %v1757
    %v1760 = vmul.f32 %v1516, %v1757
    %v1764 = vrot.slane %v1758, 2
    %v1765 = vrot.slane %v1759, 2
    %v1766 = vsel %vm392, %v1764, %v1765
    %v1767 = vrot.slane %v1760, 2
    %v1768 = vsel %vm392, %v1765, %v1767
    %1769 = vrot.lane.b32.xlu0 %v1766, 126
    %v1770 = vpop.permute.xlu0 %1769
    %1771 = vrot.lane.b32.xlu0 %v1768, 126
    %v1772 = vpop.permute.xlu0 %1771
    %v1775 = vadd.f32 %v1702, %v1770
    %v1776 = vadd.f32 %v1703, %v1772
    %v1777 = vstv %s348
    %v1778 = vmul.f32 %v1514, %v1777
    %v1779 = vmul.f32 %v1515, %v1777
    %v1780 = vmul.f32 %v1516, %v1777
    %v1784 = vrot.slane %v1778, 2
    %v1785 = vrot.slane %v1779, 2
    %v1786 = vsel %vm392, %v1784, %v1785
    %v1787 = vrot.slane %v1780, 2
    %v1788 = vsel %vm392, %v1785, %v1787
    %1789 = vrot.lane.b32.xlu0 %v1786, 126
    %v1790 = vpop.permute.xlu0 %1789
    %1791 = vrot.lane.b32.xlu0 %v1788, 126
    %v1792 = vpop.permute.xlu0 %1791
    %v1795 = vadd.f32 %v1715, %v1790
    %v1796 = vadd.f32 %v1716, %v1792
    %v1797 = vstv %s243
    %v1798 = vmul.f32 %v1514, %v1797
    %v1799 = vmul.f32 %v1515, %v1797
    %v1800 = vmul.f32 %v1516, %v1797
    %v1804 = vrot.slane %v1798, 4
    %v1805 = vrot.slane %v1799, 4
    %v1806 = vsel %vm457, %v1804, %v1805
    %v1807 = vrot.slane %v1800, 4
    %v1808 = vsel %vm457, %v1805, %v1807
    %1809 = vrot.lane.b32.xlu0 %v1806, 126
    %v1810 = vpop.permute.xlu0 %1809
    %1811 = vrot.lane.b32.xlu0 %v1808, 126
    %v1812 = vpop.permute.xlu0 %1811
    %v1815 = vadd.f32 %v1735, %v1810
    %v1816 = vadd.f32 %v1736, %v1812
    %v1817 = vstv %s279
    %v1818 = vmul.f32 %v1514, %v1817
    %v1819 = vmul.f32 %v1515, %v1817
    %v1820 = vmul.f32 %v1516, %v1817
    %v1824 = vrot.slane %v1818, 4
    %v1825 = vrot.slane %v1819, 4
    %v1826 = vsel %vm457, %v1824, %v1825
    %v1827 = vrot.slane %v1820, 4
    %v1828 = vsel %vm457, %v1825, %v1827
    %1829 = vrot.lane.b32.xlu0 %v1826, 126
    %v1830 = vpop.permute.xlu0 %1829
    %1831 = vrot.lane.b32.xlu0 %v1828, 126
    %v1832 = vpop.permute.xlu0 %1831
    %v1835 = vadd.f32 %v1755, %v1830
    %v1836 = vadd.f32 %v1756, %v1832
    %v1837 = vstv %s315
    %v1838 = vmul.f32 %v1514, %v1837
    %v1839 = vmul.f32 %v1515, %v1837
    %v1840 = vmul.f32 %v1516, %v1837
    %v1844 = vrot.slane %v1838, 4
    %v1845 = vrot.slane %v1839, 4
    %v1846 = vsel %vm457, %v1844, %v1845
    %v1847 = vrot.slane %v1840, 4
    %v1848 = vsel %vm457, %v1845, %v1847
    %1849 = vrot.lane.b32.xlu0 %v1846, 126
    %v1850 = vpop.permute.xlu0 %1849
    %1851 = vrot.lane.b32.xlu0 %v1848, 126
    %v1852 = vpop.permute.xlu0 %1851
    %v1855 = vadd.f32 %v1775, %v1850
    %v1856 = vadd.f32 %v1776, %v1852
    %v1857 = vstv %s351
    %v1858 = vmul.f32 %v1514, %v1857
    %v1859 = vmul.f32 %v1515, %v1857
    %v1860 = vmul.f32 %v1516, %v1857
    %v1864 = vrot.slane %v1858, 4
    %v1865 = vrot.slane %v1859, 4
    %v1866 = vsel %vm457, %v1864, %v1865
    %v1867 = vrot.slane %v1860, 4
    %v1868 = vsel %vm457, %v1865, %v1867
    %1869 = vrot.lane.b32.xlu0 %v1866, 126
    %v1870 = vpop.permute.xlu0 %1869
    %1871 = vrot.lane.b32.xlu0 %v1868, 126
    %v1872 = vpop.permute.xlu0 %1871
    %v1875 = vadd.f32 %v1795, %v1870
    %v1876 = vadd.f32 %v1796, %v1872
    %v1877 = vstv %s238
    %v1878 = vmul.f32 %v1514, %v1877
    %v1879 = vmul.f32 %v1515, %v1877
    %1882 = vrot.lane.b32.xlu0 %v1878, 124
    %v1883 = vpop.permute.xlu0 %1882
    %1884 = vrot.lane.b32.xlu0 %v1879, 124
    %v1885 = vpop.permute.xlu0 %1884
    %v1888 = vadd.f32 %v1815, %v1883
    %v1889 = vadd.f32 %v1816, %v1885
    %v1890 = vstv %s274
    %v1891 = vmul.f32 %v1514, %v1890
    %v1892 = vmul.f32 %v1515, %v1890
    %1895 = vrot.lane.b32.xlu0 %v1891, 124
    %v1896 = vpop.permute.xlu0 %1895
    %1897 = vrot.lane.b32.xlu0 %v1892, 124
    %v1898 = vpop.permute.xlu0 %1897
    %v1901 = vadd.f32 %v1835, %v1896
    %v1902 = vadd.f32 %v1836, %v1898
    %v1903 = vstv %s310
    %v1904 = vmul.f32 %v1514, %v1903
    %v1905 = vmul.f32 %v1515, %v1903
    %1908 = vrot.lane.b32.xlu0 %v1904, 124
    %v1909 = vpop.permute.xlu0 %1908
    %1910 = vrot.lane.b32.xlu0 %v1905, 124
    %v1911 = vpop.permute.xlu0 %1910
    %v1914 = vadd.f32 %v1855, %v1909
    %v1915 = vadd.f32 %v1856, %v1911
    %v1916 = vstv %s346
    %v1917 = vmul.f32 %v1514, %v1916
    %v1918 = vmul.f32 %v1515, %v1916
    %1921 = vrot.lane.b32.xlu0 %v1917, 124
    %v1922 = vpop.permute.xlu0 %1921
    %1923 = vrot.lane.b32.xlu0 %v1918, 124
    %v1924 = vpop.permute.xlu0 %1923
    %v1927 = vadd.f32 %v1875, %v1922
    %v1928 = vadd.f32 %v1876, %v1924
    %v1929 = vstv %s241
    %v1930 = vmul.f32 %v1514, %v1929
    %v1931 = vmul.f32 %v1515, %v1929
    %v1932 = vmul.f32 %v1516, %v1929
    %v1936 = vrot.slane %v1930, 2
    %v1937 = vrot.slane %v1931, 2
    %v1938 = vsel %vm392, %v1936, %v1937
    %v1939 = vrot.slane %v1932, 2
    %v1940 = vsel %vm392, %v1937, %v1939
    %1941 = vrot.lane.b32.xlu0 %v1938, 124
    %v1942 = vpop.permute.xlu0 %1941
    %1943 = vrot.lane.b32.xlu0 %v1940, 124
    %v1944 = vpop.permute.xlu0 %1943
    %v1947 = vadd.f32 %v1888, %v1942
    %v1948 = vadd.f32 %v1889, %v1944
    %v1949 = vstv %s277
    %v1950 = vmul.f32 %v1514, %v1949
    %v1951 = vmul.f32 %v1515, %v1949
    %v1952 = vmul.f32 %v1516, %v1949
    %v1956 = vrot.slane %v1950, 2
    %v1957 = vrot.slane %v1951, 2
    %v1958 = vsel %vm392, %v1956, %v1957
    %v1959 = vrot.slane %v1952, 2
    %v1960 = vsel %vm392, %v1957, %v1959
    %1961 = vrot.lane.b32.xlu0 %v1958, 124
    %v1962 = vpop.permute.xlu0 %1961
    %1963 = vrot.lane.b32.xlu0 %v1960, 124
    %v1964 = vpop.permute.xlu0 %1963
    %v1967 = vadd.f32 %v1901, %v1962
    %v1968 = vadd.f32 %v1902, %v1964
    %v1969 = vstv %s313
    %v1970 = vmul.f32 %v1514, %v1969
    %v1971 = vmul.f32 %v1515, %v1969
    %v1972 = vmul.f32 %v1516, %v1969
    %v1976 = vrot.slane %v1970, 2
    %v1977 = vrot.slane %v1971, 2
    %v1978 = vsel %vm392, %v1976, %v1977
    %v1979 = vrot.slane %v1972, 2
    %v1980 = vsel %vm392, %v1977, %v1979
    %1981 = vrot.lane.b32.xlu0 %v1978, 124
    %v1982 = vpop.permute.xlu0 %1981
    %1983 = vrot.lane.b32.xlu0 %v1980, 124
    %v1984 = vpop.permute.xlu0 %1983
    %v1987 = vadd.f32 %v1914, %v1982
    %v1988 = vadd.f32 %v1915, %v1984
    %v1989 = vstv %s349
    %v1990 = vmul.f32 %v1514, %v1989
    %v1991 = vmul.f32 %v1515, %v1989
    %v1992 = vmul.f32 %v1516, %v1989
    %v1996 = vrot.slane %v1990, 2
    %v1997 = vrot.slane %v1991, 2
    %v1998 = vsel %vm392, %v1996, %v1997
    %v1999 = vrot.slane %v1992, 2
    %v2000 = vsel %vm392, %v1997, %v1999
    %2001 = vrot.lane.b32.xlu0 %v1998, 124
    %v2002 = vpop.permute.xlu0 %2001
    %2003 = vrot.lane.b32.xlu0 %v2000, 124
    %v2004 = vpop.permute.xlu0 %2003
    %v2007 = vadd.f32 %v1927, %v2002
    %v2008 = vadd.f32 %v1928, %v2004
    %v2009 = vstv %s244
    %v2010 = vmul.f32 %v1514, %v2009
    %v2011 = vmul.f32 %v1515, %v2009
    %v2012 = vmul.f32 %v1516, %v2009
    %v2016 = vrot.slane %v2010, 4
    %v2017 = vrot.slane %v2011, 4
    %v2018 = vsel %vm457, %v2016, %v2017
    %v2019 = vrot.slane %v2012, 4
    %v2020 = vsel %vm457, %v2017, %v2019
    %2021 = vrot.lane.b32.xlu0 %v2018, 124
    %v2022 = vpop.permute.xlu0 %2021
    %2023 = vrot.lane.b32.xlu0 %v2020, 124
    %v2024 = vpop.permute.xlu0 %2023
    %v2027 = vadd.f32 %v1947, %v2022
    %v2028 = vadd.f32 %v1948, %v2024
    %v2029 = vstv %s280
    %v2030 = vmul.f32 %v1514, %v2029
    %v2031 = vmul.f32 %v1515, %v2029
    %v2032 = vmul.f32 %v1516, %v2029
    %v2036 = vrot.slane %v2030, 4
    %v2037 = vrot.slane %v2031, 4
    %v2038 = vsel %vm457, %v2036, %v2037
    %v2039 = vrot.slane %v2032, 4
    %v2040 = vsel %vm457, %v2037, %v2039
    %2041 = vrot.lane.b32.xlu0 %v2038, 124
    %v2042 = vpop.permute.xlu0 %2041
    %2043 = vrot.lane.b32.xlu0 %v2040, 124
    %v2044 = vpop.permute.xlu0 %2043
    %v2047 = vadd.f32 %v1967, %v2042
    %v2048 = vadd.f32 %v1968, %v2044
    %v2049 = vstv %s316
    %v2050 = vmul.f32 %v1514, %v2049
    %v2051 = vmul.f32 %v1515, %v2049
    %v2052 = vmul.f32 %v1516, %v2049
    %v2056 = vrot.slane %v2050, 4
    %v2057 = vrot.slane %v2051, 4
    %v2058 = vsel %vm457, %v2056, %v2057
    %v2059 = vrot.slane %v2052, 4
    %v2060 = vsel %vm457, %v2057, %v2059
    %2061 = vrot.lane.b32.xlu0 %v2058, 124
    %v2062 = vpop.permute.xlu0 %2061
    %2063 = vrot.lane.b32.xlu0 %v2060, 124
    %v2064 = vpop.permute.xlu0 %2063
    %v2067 = vadd.f32 %v1987, %v2062
    %v2068 = vadd.f32 %v1988, %v2064
    %v2069 = vstv %s352
    %v2070 = vmul.f32 %v1514, %v2069
    %v2071 = vmul.f32 %v1515, %v2069
    %v2072 = vmul.f32 %v1516, %v2069
    %v2076 = vrot.slane %v2070, 4
    %v2077 = vrot.slane %v2071, 4
    %v2078 = vsel %vm457, %v2076, %v2077
    %v2079 = vrot.slane %v2072, 4
    %v2080 = vsel %vm457, %v2077, %v2079
    %2081 = vrot.lane.b32.xlu0 %v2078, 124
    %v2082 = vpop.permute.xlu0 %2081
    %2083 = vrot.lane.b32.xlu0 %v2080, 124
    %v2084 = vpop.permute.xlu0 %2083
    %v2087 = vadd.f32 %v2007, %v2082
    %v2088 = vadd.f32 %v2008, %v2084
    %v2089 = vld [vmem:[%s159] sm:$0xff]
    %v2090 = vld [vmem:[%s159 + $0x8] sm:$0xff]
    %v2091 = vld [vmem:[%s159 + $0x10] sm:$0xf]
    %v2092 = vstv %s245
    %v2093 = vmul.f32 %v2089, %v2092
    %v2094 = vmul.f32 %v2090, %v2092
    %v2095 = vadd.f32 %v2027, %v2093
    %v2096 = vadd.f32 %v2028, %v2094
    %v2097 = vstv %s281
    %v2098 = vmul.f32 %v2089, %v2097
    %v2099 = vmul.f32 %v2090, %v2097
    %v2100 = vadd.f32 %v2047, %v2098
    %v2101 = vadd.f32 %v2048, %v2099
    %v2102 = vstv %s317
    %v2103 = vmul.f32 %v2089, %v2102
    %v2104 = vmul.f32 %v2090, %v2102
    %v2105 = vadd.f32 %v2067, %v2103
    %v2106 = vadd.f32 %v2068, %v2104
    %v2107 = vstv %s353
    %v2108 = vmul.f32 %v2089, %v2107
    %v2109 = vmul.f32 %v2090, %v2107
    %v2110 = vadd.f32 %v2087, %v2108
    %v2111 = vadd.f32 %v2088, %v2109
    %v2112 = vstv %s248
    %v2113 = vmul.f32 %v2089, %v2112
    %v2114 = vmul.f32 %v2090, %v2112
    %v2115 = vmul.f32 %v2091, %v2112
    %v2119 = vrot.slane %v2113, 2
    %v2120 = vrot.slane %v2114, 2
    %v2121 = vsel %vm392, %v2119, %v2120
    %v2122 = vrot.slane %v2115, 2
    %v2123 = vsel %vm392, %v2120, %v2122
    %v2126 = vadd.f32 %v2095, %v2121
    %v2127 = vadd.f32 %v2096, %v2123
    %v2128 = vstv %s284
    %v2129 = vmul.f32 %v2089, %v2128
    %v2130 = vmul.f32 %v2090, %v2128
    %v2131 = vmul.f32 %v2091, %v2128
    %v2135 = vrot.slane %v2129, 2
    %v2136 = vrot.slane %v2130, 2
    %v2137 = vsel %vm392, %v2135, %v2136
    %v2138 = vrot.slane %v2131, 2
    %v2139 = vsel %vm392, %v2136, %v2138
    %v2142 = vadd.f32 %v2100, %v2137
    %v2143 = vadd.f32 %v2101, %v2139
    %v2144 = vstv %s320
    %v2145 = vmul.f32 %v2089, %v2144
    %v2146 = vmul.f32 %v2090, %v2144
    %v2147 = vmul.f32 %v2091, %v2144
    %v2151 = vrot.slane %v2145, 2
    %v2152 = vrot.slane %v2146, 2
    %v2153 = vsel %vm392, %v2151, %v2152
    %v2154 = vrot.slane %v2147, 2
    %v2155 = vsel %vm392, %v2152, %v2154
    %v2158 = vadd.f32 %v2105, %v2153
    %v2159 = vadd.f32 %v2106, %v2155
    %v2160 = vstv %s356
    %v2161 = vmul.f32 %v2089, %v2160
    %v2162 = vmul.f32 %v2090, %v2160
    %v2163 = vmul.f32 %v2091, %v2160
    %v2167 = vrot.slane %v2161, 2
    %v2168 = vrot.slane %v2162, 2
    %v2169 = vsel %vm392, %v2167, %v2168
    %v2170 = vrot.slane %v2163, 2
    %v2171 = vsel %vm392, %v2168, %v2170
    %v2174 = vadd.f32 %v2110, %v2169
    %v2175 = vadd.f32 %v2111, %v2171
    %v2176 = vstv %s251
    %v2177 = vmul.f32 %v2089, %v2176
    %v2178 = vmul.f32 %v2090, %v2176
    %v2179 = vmul.f32 %v2091, %v2176
    %v2183 = vrot.slane %v2177, 4
    %v2184 = vrot.slane %v2178, 4
    %v2185 = vsel %vm457, %v2183, %v2184
    %v2186 = vrot.slane %v2179, 4
    %v2187 = vsel %vm457, %v2184, %v2186
    %v2190 = vadd.f32 %v2126, %v2185
    %v2191 = vadd.f32 %v2127, %v2187
    %v2192 = vstv %s287
    %v2193 = vmul.f32 %v2089, %v2192
    %v2194 = vmul.f32 %v2090, %v2192
    %v2195 = vmul.f32 %v2091, %v2192
    %v2199 = vrot.slane %v2193, 4
    %v2200 = vrot.slane %v2194, 4
    %v2201 = vsel %vm457, %v2199, %v2200
    %v2202 = vrot.slane %v2195, 4
    %v2203 = vsel %vm457, %v2200, %v2202
    %v2206 = vadd.f32 %v2142, %v2201
    %v2207 = vadd.f32 %v2143, %v2203
    %v2208 = vstv %s323
    %v2209 = vmul.f32 %v2089, %v2208
    %v2210 = vmul.f32 %v2090, %v2208
    %v2211 = vmul.f32 %v2091, %v2208
    %v2215 = vrot.slane %v2209, 4
    %v2216 = vrot.slane %v2210, 4
    %v2217 = vsel %vm457, %v2215, %v2216
    %v2218 = vrot.slane %v2211, 4
    %v2219 = vsel %vm457, %v2216, %v2218
    %v2222 = vadd.f32 %v2158, %v2217
    %v2223 = vadd.f32 %v2159, %v2219
    %v2224 = vstv %s359
    %v2225 = vmul.f32 %v2089, %v2224
    %v2226 = vmul.f32 %v2090, %v2224
    %v2227 = vmul.f32 %v2091, %v2224
    %v2231 = vrot.slane %v2225, 4
    %v2232 = vrot.slane %v2226, 4
    %v2233 = vsel %vm457, %v2231, %v2232
    %v2234 = vrot.slane %v2227, 4
    %v2235 = vsel %vm457, %v2232, %v2234
    %v2238 = vadd.f32 %v2174, %v2233
    %v2239 = vadd.f32 %v2175, %v2235
    %v2240 = vstv %s246
    %v2241 = vmul.f32 %v2089, %v2240
    %v2242 = vmul.f32 %v2090, %v2240
    %2245 = vrot.lane.b32.xlu0 %v2241, 126
    %v2246 = vpop.permute.xlu0 %2245
    %2247 = vrot.lane.b32.xlu0 %v2242, 126
    %v2248 = vpop.permute.xlu0 %2247
    %v2251 = vadd.f32 %v2190, %v2246
    %v2252 = vadd.f32 %v2191, %v2248
    %v2253 = vstv %s282
    %v2254 = vmul.f32 %v2089, %v2253
    %v2255 = vmul.f32 %v2090, %v2253
    %2258 = vrot.lane.b32.xlu0 %v2254, 126
    %v2259 = vpop.permute.xlu0 %2258
    %2260 = vrot.lane.b32.xlu0 %v2255, 126
    %v2261 = vpop.permute.xlu0 %2260
    %v2264 = vadd.f32 %v2206, %v2259
    %v2265 = vadd.f32 %v2207, %v2261
    %v2266 = vstv %s318
    %v2267 = vmul.f32 %v2089, %v2266
    %v2268 = vmul.f32 %v2090, %v2266
    %2271 = vrot.lane.b32.xlu0 %v2267, 126
    %v2272 = vpop.permute.xlu0 %2271
    %2273 = vrot.lane.b32.xlu0 %v2268, 126
    %v2274 = vpop.permute.xlu0 %2273
    %v2277 = vadd.f32 %v2222, %v2272
    %v2278 = vadd.f32 %v2223, %v2274
    %v2279 = vstv %s354
    %v2280 = vmul.f32 %v2089, %v2279
    %v2281 = vmul.f32 %v2090, %v2279
    %2284 = vrot.lane.b32.xlu0 %v2280, 126
    %v2285 = vpop.permute.xlu0 %2284
    %2286 = vrot.lane.b32.xlu0 %v2281, 126
    %v2287 = vpop.permute.xlu0 %2286
    %v2290 = vadd.f32 %v2238, %v2285
    %v2291 = vadd.f32 %v2239, %v2287
    %v2292 = vstv %s249
    %v2293 = vmul.f32 %v2089, %v2292
    %v2294 = vmul.f32 %v2090, %v2292
    %v2295 = vmul.f32 %v2091, %v2292
    %v2299 = vrot.slane %v2293, 2
    %v2300 = vrot.slane %v2294, 2
    %v2301 = vsel %vm392, %v2299, %v2300
    %v2302 = vrot.slane %v2295, 2
    %v2303 = vsel %vm392, %v2300, %v2302
    %2304 = vrot.lane.b32.xlu0 %v2301, 126
    %v2305 = vpop.permute.xlu0 %2304
    %2306 = vrot.lane.b32.xlu0 %v2303, 126
    %v2307 = vpop.permute.xlu0 %2306
    %v2310 = vadd.f32 %v2251, %v2305
    %v2311 = vadd.f32 %v2252, %v2307
    %v2312 = vstv %s285
    %v2313 = vmul.f32 %v2089, %v2312
    %v2314 = vmul.f32 %v2090, %v2312
    %v2315 = vmul.f32 %v2091, %v2312
    %v2319 = vrot.slane %v2313, 2
    %v2320 = vrot.slane %v2314, 2
    %v2321 = vsel %vm392, %v2319, %v2320
    %v2322 = vrot.slane %v2315, 2
    %v2323 = vsel %vm392, %v2320, %v2322
    %2324 = vrot.lane.b32.xlu0 %v2321, 126
    %v2325 = vpop.permute.xlu0 %2324
    %2326 = vrot.lane.b32.xlu0 %v2323, 126
    %v2327 = vpop.permute.xlu0 %2326
    %v2330 = vadd.f32 %v2264, %v2325
    %v2331 = vadd.f32 %v2265, %v2327
    %v2332 = vstv %s321
    %v2333 = vmul.f32 %v2089, %v2332
    %v2334 = vmul.f32 %v2090, %v2332
    %v2335 = vmul.f32 %v2091, %v2332
    %v2339 = vrot.slane %v2333, 2
    %v2340 = vrot.slane %v2334, 2
    %v2341 = vsel %vm392, %v2339, %v2340
    %v2342 = vrot.slane %v2335, 2
    %v2343 = vsel %vm392, %v2340, %v2342
    %2344 = vrot.lane.b32.xlu0 %v2341, 126
    %v2345 = vpop.permute.xlu0 %2344
    %2346 = vrot.lane.b32.xlu0 %v2343, 126
    %v2347 = vpop.permute.xlu0 %2346
    %v2350 = vadd.f32 %v2277, %v2345
    %v2351 = vadd.f32 %v2278, %v2347
    %v2352 = vstv %s357
    %v2353 = vmul.f32 %v2089, %v2352
    %v2354 = vmul.f32 %v2090, %v2352
    %v2355 = vmul.f32 %v2091, %v2352
    %v2359 = vrot.slane %v2353, 2
    %v2360 = vrot.slane %v2354, 2
    %v2361 = vsel %vm392, %v2359, %v2360
    %v2362 = vrot.slane %v2355, 2
    %v2363 = vsel %vm392, %v2360, %v2362
    %2364 = vrot.lane.b32.xlu0 %v2361, 126
    %v2365 = vpop.permute.xlu0 %2364
    %2366 = vrot.lane.b32.xlu0 %v2363, 126
    %v2367 = vpop.permute.xlu0 %2366
    %v2370 = vadd.f32 %v2290, %v2365
    %v2371 = vadd.f32 %v2291, %v2367
    %v2372 = vstv %s252
    %v2373 = vmul.f32 %v2089, %v2372
    %v2374 = vmul.f32 %v2090, %v2372
    %v2375 = vmul.f32 %v2091, %v2372
    %v2379 = vrot.slane %v2373, 4
    %v2380 = vrot.slane %v2374, 4
    %v2381 = vsel %vm457, %v2379, %v2380
    %v2382 = vrot.slane %v2375, 4
    %v2383 = vsel %vm457, %v2380, %v2382
    %2384 = vrot.lane.b32.xlu0 %v2381, 126
    %v2385 = vpop.permute.xlu0 %2384
    %2386 = vrot.lane.b32.xlu0 %v2383, 126
    %v2387 = vpop.permute.xlu0 %2386
    %v2390 = vadd.f32 %v2310, %v2385
    %v2391 = vadd.f32 %v2311, %v2387
    %v2392 = vstv %s288
    %v2393 = vmul.f32 %v2089, %v2392
    %v2394 = vmul.f32 %v2090, %v2392
    %v2395 = vmul.f32 %v2091, %v2392
    %v2399 = vrot.slane %v2393, 4
    %v2400 = vrot.slane %v2394, 4
    %v2401 = vsel %vm457, %v2399, %v2400
    %v2402 = vrot.slane %v2395, 4
    %v2403 = vsel %vm457, %v2400, %v2402
    %2404 = vrot.lane.b32.xlu0 %v2401, 126
    %v2405 = vpop.permute.xlu0 %2404
    %2406 = vrot.lane.b32.xlu0 %v2403, 126
    %v2407 = vpop.permute.xlu0 %2406
    %v2410 = vadd.f32 %v2330, %v2405
    %v2411 = vadd.f32 %v2331, %v2407
    %v2412 = vstv %s324
    %v2413 = vmul.f32 %v2089, %v2412
    %v2414 = vmul.f32 %v2090, %v2412
    %v2415 = vmul.f32 %v2091, %v2412
    %v2419 = vrot.slane %v2413, 4
    %v2420 = vrot.slane %v2414, 4
    %v2421 = vsel %vm457, %v2419, %v2420
    %v2422 = vrot.slane %v2415, 4
    %v2423 = vsel %vm457, %v2420, %v2422
    %2424 = vrot.lane.b32.xlu0 %v2421, 126
    %v2425 = vpop.permute.xlu0 %2424
    %2426 = vrot.lane.b32.xlu0 %v2423, 126
    %v2427 = vpop.permute.xlu0 %2426
    %v2430 = vadd.f32 %v2350, %v2425
    %v2431 = vadd.f32 %v2351, %v2427
    %v2432 = vstv %s360
    %v2433 = vmul.f32 %v2089, %v2432
    %v2434 = vmul.f32 %v2090, %v2432
    %v2435 = vmul.f32 %v2091, %v2432
    %v2439 = vrot.slane %v2433, 4
    %v2440 = vrot.slane %v2434, 4
    %v2441 = vsel %vm457, %v2439, %v2440
    %v2442 = vrot.slane %v2435, 4
    %v2443 = vsel %vm457, %v2440, %v2442
    %2444 = vrot.lane.b32.xlu0 %v2441, 126
    %v2445 = vpop.permute.xlu0 %2444
    %2446 = vrot.lane.b32.xlu0 %v2443, 126
    %v2447 = vpop.permute.xlu0 %2446
    %v2450 = vadd.f32 %v2370, %v2445
    %v2451 = vadd.f32 %v2371, %v2447
    %v2452 = vstv %s247
    %v2453 = vmul.f32 %v2089, %v2452
    %v2454 = vmul.f32 %v2090, %v2452
    %2457 = vrot.lane.b32.xlu0 %v2453, 124
    %v2458 = vpop.permute.xlu0 %2457
    %2459 = vrot.lane.b32.xlu0 %v2454, 124
    %v2460 = vpop.permute.xlu0 %2459
    %v2463 = vadd.f32 %v2390, %v2458
    %v2464 = vadd.f32 %v2391, %v2460
    %v2465 = vstv %s283
    %v2466 = vmul.f32 %v2089, %v2465
    %v2467 = vmul.f32 %v2090, %v2465
    %2470 = vrot.lane.b32.xlu0 %v2466, 124
    %v2471 = vpop.permute.xlu0 %2470
    %2472 = vrot.lane.b32.xlu0 %v2467, 124
    %v2473 = vpop.permute.xlu0 %2472
    %v2476 = vadd.f32 %v2410, %v2471
    %v2477 = vadd.f32 %v2411, %v2473
    %v2478 = vstv %s319
    %v2479 = vmul.f32 %v2089, %v2478
    %v2480 = vmul.f32 %v2090, %v2478
    %2483 = vrot.lane.b32.xlu0 %v2479, 124
    %v2484 = vpop.permute.xlu0 %2483
    %2485 = vrot.lane.b32.xlu0 %v2480, 124
    %v2486 = vpop.permute.xlu0 %2485
    %v2489 = vadd.f32 %v2430, %v2484
    %v2490 = vadd.f32 %v2431, %v2486
    %v2491 = vstv %s355
    %v2492 = vmul.f32 %v2089, %v2491
    %v2493 = vmul.f32 %v2090, %v2491
    %2496 = vrot.lane.b32.xlu0 %v2492, 124
    %v2497 = vpop.permute.xlu0 %2496
    %2498 = vrot.lane.b32.xlu0 %v2493, 124
    %v2499 = vpop.permute.xlu0 %2498
    %v2502 = vadd.f32 %v2450, %v2497
    %v2503 = vadd.f32 %v2451, %v2499
    %v2504 = vstv %s250
    %v2505 = vmul.f32 %v2089, %v2504
    %v2506 = vmul.f32 %v2090, %v2504
    %v2507 = vmul.f32 %v2091, %v2504
    %v2511 = vrot.slane %v2505, 2
    %v2512 = vrot.slane %v2506, 2
    %v2513 = vsel %vm392, %v2511, %v2512
    %v2514 = vrot.slane %v2507, 2
    %v2515 = vsel %vm392, %v2512, %v2514
    %2516 = vrot.lane.b32.xlu0 %v2513, 124
    %v2517 = vpop.permute.xlu0 %2516
    %2518 = vrot.lane.b32.xlu0 %v2515, 124
    %v2519 = vpop.permute.xlu0 %2518
    %v2522 = vadd.f32 %v2463, %v2517
    %v2523 = vadd.f32 %v2464, %v2519
    %v2524 = vstv %s286
    %v2525 = vmul.f32 %v2089, %v2524
    %v2526 = vmul.f32 %v2090, %v2524
    %v2527 = vmul.f32 %v2091, %v2524
    %v2531 = vrot.slane %v2525, 2
    %v2532 = vrot.slane %v2526, 2
    %v2533 = vsel %vm392, %v2531, %v2532
    %v2534 = vrot.slane %v2527, 2
    %v2535 = vsel %vm392, %v2532, %v2534
    %2536 = vrot.lane.b32.xlu0 %v2533, 124
    %v2537 = vpop.permute.xlu0 %2536
    %2538 = vrot.lane.b32.xlu0 %v2535, 124
    %v2539 = vpop.permute.xlu0 %2538
    %v2542 = vadd.f32 %v2476, %v2537
    %v2543 = vadd.f32 %v2477, %v2539
    %v2544 = vstv %s322
    %v2545 = vmul.f32 %v2089, %v2544
    %v2546 = vmul.f32 %v2090, %v2544
    %v2547 = vmul.f32 %v2091, %v2544
    %v2551 = vrot.slane %v2545, 2
    %v2552 = vrot.slane %v2546, 2
    %v2553 = vsel %vm392, %v2551, %v2552
    %v2554 = vrot.slane %v2547, 2
    %v2555 = vsel %vm392, %v2552, %v2554
    %2556 = vrot.lane.b32.xlu0 %v2553, 124
    %v2557 = vpop.permute.xlu0 %2556
    %2558 = vrot.lane.b32.xlu0 %v2555, 124
    %v2559 = vpop.permute.xlu0 %2558
    %v2562 = vadd.f32 %v2489, %v2557
    %v2563 = vadd.f32 %v2490, %v2559
    %v2564 = vstv %s358
    %v2565 = vmul.f32 %v2089, %v2564
    %v2566 = vmul.f32 %v2090, %v2564
    %v2567 = vmul.f32 %v2091, %v2564
    %v2571 = vrot.slane %v2565, 2
    %v2572 = vrot.slane %v2566, 2
    %v2573 = vsel %vm392, %v2571, %v2572
    %v2574 = vrot.slane %v2567, 2
    %v2575 = vsel %vm392, %v2572, %v2574
    %2576 = vrot.lane.b32.xlu0 %v2573, 124
    %v2577 = vpop.permute.xlu0 %2576
    %2578 = vrot.lane.b32.xlu0 %v2575, 124
    %v2579 = vpop.permute.xlu0 %2578
    %v2582 = vadd.f32 %v2502, %v2577
    %v2583 = vadd.f32 %v2503, %v2579
    %v2584 = vstv %s253
    %v2585 = vmul.f32 %v2089, %v2584
    %v2586 = vmul.f32 %v2090, %v2584
    %v2587 = vmul.f32 %v2091, %v2584
    %v2591 = vrot.slane %v2585, 4
    %v2592 = vrot.slane %v2586, 4
    %v2593 = vsel %vm457, %v2591, %v2592
    %v2594 = vrot.slane %v2587, 4
    %v2595 = vsel %vm457, %v2592, %v2594
    %2596 = vrot.lane.b32.xlu0 %v2593, 124
    %v2597 = vpop.permute.xlu0 %2596
    %2598 = vrot.lane.b32.xlu0 %v2595, 124
    %v2599 = vpop.permute.xlu0 %2598
    %v2602 = vadd.f32 %v2522, %v2597
    %v2603 = vadd.f32 %v2523, %v2599
    %v2604 = vstv %s289
    %v2605 = vmul.f32 %v2089, %v2604
    %v2606 = vmul.f32 %v2090, %v2604
    %v2607 = vmul.f32 %v2091, %v2604
    %v2611 = vrot.slane %v2605, 4
    %v2612 = vrot.slane %v2606, 4
    %v2613 = vsel %vm457, %v2611, %v2612
    %v2614 = vrot.slane %v2607, 4
    %v2615 = vsel %vm457, %v2612, %v2614
    %2616 = vrot.lane.b32.xlu0 %v2613, 124
    %v2617 = vpop.permute.xlu0 %2616
    %2618 = vrot.lane.b32.xlu0 %v2615, 124
    %v2619 = vpop.permute.xlu0 %2618
    %v2622 = vadd.f32 %v2542, %v2617
    %v2623 = vadd.f32 %v2543, %v2619
    %v2624 = vstv %s325
    %v2625 = vmul.f32 %v2089, %v2624
    %v2626 = vmul.f32 %v2090, %v2624
    %v2627 = vmul.f32 %v2091, %v2624
    %v2631 = vrot.slane %v2625, 4
    %v2632 = vrot.slane %v2626, 4
    %v2633 = vsel %vm457, %v2631, %v2632
    %v2634 = vrot.slane %v2627, 4
    %v2635 = vsel %vm457, %v2632, %v2634
    %2636 = vrot.lane.b32.xlu0 %v2633, 124
    %v2637 = vpop.permute.xlu0 %2636
    %2638 = vrot.lane.b32.xlu0 %v2635, 124
    %v2639 = vpop.permute.xlu0 %2638
    %v2642 = vadd.f32 %v2562, %v2637
    %v2643 = vadd.f32 %v2563, %v2639
    %v2644 = vstv %s361
    %v2645 = vmul.f32 %v2089, %v2644
    %v2646 = vmul.f32 %v2090, %v2644
    %v2647 = vmul.f32 %v2091, %v2644
    %v2651 = vrot.slane %v2645, 4
    %v2652 = vrot.slane %v2646, 4
    %v2653 = vsel %vm457, %v2651, %v2652
    %v2654 = vrot.slane %v2647, 4
    %v2655 = vsel %vm457, %v2652, %v2654
    %2656 = vrot.lane.b32.xlu0 %v2653, 124
    %v2657 = vpop.permute.xlu0 %2656
    %2658 = vrot.lane.b32.xlu0 %v2655, 124
    %v2659 = vpop.permute.xlu0 %2658
    %v2662 = vadd.f32 %v2582, %v2657
    %v2663 = vadd.f32 %v2583, %v2659
    %vm2664 = vcmask 130048
    %2665 = vst.msk [vmem:[#allocation3] sm:$0xff] %vm2664, %v2602
    %2666 = vst.msk [vmem:[#allocation3 + $0x8] sm:$0xff] %vm2664, %v2603
    %v2667 = vsel %vm2664, %v2602, 0.0
    %2668 = vadd.xlane.f32.xlu0 %v2667
    %v2669 = vpop.xlane.xlu0 %2668
    %v2670 = vsel %vm2664, %v2603, 0.0
    %2671 = vadd.xlane.f32.xlu0 %v2670
    %v2672 = vpop.xlane.xlu0 %2671
    %v2673 = vadd.f32 %v2669, %v2672
    %v2674 = vrot.slane %v2673, 4
    %v2675 = vadd.f32 %v2673, %v2674
    %v2676 = vrot.slane %v2675, 2
    %v2677 = vadd.f32 %v2675, %v2676
    %v2678 = vrot.slane %v2677, 1
    %v2679 = vadd.f32 %v2677, %v2678
    %v2680 = vadd.f32 %v2679, 0.0
    %s2681 = scalar_lea.vmem [#allocation3], 16
    %2682 = vst.msk [vmem:[%s2681] sm:$0xff] %vm2664, %v2622
    %2683 = vst.msk [vmem:[%s2681 + $0x8] sm:$0xff] %vm2664, %v2623
    %v2684 = vsel %vm2664, %v2622, 0.0
    %2685 = vadd.xlane.f32.xlu0 %v2684
    %v2686 = vpop.xlane.xlu0 %2685
    %v2687 = vsel %vm2664, %v2623, 0.0
    %2688 = vadd.xlane.f32.xlu0 %v2687
    %v2689 = vpop.xlane.xlu0 %2688
    %v2690 = vadd.f32 %v2686, %v2689
    %v2691 = vrot.slane %v2690, 4
    %v2692 = vadd.f32 %v2690, %v2691
    %v2693 = vrot.slane %v2692, 2
    %v2694 = vadd.f32 %v2692, %v2693
    %v2695 = vrot.slane %v2694, 1
    %v2696 = vadd.f32 %v2694, %v2695
    %v2697 = vadd.f32 %v2696, 0.0
    %s2698 = scalar_lea.vmem [#allocation3], 32
    %2699 = vst.msk [vmem:[%s2698] sm:$0xff] %vm2664, %v2642
    %2700 = vst.msk [vmem:[%s2698 + $0x8] sm:$0xff] %vm2664, %v2643
    %v2701 = vsel %vm2664, %v2642, 0.0
    %2702 = vadd.xlane.f32.xlu0 %v2701
    %v2703 = vpop.xlane.xlu0 %2702
    %v2704 = vsel %vm2664, %v2643, 0.0
    %2705 = vadd.xlane.f32.xlu0 %v2704
    %v2706 = vpop.xlane.xlu0 %2705
    %v2707 = vadd.f32 %v2703, %v2706
    %v2708 = vrot.slane %v2707, 4
    %v2709 = vadd.f32 %v2707, %v2708
    %v2710 = vrot.slane %v2709, 2
    %v2711 = vadd.f32 %v2709, %v2710
    %v2712 = vrot.slane %v2711, 1
    %v2713 = vadd.f32 %v2711, %v2712
    %v2714 = vadd.f32 %v2713, 0.0
    %s2715 = scalar_lea.vmem [#allocation3], 48
    %2716 = vst.msk [vmem:[%s2715] sm:$0xff] %vm2664, %v2662
    %2717 = vst.msk [vmem:[%s2715 + $0x8] sm:$0xff] %vm2664, %v2663
    %v2718 = vsel %vm2664, %v2662, 0.0
    %2719 = vadd.xlane.f32.xlu0 %v2718
    %v2720 = vpop.xlane.xlu0 %2719
    %v2721 = vsel %vm2664, %v2663, 0.0
    %2722 = vadd.xlane.f32.xlu0 %v2721
    %v2723 = vpop.xlane.xlu0 %2722
    %v2724 = vadd.f32 %v2720, %v2723
    %v2725 = vrot.slane %v2724, 4
    %v2726 = vadd.f32 %v2724, %v2725
    %v2727 = vrot.slane %v2726, 2
    %v2728 = vadd.f32 %v2726, %v2727
    %v2729 = vrot.slane %v2728, 1
    %v2730 = vadd.f32 %v2728, %v2729
    %v2731 = vadd.f32 %v2730, 0.0
    %v2732 = vld [vmem:[%s173] sm:$0xff]
    %v2733 = vld [vmem:[%s173 + $0x8] sm:$0xff]
    %v2734 = vld [vmem:[%s173 + $0x10] sm:$0xf]
    %v2735 = vmul.f32 %v2732, %v365
    %v2736 = vmul.f32 %v2733, %v365
    %v2737 = vadd.f32 %v2735, 0.0
    %v2738 = vadd.f32 %v2736, 0.0
    %v2739 = vmul.f32 %v2732, %v370
    %v2740 = vmul.f32 %v2733, %v370
    %v2741 = vadd.f32 %v2739, 0.0
    %v2742 = vadd.f32 %v2740, 0.0
    %v2743 = vmul.f32 %v2732, %v375
    %v2744 = vmul.f32 %v2733, %v375
    %v2745 = vadd.f32 %v2743, 0.0
    %v2746 = vadd.f32 %v2744, 0.0
    %v2747 = vmul.f32 %v2732, %v380
    %v2748 = vmul.f32 %v2733, %v380
    %v2749 = vadd.f32 %v2747, 0.0
    %v2750 = vadd.f32 %v2748, 0.0
    %v2751 = vmul.f32 %v2732, %v385
    %v2752 = vmul.f32 %v2733, %v385
    %v2753 = vmul.f32 %v2734, %v385
    %v2757 = vrot.slane %v2751, 2
    %v2758 = vrot.slane %v2752, 2
    %v2759 = vsel %vm392, %v2757, %v2758
    %v2760 = vrot.slane %v2753, 2
    %v2761 = vsel %vm392, %v2758, %v2760
    %v2764 = vadd.f32 %v2737, %v2759
    %v2765 = vadd.f32 %v2738, %v2761
    %v2766 = vmul.f32 %v2732, %v402
    %v2767 = vmul.f32 %v2733, %v402
    %v2768 = vmul.f32 %v2734, %v402
    %v2772 = vrot.slane %v2766, 2
    %v2773 = vrot.slane %v2767, 2
    %v2774 = vsel %vm392, %v2772, %v2773
    %v2775 = vrot.slane %v2768, 2
    %v2776 = vsel %vm392, %v2773, %v2775
    %v2779 = vadd.f32 %v2741, %v2774
    %v2780 = vadd.f32 %v2742, %v2776
    %v2781 = vmul.f32 %v2732, %v418
    %v2782 = vmul.f32 %v2733, %v418
    %v2783 = vmul.f32 %v2734, %v418
    %v2787 = vrot.slane %v2781, 2
    %v2788 = vrot.slane %v2782, 2
    %v2789 = vsel %vm392, %v2787, %v2788
    %v2790 = vrot.slane %v2783, 2
    %v2791 = vsel %vm392, %v2788, %v2790
    %v2794 = vadd.f32 %v2745, %v2789
    %v2795 = vadd.f32 %v2746, %v2791
    %v2796 = vmul.f32 %v2732, %v434
    %v2797 = vmul.f32 %v2733, %v434
    %v2798 = vmul.f32 %v2734, %v434
    %v2802 = vrot.slane %v2796, 2
    %v2803 = vrot.slane %v2797, 2
    %v2804 = vsel %vm392, %v2802, %v2803
    %v2805 = vrot.slane %v2798, 2
    %v2806 = vsel %vm392, %v2803, %v2805
    %v2809 = vadd.f32 %v2749, %v2804
    %v2810 = vadd.f32 %v2750, %v2806
    %v2811 = vmul.f32 %v2732, %v450
    %v2812 = vmul.f32 %v2733, %v450
    %v2813 = vmul.f32 %v2734, %v450
    %v2817 = vrot.slane %v2811, 4
    %v2818 = vrot.slane %v2812, 4
    %v2819 = vsel %vm457, %v2817, %v2818
    %v2820 = vrot.slane %v2813, 4
    %v2821 = vsel %vm457, %v2818, %v2820
    %v2824 = vadd.f32 %v2764, %v2819
    %v2825 = vadd.f32 %v2765, %v2821
    %v2826 = vmul.f32 %v2732, %v467
    %v2827 = vmul.f32 %v2733, %v467
    %v2828 = vmul.f32 %v2734, %v467
    %v2832 = vrot.slane %v2826, 4
    %v2833 = vrot.slane %v2827, 4
    %v2834 = vsel %vm457, %v2832, %v2833
    %v2835 = vrot.slane %v2828, 4
    %v2836 = vsel %vm457, %v2833, %v2835
    %v2839 = vadd.f32 %v2779, %v2834
    %v2840 = vadd.f32 %v2780, %v2836
    %v2841 = vmul.f32 %v2732, %v483
    %v2842 = vmul.f32 %v2733, %v483
    %v2843 = vmul.f32 %v2734, %v483
    %v2847 = vrot.slane %v2841, 4
    %v2848 = vrot.slane %v2842, 4
    %v2849 = vsel %vm457, %v2847, %v2848
    %v2850 = vrot.slane %v2843, 4
    %v2851 = vsel %vm457, %v2848, %v2850
    %v2854 = vadd.f32 %v2794, %v2849
    %v2855 = vadd.f32 %v2795, %v2851
    %v2856 = vmul.f32 %v2732, %v499
    %v2857 = vmul.f32 %v2733, %v499
    %v2858 = vmul.f32 %v2734, %v499
    %v2862 = vrot.slane %v2856, 4
    %v2863 = vrot.slane %v2857, 4
    %v2864 = vsel %vm457, %v2862, %v2863
    %v2865 = vrot.slane %v2858, 4
    %v2866 = vsel %vm457, %v2863, %v2865
    %v2869 = vadd.f32 %v2809, %v2864
    %v2870 = vadd.f32 %v2810, %v2866
    %v2871 = vmul.f32 %v2732, %v515
    %v2872 = vmul.f32 %v2733, %v515
    %2875 = vrot.lane.b32.xlu0 %v2871, 126
    %v2876 = vpop.permute.xlu0 %2875
    %2877 = vrot.lane.b32.xlu0 %v2872, 126
    %v2878 = vpop.permute.xlu0 %2877
    %v2881 = vadd.f32 %v2824, %v2876
    %v2882 = vadd.f32 %v2825, %v2878
    %v2883 = vmul.f32 %v2732, %v528
    %v2884 = vmul.f32 %v2733, %v528
    %2887 = vrot.lane.b32.xlu0 %v2883, 126
    %v2888 = vpop.permute.xlu0 %2887
    %2889 = vrot.lane.b32.xlu0 %v2884, 126
    %v2890 = vpop.permute.xlu0 %2889
    %v2893 = vadd.f32 %v2839, %v2888
    %v2894 = vadd.f32 %v2840, %v2890
    %v2895 = vmul.f32 %v2732, %v541
    %v2896 = vmul.f32 %v2733, %v541
    %2899 = vrot.lane.b32.xlu0 %v2895, 126
    %v2900 = vpop.permute.xlu0 %2899
    %2901 = vrot.lane.b32.xlu0 %v2896, 126
    %v2902 = vpop.permute.xlu0 %2901
    %v2905 = vadd.f32 %v2854, %v2900
    %v2906 = vadd.f32 %v2855, %v2902
    %v2907 = vmul.f32 %v2732, %v554
    %v2908 = vmul.f32 %v2733, %v554
    %2911 = vrot.lane.b32.xlu0 %v2907, 126
    %v2912 = vpop.permute.xlu0 %2911
    %2913 = vrot.lane.b32.xlu0 %v2908, 126
    %v2914 = vpop.permute.xlu0 %2913
    %v2917 = vadd.f32 %v2869, %v2912
    %v2918 = vadd.f32 %v2870, %v2914
    %v2919 = vmul.f32 %v2732, %v567
    %v2920 = vmul.f32 %v2733, %v567
    %v2921 = vmul.f32 %v2734, %v567
    %v2925 = vrot.slane %v2919, 2
    %v2926 = vrot.slane %v2920, 2
    %v2927 = vsel %vm392, %v2925, %v2926
    %v2928 = vrot.slane %v2921, 2
    %v2929 = vsel %vm392, %v2926, %v2928
    %2930 = vrot.lane.b32.xlu0 %v2927, 126
    %v2931 = vpop.permute.xlu0 %2930
    %2932 = vrot.lane.b32.xlu0 %v2929, 126
    %v2933 = vpop.permute.xlu0 %2932
    %v2936 = vadd.f32 %v2881, %v2931
    %v2937 = vadd.f32 %v2882, %v2933
    %v2938 = vmul.f32 %v2732, %v587
    %v2939 = vmul.f32 %v2733, %v587
    %v2940 = vmul.f32 %v2734, %v587
    %v2944 = vrot.slane %v2938, 2
    %v2945 = vrot.slane %v2939, 2
    %v2946 = vsel %vm392, %v2944, %v2945
    %v2947 = vrot.slane %v2940, 2
    %v2948 = vsel %vm392, %v2945, %v2947
    %2949 = vrot.lane.b32.xlu0 %v2946, 126
    %v2950 = vpop.permute.xlu0 %2949
    %2951 = vrot.lane.b32.xlu0 %v2948, 126
    %v2952 = vpop.permute.xlu0 %2951
    %v2955 = vadd.f32 %v2893, %v2950
    %v2956 = vadd.f32 %v2894, %v2952
    %v2957 = vmul.f32 %v2732, %v607
    %v2958 = vmul.f32 %v2733, %v607
    %v2959 = vmul.f32 %v2734, %v607
    %v2963 = vrot.slane %v2957, 2
    %v2964 = vrot.slane %v2958, 2
    %v2965 = vsel %vm392, %v2963, %v2964
    %v2966 = vrot.slane %v2959, 2
    %v2967 = vsel %vm392, %v2964, %v2966
    %2968 = vrot.lane.b32.xlu0 %v2965, 126
    %v2969 = vpop.permute.xlu0 %2968
    %2970 = vrot.lane.b32.xlu0 %v2967, 126
    %v2971 = vpop.permute.xlu0 %2970
    %v2974 = vadd.f32 %v2905, %v2969
    %v2975 = vadd.f32 %v2906, %v2971
    %v2976 = vmul.f32 %v2732, %v627
    %v2977 = vmul.f32 %v2733, %v627
    %v2978 = vmul.f32 %v2734, %v627
    %v2982 = vrot.slane %v2976, 2
    %v2983 = vrot.slane %v2977, 2
    %v2984 = vsel %vm392, %v2982, %v2983
    %v2985 = vrot.slane %v2978, 2
    %v2986 = vsel %vm392, %v2983, %v2985
    %2987 = vrot.lane.b32.xlu0 %v2984, 126
    %v2988 = vpop.permute.xlu0 %2987
    %2989 = vrot.lane.b32.xlu0 %v2986, 126
    %v2990 = vpop.permute.xlu0 %2989
    %v2993 = vadd.f32 %v2917, %v2988
    %v2994 = vadd.f32 %v2918, %v2990
    %v2995 = vmul.f32 %v2732, %v647
    %v2996 = vmul.f32 %v2733, %v647
    %v2997 = vmul.f32 %v2734, %v647
    %v3001 = vrot.slane %v2995, 4
    %v3002 = vrot.slane %v2996, 4
    %v3003 = vsel %vm457, %v3001, %v3002
    %v3004 = vrot.slane %v2997, 4
    %v3005 = vsel %vm457, %v3002, %v3004
    %3006 = vrot.lane.b32.xlu0 %v3003, 126
    %v3007 = vpop.permute.xlu0 %3006
    %3008 = vrot.lane.b32.xlu0 %v3005, 126
    %v3009 = vpop.permute.xlu0 %3008
    %v3012 = vadd.f32 %v2936, %v3007
    %v3013 = vadd.f32 %v2937, %v3009
    %v3014 = vmul.f32 %v2732, %v667
    %v3015 = vmul.f32 %v2733, %v667
    %v3016 = vmul.f32 %v2734, %v667
    %v3020 = vrot.slane %v3014, 4
    %v3021 = vrot.slane %v3015, 4
    %v3022 = vsel %vm457, %v3020, %v3021
    %v3023 = vrot.slane %v3016, 4
    %v3024 = vsel %vm457, %v3021, %v3023
    %3025 = vrot.lane.b32.xlu0 %v3022, 126
    %v3026 = vpop.permute.xlu0 %3025
    %3027 = vrot.lane.b32.xlu0 %v3024, 126
    %v3028 = vpop.permute.xlu0 %3027
    %v3031 = vadd.f32 %v2955, %v3026
    %v3032 = vadd.f32 %v2956, %v3028
    %v3033 = vmul.f32 %v2732, %v687
    %v3034 = vmul.f32 %v2733, %v687
    %v3035 = vmul.f32 %v2734, %v687
    %v3039 = vrot.slane %v3033, 4
    %v3040 = vrot.slane %v3034, 4
    %v3041 = vsel %vm457, %v3039, %v3040
    %v3042 = vrot.slane %v3035, 4
    %v3043 = vsel %vm457, %v3040, %v3042
    %3044 = vrot.lane.b32.xlu0 %v3041, 126
    %v3045 = vpop.permute.xlu0 %3044
    %3046 = vrot.lane.b32.xlu0 %v3043, 126
    %v3047 = vpop.permute.xlu0 %3046
    %v3050 = vadd.f32 %v2974, %v3045
    %v3051 = vadd.f32 %v2975, %v3047
    %v3052 = vmul.f32 %v2732, %v707
    %v3053 = vmul.f32 %v2733, %v707
    %v3054 = vmul.f32 %v2734, %v707
    %v3058 = vrot.slane %v3052, 4
    %v3059 = vrot.slane %v3053, 4
    %v3060 = vsel %vm457, %v3058, %v3059
    %v3061 = vrot.slane %v3054, 4
    %v3062 = vsel %vm457, %v3059, %v3061
    %3063 = vrot.lane.b32.xlu0 %v3060, 126
    %v3064 = vpop.permute.xlu0 %3063
    %3065 = vrot.lane.b32.xlu0 %v3062, 126
    %v3066 = vpop.permute.xlu0 %3065
    %v3069 = vadd.f32 %v2993, %v3064
    %v3070 = vadd.f32 %v2994, %v3066
    %v3071 = vmul.f32 %v2732, %v727
    %v3072 = vmul.f32 %v2733, %v727
    %3075 = vrot.lane.b32.xlu0 %v3071, 124
    %v3076 = vpop.permute.xlu0 %3075
    %3077 = vrot.lane.b32.xlu0 %v3072, 124
    %v3078 = vpop.permute.xlu0 %3077
    %v3081 = vadd.f32 %v3012, %v3076
    %v3082 = vadd.f32 %v3013, %v3078
    %v3083 = vmul.f32 %v2732, %v740
    %v3084 = vmul.f32 %v2733, %v740
    %3087 = vrot.lane.b32.xlu0 %v3083, 124
    %v3088 = vpop.permute.xlu0 %3087
    %3089 = vrot.lane.b32.xlu0 %v3084, 124
    %v3090 = vpop.permute.xlu0 %3089
    %v3093 = vadd.f32 %v3031, %v3088
    %v3094 = vadd.f32 %v3032, %v3090
    %v3095 = vmul.f32 %v2732, %v753
    %v3096 = vmul.f32 %v2733, %v753
    %3099 = vrot.lane.b32.xlu0 %v3095, 124
    %v3100 = vpop.permute.xlu0 %3099
    %3101 = vrot.lane.b32.xlu0 %v3096, 124
    %v3102 = vpop.permute.xlu0 %3101
    %v3105 = vadd.f32 %v3050, %v3100
    %v3106 = vadd.f32 %v3051, %v3102
    %v3107 = vmul.f32 %v2732, %v766
    %v3108 = vmul.f32 %v2733, %v766
    %3111 = vrot.lane.b32.xlu0 %v3107, 124
    %v3112 = vpop.permute.xlu0 %3111
    %3113 = vrot.lane.b32.xlu0 %v3108, 124
    %v3114 = vpop.permute.xlu0 %3113
    %v3117 = vadd.f32 %v3069, %v3112
    %v3118 = vadd.f32 %v3070, %v3114
    %v3119 = vmul.f32 %v2732, %v779
    %v3120 = vmul.f32 %v2733, %v779
    %v3121 = vmul.f32 %v2734, %v779
    %v3125 = vrot.slane %v3119, 2
    %v3126 = vrot.slane %v3120, 2
    %v3127 = vsel %vm392, %v3125, %v3126
    %v3128 = vrot.slane %v3121, 2
    %v3129 = vsel %vm392, %v3126, %v3128
    %3130 = vrot.lane.b32.xlu0 %v3127, 124
    %v3131 = vpop.permute.xlu0 %3130
    %3132 = vrot.lane.b32.xlu0 %v3129, 124
    %v3133 = vpop.permute.xlu0 %3132
    %v3136 = vadd.f32 %v3081, %v3131
    %v3137 = vadd.f32 %v3082, %v3133
    %v3138 = vmul.f32 %v2732, %v799
    %v3139 = vmul.f32 %v2733, %v799
    %v3140 = vmul.f32 %v2734, %v799
    %v3144 = vrot.slane %v3138, 2
    %v3145 = vrot.slane %v3139, 2
    %v3146 = vsel %vm392, %v3144, %v3145
    %v3147 = vrot.slane %v3140, 2
    %v3148 = vsel %vm392, %v3145, %v3147
    %3149 = vrot.lane.b32.xlu0 %v3146, 124
    %v3150 = vpop.permute.xlu0 %3149
    %3151 = vrot.lane.b32.xlu0 %v3148, 124
    %v3152 = vpop.permute.xlu0 %3151
    %v3155 = vadd.f32 %v3093, %v3150
    %v3156 = vadd.f32 %v3094, %v3152
    %v3157 = vmul.f32 %v2732, %v819
    %v3158 = vmul.f32 %v2733, %v819
    %v3159 = vmul.f32 %v2734, %v819
    %v3163 = vrot.slane %v3157, 2
    %v3164 = vrot.slane %v3158, 2
    %v3165 = vsel %vm392, %v3163, %v3164
    %v3166 = vrot.slane %v3159, 2
    %v3167 = vsel %vm392, %v3164, %v3166
    %3168 = vrot.lane.b32.xlu0 %v3165, 124
    %v3169 = vpop.permute.xlu0 %3168
    %3170 = vrot.lane.b32.xlu0 %v3167, 124
    %v3171 = vpop.permute.xlu0 %3170
    %v3174 = vadd.f32 %v3105, %v3169
    %v3175 = vadd.f32 %v3106, %v3171
    %v3176 = vmul.f32 %v2732, %v839
    %v3177 = vmul.f32 %v2733, %v839
    %v3178 = vmul.f32 %v2734, %v839
    %v3182 = vrot.slane %v3176, 2
    %v3183 = vrot.slane %v3177, 2
    %v3184 = vsel %vm392, %v3182, %v3183
    %v3185 = vrot.slane %v3178, 2
    %v3186 = vsel %vm392, %v3183, %v3185
    %3187 = vrot.lane.b32.xlu0 %v3184, 124
    %v3188 = vpop.permute.xlu0 %3187
    %3189 = vrot.lane.b32.xlu0 %v3186, 124
    %v3190 = vpop.permute.xlu0 %3189
    %v3193 = vadd.f32 %v3117, %v3188
    %v3194 = vadd.f32 %v3118, %v3190
    %v3195 = vmul.f32 %v2732, %v859
    %v3196 = vmul.f32 %v2733, %v859
    %v3197 = vmul.f32 %v2734, %v859
    %v3201 = vrot.slane %v3195, 4
    %v3202 = vrot.slane %v3196, 4
    %v3203 = vsel %vm457, %v3201, %v3202
    %v3204 = vrot.slane %v3197, 4
    %v3205 = vsel %vm457, %v3202, %v3204
    %3206 = vrot.lane.b32.xlu0 %v3203, 124
    %v3207 = vpop.permute.xlu0 %3206
    %3208 = vrot.lane.b32.xlu0 %v3205, 124
    %v3209 = vpop.permute.xlu0 %3208
    %v3212 = vadd.f32 %v3136, %v3207
    %v3213 = vadd.f32 %v3137, %v3209
    %v3214 = vmul.f32 %v2732, %v879
    %v3215 = vmul.f32 %v2733, %v879
    %v3216 = vmul.f32 %v2734, %v879
    %v3220 = vrot.slane %v3214, 4
    %v3221 = vrot.slane %v3215, 4
    %v3222 = vsel %vm457, %v3220, %v3221
    %v3223 = vrot.slane %v3216, 4
    %v3224 = vsel %vm457, %v3221, %v3223
    %3225 = vrot.lane.b32.xlu0 %v3222, 124
    %v3226 = vpop.permute.xlu0 %3225
    %3227 = vrot.lane.b32.xlu0 %v3224, 124
    %v3228 = vpop.permute.xlu0 %3227
    %v3231 = vadd.f32 %v3155, %v3226
    %v3232 = vadd.f32 %v3156, %v3228
    %v3233 = vmul.f32 %v2732, %v899
    %v3234 = vmul.f32 %v2733, %v899
    %v3235 = vmul.f32 %v2734, %v899
    %v3239 = vrot.slane %v3233, 4
    %v3240 = vrot.slane %v3234, 4
    %v3241 = vsel %vm457, %v3239, %v3240
    %v3242 = vrot.slane %v3235, 4
    %v3243 = vsel %vm457, %v3240, %v3242
    %3244 = vrot.lane.b32.xlu0 %v3241, 124
    %v3245 = vpop.permute.xlu0 %3244
    %3246 = vrot.lane.b32.xlu0 %v3243, 124
    %v3247 = vpop.permute.xlu0 %3246
    %v3250 = vadd.f32 %v3174, %v3245
    %v3251 = vadd.f32 %v3175, %v3247
    %v3252 = vmul.f32 %v2732, %v919
    %v3253 = vmul.f32 %v2733, %v919
    %v3254 = vmul.f32 %v2734, %v919
    %v3258 = vrot.slane %v3252, 4
    %v3259 = vrot.slane %v3253, 4
    %v3260 = vsel %vm457, %v3258, %v3259
    %v3261 = vrot.slane %v3254, 4
    %v3262 = vsel %vm457, %v3259, %v3261
    %3263 = vrot.lane.b32.xlu0 %v3260, 124
    %v3264 = vpop.permute.xlu0 %3263
    %3265 = vrot.lane.b32.xlu0 %v3262, 124
    %v3266 = vpop.permute.xlu0 %3265
    %v3269 = vadd.f32 %v3193, %v3264
    %v3270 = vadd.f32 %v3194, %v3266
    %v3271 = vld [vmem:[%s187] sm:$0xff]
    %v3272 = vld [vmem:[%s187 + $0x8] sm:$0xff]
    %v3273 = vld [vmem:[%s187 + $0x10] sm:$0xf]
    %v3274 = vmul.f32 %v3271, %v942
    %v3275 = vmul.f32 %v3272, %v942
    %v3276 = vadd.f32 %v3212, %v3274
    %v3277 = vadd.f32 %v3213, %v3275
    %v3278 = vmul.f32 %v3271, %v947
    %v3279 = vmul.f32 %v3272, %v947
    %v3280 = vadd.f32 %v3231, %v3278
    %v3281 = vadd.f32 %v3232, %v3279
    %v3282 = vmul.f32 %v3271, %v952
    %v3283 = vmul.f32 %v3272, %v952
    %v3284 = vadd.f32 %v3250, %v3282
    %v3285 = vadd.f32 %v3251, %v3283
    %v3286 = vmul.f32 %v3271, %v957
    %v3287 = vmul.f32 %v3272, %v957
    %v3288 = vadd.f32 %v3269, %v3286
    %v3289 = vadd.f32 %v3270, %v3287
    %v3290 = vmul.f32 %v3271, %v962
    %v3291 = vmul.f32 %v3272, %v962
    %v3292 = vmul.f32 %v3273, %v962
    %v3296 = vrot.slane %v3290, 2
    %v3297 = vrot.slane %v3291, 2
    %v3298 = vsel %vm392, %v3296, %v3297
    %v3299 = vrot.slane %v3292, 2
    %v3300 = vsel %vm392, %v3297, %v3299
    %v3303 = vadd.f32 %v3276, %v3298
    %v3304 = vadd.f32 %v3277, %v3300
    %v3305 = vmul.f32 %v3271, %v978
    %v3306 = vmul.f32 %v3272, %v978
    %v3307 = vmul.f32 %v3273, %v978
    %v3311 = vrot.slane %v3305, 2
    %v3312 = vrot.slane %v3306, 2
    %v3313 = vsel %vm392, %v3311, %v3312
    %v3314 = vrot.slane %v3307, 2
    %v3315 = vsel %vm392, %v3312, %v3314
    %v3318 = vadd.f32 %v3280, %v3313
    %v3319 = vadd.f32 %v3281, %v3315
    %v3320 = vmul.f32 %v3271, %v994
    %v3321 = vmul.f32 %v3272, %v994
    %v3322 = vmul.f32 %v3273, %v994
    %v3326 = vrot.slane %v3320, 2
    %v3327 = vrot.slane %v3321, 2
    %v3328 = vsel %vm392, %v3326, %v3327
    %v3329 = vrot.slane %v3322, 2
    %v3330 = vsel %vm392, %v3327, %v3329
    %v3333 = vadd.f32 %v3284, %v3328
    %v3334 = vadd.f32 %v3285, %v3330
    %v3335 = vmul.f32 %v3271, %v1010
    %v3336 = vmul.f32 %v3272, %v1010
    %v3337 = vmul.f32 %v3273, %v1010
    %v3341 = vrot.slane %v3335, 2
    %v3342 = vrot.slane %v3336, 2
    %v3343 = vsel %vm392, %v3341, %v3342
    %v3344 = vrot.slane %v3337, 2
    %v3345 = vsel %vm392, %v3342, %v3344
    %v3348 = vadd.f32 %v3288, %v3343
    %v3349 = vadd.f32 %v3289, %v3345
    %v3350 = vmul.f32 %v3271, %v1026
    %v3351 = vmul.f32 %v3272, %v1026
    %v3352 = vmul.f32 %v3273, %v1026
    %v3356 = vrot.slane %v3350, 4
    %v3357 = vrot.slane %v3351, 4
    %v3358 = vsel %vm457, %v3356, %v3357
    %v3359 = vrot.slane %v3352, 4
    %v3360 = vsel %vm457, %v3357, %v3359
    %v3363 = vadd.f32 %v3303, %v3358
    %v3364 = vadd.f32 %v3304, %v3360
    %v3365 = vmul.f32 %v3271, %v1042
    %v3366 = vmul.f32 %v3272, %v1042
    %v3367 = vmul.f32 %v3273, %v1042
    %v3371 = vrot.slane %v3365, 4
    %v3372 = vrot.slane %v3366, 4
    %v3373 = vsel %vm457, %v3371, %v3372
    %v3374 = vrot.slane %v3367, 4
    %v3375 = vsel %vm457, %v3372, %v3374
    %v3378 = vadd.f32 %v3318, %v3373
    %v3379 = vadd.f32 %v3319, %v3375
    %v3380 = vmul.f32 %v3271, %v1058
    %v3381 = vmul.f32 %v3272, %v1058
    %v3382 = vmul.f32 %v3273, %v1058
    %v3386 = vrot.slane %v3380, 4
    %v3387 = vrot.slane %v3381, 4
    %v3388 = vsel %vm457, %v3386, %v3387
    %v3389 = vrot.slane %v3382, 4
    %v3390 = vsel %vm457, %v3387, %v3389
    %v3393 = vadd.f32 %v3333, %v3388
    %v3394 = vadd.f32 %v3334, %v3390
    %v3395 = vmul.f32 %v3271, %v1074
    %v3396 = vmul.f32 %v3272, %v1074
    %v3397 = vmul.f32 %v3273, %v1074
    %v3401 = vrot.slane %v3395, 4
    %v3402 = vrot.slane %v3396, 4
    %v3403 = vsel %vm457, %v3401, %v3402
    %v3404 = vrot.slane %v3397, 4
    %v3405 = vsel %vm457, %v3402, %v3404
    %v3408 = vadd.f32 %v3348, %v3403
    %v3409 = vadd.f32 %v3349, %v3405
    %v3410 = vmul.f32 %v3271, %v1090
    %v3411 = vmul.f32 %v3272, %v1090
    %3414 = vrot.lane.b32.xlu0 %v3410, 126
    %v3415 = vpop.permute.xlu0 %3414
    %3416 = vrot.lane.b32.xlu0 %v3411, 126
    %v3417 = vpop.permute.xlu0 %3416
    %v3420 = vadd.f32 %v3363, %v3415
    %v3421 = vadd.f32 %v3364, %v3417
    %v3422 = vmul.f32 %v3271, %v1103
    %v3423 = vmul.f32 %v3272, %v1103
    %3426 = vrot.lane.b32.xlu0 %v3422, 126
    %v3427 = vpop.permute.xlu0 %3426
    %3428 = vrot.lane.b32.xlu0 %v3423, 126
    %v3429 = vpop.permute.xlu0 %3428
    %v3432 = vadd.f32 %v3378, %v3427
    %v3433 = vadd.f32 %v3379, %v3429
    %v3434 = vmul.f32 %v3271, %v1116
    %v3435 = vmul.f32 %v3272, %v1116
    %3438 = vrot.lane.b32.xlu0 %v3434, 126
    %v3439 = vpop.permute.xlu0 %3438
    %3440 = vrot.lane.b32.xlu0 %v3435, 126
    %v3441 = vpop.permute.xlu0 %3440
    %v3444 = vadd.f32 %v3393, %v3439
    %v3445 = vadd.f32 %v3394, %v3441
    %v3446 = vmul.f32 %v3271, %v1129
    %v3447 = vmul.f32 %v3272, %v1129
    %3450 = vrot.lane.b32.xlu0 %v3446, 126
    %v3451 = vpop.permute.xlu0 %3450
    %3452 = vrot.lane.b32.xlu0 %v3447, 126
    %v3453 = vpop.permute.xlu0 %3452
    %v3456 = vadd.f32 %v3408, %v3451
    %v3457 = vadd.f32 %v3409, %v3453
    %v3458 = vmul.f32 %v3271, %v1142
    %v3459 = vmul.f32 %v3272, %v1142
    %v3460 = vmul.f32 %v3273, %v1142
    %v3464 = vrot.slane %v3458, 2
    %v3465 = vrot.slane %v3459, 2
    %v3466 = vsel %vm392, %v3464, %v3465
    %v3467 = vrot.slane %v3460, 2
    %v3468 = vsel %vm392, %v3465, %v3467
    %3469 = vrot.lane.b32.xlu0 %v3466, 126
    %v3470 = vpop.permute.xlu0 %3469
    %3471 = vrot.lane.b32.xlu0 %v3468, 126
    %v3472 = vpop.permute.xlu0 %3471
    %v3475 = vadd.f32 %v3420, %v3470
    %v3476 = vadd.f32 %v3421, %v3472
    %v3477 = vmul.f32 %v3271, %v1162
    %v3478 = vmul.f32 %v3272, %v1162
    %v3479 = vmul.f32 %v3273, %v1162
    %v3483 = vrot.slane %v3477, 2
    %v3484 = vrot.slane %v3478, 2
    %v3485 = vsel %vm392, %v3483, %v3484
    %v3486 = vrot.slane %v3479, 2
    %v3487 = vsel %vm392, %v3484, %v3486
    %3488 = vrot.lane.b32.xlu0 %v3485, 126
    %v3489 = vpop.permute.xlu0 %3488
    %3490 = vrot.lane.b32.xlu0 %v3487, 126
    %v3491 = vpop.permute.xlu0 %3490
    %v3494 = vadd.f32 %v3432, %v3489
    %v3495 = vadd.f32 %v3433, %v3491
    %v3496 = vmul.f32 %v3271, %v1182
    %v3497 = vmul.f32 %v3272, %v1182
    %v3498 = vmul.f32 %v3273, %v1182
    %v3502 = vrot.slane %v3496, 2
    %v3503 = vrot.slane %v3497, 2
    %v3504 = vsel %vm392, %v3502, %v3503
    %v3505 = vrot.slane %v3498, 2
    %v3506 = vsel %vm392, %v3503, %v3505
    %3507 = vrot.lane.b32.xlu0 %v3504, 126
    %v3508 = vpop.permute.xlu0 %3507
    %3509 = vrot.lane.b32.xlu0 %v3506, 126
    %v3510 = vpop.permute.xlu0 %3509
    %v3513 = vadd.f32 %v3444, %v3508
    %v3514 = vadd.f32 %v3445, %v3510
    %v3515 = vmul.f32 %v3271, %v1202
    %v3516 = vmul.f32 %v3272, %v1202
    %v3517 = vmul.f32 %v3273, %v1202
    %v3521 = vrot.slane %v3515, 2
    %v3522 = vrot.slane %v3516, 2
    %v3523 = vsel %vm392, %v3521, %v3522
    %v3524 = vrot.slane %v3517, 2
    %v3525 = vsel %vm392, %v3522, %v3524
    %3526 = vrot.lane.b32.xlu0 %v3523, 126
    %v3527 = vpop.permute.xlu0 %3526
    %3528 = vrot.lane.b32.xlu0 %v3525, 126
    %v3529 = vpop.permute.xlu0 %3528
    %v3532 = vadd.f32 %v3456, %v3527
    %v3533 = vadd.f32 %v3457, %v3529
    %v3534 = vmul.f32 %v3271, %v1222
    %v3535 = vmul.f32 %v3272, %v1222
    %v3536 = vmul.f32 %v3273, %v1222
    %v3540 = vrot.slane %v3534, 4
    %v3541 = vrot.slane %v3535, 4
    %v3542 = vsel %vm457, %v3540, %v3541
    %v3543 = vrot.slane %v3536, 4
    %v3544 = vsel %vm457, %v3541, %v3543
    %3545 = vrot.lane.b32.xlu0 %v3542, 126
    %v3546 = vpop.permute.xlu0 %3545
    %3547 = vrot.lane.b32.xlu0 %v3544, 126
    %v3548 = vpop.permute.xlu0 %3547
    %v3551 = vadd.f32 %v3475, %v3546
    %v3552 = vadd.f32 %v3476, %v3548
    %v3553 = vmul.f32 %v3271, %v1242
    %v3554 = vmul.f32 %v3272, %v1242
    %v3555 = vmul.f32 %v3273, %v1242
    %v3559 = vrot.slane %v3553, 4
    %v3560 = vrot.slane %v3554, 4
    %v3561 = vsel %vm457, %v3559, %v3560
    %v3562 = vrot.slane %v3555, 4
    %v3563 = vsel %vm457, %v3560, %v3562
    %3564 = vrot.lane.b32.xlu0 %v3561, 126
    %v3565 = vpop.permute.xlu0 %3564
    %3566 = vrot.lane.b32.xlu0 %v3563, 126
    %v3567 = vpop.permute.xlu0 %3566
    %v3570 = vadd.f32 %v3494, %v3565
    %v3571 = vadd.f32 %v3495, %v3567
    %v3572 = vmul.f32 %v3271, %v1262
    %v3573 = vmul.f32 %v3272, %v1262
    %v3574 = vmul.f32 %v3273, %v1262
    %v3578 = vrot.slane %v3572, 4
    %v3579 = vrot.slane %v3573, 4
    %v3580 = vsel %vm457, %v3578, %v3579
    %v3581 = vrot.slane %v3574, 4
    %v3582 = vsel %vm457, %v3579, %v3581
    %3583 = vrot.lane.b32.xlu0 %v3580, 126
    %v3584 = vpop.permute.xlu0 %3583
    %3585 = vrot.lane.b32.xlu0 %v3582, 126
    %v3586 = vpop.permute.xlu0 %3585
    %v3589 = vadd.f32 %v3513, %v3584
    %v3590 = vadd.f32 %v3514, %v3586
    %v3591 = vmul.f32 %v3271, %v1282
    %v3592 = vmul.f32 %v3272, %v1282
    %v3593 = vmul.f32 %v3273, %v1282
    %v3597 = vrot.slane %v3591, 4
    %v3598 = vrot.slane %v3592, 4
    %v3599 = vsel %vm457, %v3597, %v3598
    %v3600 = vrot.slane %v3593, 4
    %v3601 = vsel %vm457, %v3598, %v3600
    %3602 = vrot.lane.b32.xlu0 %v3599, 126
    %v3603 = vpop.permute.xlu0 %3602
    %3604 = vrot.lane.b32.xlu0 %v3601, 126
    %v3605 = vpop.permute.xlu0 %3604
    %v3608 = vadd.f32 %v3532, %v3603
    %v3609 = vadd.f32 %v3533, %v3605
    %v3610 = vmul.f32 %v3271, %v1302
    %v3611 = vmul.f32 %v3272, %v1302
    %3614 = vrot.lane.b32.xlu0 %v3610, 124
    %v3615 = vpop.permute.xlu0 %3614
    %3616 = vrot.lane.b32.xlu0 %v3611, 124
    %v3617 = vpop.permute.xlu0 %3616
    %v3620 = vadd.f32 %v3551, %v3615
    %v3621 = vadd.f32 %v3552, %v3617
    %v3622 = vmul.f32 %v3271, %v1315
    %v3623 = vmul.f32 %v3272, %v1315
    %3626 = vrot.lane.b32.xlu0 %v3622, 124
    %v3627 = vpop.permute.xlu0 %3626
    %3628 = vrot.lane.b32.xlu0 %v3623, 124
    %v3629 = vpop.permute.xlu0 %3628
    %v3632 = vadd.f32 %v3570, %v3627
    %v3633 = vadd.f32 %v3571, %v3629
    %v3634 = vmul.f32 %v3271, %v1328
    %v3635 = vmul.f32 %v3272, %v1328
    %3638 = vrot.lane.b32.xlu0 %v3634, 124
    %v3639 = vpop.permute.xlu0 %3638
    %3640 = vrot.lane.b32.xlu0 %v3635, 124
    %v3641 = vpop.permute.xlu0 %3640
    %v3644 = vadd.f32 %v3589, %v3639
    %v3645 = vadd.f32 %v3590, %v3641
    %v3646 = vmul.f32 %v3271, %v1341
    %v3647 = vmul.f32 %v3272, %v1341
    %3650 = vrot.lane.b32.xlu0 %v3646, 124
    %v3651 = vpop.permute.xlu0 %3650
    %3652 = vrot.lane.b32.xlu0 %v3647, 124
    %v3653 = vpop.permute.xlu0 %3652
    %v3656 = vadd.f32 %v3608, %v3651
    %v3657 = vadd.f32 %v3609, %v3653
    %v3658 = vmul.f32 %v3271, %v1354
    %v3659 = vmul.f32 %v3272, %v1354
    %v3660 = vmul.f32 %v3273, %v1354
    %v3664 = vrot.slane %v3658, 2
    %v3665 = vrot.slane %v3659, 2
    %v3666 = vsel %vm392, %v3664, %v3665
    %v3667 = vrot.slane %v3660, 2
    %v3668 = vsel %vm392, %v3665, %v3667
    %3669 = vrot.lane.b32.xlu0 %v3666, 124
    %v3670 = vpop.permute.xlu0 %3669
    %3671 = vrot.lane.b32.xlu0 %v3668, 124
    %v3672 = vpop.permute.xlu0 %3671
    %v3675 = vadd.f32 %v3620, %v3670
    %v3676 = vadd.f32 %v3621, %v3672
    %v3677 = vmul.f32 %v3271, %v1374
    %v3678 = vmul.f32 %v3272, %v1374
    %v3679 = vmul.f32 %v3273, %v1374
    %v3683 = vrot.slane %v3677, 2
    %v3684 = vrot.slane %v3678, 2
    %v3685 = vsel %vm392, %v3683, %v3684
    %v3686 = vrot.slane %v3679, 2
    %v3687 = vsel %vm392, %v3684, %v3686
    %3688 = vrot.lane.b32.xlu0 %v3685, 124
    %v3689 = vpop.permute.xlu0 %3688
    %3690 = vrot.lane.b32.xlu0 %v3687, 124
    %v3691 = vpop.permute.xlu0 %3690
    %v3694 = vadd.f32 %v3632, %v3689
    %v3695 = vadd.f32 %v3633, %v3691
    %v3696 = vmul.f32 %v3271, %v1394
    %v3697 = vmul.f32 %v3272, %v1394
    %v3698 = vmul.f32 %v3273, %v1394
    %v3702 = vrot.slane %v3696, 2
    %v3703 = vrot.slane %v3697, 2
    %v3704 = vsel %vm392, %v3702, %v3703
    %v3705 = vrot.slane %v3698, 2
    %v3706 = vsel %vm392, %v3703, %v3705
    %3707 = vrot.lane.b32.xlu0 %v3704, 124
    %v3708 = vpop.permute.xlu0 %3707
    %3709 = vrot.lane.b32.xlu0 %v3706, 124
    %v3710 = vpop.permute.xlu0 %3709
    %v3713 = vadd.f32 %v3644, %v3708
    %v3714 = vadd.f32 %v3645, %v3710
    %v3715 = vmul.f32 %v3271, %v1414
    %v3716 = vmul.f32 %v3272, %v1414
    %v3717 = vmul.f32 %v3273, %v1414
    %v3721 = vrot.slane %v3715, 2
    %v3722 = vrot.slane %v3716, 2
    %v3723 = vsel %vm392, %v3721, %v3722
    %v3724 = vrot.slane %v3717, 2
    %v3725 = vsel %vm392, %v3722, %v3724
    %3726 = vrot.lane.b32.xlu0 %v3723, 124
    %v3727 = vpop.permute.xlu0 %3726
    %3728 = vrot.lane.b32.xlu0 %v3725, 124
    %v3729 = vpop.permute.xlu0 %3728
    %v3732 = vadd.f32 %v3656, %v3727
    %v3733 = vadd.f32 %v3657, %v3729
    %v3734 = vmul.f32 %v3271, %v1434
    %v3735 = vmul.f32 %v3272, %v1434
    %v3736 = vmul.f32 %v3273, %v1434
    %v3740 = vrot.slane %v3734, 4
    %v3741 = vrot.slane %v3735, 4
    %v3742 = vsel %vm457, %v3740, %v3741
    %v3743 = vrot.slane %v3736, 4
    %v3744 = vsel %vm457, %v3741, %v3743
    %3745 = vrot.lane.b32.xlu0 %v3742, 124
    %v3746 = vpop.permute.xlu0 %3745
    %3747 = vrot.lane.b32.xlu0 %v3744, 124
    %v3748 = vpop.permute.xlu0 %3747
    %v3751 = vadd.f32 %v3675, %v3746
    %v3752 = vadd.f32 %v3676, %v3748
    %v3753 = vmul.f32 %v3271, %v1454
    %v3754 = vmul.f32 %v3272, %v1454
    %v3755 = vmul.f32 %v3273, %v1454
    %v3759 = vrot.slane %v3753, 4
    %v3760 = vrot.slane %v3754, 4
    %v3761 = vsel %vm457, %v3759, %v3760
    %v3762 = vrot.slane %v3755, 4
    %v3763 = vsel %vm457, %v3760, %v3762
    %3764 = vrot.lane.b32.xlu0 %v3761, 124
    %v3765 = vpop.permute.xlu0 %3764
    %3766 = vrot.lane.b32.xlu0 %v3763, 124
    %v3767 = vpop.permute.xlu0 %3766
    %v3770 = vadd.f32 %v3694, %v3765
    %v3771 = vadd.f32 %v3695, %v3767
    %v3772 = vmul.f32 %v3271, %v1474
    %v3773 = vmul.f32 %v3272, %v1474
    %v3774 = vmul.f32 %v3273, %v1474
    %v3778 = vrot.slane %v3772, 4
    %v3779 = vrot.slane %v3773, 4
    %v3780 = vsel %vm457, %v3778, %v3779
    %v3781 = vrot.slane %v3774, 4
    %v3782 = vsel %vm457, %v3779, %v3781
    %3783 = vrot.lane.b32.xlu0 %v3780, 124
    %v3784 = vpop.permute.xlu0 %3783
    %3785 = vrot.lane.b32.xlu0 %v3782, 124
    %v3786 = vpop.permute.xlu0 %3785
    %v3789 = vadd.f32 %v3713, %v3784
    %v3790 = vadd.f32 %v3714, %v3786
    %v3791 = vmul.f32 %v3271, %v1494
    %v3792 = vmul.f32 %v3272, %v1494
    %v3793 = vmul.f32 %v3273, %v1494
    %v3797 = vrot.slane %v3791, 4
    %v3798 = vrot.slane %v3792, 4
    %v3799 = vsel %vm457, %v3797, %v3798
    %v3800 = vrot.slane %v3793, 4
    %v3801 = vsel %vm457, %v3798, %v3800
    %3802 = vrot.lane.b32.xlu0 %v3799, 124
    %v3803 = vpop.permute.xlu0 %3802
    %3804 = vrot.lane.b32.xlu0 %v3801, 124
    %v3805 = vpop.permute.xlu0 %3804
    %v3808 = vadd.f32 %v3732, %v3803
    %v3809 = vadd.f32 %v3733, %v3805
    %v3810 = vld [vmem:[%s201] sm:$0xff]
    %v3811 = vld [vmem:[%s201 + $0x8] sm:$0xff]
    %v3812 = vld [vmem:[%s201 + $0x10] sm:$0xf]
    %v3813 = vmul.f32 %v3810, %v1517
    %v3814 = vmul.f32 %v3811, %v1517
    %v3815 = vadd.f32 %v3751, %v3813
    %v3816 = vadd.f32 %v3752, %v3814
    %v3817 = vmul.f32 %v3810, %v1522
    %v3818 = vmul.f32 %v3811, %v1522
    %v3819 = vadd.f32 %v3770, %v3817
    %v3820 = vadd.f32 %v3771, %v3818
    %v3821 = vmul.f32 %v3810, %v1527
    %v3822 = vmul.f32 %v3811, %v1527
    %v3823 = vadd.f32 %v3789, %v3821
    %v3824 = vadd.f32 %v3790, %v3822
    %v3825 = vmul.f32 %v3810, %v1532
    %v3826 = vmul.f32 %v3811, %v1532
    %v3827 = vadd.f32 %v3808, %v3825
    %v3828 = vadd.f32 %v3809, %v3826
    %v3829 = vmul.f32 %v3810, %v1537
    %v3830 = vmul.f32 %v3811, %v1537
    %v3831 = vmul.f32 %v3812, %v1537
    %v3835 = vrot.slane %v3829, 2
    %v3836 = vrot.slane %v3830, 2
    %v3837 = vsel %vm392, %v3835, %v3836
    %v3838 = vrot.slane %v3831, 2
    %v3839 = vsel %vm392, %v3836, %v3838
    %v3842 = vadd.f32 %v3815, %v3837
    %v3843 = vadd.f32 %v3816, %v3839
    %v3844 = vmul.f32 %v3810, %v1553
    %v3845 = vmul.f32 %v3811, %v1553
    %v3846 = vmul.f32 %v3812, %v1553
    %v3850 = vrot.slane %v3844, 2
    %v3851 = vrot.slane %v3845, 2
    %v3852 = vsel %vm392, %v3850, %v3851
    %v3853 = vrot.slane %v3846, 2
    %v3854 = vsel %vm392, %v3851, %v3853
    %v3857 = vadd.f32 %v3819, %v3852
    %v3858 = vadd.f32 %v3820, %v3854
    %v3859 = vmul.f32 %v3810, %v1569
    %v3860 = vmul.f32 %v3811, %v1569
    %v3861 = vmul.f32 %v3812, %v1569
    %v3865 = vrot.slane %v3859, 2
    %v3866 = vrot.slane %v3860, 2
    %v3867 = vsel %vm392, %v3865, %v3866
    %v3868 = vrot.slane %v3861, 2
    %v3869 = vsel %vm392, %v3866, %v3868
    %v3872 = vadd.f32 %v3823, %v3867
    %v3873 = vadd.f32 %v3824, %v3869
    %v3874 = vmul.f32 %v3810, %v1585
    %v3875 = vmul.f32 %v3811, %v1585
    %v3876 = vmul.f32 %v3812, %v1585
    %v3880 = vrot.slane %v3874, 2
    %v3881 = vrot.slane %v3875, 2
    %v3882 = vsel %vm392, %v3880, %v3881
    %v3883 = vrot.slane %v3876, 2
    %v3884 = vsel %vm392, %v3881, %v3883
    %v3887 = vadd.f32 %v3827, %v3882
    %v3888 = vadd.f32 %v3828, %v3884
    %v3889 = vmul.f32 %v3810, %v1601
    %v3890 = vmul.f32 %v3811, %v1601
    %v3891 = vmul.f32 %v3812, %v1601
    %v3895 = vrot.slane %v3889, 4
    %v3896 = vrot.slane %v3890, 4
    %v3897 = vsel %vm457, %v3895, %v3896
    %v3898 = vrot.slane %v3891, 4
    %v3899 = vsel %vm457, %v3896, %v3898
    %v3902 = vadd.f32 %v3842, %v3897
    %v3903 = vadd.f32 %v3843, %v3899
    %v3904 = vmul.f32 %v3810, %v1617
    %v3905 = vmul.f32 %v3811, %v1617
    %v3906 = vmul.f32 %v3812, %v1617
    %v3910 = vrot.slane %v3904, 4
    %v3911 = vrot.slane %v3905, 4
    %v3912 = vsel %vm457, %v3910, %v3911
    %v3913 = vrot.slane %v3906, 4
    %v3914 = vsel %vm457, %v3911, %v3913
    %v3917 = vadd.f32 %v3857, %v3912
    %v3918 = vadd.f32 %v3858, %v3914
    %v3919 = vmul.f32 %v3810, %v1633
    %v3920 = vmul.f32 %v3811, %v1633
    %v3921 = vmul.f32 %v3812, %v1633
    %v3925 = vrot.slane %v3919, 4
    %v3926 = vrot.slane %v3920, 4
    %v3927 = vsel %vm457, %v3925, %v3926
    %v3928 = vrot.slane %v3921, 4
    %v3929 = vsel %vm457, %v3926, %v3928
    %v3932 = vadd.f32 %v3872, %v3927
    %v3933 = vadd.f32 %v3873, %v3929
    %v3934 = vmul.f32 %v3810, %v1649
    %v3935 = vmul.f32 %v3811, %v1649
    %v3936 = vmul.f32 %v3812, %v1649
    %v3940 = vrot.slane %v3934, 4
    %v3941 = vrot.slane %v3935, 4
    %v3942 = vsel %vm457, %v3940, %v3941
    %v3943 = vrot.slane %v3936, 4
    %v3944 = vsel %vm457, %v3941, %v3943
    %v3947 = vadd.f32 %v3887, %v3942
    %v3948 = vadd.f32 %v3888, %v3944
    %v3949 = vmul.f32 %v3810, %v1665
    %v3950 = vmul.f32 %v3811, %v1665
    %3953 = vrot.lane.b32.xlu0 %v3949, 126
    %v3954 = vpop.permute.xlu0 %3953
    %3955 = vrot.lane.b32.xlu0 %v3950, 126
    %v3956 = vpop.permute.xlu0 %3955
    %v3959 = vadd.f32 %v3902, %v3954
    %v3960 = vadd.f32 %v3903, %v3956
    %v3961 = vmul.f32 %v3810, %v1678
    %v3962 = vmul.f32 %v3811, %v1678
    %3965 = vrot.lane.b32.xlu0 %v3961, 126
    %v3966 = vpop.permute.xlu0 %3965
    %3967 = vrot.lane.b32.xlu0 %v3962, 126
    %v3968 = vpop.permute.xlu0 %3967
    %v3971 = vadd.f32 %v3917, %v3966
    %v3972 = vadd.f32 %v3918, %v3968
    %v3973 = vmul.f32 %v3810, %v1691
    %v3974 = vmul.f32 %v3811, %v1691
    %3977 = vrot.lane.b32.xlu0 %v3973, 126
    %v3978 = vpop.permute.xlu0 %3977
    %3979 = vrot.lane.b32.xlu0 %v3974, 126
    %v3980 = vpop.permute.xlu0 %3979
    %v3983 = vadd.f32 %v3932, %v3978
    %v3984 = vadd.f32 %v3933, %v3980
    %v3985 = vmul.f32 %v3810, %v1704
    %v3986 = vmul.f32 %v3811, %v1704
    %3989 = vrot.lane.b32.xlu0 %v3985, 126
    %v3990 = vpop.permute.xlu0 %3989
    %3991 = vrot.lane.b32.xlu0 %v3986, 126
    %v3992 = vpop.permute.xlu0 %3991
    %v3995 = vadd.f32 %v3947, %v3990
    %v3996 = vadd.f32 %v3948, %v3992
    %v3997 = vmul.f32 %v3810, %v1717
    %v3998 = vmul.f32 %v3811, %v1717
    %v3999 = vmul.f32 %v3812, %v1717
    %v4003 = vrot.slane %v3997, 2
    %v4004 = vrot.slane %v3998, 2
    %v4005 = vsel %vm392, %v4003, %v4004
    %v4006 = vrot.slane %v3999, 2
    %v4007 = vsel %vm392, %v4004, %v4006
    %4008 = vrot.lane.b32.xlu0 %v4005, 126
    %v4009 = vpop.permute.xlu0 %4008
    %4010 = vrot.lane.b32.xlu0 %v4007, 126
    %v4011 = vpop.permute.xlu0 %4010
    %v4014 = vadd.f32 %v3959, %v4009
    %v4015 = vadd.f32 %v3960, %v4011
    %v4016 = vmul.f32 %v3810, %v1737
    %v4017 = vmul.f32 %v3811, %v1737
    %v4018 = vmul.f32 %v3812, %v1737
    %v4022 = vrot.slane %v4016, 2
    %v4023 = vrot.slane %v4017, 2
    %v4024 = vsel %vm392, %v4022, %v4023
    %v4025 = vrot.slane %v4018, 2
    %v4026 = vsel %vm392, %v4023, %v4025
    %4027 = vrot.lane.b32.xlu0 %v4024, 126
    %v4028 = vpop.permute.xlu0 %4027
    %4029 = vrot.lane.b32.xlu0 %v4026, 126
    %v4030 = vpop.permute.xlu0 %4029
    %v4033 = vadd.f32 %v3971, %v4028
    %v4034 = vadd.f32 %v3972, %v4030
    %v4035 = vmul.f32 %v3810, %v1757
    %v4036 = vmul.f32 %v3811, %v1757
    %v4037 = vmul.f32 %v3812, %v1757
    %v4041 = vrot.slane %v4035, 2
    %v4042 = vrot.slane %v4036, 2
    %v4043 = vsel %vm392, %v4041, %v4042
    %v4044 = vrot.slane %v4037, 2
    %v4045 = vsel %vm392, %v4042, %v4044
    %4046 = vrot.lane.b32.xlu0 %v4043, 126
    %v4047 = vpop.permute.xlu0 %4046
    %4048 = vrot.lane.b32.xlu0 %v4045, 126
    %v4049 = vpop.permute.xlu0 %4048
    %v4052 = vadd.f32 %v3983, %v4047
    %v4053 = vadd.f32 %v3984, %v4049
    %v4054 = vmul.f32 %v3810, %v1777
    %v4055 = vmul.f32 %v3811, %v1777
    %v4056 = vmul.f32 %v3812, %v1777
    %v4060 = vrot.slane %v4054, 2
    %v4061 = vrot.slane %v4055, 2
    %v4062 = vsel %vm392, %v4060, %v4061
    %v4063 = vrot.slane %v4056, 2
    %v4064 = vsel %vm392, %v4061, %v4063
    %4065 = vrot.lane.b32.xlu0 %v4062, 126
    %v4066 = vpop.permute.xlu0 %4065
    %4067 = vrot.lane.b32.xlu0 %v4064, 126
    %v4068 = vpop.permute.xlu0 %4067
    %v4071 = vadd.f32 %v3995, %v4066
    %v4072 = vadd.f32 %v3996, %v4068
    %v4073 = vmul.f32 %v3810, %v1797
    %v4074 = vmul.f32 %v3811, %v1797
    %v4075 = vmul.f32 %v3812, %v1797
    %v4079 = vrot.slane %v4073, 4
    %v4080 = vrot.slane %v4074, 4
    %v4081 = vsel %vm457, %v4079, %v4080
    %v4082 = vrot.slane %v4075, 4
    %v4083 = vsel %vm457, %v4080, %v4082
    %4084 = vrot.lane.b32.xlu0 %v4081, 126
    %v4085 = vpop.permute.xlu0 %4084
    %4086 = vrot.lane.b32.xlu0 %v4083, 126
    %v4087 = vpop.permute.xlu0 %4086
    %v4090 = vadd.f32 %v4014, %v4085
    %v4091 = vadd.f32 %v4015, %v4087
    %v4092 = vmul.f32 %v3810, %v1817
    %v4093 = vmul.f32 %v3811, %v1817
    %v4094 = vmul.f32 %v3812, %v1817
    %v4098 = vrot.slane %v4092, 4
    %v4099 = vrot.slane %v4093, 4
    %v4100 = vsel %vm457, %v4098, %v4099
    %v4101 = vrot.slane %v4094, 4
    %v4102 = vsel %vm457, %v4099, %v4101
    %4103 = vrot.lane.b32.xlu0 %v4100, 126
    %v4104 = vpop.permute.xlu0 %4103
    %4105 = vrot.lane.b32.xlu0 %v4102, 126
    %v4106 = vpop.permute.xlu0 %4105
    %v4109 = vadd.f32 %v4033, %v4104
    %v4110 = vadd.f32 %v4034, %v4106
    %v4111 = vmul.f32 %v3810, %v1837
    %v4112 = vmul.f32 %v3811, %v1837
    %v4113 = vmul.f32 %v3812, %v1837
    %v4117 = vrot.slane %v4111, 4
    %v4118 = vrot.slane %v4112, 4
    %v4119 = vsel %vm457, %v4117, %v4118
    %v4120 = vrot.slane %v4113, 4
    %v4121 = vsel %vm457, %v4118, %v4120
    %4122 = vrot.lane.b32.xlu0 %v4119, 126
    %v4123 = vpop.permute.xlu0 %4122
    %4124 = vrot.lane.b32.xlu0 %v4121, 126
    %v4125 = vpop.permute.xlu0 %4124
    %v4128 = vadd.f32 %v4052, %v4123
    %v4129 = vadd.f32 %v4053, %v4125
    %v4130 = vmul.f32 %v3810, %v1857
    %v4131 = vmul.f32 %v3811, %v1857
    %v4132 = vmul.f32 %v3812, %v1857
    %v4136 = vrot.slane %v4130, 4
    %v4137 = vrot.slane %v4131, 4
    %v4138 = vsel %vm457, %v4136, %v4137
    %v4139 = vrot.slane %v4132, 4
    %v4140 = vsel %vm457, %v4137, %v4139
    %4141 = vrot.lane.b32.xlu0 %v4138, 126
    %v4142 = vpop.permute.xlu0 %4141
    %4143 = vrot.lane.b32.xlu0 %v4140, 126
    %v4144 = vpop.permute.xlu0 %4143
    %v4147 = vadd.f32 %v4071, %v4142
    %v4148 = vadd.f32 %v4072, %v4144
    %v4149 = vmul.f32 %v3810, %v1877
    %v4150 = vmul.f32 %v3811, %v1877
    %4153 = vrot.lane.b32.xlu0 %v4149, 124
    %v4154 = vpop.permute.xlu0 %4153
    %4155 = vrot.lane.b32.xlu0 %v4150, 124
    %v4156 = vpop.permute.xlu0 %4155
    %v4159 = vadd.f32 %v4090, %v4154
    %v4160 = vadd.f32 %v4091, %v4156
    %v4161 = vmul.f32 %v3810, %v1890
    %v4162 = vmul.f32 %v3811, %v1890
    %4165 = vrot.lane.b32.xlu0 %v4161, 124
    %v4166 = vpop.permute.xlu0 %4165
    %4167 = vrot.lane.b32.xlu0 %v4162, 124
    %v4168 = vpop.permute.xlu0 %4167
    %v4171 = vadd.f32 %v4109, %v4166
    %v4172 = vadd.f32 %v4110, %v4168
    %v4173 = vmul.f32 %v3810, %v1903
    %v4174 = vmul.f32 %v3811, %v1903
    %4177 = vrot.lane.b32.xlu0 %v4173, 124
    %v4178 = vpop.permute.xlu0 %4177
    %4179 = vrot.lane.b32.xlu0 %v4174, 124
    %v4180 = vpop.permute.xlu0 %4179
    %v4183 = vadd.f32 %v4128, %v4178
    %v4184 = vadd.f32 %v4129, %v4180
    %v4185 = vmul.f32 %v3810, %v1916
    %v4186 = vmul.f32 %v3811, %v1916
    %4189 = vrot.lane.b32.xlu0 %v4185, 124
    %v4190 = vpop.permute.xlu0 %4189
    %4191 = vrot.lane.b32.xlu0 %v4186, 124
    %v4192 = vpop.permute.xlu0 %4191
    %v4195 = vadd.f32 %v4147, %v4190
    %v4196 = vadd.f32 %v4148, %v4192
    %v4197 = vmul.f32 %v3810, %v1929
    %v4198 = vmul.f32 %v3811, %v1929
    %v4199 = vmul.f32 %v3812, %v1929
    %v4203 = vrot.slane %v4197, 2
    %v4204 = vrot.slane %v4198, 2
    %v4205 = vsel %vm392, %v4203, %v4204
    %v4206 = vrot.slane %v4199, 2
    %v4207 = vsel %vm392, %v4204, %v4206
    %4208 = vrot.lane.b32.xlu0 %v4205, 124
    %v4209 = vpop.permute.xlu0 %4208
    %4210 = vrot.lane.b32.xlu0 %v4207, 124
    %v4211 = vpop.permute.xlu0 %4210
    %v4214 = vadd.f32 %v4159, %v4209
    %v4215 = vadd.f32 %v4160, %v4211
    %v4216 = vmul.f32 %v3810, %v1949
    %v4217 = vmul.f32 %v3811, %v1949
    %v4218 = vmul.f32 %v3812, %v1949
    %v4222 = vrot.slane %v4216, 2
    %v4223 = vrot.slane %v4217, 2
    %v4224 = vsel %vm392, %v4222, %v4223
    %v4225 = vrot.slane %v4218, 2
    %v4226 = vsel %vm392, %v4223, %v4225
    %4227 = vrot.lane.b32.xlu0 %v4224, 124
    %v4228 = vpop.permute.xlu0 %4227
    %4229 = vrot.lane.b32.xlu0 %v4226, 124
    %v4230 = vpop.permute.xlu0 %4229
    %v4233 = vadd.f32 %v4171, %v4228
    %v4234 = vadd.f32 %v4172, %v4230
    %v4235 = vmul.f32 %v3810, %v1969
    %v4236 = vmul.f32 %v3811, %v1969
    %v4237 = vmul.f32 %v3812, %v1969
    %v4241 = vrot.slane %v4235, 2
    %v4242 = vrot.slane %v4236, 2
    %v4243 = vsel %vm392, %v4241, %v4242
    %v4244 = vrot.slane %v4237, 2
    %v4245 = vsel %vm392, %v4242, %v4244
    %4246 = vrot.lane.b32.xlu0 %v4243, 124
    %v4247 = vpop.permute.xlu0 %4246
    %4248 = vrot.lane.b32.xlu0 %v4245, 124
    %v4249 = vpop.permute.xlu0 %4248
    %v4252 = vadd.f32 %v4183, %v4247
    %v4253 = vadd.f32 %v4184, %v4249
    %v4254 = vmul.f32 %v3810, %v1989
    %v4255 = vmul.f32 %v3811, %v1989
    %v4256 = vmul.f32 %v3812, %v1989
    %v4260 = vrot.slane %v4254, 2
    %v4261 = vrot.slane %v4255, 2
    %v4262 = vsel %vm392, %v4260, %v4261
    %v4263 = vrot.slane %v4256, 2
    %v4264 = vsel %vm392, %v4261, %v4263
    %4265 = vrot.lane.b32.xlu0 %v4262, 124
    %v4266 = vpop.permute.xlu0 %4265
    %4267 = vrot.lane.b32.xlu0 %v4264, 124
    %v4268 = vpop.permute.xlu0 %4267
    %v4271 = vadd.f32 %v4195, %v4266
    %v4272 = vadd.f32 %v4196, %v4268
    %v4273 = vmul.f32 %v3810, %v2009
    %v4274 = vmul.f32 %v3811, %v2009
    %v4275 = vmul.f32 %v3812, %v2009
    %v4279 = vrot.slane %v4273, 4
    %v4280 = vrot.slane %v4274, 4
    %v4281 = vsel %vm457, %v4279, %v4280
    %v4282 = vrot.slane %v4275, 4
    %v4283 = vsel %vm457, %v4280, %v4282
    %4284 = vrot.lane.b32.xlu0 %v4281, 124
    %v4285 = vpop.permute.xlu0 %4284
    %4286 = vrot.lane.b32.xlu0 %v4283, 124
    %v4287 = vpop.permute.xlu0 %4286
    %v4290 = vadd.f32 %v4214, %v4285
    %v4291 = vadd.f32 %v4215, %v4287
    %v4292 = vmul.f32 %v3810, %v2029
    %v4293 = vmul.f32 %v3811, %v2029
    %v4294 = vmul.f32 %v3812, %v2029
    %v4298 = vrot.slane %v4292, 4
    %v4299 = vrot.slane %v4293, 4
    %v4300 = vsel %vm457, %v4298, %v4299
    %v4301 = vrot.slane %v4294, 4
    %v4302 = vsel %vm457, %v4299, %v4301
    %4303 = vrot.lane.b32.xlu0 %v4300, 124
    %v4304 = vpop.permute.xlu0 %4303
    %4305 = vrot.lane.b32.xlu0 %v4302, 124
    %v4306 = vpop.permute.xlu0 %4305
    %v4309 = vadd.f32 %v4233, %v4304
    %v4310 = vadd.f32 %v4234, %v4306
    %v4311 = vmul.f32 %v3810, %v2049
    %v4312 = vmul.f32 %v3811, %v2049
    %v4313 = vmul.f32 %v3812, %v2049
    %v4317 = vrot.slane %v4311, 4
    %v4318 = vrot.slane %v4312, 4
    %v4319 = vsel %vm457, %v4317, %v4318
    %v4320 = vrot.slane %v4313, 4
    %v4321 = vsel %vm457, %v4318, %v4320
    %4322 = vrot.lane.b32.xlu0 %v4319, 124
    %v4323 = vpop.permute.xlu0 %4322
    %4324 = vrot.lane.b32.xlu0 %v4321, 124
    %v4325 = vpop.permute.xlu0 %4324
    %v4328 = vadd.f32 %v4252, %v4323
    %v4329 = vadd.f32 %v4253, %v4325
    %v4330 = vmul.f32 %v3810, %v2069
    %v4331 = vmul.f32 %v3811, %v2069
    %v4332 = vmul.f32 %v3812, %v2069
    %v4336 = vrot.slane %v4330, 4
    %v4337 = vrot.slane %v4331, 4
    %v4338 = vsel %vm457, %v4336, %v4337
    %v4339 = vrot.slane %v4332, 4
    %v4340 = vsel %vm457, %v4337, %v4339
    %4341 = vrot.lane.b32.xlu0 %v4338, 124
    %v4342 = vpop.permute.xlu0 %4341
    %4343 = vrot.lane.b32.xlu0 %v4340, 124
    %v4344 = vpop.permute.xlu0 %4343
    %v4347 = vadd.f32 %v4271, %v4342
    %v4348 = vadd.f32 %v4272, %v4344
    %v4349 = vld [vmem:[%s215] sm:$0xff]
    %v4350 = vld [vmem:[%s215 + $0x8] sm:$0xff]
    %v4351 = vld [vmem:[%s215 + $0x10] sm:$0xf]
    %v4352 = vmul.f32 %v4349, %v2092
    %v4353 = vmul.f32 %v4350, %v2092
    %v4354 = vadd.f32 %v4290, %v4352
    %v4355 = vadd.f32 %v4291, %v4353
    %v4356 = vmul.f32 %v4349, %v2097
    %v4357 = vmul.f32 %v4350, %v2097
    %v4358 = vadd.f32 %v4309, %v4356
    %v4359 = vadd.f32 %v4310, %v4357
    %v4360 = vmul.f32 %v4349, %v2102
    %v4361 = vmul.f32 %v4350, %v2102
    %v4362 = vadd.f32 %v4328, %v4360
    %v4363 = vadd.f32 %v4329, %v4361
    %v4364 = vmul.f32 %v4349, %v2107
    %v4365 = vmul.f32 %v4350, %v2107
    %v4366 = vadd.f32 %v4347, %v4364
    %v4367 = vadd.f32 %v4348, %v4365
    %v4368 = vmul.f32 %v4349, %v2112
    %v4369 = vmul.f32 %v4350, %v2112
    %v4370 = vmul.f32 %v4351, %v2112
    %v4374 = vrot.slane %v4368, 2
    %v4375 = vrot.slane %v4369, 2
    %v4376 = vsel %vm392, %v4374, %v4375
    %v4377 = vrot.slane %v4370, 2
    %v4378 = vsel %vm392, %v4375, %v4377
    %v4381 = vadd.f32 %v4354, %v4376
    %v4382 = vadd.f32 %v4355, %v4378
    %v4383 = vmul.f32 %v4349, %v2128
    %v4384 = vmul.f32 %v4350, %v2128
    %v4385 = vmul.f32 %v4351, %v2128
    %v4389 = vrot.slane %v4383, 2
    %v4390 = vrot.slane %v4384, 2
    %v4391 = vsel %vm392, %v4389, %v4390
    %v4392 = vrot.slane %v4385, 2
    %v4393 = vsel %vm392, %v4390, %v4392
    %v4396 = vadd.f32 %v4358, %v4391
    %v4397 = vadd.f32 %v4359, %v4393
    %v4398 = vmul.f32 %v4349, %v2144
    %v4399 = vmul.f32 %v4350, %v2144
    %v4400 = vmul.f32 %v4351, %v2144
    %v4404 = vrot.slane %v4398, 2
    %v4405 = vrot.slane %v4399, 2
    %v4406 = vsel %vm392, %v4404, %v4405
    %v4407 = vrot.slane %v4400, 2
    %v4408 = vsel %vm392, %v4405, %v4407
    %v4411 = vadd.f32 %v4362, %v4406
    %v4412 = vadd.f32 %v4363, %v4408
    %v4413 = vmul.f32 %v4349, %v2160
    %v4414 = vmul.f32 %v4350, %v2160
    %v4415 = vmul.f32 %v4351, %v2160
    %v4419 = vrot.slane %v4413, 2
    %v4420 = vrot.slane %v4414, 2
    %v4421 = vsel %vm392, %v4419, %v4420
    %v4422 = vrot.slane %v4415, 2
    %v4423 = vsel %vm392, %v4420, %v4422
    %v4426 = vadd.f32 %v4366, %v4421
    %v4427 = vadd.f32 %v4367, %v4423
    %v4428 = vmul.f32 %v4349, %v2176
    %v4429 = vmul.f32 %v4350, %v2176
    %v4430 = vmul.f32 %v4351, %v2176
    %v4434 = vrot.slane %v4428, 4
    %v4435 = vrot.slane %v4429, 4
    %v4436 = vsel %vm457, %v4434, %v4435
    %v4437 = vrot.slane %v4430, 4
    %v4438 = vsel %vm457, %v4435, %v4437
    %v4441 = vadd.f32 %v4381, %v4436
    %v4442 = vadd.f32 %v4382, %v4438
    %v4443 = vmul.f32 %v4349, %v2192
    %v4444 = vmul.f32 %v4350, %v2192
    %v4445 = vmul.f32 %v4351, %v2192
    %v4449 = vrot.slane %v4443, 4
    %v4450 = vrot.slane %v4444, 4
    %v4451 = vsel %vm457, %v4449, %v4450
    %v4452 = vrot.slane %v4445, 4
    %v4453 = vsel %vm457, %v4450, %v4452
    %v4456 = vadd.f32 %v4396, %v4451
    %v4457 = vadd.f32 %v4397, %v4453
    %v4458 = vmul.f32 %v4349, %v2208
    %v4459 = vmul.f32 %v4350, %v2208
    %v4460 = vmul.f32 %v4351, %v2208
    %v4464 = vrot.slane %v4458, 4
    %v4465 = vrot.slane %v4459, 4
    %v4466 = vsel %vm457, %v4464, %v4465
    %v4467 = vrot.slane %v4460, 4
    %v4468 = vsel %vm457, %v4465, %v4467
    %v4471 = vadd.f32 %v4411, %v4466
    %v4472 = vadd.f32 %v4412, %v4468
    %v4473 = vmul.f32 %v4349, %v2224
    %v4474 = vmul.f32 %v4350, %v2224
    %v4475 = vmul.f32 %v4351, %v2224
    %v4479 = vrot.slane %v4473, 4
    %v4480 = vrot.slane %v4474, 4
    %v4481 = vsel %vm457, %v4479, %v4480
    %v4482 = vrot.slane %v4475, 4
    %v4483 = vsel %vm457, %v4480, %v4482
    %v4486 = vadd.f32 %v4426, %v4481
    %v4487 = vadd.f32 %v4427, %v4483
    %v4488 = vmul.f32 %v4349, %v2240
    %v4489 = vmul.f32 %v4350, %v2240
    %4492 = vrot.lane.b32.xlu0 %v4488, 126
    %v4493 = vpop.permute.xlu0 %4492
    %4494 = vrot.lane.b32.xlu0 %v4489, 126
    %v4495 = vpop.permute.xlu0 %4494
    %v4498 = vadd.f32 %v4441, %v4493
    %v4499 = vadd.f32 %v4442, %v4495
    %v4500 = vmul.f32 %v4349, %v2253
    %v4501 = vmul.f32 %v4350, %v2253
    %4504 = vrot.lane.b32.xlu0 %v4500, 126
    %v4505 = vpop.permute.xlu0 %4504
    %4506 = vrot.lane.b32.xlu0 %v4501, 126
    %v4507 = vpop.permute.xlu0 %4506
    %v4510 = vadd.f32 %v4456, %v4505
    %v4511 = vadd.f32 %v4457, %v4507
    %v4512 = vmul.f32 %v4349, %v2266
    %v4513 = vmul.f32 %v4350, %v2266
    %4516 = vrot.lane.b32.xlu0 %v4512, 126
    %v4517 = vpop.permute.xlu0 %4516
    %4518 = vrot.lane.b32.xlu0 %v4513, 126
    %v4519 = vpop.permute.xlu0 %4518
    %v4522 = vadd.f32 %v4471, %v4517
    %v4523 = vadd.f32 %v4472, %v4519
    %v4524 = vmul.f32 %v4349, %v2279
    %v4525 = vmul.f32 %v4350, %v2279
    %4528 = vrot.lane.b32.xlu0 %v4524, 126
    %v4529 = vpop.permute.xlu0 %4528
    %4530 = vrot.lane.b32.xlu0 %v4525, 126
    %v4531 = vpop.permute.xlu0 %4530
    %v4534 = vadd.f32 %v4486, %v4529
    %v4535 = vadd.f32 %v4487, %v4531
    %v4536 = vmul.f32 %v4349, %v2292
    %v4537 = vmul.f32 %v4350, %v2292
    %v4538 = vmul.f32 %v4351, %v2292
    %v4542 = vrot.slane %v4536, 2
    %v4543 = vrot.slane %v4537, 2
    %v4544 = vsel %vm392, %v4542, %v4543
    %v4545 = vrot.slane %v4538, 2
    %v4546 = vsel %vm392, %v4543, %v4545
    %4547 = vrot.lane.b32.xlu0 %v4544, 126
    %v4548 = vpop.permute.xlu0 %4547
    %4549 = vrot.lane.b32.xlu0 %v4546, 126
    %v4550 = vpop.permute.xlu0 %4549
    %v4553 = vadd.f32 %v4498, %v4548
    %v4554 = vadd.f32 %v4499, %v4550
    %v4555 = vmul.f32 %v4349, %v2312
    %v4556 = vmul.f32 %v4350, %v2312
    %v4557 = vmul.f32 %v4351, %v2312
    %v4561 = vrot.slane %v4555, 2
    %v4562 = vrot.slane %v4556, 2
    %v4563 = vsel %vm392, %v4561, %v4562
    %v4564 = vrot.slane %v4557, 2
    %v4565 = vsel %vm392, %v4562, %v4564
    %4566 = vrot.lane.b32.xlu0 %v4563, 126
    %v4567 = vpop.permute.xlu0 %4566
    %4568 = vrot.lane.b32.xlu0 %v4565, 126
    %v4569 = vpop.permute.xlu0 %4568
    %v4572 = vadd.f32 %v4510, %v4567
    %v4573 = vadd.f32 %v4511, %v4569
    %v4574 = vmul.f32 %v4349, %v2332
    %v4575 = vmul.f32 %v4350, %v2332
    %v4576 = vmul.f32 %v4351, %v2332
    %v4580 = vrot.slane %v4574, 2
    %v4581 = vrot.slane %v4575, 2
    %v4582 = vsel %vm392, %v4580, %v4581
    %v4583 = vrot.slane %v4576, 2
    %v4584 = vsel %vm392, %v4581, %v4583
    %4585 = vrot.lane.b32.xlu0 %v4582, 126
    %v4586 = vpop.permute.xlu0 %4585
    %4587 = vrot.lane.b32.xlu0 %v4584, 126
    %v4588 = vpop.permute.xlu0 %4587
    %v4591 = vadd.f32 %v4522, %v4586
    %v4592 = vadd.f32 %v4523, %v4588
    %v4593 = vmul.f32 %v4349, %v2352
    %v4594 = vmul.f32 %v4350, %v2352
    %v4595 = vmul.f32 %v4351, %v2352
    %v4599 = vrot.slane %v4593, 2
    %v4600 = vrot.slane %v4594, 2
    %v4601 = vsel %vm392, %v4599, %v4600
    %v4602 = vrot.slane %v4595, 2
    %v4603 = vsel %vm392, %v4600, %v4602
    %4604 = vrot.lane.b32.xlu0 %v4601, 126
    %v4605 = vpop.permute.xlu0 %4604
    %4606 = vrot.lane.b32.xlu0 %v4603, 126
    %v4607 = vpop.permute.xlu0 %4606
    %v4610 = vadd.f32 %v4534, %v4605
    %v4611 = vadd.f32 %v4535, %v4607
    %v4612 = vmul.f32 %v4349, %v2372
    %v4613 = vmul.f32 %v4350, %v2372
    %v4614 = vmul.f32 %v4351, %v2372
    %v4618 = vrot.slane %v4612, 4
    %v4619 = vrot.slane %v4613, 4
    %v4620 = vsel %vm457, %v4618, %v4619
    %v4621 = vrot.slane %v4614, 4
    %v4622 = vsel %vm457, %v4619, %v4621
    %4623 = vrot.lane.b32.xlu0 %v4620, 126
    %v4624 = vpop.permute.xlu0 %4623
    %4625 = vrot.lane.b32.xlu0 %v4622, 126
    %v4626 = vpop.permute.xlu0 %4625
    %v4629 = vadd.f32 %v4553, %v4624
    %v4630 = vadd.f32 %v4554, %v4626
    %v4631 = vmul.f32 %v4349, %v2392
    %v4632 = vmul.f32 %v4350, %v2392
    %v4633 = vmul.f32 %v4351, %v2392
    %v4637 = vrot.slane %v4631, 4
    %v4638 = vrot.slane %v4632, 4
    %v4639 = vsel %vm457, %v4637, %v4638
    %v4640 = vrot.slane %v4633, 4
    %v4641 = vsel %vm457, %v4638, %v4640
    %4642 = vrot.lane.b32.xlu0 %v4639, 126
    %v4643 = vpop.permute.xlu0 %4642
    %4644 = vrot.lane.b32.xlu0 %v4641, 126
    %v4645 = vpop.permute.xlu0 %4644
    %v4648 = vadd.f32 %v4572, %v4643
    %v4649 = vadd.f32 %v4573, %v4645
    %v4650 = vmul.f32 %v4349, %v2412
    %v4651 = vmul.f32 %v4350, %v2412
    %v4652 = vmul.f32 %v4351, %v2412
    %v4656 = vrot.slane %v4650, 4
    %v4657 = vrot.slane %v4651, 4
    %v4658 = vsel %vm457, %v4656, %v4657
    %v4659 = vrot.slane %v4652, 4
    %v4660 = vsel %vm457, %v4657, %v4659
    %4661 = vrot.lane.b32.xlu0 %v4658, 126
    %v4662 = vpop.permute.xlu0 %4661
    %4663 = vrot.lane.b32.xlu0 %v4660, 126
    %v4664 = vpop.permute.xlu0 %4663
    %v4667 = vadd.f32 %v4591, %v4662
    %v4668 = vadd.f32 %v4592, %v4664
    %v4669 = vmul.f32 %v4349, %v2432
    %v4670 = vmul.f32 %v4350, %v2432
    %v4671 = vmul.f32 %v4351, %v2432
    %v4675 = vrot.slane %v4669, 4
    %v4676 = vrot.slane %v4670, 4
    %v4677 = vsel %vm457, %v4675, %v4676
    %v4678 = vrot.slane %v4671, 4
    %v4679 = vsel %vm457, %v4676, %v4678
    %4680 = vrot.lane.b32.xlu0 %v4677, 126
    %v4681 = vpop.permute.xlu0 %4680
    %4682 = vrot.lane.b32.xlu0 %v4679, 126
    %v4683 = vpop.permute.xlu0 %4682
    %v4686 = vadd.f32 %v4610, %v4681
    %v4687 = vadd.f32 %v4611, %v4683
    %v4688 = vmul.f32 %v4349, %v2452
    %v4689 = vmul.f32 %v4350, %v2452
    %4692 = vrot.lane.b32.xlu0 %v4688, 124
    %v4693 = vpop.permute.xlu0 %4692
    %4694 = vrot.lane.b32.xlu0 %v4689, 124
    %v4695 = vpop.permute.xlu0 %4694
    %v4698 = vadd.f32 %v4629, %v4693
    %v4699 = vadd.f32 %v4630, %v4695
    %v4700 = vmul.f32 %v4349, %v2465
    %v4701 = vmul.f32 %v4350, %v2465
    %4704 = vrot.lane.b32.xlu0 %v4700, 124
    %v4705 = vpop.permute.xlu0 %4704
    %4706 = vrot.lane.b32.xlu0 %v4701, 124
    %v4707 = vpop.permute.xlu0 %4706
    %v4710 = vadd.f32 %v4648, %v4705
    %v4711 = vadd.f32 %v4649, %v4707
    %v4712 = vmul.f32 %v4349, %v2478
    %v4713 = vmul.f32 %v4350, %v2478
    %4716 = vrot.lane.b32.xlu0 %v4712, 124
    %v4717 = vpop.permute.xlu0 %4716
    %4718 = vrot.lane.b32.xlu0 %v4713, 124
    %v4719 = vpop.permute.xlu0 %4718
    %v4722 = vadd.f32 %v4667, %v4717
    %v4723 = vadd.f32 %v4668, %v4719
    %v4724 = vmul.f32 %v4349, %v2491
    %v4725 = vmul.f32 %v4350, %v2491
    %4728 = vrot.lane.b32.xlu0 %v4724, 124
    %v4729 = vpop.permute.xlu0 %4728
    %4730 = vrot.lane.b32.xlu0 %v4725, 124
    %v4731 = vpop.permute.xlu0 %4730
    %v4734 = vadd.f32 %v4686, %v4729
    %v4735 = vadd.f32 %v4687, %v4731
    %v4736 = vmul.f32 %v4349, %v2504
    %v4737 = vmul.f32 %v4350, %v2504
    %v4738 = vmul.f32 %v4351, %v2504
    %v4742 = vrot.slane %v4736, 2
    %v4743 = vrot.slane %v4737, 2
    %v4744 = vsel %vm392, %v4742, %v4743
    %v4745 = vrot.slane %v4738, 2
    %v4746 = vsel %vm392, %v4743, %v4745
    %4747 = vrot.lane.b32.xlu0 %v4744, 124
    %v4748 = vpop.permute.xlu0 %4747
    %4749 = vrot.lane.b32.xlu0 %v4746, 124
    %v4750 = vpop.permute.xlu0 %4749
    %v4753 = vadd.f32 %v4698, %v4748
    %v4754 = vadd.f32 %v4699, %v4750
    %v4755 = vmul.f32 %v4349, %v2524
    %v4756 = vmul.f32 %v4350, %v2524
    %v4757 = vmul.f32 %v4351, %v2524
    %v4761 = vrot.slane %v4755, 2
    %v4762 = vrot.slane %v4756, 2
    %v4763 = vsel %vm392, %v4761, %v4762
    %v4764 = vrot.slane %v4757, 2
    %v4765 = vsel %vm392, %v4762, %v4764
    %4766 = vrot.lane.b32.xlu0 %v4763, 124
    %v4767 = vpop.permute.xlu0 %4766
    %4768 = vrot.lane.b32.xlu0 %v4765, 124
    %v4769 = vpop.permute.xlu0 %4768
    %v4772 = vadd.f32 %v4710, %v4767
    %v4773 = vadd.f32 %v4711, %v4769
    %v4774 = vmul.f32 %v4349, %v2544
    %v4775 = vmul.f32 %v4350, %v2544
    %v4776 = vmul.f32 %v4351, %v2544
    %v4780 = vrot.slane %v4774, 2
    %v4781 = vrot.slane %v4775, 2
    %v4782 = vsel %vm392, %v4780, %v4781
    %v4783 = vrot.slane %v4776, 2
    %v4784 = vsel %vm392, %v4781, %v4783
    %4785 = vrot.lane.b32.xlu0 %v4782, 124
    %v4786 = vpop.permute.xlu0 %4785
    %4787 = vrot.lane.b32.xlu0 %v4784, 124
    %v4788 = vpop.permute.xlu0 %4787
    %v4791 = vadd.f32 %v4722, %v4786
    %v4792 = vadd.f32 %v4723, %v4788
    %v4793 = vmul.f32 %v4349, %v2564
    %v4794 = vmul.f32 %v4350, %v2564
    %v4795 = vmul.f32 %v4351, %v2564
    %v4799 = vrot.slane %v4793, 2
    %v4800 = vrot.slane %v4794, 2
    %v4801 = vsel %vm392, %v4799, %v4800
    %v4802 = vrot.slane %v4795, 2
    %v4803 = vsel %vm392, %v4800, %v4802
    %4804 = vrot.lane.b32.xlu0 %v4801, 124
    %v4805 = vpop.permute.xlu0 %4804
    %4806 = vrot.lane.b32.xlu0 %v4803, 124
    %v4807 = vpop.permute.xlu0 %4806
    %v4810 = vadd.f32 %v4734, %v4805
    %v4811 = vadd.f32 %v4735, %v4807
    %v4812 = vmul.f32 %v4349, %v2584
    %v4813 = vmul.f32 %v4350, %v2584
    %v4814 = vmul.f32 %v4351, %v2584
    %v4818 = vrot.slane %v4812, 4
    %v4819 = vrot.slane %v4813, 4
    %v4820 = vsel %vm457, %v4818, %v4819
    %v4821 = vrot.slane %v4814, 4
    %v4822 = vsel %vm457, %v4819, %v4821
    %4823 = vrot.lane.b32.xlu0 %v4820, 124
    %v4824 = vpop.permute.xlu0 %4823
    %4825 = vrot.lane.b32.xlu0 %v4822, 124
    %v4826 = vpop.permute.xlu0 %4825
    %v4829 = vadd.f32 %v4753, %v4824
    %v4830 = vadd.f32 %v4754, %v4826
    %v4831 = vmul.f32 %v4349, %v2604
    %v4832 = vmul.f32 %v4350, %v2604
    %v4833 = vmul.f32 %v4351, %v2604
    %v4837 = vrot.slane %v4831, 4
    %v4838 = vrot.slane %v4832, 4
    %v4839 = vsel %vm457, %v4837, %v4838
    %v4840 = vrot.slane %v4833, 4
    %v4841 = vsel %vm457, %v4838, %v4840
    %4842 = vrot.lane.b32.xlu0 %v4839, 124
    %v4843 = vpop.permute.xlu0 %4842
    %4844 = vrot.lane.b32.xlu0 %v4841, 124
    %v4845 = vpop.permute.xlu0 %4844
    %v4848 = vadd.f32 %v4772, %v4843
    %v4849 = vadd.f32 %v4773, %v4845
    %v4850 = vmul.f32 %v4349, %v2624
    %v4851 = vmul.f32 %v4350, %v2624
    %v4852 = vmul.f32 %v4351, %v2624
    %v4856 = vrot.slane %v4850, 4
    %v4857 = vrot.slane %v4851, 4
    %v4858 = vsel %vm457, %v4856, %v4857
    %v4859 = vrot.slane %v4852, 4
    %v4860 = vsel %vm457, %v4857, %v4859
    %4861 = vrot.lane.b32.xlu0 %v4858, 124
    %v4862 = vpop.permute.xlu0 %4861
    %4863 = vrot.lane.b32.xlu0 %v4860, 124
    %v4864 = vpop.permute.xlu0 %4863
    %v4867 = vadd.f32 %v4791, %v4862
    %v4868 = vadd.f32 %v4792, %v4864
    %v4869 = vmul.f32 %v4349, %v2644
    %v4870 = vmul.f32 %v4350, %v2644
    %v4871 = vmul.f32 %v4351, %v2644
    %v4875 = vrot.slane %v4869, 4
    %v4876 = vrot.slane %v4870, 4
    %v4877 = vsel %vm457, %v4875, %v4876
    %v4878 = vrot.slane %v4871, 4
    %v4879 = vsel %vm457, %v4876, %v4878
    %4880 = vrot.lane.b32.xlu0 %v4877, 124
    %v4881 = vpop.permute.xlu0 %4880
    %4882 = vrot.lane.b32.xlu0 %v4879, 124
    %v4883 = vpop.permute.xlu0 %4882
    %v4886 = vadd.f32 %v4810, %v4881
    %v4887 = vadd.f32 %v4811, %v4883
    %s4888 = scalar_lea.vmem [#allocation3], 64
    %4889 = vst.msk [vmem:[%s4888] sm:$0xff] %vm2664, %v4829
    %4890 = vst.msk [vmem:[%s4888 + $0x8] sm:$0xff] %vm2664, %v4830
    %v4891 = vsel %vm2664, %v4829, 0.0
    %4892 = vadd.xlane.f32.xlu0 %v4891
    %v4893 = vpop.xlane.xlu0 %4892
    %v4894 = vsel %vm2664, %v4830, 0.0
    %4895 = vadd.xlane.f32.xlu0 %v4894
    %v4896 = vpop.xlane.xlu0 %4895
    %v4897 = vadd.f32 %v4893, %v4896
    %v4898 = vrot.slane %v4897, 4
    %v4899 = vadd.f32 %v4897, %v4898
    %v4900 = vrot.slane %v4899, 2
    %v4901 = vadd.f32 %v4899, %v4900
    %v4902 = vrot.slane %v4901, 1
    %v4903 = vadd.f32 %v4901, %v4902
    %v4904 = vadd.f32 %v2680, %v4903
    %s4905 = scalar_lea.vmem [#allocation3], 80
    %4906 = vst.msk [vmem:[%s4905] sm:$0xff] %vm2664, %v4848
    %4907 = vst.msk [vmem:[%s4905 + $0x8] sm:$0xff] %vm2664, %v4849
    %v4908 = vsel %vm2664, %v4848, 0.0
    %4909 = vadd.xlane.f32.xlu0 %v4908
    %v4910 = vpop.xlane.xlu0 %4909
    %v4911 = vsel %vm2664, %v4849, 0.0
    %4912 = vadd.xlane.f32.xlu0 %v4911
    %v4913 = vpop.xlane.xlu0 %4912
    %v4914 = vadd.f32 %v4910, %v4913
    %v4915 = vrot.slane %v4914, 4
    %v4916 = vadd.f32 %v4914, %v4915
    %v4917 = vrot.slane %v4916, 2
    %v4918 = vadd.f32 %v4916, %v4917
    %v4919 = vrot.slane %v4918, 1
    %v4920 = vadd.f32 %v4918, %v4919
    %v4921 = vadd.f32 %v2697, %v4920
    %s4922 = scalar_lea.vmem [#allocation3], 96
    %4923 = vst.msk [vmem:[%s4922] sm:$0xff] %vm2664, %v4867
    %4924 = vst.msk [vmem:[%s4922 + $0x8] sm:$0xff] %vm2664, %v4868
    %v4925 = vsel %vm2664, %v4867, 0.0
    %4926 = vadd.xlane.f32.xlu0 %v4925
    %v4927 = vpop.xlane.xlu0 %4926
    %v4928 = vsel %vm2664, %v4868, 0.0
    %4929 = vadd.xlane.f32.xlu0 %v4928
    %v4930 = vpop.xlane.xlu0 %4929
    %v4931 = vadd.f32 %v4927, %v4930
    %v4932 = vrot.slane %v4931, 4
    %v4933 = vadd.f32 %v4931, %v4932
    %v4934 = vrot.slane %v4933, 2
    %v4935 = vadd.f32 %v4933, %v4934
    %v4936 = vrot.slane %v4935, 1
    %v4937 = vadd.f32 %v4935, %v4936
    %v4938 = vadd.f32 %v2714, %v4937
    %s4939 = scalar_lea.vmem [#allocation3], 112
    %4940 = vst.msk [vmem:[%s4939] sm:$0xff] %vm2664, %v4886
    %4941 = vst.msk [vmem:[%s4939 + $0x8] sm:$0xff] %vm2664, %v4887
    %v4942 = vsel %vm2664, %v4886, 0.0
    %4943 = vadd.xlane.f32.xlu0 %v4942
    %v4944 = vpop.xlane.xlu0 %4943
    %v4945 = vsel %vm2664, %v4887, 0.0
    %4946 = vadd.xlane.f32.xlu0 %v4945
    %v4947 = vpop.xlane.xlu0 %4946
    %v4948 = vadd.f32 %v4944, %v4947
    %v4949 = vrot.slane %v4948, 4
    %v4950 = vadd.f32 %v4948, %v4949
    %v4951 = vrot.slane %v4950, 2
    %v4952 = vadd.f32 %v4950, %v4951
    %v4953 = vrot.slane %v4952, 1
    %v4954 = vadd.f32 %v4952, %v4953
    %v4955 = vadd.f32 %v2731, %v4954
    %v4956 = vmul.f32 %v4904, 0.001953125
    %v4957 = vmul.f32 %v4921, 0.001953125
    %v4958 = vmul.f32 %v4938, 0.001953125
    %v4959 = vmul.f32 %v4955, 0.001953125
    %v4960 = vld [vmem:[#allocation3] sm:$0xff]
    %v4961 = vld [vmem:[#allocation3 + $0x8] sm:$0xff]
    %v4962 = vsub.f32 %v4960, %v4956
    %v4963 = vsub.f32 %v4961, %v4956
    %v4964 = vmul.f32 %v4962, %v4962
    %v4965 = vmul.f32 %v4963, %v4963
    %v4966 = vsel %vm2664, %v4964, 0.0
    %4967 = vadd.xlane.f32.xlu0 %v4966
    %v4968 = vpop.xlane.xlu0 %4967
    %v4969 = vsel %vm2664, %v4965, 0.0
    %4970 = vadd.xlane.f32.xlu0 %v4969
    %v4971 = vpop.xlane.xlu0 %4970
    %v4972 = vadd.f32 %v4968, %v4971
    %v4973 = vrot.slane %v4972, 4
    %v4974 = vadd.f32 %v4972, %v4973
    %v4975 = vrot.slane %v4974, 2
    %v4976 = vadd.f32 %v4974, %v4975
    %v4977 = vrot.slane %v4976, 1
    %v4978 = vadd.f32 %v4976, %v4977
    %v4979 = vadd.f32 %v4978, 0.0
    %v4980 = vld [vmem:[%s2681] sm:$0xff]
    %v4981 = vld [vmem:[%s2681 + $0x8] sm:$0xff]
    %v4982 = vsub.f32 %v4980, %v4957
    %v4983 = vsub.f32 %v4981, %v4957
    %v4984 = vmul.f32 %v4982, %v4982
    %v4985 = vmul.f32 %v4983, %v4983
    %v4986 = vsel %vm2664, %v4984, 0.0
    %4987 = vadd.xlane.f32.xlu0 %v4986
    %v4988 = vpop.xlane.xlu0 %4987
    %v4989 = vsel %vm2664, %v4985, 0.0
    %4990 = vadd.xlane.f32.xlu0 %v4989
    %v4991 = vpop.xlane.xlu0 %4990
    %v4992 = vadd.f32 %v4988, %v4991
    %v4993 = vrot.slane %v4992, 4
    %v4994 = vadd.f32 %v4992, %v4993
    %v4995 = vrot.slane %v4994, 2
    %v4996 = vadd.f32 %v4994, %v4995
    %v4997 = vrot.slane %v4996, 1
    %v4998 = vadd.f32 %v4996, %v4997
    %v4999 = vadd.f32 %v4998, 0.0
    %v5000 = vld [vmem:[%s2698] sm:$0xff]
    %v5001 = vld [vmem:[%s2698 + $0x8] sm:$0xff]
    %v5002 = vsub.f32 %v5000, %v4958
    %v5003 = vsub.f32 %v5001, %v4958
    %v5004 = vmul.f32 %v5002, %v5002
    %v5005 = vmul.f32 %v5003, %v5003
    %v5006 = vsel %vm2664, %v5004, 0.0
    %5007 = vadd.xlane.f32.xlu0 %v5006
    %v5008 = vpop.xlane.xlu0 %5007
    %v5009 = vsel %vm2664, %v5005, 0.0
    %5010 = vadd.xlane.f32.xlu0 %v5009
    %v5011 = vpop.xlane.xlu0 %5010
    %v5012 = vadd.f32 %v5008, %v5011
    %v5013 = vrot.slane %v5012, 4
    %v5014 = vadd.f32 %v5012, %v5013
    %v5015 = vrot.slane %v5014, 2
    %v5016 = vadd.f32 %v5014, %v5015
    %v5017 = vrot.slane %v5016, 1
    %v5018 = vadd.f32 %v5016, %v5017
    %v5019 = vadd.f32 %v5018, 0.0
    %v5020 = vld [vmem:[%s2715] sm:$0xff]
    %v5021 = vld [vmem:[%s2715 + $0x8] sm:$0xff]
    %v5022 = vsub.f32 %v5020, %v4959
    %v5023 = vsub.f32 %v5021, %v4959
    %v5024 = vmul.f32 %v5022, %v5022
    %v5025 = vmul.f32 %v5023, %v5023
    %v5026 = vsel %vm2664, %v5024, 0.0
    %5027 = vadd.xlane.f32.xlu0 %v5026
    %v5028 = vpop.xlane.xlu0 %5027
    %v5029 = vsel %vm2664, %v5025, 0.0
    %5030 = vadd.xlane.f32.xlu0 %v5029
    %v5031 = vpop.xlane.xlu0 %5030
    %v5032 = vadd.f32 %v5028, %v5031
    %v5033 = vrot.slane %v5032, 4
    %v5034 = vadd.f32 %v5032, %v5033
    %v5035 = vrot.slane %v5034, 2
    %v5036 = vadd.f32 %v5034, %v5035
    %v5037 = vrot.slane %v5036, 1
    %v5038 = vadd.f32 %v5036, %v5037
    %v5039 = vadd.f32 %v5038, 0.0
    %v5040 = vld [vmem:[%s4888] sm:$0xff]
    %v5041 = vld [vmem:[%s4888 + $0x8] sm:$0xff]
    %v5042 = vsub.f32 %v5040, %v4956
    %v5043 = vsub.f32 %v5041, %v4956
    %v5044 = vmul.f32 %v5042, %v5042
    %v5045 = vmul.f32 %v5043, %v5043
    %v5046 = vsel %vm2664, %v5044, 0.0
    %5047 = vadd.xlane.f32.xlu0 %v5046
    %v5048 = vpop.xlane.xlu0 %5047
    %v5049 = vsel %vm2664, %v5045, 0.0
    %5050 = vadd.xlane.f32.xlu0 %v5049
    %v5051 = vpop.xlane.xlu0 %5050
    %v5052 = vadd.f32 %v5048, %v5051
    %v5053 = vrot.slane %v5052, 4
    %v5054 = vadd.f32 %v5052, %v5053
    %v5055 = vrot.slane %v5054, 2
    %v5056 = vadd.f32 %v5054, %v5055
    %v5057 = vrot.slane %v5056, 1
    %v5058 = vadd.f32 %v5056, %v5057
    %v5059 = vadd.f32 %v4979, %v5058
    %v5060 = vld [vmem:[%s4905] sm:$0xff]
    %v5061 = vld [vmem:[%s4905 + $0x8] sm:$0xff]
    %v5062 = vsub.f32 %v5060, %v4957
    %v5063 = vsub.f32 %v5061, %v4957
    %v5064 = vmul.f32 %v5062, %v5062
    %v5065 = vmul.f32 %v5063, %v5063
    %v5066 = vsel %vm2664, %v5064, 0.0
    %5067 = vadd.xlane.f32.xlu0 %v5066
    %v5068 = vpop.xlane.xlu0 %5067
    %v5069 = vsel %vm2664, %v5065, 0.0
    %5070 = vadd.xlane.f32.xlu0 %v5069
    %v5071 = vpop.xlane.xlu0 %5070
    %v5072 = vadd.f32 %v5068, %v5071
    %v5073 = vrot.slane %v5072, 4
    %v5074 = vadd.f32 %v5072, %v5073
    %v5075 = vrot.slane %v5074, 2
    %v5076 = vadd.f32 %v5074, %v5075
    %v5077 = vrot.slane %v5076, 1
    %v5078 = vadd.f32 %v5076, %v5077
    %v5079 = vadd.f32 %v4999, %v5078
    %v5080 = vld [vmem:[%s4922] sm:$0xff]
    %v5081 = vld [vmem:[%s4922 + $0x8] sm:$0xff]
    %v5082 = vsub.f32 %v5080, %v4958
    %v5083 = vsub.f32 %v5081, %v4958
    %v5084 = vmul.f32 %v5082, %v5082
    %v5085 = vmul.f32 %v5083, %v5083
    %v5086 = vsel %vm2664, %v5084, 0.0
    %5087 = vadd.xlane.f32.xlu0 %v5086
    %v5088 = vpop.xlane.xlu0 %5087
    %v5089 = vsel %vm2664, %v5085, 0.0
    %5090 = vadd.xlane.f32.xlu0 %v5089
    %v5091 = vpop.xlane.xlu0 %5090
    %v5092 = vadd.f32 %v5088, %v5091
    %v5093 = vrot.slane %v5092, 4
    %v5094 = vadd.f32 %v5092, %v5093
    %v5095 = vrot.slane %v5094, 2
    %v5096 = vadd.f32 %v5094, %v5095
    %v5097 = vrot.slane %v5096, 1
    %v5098 = vadd.f32 %v5096, %v5097
    %v5099 = vadd.f32 %v5019, %v5098
    %v5100 = vld [vmem:[%s4939] sm:$0xff]
    %v5101 = vld [vmem:[%s4939 + $0x8] sm:$0xff]
    %v5102 = vsub.f32 %v5100, %v4959
    %v5103 = vsub.f32 %v5101, %v4959
    %v5104 = vmul.f32 %v5102, %v5102
    %v5105 = vmul.f32 %v5103, %v5103
    %v5106 = vsel %vm2664, %v5104, 0.0
    %5107 = vadd.xlane.f32.xlu0 %v5106
    %v5108 = vpop.xlane.xlu0 %5107
    %v5109 = vsel %vm2664, %v5105, 0.0
    %5110 = vadd.xlane.f32.xlu0 %v5109
    %v5111 = vpop.xlane.xlu0 %5110
    %v5112 = vadd.f32 %v5108, %v5111
    %v5113 = vrot.slane %v5112, 4
    %v5114 = vadd.f32 %v5112, %v5113
    %v5115 = vrot.slane %v5114, 2
    %v5116 = vadd.f32 %v5114, %v5115
    %v5117 = vrot.slane %v5116, 1
    %v5118 = vadd.f32 %v5116, %v5117
    %v5119 = vadd.f32 %v5039, %v5118
    %v5120 = vmul.f32 %v5059, 0.001953125
    %v5121 = vadd.f32 %v5120, 1e-05
    %v5122 = vrsqrt.pop %v5121
    %s5123 = sld [smem:[#allocation10]]
    %v5124 = vstv %s5123
    %v5125 = vmul.f32 %v5124, %v5122
    %v5126 = vadd.f32 %v5125, 1.0
    %s5127 = sld [smem:[#allocation9]]
    %s5128 = sld [smem:[#allocation12]]
    %s5129 = sadd.f32 %s5127, %s5128
    %v5130 = vmul.f32 %v4956, %v5125
    %v5131 = vstv %s5129
    %v5132 = vsub.f32 %v5131, %v5130
    %v5133 = vmul.f32 %v4960, %v5126
    %v5134 = vmul.f32 %v4961, %v5126
    %v5135 = vadd.f32 %v5133, %v5132
    %v5136 = vadd.f32 %v5134, %v5132
    %v5137 = vmax.f32 %v5135, 0.0
    %v5138 = vmax.f32 %v5136, 0.0
    %5139 = vst.msk [vmem:[#allocation14] sm:$0xff] %vm2664, %v5137
    %5140 = vst.msk [vmem:[#allocation14 + $0x8] sm:$0xff] %vm2664, %v5138
    %v5141 = vld [vmem:[%s4888] sm:$0xff]
    %v5142 = vld [vmem:[%s4888 + $0x8] sm:$0xff]
    %v5143 = vmul.f32 %v5141, %v5126
    %v5144 = vmul.f32 %v5142, %v5126
    %v5145 = vadd.f32 %v5143, %v5132
    %v5146 = vadd.f32 %v5144, %v5132
    %v5147 = vmax.f32 %v5145, 0.0
    %v5148 = vmax.f32 %v5146, 0.0
    %s5149 = scalar_lea.vmem [#allocation14], 64
    %5150 = vst.msk [vmem:[%s5149] sm:$0xff] %vm2664, %v5147
    %5151 = vst.msk [vmem:[%s5149 + $0x8] sm:$0xff] %vm2664, %v5148
    %v5152 = vmul.f32 %v5079, 0.001953125
    %v5153 = vadd.f32 %v5152, 1e-05
    %v5154 = vrsqrt.pop %v5153
    %s5155 = sld [smem:[#allocation10 + $0x1]]
    %v5156 = vstv %s5155
    %v5157 = vmul.f32 %v5156, %v5154
    %v5158 = vadd.f32 %v5157, 1.0
    %s5159 = sld [smem:[#allocation9 + $0x1]]
    %s5160 = sld [smem:[#allocation12 + $0x1]]
    %s5161 = sadd.f32 %s5159, %s5160
    %v5162 = vmul.f32 %v4957, %v5157
    %v5163 = vstv %s5161
    %v5164 = vsub.f32 %v5163, %v5162
    %v5165 = vld [vmem:[%s2681] sm:$0xff]
    %v5166 = vld [vmem:[%s2681 + $0x8] sm:$0xff]
    %v5167 = vmul.f32 %v5165, %v5158
    %v5168 = vmul.f32 %v5166, %v5158
    %v5169 = vadd.f32 %v5167, %v5164
    %v5170 = vadd.f32 %v5168, %v5164
    %v5171 = vmax.f32 %v5169, 0.0
    %v5172 = vmax.f32 %v5170, 0.0
    %s5173 = scalar_lea.vmem [#allocation14], 16
    %5174 = vst.msk [vmem:[%s5173] sm:$0xff] %vm2664, %v5171
    %5175 = vst.msk [vmem:[%s5173 + $0x8] sm:$0xff] %vm2664, %v5172
    %v5176 = vld [vmem:[%s4905] sm:$0xff]
    %v5177 = vld [vmem:[%s4905 + $0x8] sm:$0xff]
    %v5178 = vmul.f32 %v5176, %v5158
    %v5179 = vmul.f32 %v5177, %v5158
    %v5180 = vadd.f32 %v5178, %v5164
    %v5181 = vadd.f32 %v5179, %v5164
    %v5182 = vmax.f32 %v5180, 0.0
    %v5183 = vmax.f32 %v5181, 0.0
    %s5184 = scalar_lea.vmem [#allocation14], 80
    %5185 = vst.msk [vmem:[%s5184] sm:$0xff] %vm2664, %v5182
    %5186 = vst.msk [vmem:[%s5184 + $0x8] sm:$0xff] %vm2664, %v5183
    %v5187 = vmul.f32 %v5099, 0.001953125
    %v5188 = vadd.f32 %v5187, 1e-05
    %v5189 = vrsqrt.pop %v5188
    %s5190 = sld [smem:[#allocation10 + $0x2]]
    %v5191 = vstv %s5190
    %v5192 = vmul.f32 %v5191, %v5189
    %v5193 = vadd.f32 %v5192, 1.0
    %s5194 = sld [smem:[#allocation9 + $0x2]]
    %s5195 = sld [smem:[#allocation12 + $0x2]]
    %s5196 = sadd.f32 %s5194, %s5195
    %v5197 = vmul.f32 %v4958, %v5192
    %v5198 = vstv %s5196
    %v5199 = vsub.f32 %v5198, %v5197
    %v5200 = vld [vmem:[%s2698] sm:$0xff]
    %v5201 = vld [vmem:[%s2698 + $0x8] sm:$0xff]
    %v5202 = vmul.f32 %v5200, %v5193
    %v5203 = vmul.f32 %v5201, %v5193
    %v5204 = vadd.f32 %v5202, %v5199
    %v5205 = vadd.f32 %v5203, %v5199
    %v5206 = vmax.f32 %v5204, 0.0
    %v5207 = vmax.f32 %v5205, 0.0
    %s5208 = scalar_lea.vmem [#allocation14], 32
    %5209 = vst.msk [vmem:[%s5208] sm:$0xff] %vm2664, %v5206
    %5210 = vst.msk [vmem:[%s5208 + $0x8] sm:$0xff] %vm2664, %v5207
    %v5211 = vld [vmem:[%s4922] sm:$0xff]
    %v5212 = vld [vmem:[%s4922 + $0x8] sm:$0xff]
    %v5213 = vmul.f32 %v5211, %v5193
    %v5214 = vmul.f32 %v5212, %v5193
    %v5215 = vadd.f32 %v5213, %v5199
    %v5216 = vadd.f32 %v5214, %v5199
    %v5217 = vmax.f32 %v5215, 0.0
    %v5218 = vmax.f32 %v5216, 0.0
    %s5219 = scalar_lea.vmem [#allocation14], 96
    %5220 = vst.msk [vmem:[%s5219] sm:$0xff] %vm2664, %v5217
    %5221 = vst.msk [vmem:[%s5219 + $0x8] sm:$0xff] %vm2664, %v5218
    %v5222 = vmul.f32 %v5119, 0.001953125
    %v5223 = vadd.f32 %v5222, 1e-05
    %v5224 = vrsqrt.pop %v5223
    %s5225 = sld [smem:[#allocation10 + $0x3]]
    %v5226 = vstv %s5225
    %v5227 = vmul.f32 %v5226, %v5224
    %v5228 = vadd.f32 %v5227, 1.0
    %s5229 = sld [smem:[#allocation9 + $0x3]]
    %s5230 = sld [smem:[#allocation12 + $0x3]]
    %s5231 = sadd.f32 %s5229, %s5230
    %v5232 = vmul.f32 %v4959, %v5227
    %v5233 = vstv %s5231
    %v5234 = vsub.f32 %v5233, %v5232
    %v5235 = vld [vmem:[%s2715] sm:$0xff]
    %v5236 = vld [vmem:[%s2715 + $0x8] sm:$0xff]
    %v5237 = vmul.f32 %v5235, %v5228
    %v5238 = vmul.f32 %v5236, %v5228
    %v5239 = vadd.f32 %v5237, %v5234
    %v5240 = vadd.f32 %v5238, %v5234
    %v5241 = vmax.f32 %v5239, 0.0
    %v5242 = vmax.f32 %v5240, 0.0
    %s5243 = scalar_lea.vmem [#allocation14], 48
    %5244 = vst.msk [vmem:[%s5243] sm:$0xff] %vm2664, %v5241
    %5245 = vst.msk [vmem:[%s5243 + $0x8] sm:$0xff] %vm2664, %v5242
    %v5246 = vld [vmem:[%s4939] sm:$0xff]
    %v5247 = vld [vmem:[%s4939 + $0x8] sm:$0xff]
    %v5248 = vmul.f32 %v5246, %v5228
    %v5249 = vmul.f32 %v5247, %v5228
    %v5250 = vadd.f32 %v5248, %v5234
    %v5251 = vadd.f32 %v5249, %v5234
    %v5252 = vmax.f32 %v5250, 0.0
    %v5253 = vmax.f32 %v5251, 0.0
    %s5254 = scalar_lea.vmem [#allocation14], 112
    %5255 = vst.msk [vmem:[%s5254] sm:$0xff] %vm2664, %v5252
    %5256 = vst.msk [vmem:[%s5254 + $0x8] sm:$0xff] %vm2664, %v5253
    // Predicated region
    $region42: #{tpu_custom_call.1} parent=1 // pred_check
      _
    $region43: #{tpu_custom_call.1} parent=1 // pred_check_branch
      %5258 = sbr.rel (0) target = $region45
    $region44: #{tpu_custom_call.1} parent=1 // pred_region
      %s5260 = ssub.s32 2048, 2048
      %5261 = vsyncadd [#allocation6], %s5260
      %s5262 = sshll.u32 [#allocation14], 4
      %s5263 = int_to_ptr.vmem [resolvable:$true] %s5262
      %5268 = dma.vmem_to_hbm [thread:$0]  %s5263, 2048, %s5, [#allocation6], 128, 128, 8
    $region45: #{tpu_custom_call.1} parent=1 // pred_fallthru
      _
    // Predicated region
    $region46: #{tpu_custom_call.1} parent=1 // pred_check
      _
    $region47: #{tpu_custom_call.1} parent=1 // pred_check_branch
      %5270 = sbr.rel (0) target = $region49
    $region48: #{tpu_custom_call.1} parent=1 // pred_region
      %5271 = dma.done [#allocation6], 2048
    $region49: #{tpu_custom_call.1} parent=1 // pred_fallthru
      _
    %5272 = vsyncpa [#allocation5], 1
    %5273 = vsyncpa [#allocation6], 1
    %5274 = vsyncpa [#allocation7], 1
    %5275 = vsyncpa [#allocation8], 1
    %5276 = vsyncpa [#allocation11], 1

</llo_original>
